<compile_context>
chip_gen: v7x
topology: tpu7x:2x2x1
jax: 0.10.0
libtpu: 0.0.40
codegen_flags: <defaults>
</compile_context>

<pallas_src>
import functools
import math

import jax
import jax.numpy as jnp
from jax import lax
from jax.experimental import pallas as pl
from jax.experimental.pallas import tpu as pltpu


# ----------------------------------------------------------------------------
# Kernels
# ----------------------------------------------------------------------------
def _conv_leaky_kernel(p_ref, w_ref, o_ref, *, slope):
    # p_ref: [tm, G*K] bf16 grouped patches, w_ref: [G*K, G*C0] block-diag bf16
    y = jnp.dot(p_ref[...], w_ref[...], preferred_element_type=jnp.float32)
    o_ref[...] = jnp.where(y >= 0, y, slope * y).astype(o_ref.dtype)


def _conv_bn_leaky_kernel(p_ref, w_ref, g_ref, b_ref, o_ref, *, eps, slope):
    # matmul -> training-mode BatchNorm (stats over all M rows) -> LeakyReLU
    y = jnp.dot(p_ref[...], w_ref[...], preferred_element_type=jnp.float32)
    mean = jnp.mean(y, axis=0, keepdims=True)
    var = jnp.mean(jnp.square(y - mean), axis=0, keepdims=True)
    y = (y - mean) * lax.rsqrt(var + eps)
    y = y * g_ref[...] + b_ref[...]
    o_ref[...] = jnp.where(y >= 0, y, slope * y).astype(o_ref.dtype)


def _conv_bn_leaky_head_kernel(p_ref, w_ref, g_ref, b_ref, w3_ref, seg_ref,
                               o_ref, *, eps, slope):
    # Layer 2: matmul + BN + LeakyReLU, then layer 3 (4^3 valid conv, Cout=1)
    # + Sigmoid fused as an epilogue.
    y = jnp.dot(p_ref[...], w_ref[...], preferred_element_type=jnp.float32)
    mean = jnp.mean(y, axis=0, keepdims=True)
    var = jnp.mean(jnp.square(y - mean), axis=0, keepdims=True)
    y = (y - mean) * lax.rsqrt(var + eps)
    y = y * g_ref[...] + b_ref[...]
    y = jnp.where(y >= 0, y, slope * y)                       # [M2, C2] f32
    # conv3: per-row dot with the spatially-tiled conv3 weight, then a
    # per-sample reduction through the 0/1 segment matrix.
    r = jnp.sum(y * w3_ref[...], axis=1, keepdims=True)       # [M2, 1]
    z = jnp.sum(r * seg_ref[...], axis=0, keepdims=True)      # [1, N]
    o_ref[...] = (1.0 / (1.0 + jnp.exp(-z))).astype(o_ref.dtype)


# ----------------------------------------------------------------------------
# pallas_call wrappers
# ----------------------------------------------------------------------------
def _pick_row_tile(m):
    # Largest tile that divides M while keeping >= 2 grid steps (megacore).
    for t in (512, 256, 128, 64):
        if m % t == 0 and m // t >= 2:
            return t
    return m


def conv_leaky(pg, wg, *, slope=0.2):
    Mg, Kg = pg.shape
    Cg = wg.shape[1]
    tm = _pick_row_tile(Mg)
    flops = 2 * Mg * Kg * Cg
    bytes_accessed = (Mg * Kg + Kg * Cg + Mg * Cg) * 2
    return pl.pallas_call(
        functools.partial(_conv_leaky_kernel, slope=slope),
        out_shape=jax.ShapeDtypeStruct((Mg, Cg), jnp.bfloat16),
        grid=(Mg // tm,),
        in_specs=[pl.BlockSpec((tm, Kg), lambda i: (i, 0)),
                  pl.BlockSpec((Kg, Cg), lambda i: (0, 0))],
        out_specs=pl.BlockSpec((tm, Cg), lambda i: (i, 0)),
        compiler_params=pltpu.CompilerParams(
            dimension_semantics=("parallel",),
            vmem_limit_bytes=48 * 1024 * 1024),
        cost_estimate=pl.CostEstimate(flops=flops, transcendentals=0,
                                      bytes_accessed=bytes_accessed),
    )(pg, wg)


def conv_bn_leaky(p, w, gamma, beta, *, eps=1e-5, slope=0.2):
    M, K = p.shape
    C = w.shape[1]
    flops = 2 * M * K * C
    bytes_accessed = (M * K + K * C) * 2 + M * C * 2 + 2 * C * 4
    return pl.pallas_call(
        functools.partial(_conv_bn_leaky_kernel, eps=eps, slope=slope),
        out_shape=jax.ShapeDtypeStruct((M, C), jnp.bfloat16),
        grid=(1,),
        in_specs=[pl.BlockSpec((M, K), lambda i: (0, 0)),
                  pl.BlockSpec((K, C), lambda i: (0, 0)),
                  pl.BlockSpec((1, C), lambda i: (0, 0)),
                  pl.BlockSpec((1, C), lambda i: (0, 0))],
        out_specs=pl.BlockSpec((M, C), lambda i: (0, 0)),
        compiler_params=pltpu.CompilerParams(
            dimension_semantics=("arbitrary",),
            vmem_limit_bytes=48 * 1024 * 1024),
        cost_estimate=pl.CostEstimate(flops=flops, transcendentals=0,
                                      bytes_accessed=bytes_accessed),
    )(p, w, gamma, beta)


def conv_bn_leaky_head(p, w, gamma, beta, w3t, seg, *, eps=1e-5, slope=0.2):
    M, K = p.shape
    C = w.shape[1]
    Nb = seg.shape[1]
    flops = 2 * M * K * C + 4 * M * C
    bytes_accessed = (M * K + K * C) * 2 + (M * C + M * Nb + 2 * C + Nb) * 4
    return pl.pallas_call(
        functools.partial(_conv_bn_leaky_head_kernel, eps=eps, slope=slope),
        out_shape=jax.ShapeDtypeStruct((1, Nb), jnp.float32),
        grid=(1,),
        in_specs=[pl.BlockSpec((M, K), lambda i: (0, 0)),
                  pl.BlockSpec((K, C), lambda i: (0, 0)),
                  pl.BlockSpec((1, C), lambda i: (0, 0)),
                  pl.BlockSpec((1, C), lambda i: (0, 0)),
                  pl.BlockSpec((M, C), lambda i: (0, 0)),
                  pl.BlockSpec((M, Nb), lambda i: (0, 0))],
        out_specs=pl.BlockSpec((1, Nb), lambda i: (0, 0)),
        compiler_params=pltpu.CompilerParams(
            dimension_semantics=("arbitrary",),
            vmem_limit_bytes=48 * 1024 * 1024),
        cost_estimate=pl.CostEstimate(flops=flops, transcendentals=Nb,
                                      bytes_accessed=bytes_accessed),
    )(p, w, gamma, beta, w3t, seg)


# ----------------------------------------------------------------------------
# Glue: channel-last im2col (plain JAX, static slicing only) + weight reshape
# ----------------------------------------------------------------------------
def im2col_3d_ndhwc(x, k, stride, pad):
    # x: [N, D, H, W, C] -> ([N*Do*Ho*Wo, k^3*C], (N, Do, Ho, Wo))
    # K ordering is (kd, kh, kw, c) -- matches _w_to_mat below.
    N, D, H, W, C = x.shape
    if pad:
        x = jnp.pad(x, ((0, 0), (pad, pad), (pad, pad), (pad, pad), (0, 0)))
    Do = (D + 2 * pad - k) // stride + 1
    Ho = (H + 2 * pad - k) // stride + 1
    Wo = (W + 2 * pad - k) // stride + 1
    cols = []
    for kd in range(k):
        for kh in range(k):
            for kw in range(k):
                cols.append(x[:,
                              kd:kd + (Do - 1) * stride + 1:stride,
                              kh:kh + (Ho - 1) * stride + 1:stride,
                              kw:kw + (Wo - 1) * stride + 1:stride, :])
    p = jnp.stack(cols, axis=4)                   # [N, Do, Ho, Wo, k^3, C]
    return p.reshape(N * Do * Ho * Wo, k * k * k * C), (N, Do, Ho, Wo)


def _w_to_mat(w):
    # torch Conv3d weight [Cout, Cin, kD, kH, kW] -> [kD*kH*kW*Cin, Cout]
    cout = w.shape[0]
    return jnp.transpose(w, (2, 3, 4, 1, 0)).reshape(-1, cout)


# ----------------------------------------------------------------------------
# Parameters + forward
# ----------------------------------------------------------------------------
def init_params(key, init_out_channels=4):
    c0 = init_out_channels
    c1 = c0 * 2
    c2 = c1 * 2
    ks = jax.random.split(key, 4)
    return {
        "conv0_w": 0.02 * jax.random.normal(ks[0], (c0, 1, 4, 4, 4), jnp.float32),
        "conv1_w": 0.02 * jax.random.normal(ks[1], (c1, c0, 4, 4, 4), jnp.float32),
        "conv1_gamma": jnp.ones((1, c1), jnp.float32),
        "conv1_beta": jnp.zeros((1, c1), jnp.float32),
        "conv2_w": 0.02 * jax.random.normal(ks[2], (c2, c1, 4, 4, 4), jnp.float32),
        "conv2_gamma": jnp.ones((1, c2), jnp.float32),
        "conv2_beta": jnp.zeros((1, c2), jnp.float32),
        "conv3_w": 0.02 * jax.random.normal(ks[3], (1, c2, 4, 4, 4), jnp.float32),
    }


@jax.jit
def discriminator_forward(x, params):
    # x: [N, 1, 32, 32, 32] NCDHW (PyTorch layout). Convert once to NDHWC bf16.
    N = x.shape[0]
    h = jnp.transpose(x, (0, 2, 3, 4, 1)).astype(jnp.bfloat16)

    # ---- layer 0: Conv(1 -> c0) + LeakyReLU, lane-dense grouped matmul ----
    w0 = params["conv0_w"]
    c0 = w0.shape[0]
    p0, (_, D0, H0, W0) = im2col_3d_ndhwc(h, 4, 2, 1)       # [M0, 64]
    w0m = _w_to_mat(w0).astype(jnp.bfloat16)                # [64, c0]
    K0 = w0m.shape[0]
    M0 = p0.shape[0]
    G0 = math.gcd(max(1, 128 // c0), M0)                    # group -> ~128 lanes
    p0g = p0.reshape(M0 // G0, G0 * K0)                     # free reshape
    w0g = jnp.kron(jnp.eye(G0, dtype=w0m.dtype), w0m)       # block-diag weight
    y0g = conv_leaky(p0g, w0g)                              # [M0/G0, G0*c0] bf16
    h = y0g.reshape(N, D0, H0, W0, c0)                      # NDHWC, free reshape

    # ---- layer 1: Conv(c0 -> c1) + BN + LeakyReLU (full-batch stats) ----
    w1 = params["conv1_w"]
    c1 = w1.shape[0]
    p1, (_, D1, H1, W1) = im2col_3d_ndhwc(h, 4, 2, 1)       # [M1, c0*64]
    y1 = conv_bn_leaky(p1, _w_to_mat(w1).astype(jnp.bfloat16),
                       params["conv1_gamma"], params["conv1_beta"])
    h = y1.reshape(N, D1, H1, W1, c1)

    # ---- layers 2 + 3 fused: Conv(c1 -> c2) + BN + LeakyReLU + Conv(c2 -> 1)
    #      (4^3 valid) + Sigmoid ----
    w2 = params["conv2_w"]
    c2 = w2.shape[0]
    p2, (_, D2, H2, W2) = im2col_3d_ndhwc(h, 4, 2, 1)       # [M2, c1*64]
    S = D2 * H2 * W2                                        # spatial positions (=64)
    M2 = p2.shape[0]
    w3m = _w_to_mat(params["conv3_w"]).astype(jnp.float32)  # [S*c2, 1], (kd,kh,kw,c)
    w3t = jnp.tile(w3m.reshape(S, c2), (N, 1))              # [M2, c2]
    seg = (jnp.arange(M2)[:, None] // S ==
           jnp.arange(N)[None, :]).astype(jnp.float32)      # [M2, N] 0/1 per sample
    z = conv_bn_leaky_head(p2, _w_to_mat(w2).astype(jnp.bfloat16),
                           params["conv2_gamma"], params["conv2_beta"],
                           w3t, seg)                        # [1, N] f32
    # matches .view(-1, 1).squeeze(1)
    return z.reshape(-1)


if __name__ == "__main__":
    key = jax.random.PRNGKey(0)
    pkey, xkey = jax.random.split(key)

    params = init_params(pkey, init_out_channels=4)
    # Input must be 32^3 so the final 4x4x4 valid conv reduces to 1x1x1.
    x = jax.random.normal(xkey, (2, 1, 32, 32, 32), jnp.float32)

    out = discriminator_forward(x, params)
    out = jax.block_until_ready(out)

    assert out.shape == (2,), out.shape
    assert bool(jnp.all(jnp.isfinite(out)))
    assert bool(jnp.all((out > 0.0) & (out < 1.0)))  # sigmoid range
    print("KERNEL_OK")
</pallas_src>

<mosaic_0001>
module attributes {stable_mosaic.version = 11 : i64} {
  func.func @_conv_leaky_kernel(%arg0: i32, %arg1: memref<128x2048xbf16, #tpu.memory_space<vmem>>, %arg2: memref<2048x128xbf16, #tpu.memory_space<vmem>>, %arg3: memref<128x128xbf16, #tpu.memory_space<vmem>>) attributes {dimension_semantics = [#tpu.dimension_semantics<parallel>], iteration_bounds = array<i64: 2>, scalar_prefetch = 0 : i64, scratch_operands = 0 : i64, tpu.core_type = #tpu.core_type<tc>, window_params = [{transform_indices = @transform_0, window_bounds = array<i64: 128, 2048>}, {pipeline_mode = #tpu.pipeline_mode<synchronous>, transform_indices = @transform_1, window_bounds = array<i64: 2048, 128>}, {transform_indices = @transform_2, window_bounds = array<i64: 128, 128>}]} {
    %c0 = arith.constant 0 : index
    %c0_0 = arith.constant 0 : index
    %0 = vector.load %arg1[%c0, %c0_0] : memref<128x2048xbf16, #tpu.memory_space<vmem>>, vector<128x2048xbf16>
    %c0_1 = arith.constant 0 : index
    %c0_2 = arith.constant 0 : index
    %1 = vector.load %arg2[%c0_1, %c0_2] : memref<2048x128xbf16, #tpu.memory_space<vmem>>, vector<2048x128xbf16>
    %cst = arith.constant dense<0.000000e+00> : vector<128x128xf32>
    %2 = tpu.matmul %0, %1, %cst {dimension_numbers = #tpu.dot_dimension_numbers<[1], [0], [0], [1], [0, 0, 1, 1], [], []>} : vector<128x2048xbf16>, vector<2048x128xbf16>, vector<128x128xf32> -> vector<128x128xf32>
    %cst_3 = arith.constant 0.000000e+00 : f32
    %3 = vector.broadcast %cst_3 : f32 to vector<128x128xf32>
    %4 = arith.cmpf oge, %2, %3 : vector<128x128xf32>
    %cst_4 = arith.constant 2.000000e-01 : f32
    %5 = vector.broadcast %cst_4 : f32 to vector<128x128xf32>
    %6 = arith.mulf %5, %2 : vector<128x128xf32>
    %7 = arith.select %4, %2, %6 : vector<128x128xi1>, vector<128x128xf32>
    %8 = arith.truncf %7 : vector<128x128xf32> to vector<128x128xbf16>
    %c0_5 = arith.constant 0 : index
    %c0_6 = arith.constant 0 : index
    %9 = vector.load %arg3[%c0_5, %c0_6] : memref<128x128xbf16, #tpu.memory_space<vmem>>, vector<128x128xbf16>
    tpu.vector_store %arg3[%c0_5, %c0_6], %8 {strides = array<i32>} : memref<128x128xbf16, #tpu.memory_space<vmem>>, vector<128x128xbf16>,
    return
  }
  func.func @transform_0(%arg0: i32) -> (i32, i32) {
    %c0_i32 = arith.constant 0 : i32
    %c0_i32_0 = arith.constant 0 : i32
    return %arg0, %c0_i32 : i32, i32
  }
  func.func @transform_1(%arg0: i32) -> (i32, i32) {
    %c0_i32 = arith.constant 0 : i32
    %c0_i32_0 = arith.constant 0 : i32
    %c0_i32_1 = arith.constant 0 : i32
    return %c0_i32, %c0_i32_0 : i32, i32
  }
  func.func @transform_2(%arg0: i32) -> (i32, i32) {
    %c0_i32 = arith.constant 0 : i32
    %c0_i32_0 = arith.constant 0 : i32
    return %arg0, %c0_i32 : i32, i32
  }
}

module attributes {stable_mosaic.version = 11 : i64} {
  func.func @_conv_bn_leaky_kernel(%arg0: i32, %arg1: memref<1024x256xbf16, #tpu.memory_space<vmem>>, %arg2: memref<256x8xbf16, #tpu.memory_space<vmem>>, %arg3: memref<1x8xf32, #tpu.memory_space<vmem>>, %arg4: memref<1x8xf32, #tpu.memory_space<vmem>>, %arg5: memref<1024x8xbf16, #tpu.memory_space<vmem>>) attributes {dimension_semantics = [#tpu.dimension_semantics<arbitrary>], iteration_bounds = array<i64: 1>, scalar_prefetch = 0 : i64, scratch_operands = 0 : i64, tpu.core_type = #tpu.core_type<tc>, window_params = [{pipeline_mode = #tpu.pipeline_mode<synchronous>, transform_indices = @transform_0, window_bounds = array<i64: 1024, 256>}, {pipeline_mode = #tpu.pipeline_mode<synchronous>, transform_indices = @transform_1, window_bounds = array<i64: 256, 8>}, {pipeline_mode = #tpu.pipeline_mode<synchronous>, transform_indices = @transform_2, window_bounds = array<i64: 1, 8>}, {pipeline_mode = #tpu.pipeline_mode<synchronous>, transform_indices = @transform_3, window_bounds = array<i64: 1, 8>}, {pipeline_mode = #tpu.pipeline_mode<synchronous>, transform_indices = @transform_4, window_bounds = array<i64: 1024, 8>}]} {
    %c0 = arith.constant 0 : index
    %c0_0 = arith.constant 0 : index
    %0 = vector.load %arg1[%c0, %c0_0] : memref<1024x256xbf16, #tpu.memory_space<vmem>>, vector<1024x256xbf16>
    %c0_1 = arith.constant 0 : index
    %c0_2 = arith.constant 0 : index
    %1 = vector.load %arg2[%c0_1, %c0_2] : memref<256x8xbf16, #tpu.memory_space<vmem>>, vector<256x8xbf16>
    %cst = arith.constant dense<0.000000e+00> : vector<1024x8xf32>
    %2 = tpu.matmul %0, %1, %cst {dimension_numbers = #tpu.dot_dimension_numbers<[1], [0], [0], [1], [0, 0, 1, 1], [], []>} : vector<1024x256xbf16>, vector<256x8xbf16>, vector<1024x8xf32> -> vector<1024x8xf32>
    %cst_3 = arith.constant dense<0.000000e+00> : vector<8xf32>
    %3 = vector.multi_reduction <add>, %2, %cst_3 [0] : vector<1024x8xf32> to vector<8xf32>
    %4 = vector.shape_cast %3 : vector<8xf32> to vector<1x8xf32>
    %cst_4 = arith.constant 1.024000e+03 : f32
    %5 = vector.broadcast %cst_4 : f32 to vector<1x8xf32>
    %6 = arith.divf %4, %5 : vector<1x8xf32>
    %7 = vector.broadcast %6 : vector<1x8xf32> to vector<1024x8xf32>
    %8 = arith.subf %2, %7 : vector<1024x8xf32>
    %9 = arith.mulf %8, %8 : vector<1024x8xf32>
    %cst_5 = arith.constant dense<0.000000e+00> : vector<8xf32>
    %10 = vector.multi_reduction <add>, %9, %cst_5 [0] : vector<1024x8xf32> to vector<8xf32>
    %11 = vector.shape_cast %10 : vector<8xf32> to vector<1x8xf32>
    %cst_6 = arith.constant 1.024000e+03 : f32
    %12 = vector.broadcast %cst_6 : f32 to vector<1x8xf32>
    %13 = arith.divf %11, %12 : vector<1x8xf32>
    %14 = vector.broadcast %6 : vector<1x8xf32> to vector<1024x8xf32>
    %15 = arith.subf %2, %14 : vector<1024x8xf32>
    %cst_7 = arith.constant 9.99999974E-6 : f32
    %16 = vector.broadcast %cst_7 : f32 to vector<1x8xf32>
    %17 = arith.addf %13, %16 : vector<1x8xf32>
    %18 = math.rsqrt %17 : vector<1x8xf32>
    %19 = vector.broadcast %18 : vector<1x8xf32> to vector<1024x8xf32>
    %20 = arith.mulf %15, %19 : vector<1024x8xf32>
    %c0_8 = arith.constant 0 : index
    %c0_9 = arith.constant 0 : index
    %21 = vector.load %arg3[%c0_8, %c0_9] : memref<1x8xf32, #tpu.memory_space<vmem>>, vector<1x8xf32>
    %22 = vector.broadcast %21 : vector<1x8xf32> to vector<1024x8xf32>
    %23 = arith.mulf %20, %22 : vector<1024x8xf32>
    %c0_10 = arith.constant 0 : index
    %c0_11 = arith.constant 0 : index
    %24 = vector.load %arg4[%c0_10, %c0_11] : memref<1x8xf32, #tpu.memory_space<vmem>>, vector<1x8xf32>
    %25 = vector.broadcast %24 : vector<1x8xf32> to vector<1024x8xf32>
    %26 = arith.addf %23, %25 : vector<1024x8xf32>
    %cst_12 = arith.constant 0.000000e+00 : f32
    %27 = vector.broadcast %cst_12 : f32 to vector<1024x8xf32>
    %28 = arith.cmpf oge, %26, %27 : vector<1024x8xf32>
    %cst_13 = arith.constant 2.000000e-01 : f32
    %29 = vector.broadcast %cst_13 : f32 to vector<1024x8xf32>
    %30 = arith.mulf %29, %26 : vector<1024x8xf32>
    %31 = arith.select %28, %26, %30 : vector<1024x8xi1>, vector<1024x8xf32>
    %32 = arith.truncf %31 : vector<1024x8xf32> to vector<1024x8xbf16>
    %c0_14 = arith.constant 0 : index
    %c0_15 = arith.constant 0 : index
    %33 = vector.load %arg5[%c0_14, %c0_15] : memref<1024x8xbf16, #tpu.memory_space<vmem>>, vector<1024x8xbf16>
    tpu.vector_store %arg5[%c0_14, %c0_15], %32 {strides = array<i32>} : memref<1024x8xbf16, #tpu.memory_space<vmem>>, vector<1024x8xbf16>,
    return
  }
  func.func @transform_0(%arg0: i32) -> (i32, i32) {
    %c0_i32 = arith.constant 0 : i32
    %c0_i32_0 = arith.constant 0 : i32
    %c0_i32_1 = arith.constant 0 : i32
    return %c0_i32, %c0_i32_0 : i32, i32
  }
  func.func @transform_1(%arg0: i32) -> (i32, i32) {
    %c0_i32 = arith.constant 0 : i32
    %c0_i32_0 = arith.constant 0 : i32
    %c0_i32_1 = arith.constant 0 : i32
    return %c0_i32, %c0_i32_0 : i32, i32
  }
  func.func @transform_2(%arg0: i32) -> (i32, i32) {
    %c0_i32 = arith.constant 0 : i32
    %c0_i32_0 = arith.constant 0 : i32
    %c0_i32_1 = arith.constant 0 : i32
    return %c0_i32, %c0_i32_0 : i32, i32
  }
  func.func @transform_3(%arg0: i32) -> (i32, i32) {
    %c0_i32 = arith.constant 0 : i32
    %c0_i32_0 = arith.constant 0 : i32
    %c0_i32_1 = arith.constant 0 : i32
    return %c0_i32, %c0_i32_0 : i32, i32
  }
  func.func @transform_4(%arg0: i32) -> (i32, i32) {
    %c0_i32 = arith.constant 0 : i32
    %c0_i32_0 = arith.constant 0 : i32
    %c0_i32_1 = arith.constant 0 : i32
    return %c0_i32, %c0_i32_0 : i32, i32
  }
}

module attributes {stable_mosaic.version = 11 : i64} {
  func.func @_conv_bn_leaky_head_kernel(%arg0: i32, %arg1: memref<128x512xbf16, #tpu.memory_space<vmem>>, %arg2: memref<512x16xbf16, #tpu.memory_space<vmem>>, %arg3: memref<1x16xf32, #tpu.memory_space<vmem>>, %arg4: memref<1x16xf32, #tpu.memory_space<vmem>>, %arg5: memref<128x16xf32, #tpu.memory_space<vmem>>, %arg6: memref<128x2xf32, #tpu.memory_space<vmem>>, %arg7: memref<1x2xf32, #tpu.memory_space<vmem>>) attributes {dimension_semantics = [#tpu.dimension_semantics<arbitrary>], iteration_bounds = array<i64: 1>, scalar_prefetch = 0 : i64, scratch_operands = 0 : i64, tpu.core_type = #tpu.core_type<tc>, window_params = [{pipeline_mode = #tpu.pipeline_mode<synchronous>, transform_indices = @transform_0, window_bounds = array<i64: 128, 512>}, {pipeline_mode = #tpu.pipeline_mode<synchronous>, transform_indices = @transform_1, window_bounds = array<i64: 512, 16>}, {pipeline_mode = #tpu.pipeline_mode<synchronous>, transform_indices = @transform_2, window_bounds = array<i64: 1, 16>}, {pipeline_mode = #tpu.pipeline_mode<synchronous>, transform_indices = @transform_3, window_bounds = array<i64: 1, 16>}, {pipeline_mode = #tpu.pipeline_mode<synchronous>, transform_indices = @transform_4, window_bounds = array<i64: 128, 16>}, {pipeline_mode = #tpu.pipeline_mode<synchronous>, transform_indices = @transform_5, window_bounds = array<i64: 128, 2>}, {pipeline_mode = #tpu.pipeline_mode<synchronous>, transform_indices = @transform_6, window_bounds = array<i64: 1, 2>}]} {
    %c0 = arith.constant 0 : index
    %c0_0 = arith.constant 0 : index
    %0 = vector.load %arg1[%c0, %c0_0] : memref<128x512xbf16, #tpu.memory_space<vmem>>, vector<128x512xbf16>
    %c0_1 = arith.constant 0 : index
    %c0_2 = arith.constant 0 : index
    %1 = vector.load %arg2[%c0_1, %c0_2] : memref<512x16xbf16, #tpu.memory_space<vmem>>, vector<512x16xbf16>
    %cst = arith.constant dense<0.000000e+00> : vector<128x16xf32>
    %2 = tpu.matmul %0, %1, %cst {dimension_numbers = #tpu.dot_dimension_numbers<[1], [0], [0], [1], [0, 0, 1, 1], [], []>} : vector<128x512xbf16>, vector<512x16xbf16>, vector<128x16xf32> -> vector<128x16xf32>
    %cst_3 = arith.constant dense<0.000000e+00> : vector<16xf32>
    %3 = vector.multi_reduction <add>, %2, %cst_3 [0] : vector<128x16xf32> to vector<16xf32>
    %4 = vector.shape_cast %3 : vector<16xf32> to vector<1x16xf32>
    %cst_4 = arith.constant 1.280000e+02 : f32
    %5 = vector.broadcast %cst_4 : f32 to vector<1x16xf32>
    %6 = arith.divf %4, %5 : vector<1x16xf32>
    %7 = vector.broadcast %6 : vector<1x16xf32> to vector<128x16xf32>
    %8 = arith.subf %2, %7 : vector<128x16xf32>
    %9 = arith.mulf %8, %8 : vector<128x16xf32>
    %cst_5 = arith.constant dense<0.000000e+00> : vector<16xf32>
    %10 = vector.multi_reduction <add>, %9, %cst_5 [0] : vector<128x16xf32> to vector<16xf32>
    %11 = vector.shape_cast %10 : vector<16xf32> to vector<1x16xf32>
    %cst_6 = arith.constant 1.280000e+02 : f32
    %12 = vector.broadcast %cst_6 : f32 to vector<1x16xf32>
    %13 = arith.divf %11, %12 : vector<1x16xf32>
    %14 = vector.broadcast %6 : vector<1x16xf32> to vector<128x16xf32>
    %15 = arith.subf %2, %14 : vector<128x16xf32>
    %cst_7 = arith.constant 9.99999974E-6 : f32
    %16 = vector.broadcast %cst_7 : f32 to vector<1x16xf32>
    %17 = arith.addf %13, %16 : vector<1x16xf32>
    %18 = math.rsqrt %17 : vector<1x16xf32>
    %19 = vector.broadcast %18 : vector<1x16xf32> to vector<128x16xf32>
    %20 = arith.mulf %15, %19 : vector<128x16xf32>
    %c0_8 = arith.constant 0 : index
    %c0_9 = arith.constant 0 : index
    %21 = vector.load %arg3[%c0_8, %c0_9] : memref<1x16xf32, #tpu.memory_space<vmem>>, vector<1x16xf32>
    %22 = vector.broadcast %21 : vector<1x16xf32> to vector<128x16xf32>
    %23 = arith.mulf %20, %22 : vector<128x16xf32>
    %c0_10 = arith.constant 0 : index
    %c0_11 = arith.constant 0 : index
    %24 = vector.load %arg4[%c0_10, %c0_11] : memref<1x16xf32, #tpu.memory_space<vmem>>, vector<1x16xf32>
    %25 = vector.broadcast %24 : vector<1x16xf32> to vector<128x16xf32>
    %26 = arith.addf %23, %25 : vector<128x16xf32>
    %cst_12 = arith.constant 0.000000e+00 : f32
    %27 = vector.broadcast %cst_12 : f32 to vector<128x16xf32>
    %28 = arith.cmpf oge, %26, %27 : vector<128x16xf32>
    %cst_13 = arith.constant 2.000000e-01 : f32
    %29 = vector.broadcast %cst_13 : f32 to vector<128x16xf32>
    %30 = arith.mulf %29, %26 : vector<128x16xf32>
    %31 = arith.select %28, %26, %30 : vector<128x16xi1>, vector<128x16xf32>
    %c0_14 = arith.constant 0 : index
    %c0_15 = arith.constant 0 : index
    %32 = vector.load %arg5[%c0_14, %c0_15] : memref<128x16xf32, #tpu.memory_space<vmem>>, vector<128x16xf32>
    %33 = arith.mulf %31, %32 : vector<128x16xf32>
    %cst_16 = arith.constant dense<0.000000e+00> : vector<128xf32>
    %34 = vector.multi_reduction <add>, %33, %cst_16 [1] : vector<128x16xf32> to vector<128xf32>
    %35 = vector.shape_cast %34 : vector<128xf32> to vector<128x1xf32>
    %c0_17 = arith.constant 0 : index
    %c0_18 = arith.constant 0 : index
    %36 = vector.load %arg6[%c0_17, %c0_18] : memref<128x2xf32, #tpu.memory_space<vmem>>, vector<128x2xf32>
    %37 = vector.broadcast %35 : vector<128x1xf32> to vector<128x2xf32>
    %38 = arith.mulf %37, %36 : vector<128x2xf32>
    %cst_19 = arith.constant dense<0.000000e+00> : vector<2xf32>
    %39 = vector.multi_reduction <add>, %38, %cst_19 [0] : vector<128x2xf32> to vector<2xf32>
    %40 = vector.shape_cast %39 : vector<2xf32> to vector<1x2xf32>
    %cst_20 = arith.constant 0.000000e+00 : f32
    %41 = vector.broadcast %cst_20 : f32 to vector<1x2xf32>
    %42 = arith.subf %41, %40 : vector<1x2xf32>
    %43 = math.exp %42 : vector<1x2xf32>
    %cst_21 = arith.constant 1.000000e+00 : f32
    %44 = vector.broadcast %cst_21 : f32 to vector<1x2xf32>
    %45 = arith.addf %44, %43 : vector<1x2xf32>
    %cst_22 = arith.constant 1.000000e+00 : f32
    %46 = vector.broadcast %cst_22 : f32 to vector<1x2xf32>
    %47 = arith.divf %46, %45 : vector<1x2xf32>
    %c0_23 = arith.constant 0 : index
    %c0_24 = arith.constant 0 : index
    %48 = vector.load %arg7[%c0_23, %c0_24] : memref<1x2xf32, #tpu.memory_space<vmem>>, vector<1x2xf32>
    tpu.vector_store %arg7[%c0_23, %c0_24], %47 {strides = array<i32>} : memref<1x2xf32, #tpu.memory_space<vmem>>, vector<1x2xf32>,
    return
  }
  func.func @transform_0(%arg0: i32) -> (i32, i32) {
    %c0_i32 = arith.constant 0 : i32
    %c0_i32_0 = arith.constant 0 : i32
    %c0_i32_1 = arith.constant 0 : i32
    return %c0_i32, %c0_i32_0 : i32, i32
  }
  func.func @transform_1(%arg0: i32) -> (i32, i32) {
    %c0_i32 = arith.constant 0 : i32
    %c0_i32_0 = arith.constant 0 : i32
    %c0_i32_1 = arith.constant 0 : i32
    return %c0_i32, %c0_i32_0 : i32, i32
  }
  func.func @transform_2(%arg0: i32) -> (i32, i32) {
    %c0_i32 = arith.constant 0 : i32
    %c0_i32_0 = arith.constant 0 : i32
    %c0_i32_1 = arith.constant 0 : i32
    return %c0_i32, %c0_i32_0 : i32, i32
  }
  func.func @transform_3(%arg0: i32) -> (i32, i32) {
    %c0_i32 = arith.constant 0 : i32
    %c0_i32_0 = arith.constant 0 : i32
    %c0_i32_1 = arith.constant 0 : i32
    return %c0_i32, %c0_i32_0 : i32, i32
  }
  func.func @transform_4(%arg0: i32) -> (i32, i32) {
    %c0_i32 = arith.constant 0 : i32
    %c0_i32_0 = arith.constant 0 : i32
    %c0_i32_1 = arith.constant 0 : i32
    return %c0_i32, %c0_i32_0 : i32, i32
  }
  func.func @transform_5(%arg0: i32) -> (i32, i32) {
    %c0_i32 = arith.constant 0 : i32
    %c0_i32_0 = arith.constant 0 : i32
    %c0_i32_1 = arith.constant 0 : i32
    return %c0_i32, %c0_i32_0 : i32, i32
  }
  func.func @transform_6(%arg0: i32) -> (i32, i32) {
    %c0_i32 = arith.constant 0 : i32
    %c0_i32_0 = arith.constant 0 : i32
    %c0_i32_1 = arith.constant 0 : i32
    return %c0_i32, %c0_i32_0 : i32, i32
  }
}

</mosaic_0001>

<llo_original>
// kernel: discriminator_forward.3
$region0: #{discriminator_forward.3}
  #allocation0 [shape = 'u32[]', space=smem, size = 0x4, offset = 0x4, fixed_abs, tag = 'smem constant byte address 0x4 - core index']
  #allocation1 [shape = 'u32[144,128]{1,0:T(1,128)}', space=vmem, size = 0x12000, scoped, tag = 'internal scratch']
  %s0 = inlined_call_operand.vmem [shape: bf16[256,2048], index: 0, kind: input, shape index: {}]
  %s1 = inlined_call_operand.vmem [shape: bf16[2048,128], index: 1, kind: input, shape index: {}]
  %s2 = inlined_call_operand.vmem [shape: bf16[256,128], index: 2, kind: output, shape index: {}]
  %s3 = sld [smem:[#allocation0]]
  $region41: #{discriminator_forward.3} parent=0
    _
  %s5 = ssub.s32 1, %s3
  %s6 = scalar_select 0, %s5, %s3
  loop: start=0, step=1, limit=4
  $region2: #{discriminator_forward.3} parent=0 // loop_pre_header
    _
  $region3: #{discriminator_forward.3} parent=0 // loop_header
    %s8 = sphi 0, %s12
    %p9 = scmp.ge.s32.totalorder %s8, 4
    %s18 = sphi 0, %s20
    %s21 = sphi 0, %s18
    %s22 = sphi 0, %s21
    %s38 = sphi 0, %s22
    %s42 = sphi 0, %s42
    %s44 = sphi 0, %s42
    %s45 = sphi 0, %s44
    %s59 = sphi 0, %s45
    %s65 = sphi 0, %s67
    %s68 = sphi 0, %s65
    %s69 = sphi 0, %s68
    %s85 = sphi 0, %s69
  $region4: #{discriminator_forward.3} parent=0 // loop_header_branch
    %11 = sbr.rel (%p9) target = $region8
  $region5: #{discriminator_forward.3} parent=0 // loop_body
    %s13 = ssub.s32 %s8, 1
    %s14 = ssub.s32 %s8, 2
    %s15 = sadd.s32 %s8, 1
    %s16 = ssub.s32 %s8, %s15
    %p17 = scmp.eq.s32.totalorder %s16, 0
    %s19 = sadd.s32 %s18, 1
    %s20 = scalar_select %p17, %s18, %s19
    %p23 = pneg %p17
    %p24 = scmp.eq.s32.totalorder %s8, 1
    %p25 = por %p23, %p24
    %p26 = scmp.ne.s32.totalorder %s18, %s21
    %p27 = scmp.eq.s32.totalorder %s8, 0
    %p28 = por %p26, %p27
    %p29 = scmp.ne.s32.totalorder %s18, %s21
    %p30 = scmp.eq.s32.totalorder %s13, 1
    %p31 = por %p29, %p30
    %p32 = scmp.ne.s32.totalorder %s21, %s22
    %p33 = scmp.eq.s32.totalorder %s13, 0
    %p34 = por %p32, %p33
    %p35 = scmp.ne.s32.totalorder %s21, %s22
    %p36 = scmp.eq.s32.totalorder %s14, 1
    %p37 = por %p35, %p36
    %p39 = scmp.ne.s32.totalorder %s22, %s38
    %p40 = scmp.eq.s32.totalorder %s14, 0
    %p41 = por %p39, %p40
    %s43 = sadd.s32 %s42, 1
    %p46 = scmp.eq.s32.totalorder %s8, 1
    %p47 = scmp.ne.s32.totalorder %s42, %s44
    %p48 = scmp.eq.s32.totalorder %s8, 0
    %p49 = por %p47, %p48
    %p50 = scmp.ne.s32.totalorder %s42, %s44
    %p51 = scmp.eq.s32.totalorder %s13, 1
    %p52 = por %p50, %p51
    %p53 = scmp.ne.s32.totalorder %s44, %s45
    %p54 = scmp.eq.s32.totalorder %s13, 0
    %p55 = por %p53, %p54
    %p56 = scmp.ne.s32.totalorder %s44, %s45
    %p57 = scmp.eq.s32.totalorder %s14, 1
    %p58 = por %p56, %p57
    %p60 = scmp.ne.s32.totalorder %s45, %s59
    %p61 = scmp.eq.s32.totalorder %s14, 0
    %p62 = por %p60, %p61
    %s63 = ssub.s32 %s8, %s15
    %p64 = scmp.eq.s32.totalorder %s63, 0
    %s66 = sadd.s32 %s65, 1
    %s67 = scalar_select %p64, %s65, %s66
    %p70 = pneg %p64
    %p71 = scmp.eq.s32.totalorder %s8, 1
    %p72 = por %p70, %p71
    %p73 = scmp.ne.s32.totalorder %s65, %s68
    %p74 = scmp.eq.s32.totalorder %s8, 0
    %p75 = por %p73, %p74
    %p76 = scmp.ne.s32.totalorder %s65, %s68
    %p77 = scmp.eq.s32.totalorder %s13, 1
    %p78 = por %p76, %p77
    %p79 = scmp.ne.s32.totalorder %s68, %s69
    %p80 = scmp.eq.s32.totalorder %s13, 0
    %p81 = por %p79, %p80
    %p82 = scmp.ne.s32.totalorder %s68, %s69
    %p83 = scmp.eq.s32.totalorder %s14, 1
    %p84 = por %p82, %p83
    %p86 = scmp.ne.s32.totalorder %s69, %s85
    %p87 = scmp.eq.s32.totalorder %s14, 0
    %p88 = por %p86, %p87
    %p89 = scmp.le.s32.totalorder 1, %s8
    %p90 = scmp.lt.s32.totalorder %s8, 3
    %p91 = pnand %p89, %p90
    %p92 = pneg %p91
    // Predicated region
    $region9: #{discriminator_forward.3} parent=5 // pred_check
      _
    $region10: #{discriminator_forward.3} parent=5 // pred_check_branch
      %94 = sbr.rel (%p91) target = $region12
    $region11: #{discriminator_forward.3} parent=5 // pred_region
      %s95 = ssub.s32 %s8, 1
      // Predicated region
      $region13: #{discriminator_forward.3} parent=11 // pred_check
        %p96 = pneg %p55
      $region14: #{discriminator_forward.3} parent=11 // pred_check_branch
        %98 = sbr.rel (%p96) target = $region16
      $region15: #{discriminator_forward.3} parent=11 // pred_region
        _
      $region16: #{discriminator_forward.3} parent=11 // pred_fallthru
        _
    $region12: #{discriminator_forward.3} parent=5 // pred_fallthru
      _
    %p99 = scmp.lt.s32.totalorder %s8, 2
    // Predicated region
    $region17: #{discriminator_forward.3} parent=5 // pred_check
      %p100 = pneg %p99
    $region18: #{discriminator_forward.3} parent=5 // pred_check_branch
      %102 = sbr.rel (%p100) target = $region20
    $region19: #{discriminator_forward.3} parent=5 // pred_region
      // Predicated region
      $region21: #{discriminator_forward.3} parent=19 // pred_check
        %p103 = pneg %p28
      $region22: #{discriminator_forward.3} parent=19 // pred_check_branch
        %105 = sbr.rel (%p103) target = $region24
      $region23: #{discriminator_forward.3} parent=19 // pred_region
        %s106 = smul.u32 16, %s8
        %p107 = scmp.lt.s32.totalorder %s106, 31
        %s108 = scalar_select %p107, %s106, 31
        %s109 = smul.addr %s108, 16
        %s110 = smul.addr %s109, 4
        %s111 = scalar_lea.vmem %s0, %s110
        %s112 = smul.u32 16, %s8
      $region24: #{discriminator_forward.3} parent=19 // pred_fallthru
        _
    $region20: #{discriminator_forward.3} parent=5 // pred_fallthru
      _
    %p113 = scmp.le.s32.totalorder 1, %s8
    %p114 = scmp.lt.s32.totalorder %s8, 3
    %p115 = pnand %p113, %p114
    %p116 = pneg %p115
    // Predicated region
    $region25: #{discriminator_forward.3} parent=5 // pred_check
      _
    $region26: #{discriminator_forward.3} parent=5 // pred_check_branch
      %118 = sbr.rel (%p115) target = $region28
    $region27: #{discriminator_forward.3} parent=5 // pred_region
      %s119 = ssub.s32 %s8, 1
      %s120 = smul.u32 16, %s13
      %p121 = scmp.lt.s32.totalorder %s120, 31
      %s122 = scalar_select %p121, %s120, 31
      %s123 = smul.addr %s122, 16
      %s124 = smul.addr %s123, 4
      %s125 = scalar_lea.vmem %s0, %s124
      %p126 = pneg %p34
      %p127 = pneg %p31
      %p128 = pneg %p55
      %p129 = pneg %p52
      %p130 = pneg %p81
      %p131 = pneg %p78
      %s132 = smul.u32 16, %s13
      %p133 = scmp.lt.s32.totalorder %s132, 31
      %s134 = scalar_select %p133, %s132, 31
      %s135 = smul.addr %s134, 4
      %s136 = scalar_lea.vmem %s2, %s135
      %s137 = smul.u32 16, %s13
      %p138 = scmp.lt.s32.totalorder %s137, 31
      %s139 = scalar_select %p138, %s137, 31
      %s140 = smul.addr %s139, 16
      %s141 = smul.addr %s140, 4
      %s142 = scalar_lea.vmem %s0, %s141
      %s143 = smul.u32 16, %s13
      %s144 = smul.u32 16, %s13
      %p145 = scmp.lt.s32.totalorder %s144, 31
      %s146 = scalar_select %p145, %s144, 31
      %s147 = smul.addr %s146, 4
      %s148 = scalar_lea.vmem %s2, %s147
      %s149 = smul.u32 16, %s13
      %v151 = vld [vmem:[%s142] sm:$0xff]
      %v152 = vld [vmem:[%s142 + $0x8] sm:$0xff]
      %v153 = vld [vmem:[%s142 + $0x10] sm:$0xff]
      %v154 = vld [vmem:[%s142 + $0x18] sm:$0xff]
      %v155 = vld [vmem:[%s142 + $0x20] sm:$0xff]
      %v156 = vld [vmem:[%s142 + $0x28] sm:$0xff]
      %v157 = vld [vmem:[%s142 + $0x30] sm:$0xff]
      %v158 = vld [vmem:[%s142 + $0x38] sm:$0xff]
      %v159 = vld [vmem:[%s142 + $0x40] sm:$0xff]
      %v160 = vld [vmem:[%s142 + $0x48] sm:$0xff]
      %v161 = vld [vmem:[%s142 + $0x50] sm:$0xff]
      %v162 = vld [vmem:[%s142 + $0x58] sm:$0xff]
      %v163 = vld [vmem:[%s142 + $0x60] sm:$0xff]
      %v164 = vld [vmem:[%s142 + $0x68] sm:$0xff]
      %v165 = vld [vmem:[%s142 + $0x70] sm:$0xff]
      %v166 = vld [vmem:[%s142 + $0x78] sm:$0xff]
      %v167 = vld [vmem:[%s142 + $0x80] sm:$0xff]
      %v168 = vld [vmem:[%s142 + $0x88] sm:$0xff]
      %v169 = vld [vmem:[%s142 + $0x90] sm:$0xff]
      %v170 = vld [vmem:[%s142 + $0x98] sm:$0xff]
      %v171 = vld [vmem:[%s142 + $0xa0] sm:$0xff]
      %v172 = vld [vmem:[%s142 + $0xa8] sm:$0xff]
      %v173 = vld [vmem:[%s142 + $0xb0] sm:$0xff]
      %v174 = vld [vmem:[%s142 + $0xb8] sm:$0xff]
      %v175 = vld [vmem:[%s142 + $0xc0] sm:$0xff]
      %v176 = vld [vmem:[%s142 + $0xc8] sm:$0xff]
      %v177 = vld [vmem:[%s142 + $0xd0] sm:$0xff]
      %v178 = vld [vmem:[%s142 + $0xd8] sm:$0xff]
      %v179 = vld [vmem:[%s142 + $0xe0] sm:$0xff]
      %v180 = vld [vmem:[%s142 + $0xe8] sm:$0xff]
      %v181 = vld [vmem:[%s142 + $0xf0] sm:$0xff]
      %v182 = vld [vmem:[%s142 + $0xf8] sm:$0xff]
      %v183 = vld [vmem:[%s142 + $0x100] sm:$0xff]
      %v184 = vld [vmem:[%s142 + $0x108] sm:$0xff]
      %v185 = vld [vmem:[%s142 + $0x110] sm:$0xff]
      %v186 = vld [vmem:[%s142 + $0x118] sm:$0xff]
      %v187 = vld [vmem:[%s142 + $0x120] sm:$0xff]
      %v188 = vld [vmem:[%s142 + $0x128] sm:$0xff]
      %v189 = vld [vmem:[%s142 + $0x130] sm:$0xff]
      %v190 = vld [vmem:[%s142 + $0x138] sm:$0xff]
      %v191 = vld [vmem:[%s142 + $0x140] sm:$0xff]
      %v192 = vld [vmem:[%s142 + $0x148] sm:$0xff]
      %v193 = vld [vmem:[%s142 + $0x150] sm:$0xff]
      %v194 = vld [vmem:[%s142 + $0x158] sm:$0xff]
      %v195 = vld [vmem:[%s142 + $0x160] sm:$0xff]
      %v196 = vld [vmem:[%s142 + $0x168] sm:$0xff]
      %v197 = vld [vmem:[%s142 + $0x170] sm:$0xff]
      %v198 = vld [vmem:[%s142 + $0x178] sm:$0xff]
      %v199 = vld [vmem:[%s142 + $0x180] sm:$0xff]
      %v200 = vld [vmem:[%s142 + $0x188] sm:$0xff]
      %v201 = vld [vmem:[%s142 + $0x190] sm:$0xff]
      %v202 = vld [vmem:[%s142 + $0x198] sm:$0xff]
      %v203 = vld [vmem:[%s142 + $0x1a0] sm:$0xff]
      %v204 = vld [vmem:[%s142 + $0x1a8] sm:$0xff]
      %v205 = vld [vmem:[%s142 + $0x1b0] sm:$0xff]
      %v206 = vld [vmem:[%s142 + $0x1b8] sm:$0xff]
      %v207 = vld [vmem:[%s142 + $0x1c0] sm:$0xff]
      %v208 = vld [vmem:[%s142 + $0x1c8] sm:$0xff]
      %v209 = vld [vmem:[%s142 + $0x1d0] sm:$0xff]
      %v210 = vld [vmem:[%s142 + $0x1d8] sm:$0xff]
      %v211 = vld [vmem:[%s142 + $0x1e0] sm:$0xff]
      %v212 = vld [vmem:[%s142 + $0x1e8] sm:$0xff]
      %v213 = vld [vmem:[%s142 + $0x1f0] sm:$0xff]
      %v214 = vld [vmem:[%s142 + $0x1f8] sm:$0xff]
      %v215 = vld [vmem:[%s142 + $0x200] sm:$0xff]
      %v216 = vld [vmem:[%s142 + $0x208] sm:$0xff]
      %v217 = vld [vmem:[%s142 + $0x210] sm:$0xff]
      %v218 = vld [vmem:[%s142 + $0x218] sm:$0xff]
      %v219 = vld [vmem:[%s142 + $0x220] sm:$0xff]
      %v220 = vld [vmem:[%s142 + $0x228] sm:$0xff]
      %v221 = vld [vmem:[%s142 + $0x230] sm:$0xff]
      %v222 = vld [vmem:[%s142 + $0x238] sm:$0xff]
      %v223 = vld [vmem:[%s142 + $0x240] sm:$0xff]
      %v224 = vld [vmem:[%s142 + $0x248] sm:$0xff]
      %v225 = vld [vmem:[%s142 + $0x250] sm:$0xff]
      %v226 = vld [vmem:[%s142 + $0x258] sm:$0xff]
      %v227 = vld [vmem:[%s142 + $0x260] sm:$0xff]
      %v228 = vld [vmem:[%s142 + $0x268] sm:$0xff]
      %v229 = vld [vmem:[%s142 + $0x270] sm:$0xff]
      %v230 = vld [vmem:[%s142 + $0x278] sm:$0xff]
      %v231 = vld [vmem:[%s142 + $0x280] sm:$0xff]
      %v232 = vld [vmem:[%s142 + $0x288] sm:$0xff]
      %v233 = vld [vmem:[%s142 + $0x290] sm:$0xff]
      %v234 = vld [vmem:[%s142 + $0x298] sm:$0xff]
      %v235 = vld [vmem:[%s142 + $0x2a0] sm:$0xff]
      %v236 = vld [vmem:[%s142 + $0x2a8] sm:$0xff]
      %v237 = vld [vmem:[%s142 + $0x2b0] sm:$0xff]
      %v238 = vld [vmem:[%s142 + $0x2b8] sm:$0xff]
      %v239 = vld [vmem:[%s142 + $0x2c0] sm:$0xff]
      %v240 = vld [vmem:[%s142 + $0x2c8] sm:$0xff]
      %v241 = vld [vmem:[%s142 + $0x2d0] sm:$0xff]
      %v242 = vld [vmem:[%s142 + $0x2d8] sm:$0xff]
      %v243 = vld [vmem:[%s142 + $0x2e0] sm:$0xff]
      %v244 = vld [vmem:[%s142 + $0x2e8] sm:$0xff]
      %v245 = vld [vmem:[%s142 + $0x2f0] sm:$0xff]
      %v246 = vld [vmem:[%s142 + $0x2f8] sm:$0xff]
      %v247 = vld [vmem:[%s142 + $0x300] sm:$0xff]
      %v248 = vld [vmem:[%s142 + $0x308] sm:$0xff]
      %v249 = vld [vmem:[%s142 + $0x310] sm:$0xff]
      %v250 = vld [vmem:[%s142 + $0x318] sm:$0xff]
      %v251 = vld [vmem:[%s142 + $0x320] sm:$0xff]
      %v252 = vld [vmem:[%s142 + $0x328] sm:$0xff]
      %v253 = vld [vmem:[%s142 + $0x330] sm:$0xff]
      %v254 = vld [vmem:[%s142 + $0x338] sm:$0xff]
      %v255 = vld [vmem:[%s142 + $0x340] sm:$0xff]
      %v256 = vld [vmem:[%s142 + $0x348] sm:$0xff]
      %v257 = vld [vmem:[%s142 + $0x350] sm:$0xff]
      %v258 = vld [vmem:[%s142 + $0x358] sm:$0xff]
      %v259 = vld [vmem:[%s142 + $0x360] sm:$0xff]
      %v260 = vld [vmem:[%s142 + $0x368] sm:$0xff]
      %v261 = vld [vmem:[%s142 + $0x370] sm:$0xff]
      %v262 = vld [vmem:[%s142 + $0x378] sm:$0xff]
      %v263 = vld [vmem:[%s142 + $0x380] sm:$0xff]
      %v264 = vld [vmem:[%s142 + $0x388] sm:$0xff]
      %v265 = vld [vmem:[%s142 + $0x390] sm:$0xff]
      %v266 = vld [vmem:[%s142 + $0x398] sm:$0xff]
      %v267 = vld [vmem:[%s142 + $0x3a0] sm:$0xff]
      %v268 = vld [vmem:[%s142 + $0x3a8] sm:$0xff]
      %v269 = vld [vmem:[%s142 + $0x3b0] sm:$0xff]
      %v270 = vld [vmem:[%s142 + $0x3b8] sm:$0xff]
      %v271 = vld [vmem:[%s142 + $0x3c0] sm:$0xff]
      %v272 = vld [vmem:[%s142 + $0x3c8] sm:$0xff]
      %v273 = vld [vmem:[%s142 + $0x3d0] sm:$0xff]
      %v274 = vld [vmem:[%s142 + $0x3d8] sm:$0xff]
      %v275 = vld [vmem:[%s142 + $0x3e0] sm:$0xff]
      %v276 = vld [vmem:[%s142 + $0x3e8] sm:$0xff]
      %v277 = vld [vmem:[%s142 + $0x3f0] sm:$0xff]
      %v278 = vld [vmem:[%s142 + $0x3f8] sm:$0xff]
      %v279 = vld [vmem:[%s1] sm:$0xf]
      %v280 = vld [vmem:[%s1 + $0x4] sm:$0xf]
      %v281 = vld [vmem:[%s1 + $0x8] sm:$0xf]
      %v282 = vld [vmem:[%s1 + $0xc] sm:$0xf]
      %v283 = vld [vmem:[%s1 + $0x10] sm:$0xf]
      %v284 = vld [vmem:[%s1 + $0x14] sm:$0xf]
      %v285 = vld [vmem:[%s1 + $0x18] sm:$0xf]
      %v286 = vld [vmem:[%s1 + $0x1c] sm:$0xf]
      %v287 = vld [vmem:[%s1 + $0x20] sm:$0xf]
      %v288 = vld [vmem:[%s1 + $0x24] sm:$0xf]
      %v289 = vld [vmem:[%s1 + $0x28] sm:$0xf]
      %v290 = vld [vmem:[%s1 + $0x2c] sm:$0xf]
      %v291 = vld [vmem:[%s1 + $0x30] sm:$0xf]
      %v292 = vld [vmem:[%s1 + $0x34] sm:$0xf]
      %v293 = vld [vmem:[%s1 + $0x38] sm:$0xf]
      %v294 = vld [vmem:[%s1 + $0x3c] sm:$0xf]
      %v295 = vld [vmem:[%s1 + $0x40] sm:$0xf]
      %v296 = vld [vmem:[%s1 + $0x44] sm:$0xf]
      %v297 = vld [vmem:[%s1 + $0x48] sm:$0xf]
      %v298 = vld [vmem:[%s1 + $0x4c] sm:$0xf]
      %v299 = vld [vmem:[%s1 + $0x50] sm:$0xf]
      %v300 = vld [vmem:[%s1 + $0x54] sm:$0xf]
      %v301 = vld [vmem:[%s1 + $0x58] sm:$0xf]
      %v302 = vld [vmem:[%s1 + $0x5c] sm:$0xf]
      %v303 = vld [vmem:[%s1 + $0x60] sm:$0xf]
      %v304 = vld [vmem:[%s1 + $0x64] sm:$0xf]
      %v305 = vld [vmem:[%s1 + $0x68] sm:$0xf]
      %v306 = vld [vmem:[%s1 + $0x6c] sm:$0xf]
      %v307 = vld [vmem:[%s1 + $0x70] sm:$0xf]
      %v308 = vld [vmem:[%s1 + $0x74] sm:$0xf]
      %v309 = vld [vmem:[%s1 + $0x78] sm:$0xf]
      %v310 = vld [vmem:[%s1 + $0x7c] sm:$0xf]
      %v311 = vld [vmem:[%s1 + $0x80] sm:$0xf]
      %v312 = vld [vmem:[%s1 + $0x84] sm:$0xf]
      %v313 = vld [vmem:[%s1 + $0x88] sm:$0xf]
      %v314 = vld [vmem:[%s1 + $0x8c] sm:$0xf]
      %v315 = vld [vmem:[%s1 + $0x90] sm:$0xf]
      %v316 = vld [vmem:[%s1 + $0x94] sm:$0xf]
      %v317 = vld [vmem:[%s1 + $0x98] sm:$0xf]
      %v318 = vld [vmem:[%s1 + $0x9c] sm:$0xf]
      %v319 = vld [vmem:[%s1 + $0xa0] sm:$0xf]
      %v320 = vld [vmem:[%s1 + $0xa4] sm:$0xf]
      %v321 = vld [vmem:[%s1 + $0xa8] sm:$0xf]
      %v322 = vld [vmem:[%s1 + $0xac] sm:$0xf]
      %v323 = vld [vmem:[%s1 + $0xb0] sm:$0xf]
      %v324 = vld [vmem:[%s1 + $0xb4] sm:$0xf]
      %v325 = vld [vmem:[%s1 + $0xb8] sm:$0xf]
      %v326 = vld [vmem:[%s1 + $0xbc] sm:$0xf]
      %v327 = vld [vmem:[%s1 + $0xc0] sm:$0xf]
      %v328 = vld [vmem:[%s1 + $0xc4] sm:$0xf]
      %v329 = vld [vmem:[%s1 + $0xc8] sm:$0xf]
      %v330 = vld [vmem:[%s1 + $0xcc] sm:$0xf]
      %v331 = vld [vmem:[%s1 + $0xd0] sm:$0xf]
      %v332 = vld [vmem:[%s1 + $0xd4] sm:$0xf]
      %v333 = vld [vmem:[%s1 + $0xd8] sm:$0xf]
      %v334 = vld [vmem:[%s1 + $0xdc] sm:$0xf]
      %v335 = vld [vmem:[%s1 + $0xe0] sm:$0xf]
      %v336 = vld [vmem:[%s1 + $0xe4] sm:$0xf]
      %v337 = vld [vmem:[%s1 + $0xe8] sm:$0xf]
      %v338 = vld [vmem:[%s1 + $0xec] sm:$0xf]
      %v339 = vld [vmem:[%s1 + $0xf0] sm:$0xf]
      %v340 = vld [vmem:[%s1 + $0xf4] sm:$0xf]
      %v341 = vld [vmem:[%s1 + $0xf8] sm:$0xf]
      %v342 = vld [vmem:[%s1 + $0xfc] sm:$0xf]
      %v343 = vld [vmem:[%s1 + $0x100] sm:$0xf]
      %v344 = vld [vmem:[%s1 + $0x104] sm:$0xf]
      %v345 = vld [vmem:[%s1 + $0x108] sm:$0xf]
      %v346 = vld [vmem:[%s1 + $0x10c] sm:$0xf]
      %v347 = vld [vmem:[%s1 + $0x110] sm:$0xf]
      %v348 = vld [vmem:[%s1 + $0x114] sm:$0xf]
      %v349 = vld [vmem:[%s1 + $0x118] sm:$0xf]
      %v350 = vld [vmem:[%s1 + $0x11c] sm:$0xf]
      %v351 = vld [vmem:[%s1 + $0x120] sm:$0xf]
      %v352 = vld [vmem:[%s1 + $0x124] sm:$0xf]
      %v353 = vld [vmem:[%s1 + $0x128] sm:$0xf]
      %v354 = vld [vmem:[%s1 + $0x12c] sm:$0xf]
      %v355 = vld [vmem:[%s1 + $0x130] sm:$0xf]
      %v356 = vld [vmem:[%s1 + $0x134] sm:$0xf]
      %v357 = vld [vmem:[%s1 + $0x138] sm:$0xf]
      %v358 = vld [vmem:[%s1 + $0x13c] sm:$0xf]
      %v359 = vld [vmem:[%s1 + $0x140] sm:$0xf]
      %v360 = vld [vmem:[%s1 + $0x144] sm:$0xf]
      %v361 = vld [vmem:[%s1 + $0x148] sm:$0xf]
      %v362 = vld [vmem:[%s1 + $0x14c] sm:$0xf]
      %v363 = vld [vmem:[%s1 + $0x150] sm:$0xf]
      %v364 = vld [vmem:[%s1 + $0x154] sm:$0xf]
      %v365 = vld [vmem:[%s1 + $0x158] sm:$0xf]
      %v366 = vld [vmem:[%s1 + $0x15c] sm:$0xf]
      %v367 = vld [vmem:[%s1 + $0x160] sm:$0xf]
      %v368 = vld [vmem:[%s1 + $0x164] sm:$0xf]
      %v369 = vld [vmem:[%s1 + $0x168] sm:$0xf]
      %v370 = vld [vmem:[%s1 + $0x16c] sm:$0xf]
      %v371 = vld [vmem:[%s1 + $0x170] sm:$0xf]
      %v372 = vld [vmem:[%s1 + $0x174] sm:$0xf]
      %v373 = vld [vmem:[%s1 + $0x178] sm:$0xf]
      %v374 = vld [vmem:[%s1 + $0x17c] sm:$0xf]
      %v375 = vld [vmem:[%s1 + $0x180] sm:$0xf]
      %v376 = vld [vmem:[%s1 + $0x184] sm:$0xf]
      %v377 = vld [vmem:[%s1 + $0x188] sm:$0xf]
      %v378 = vld [vmem:[%s1 + $0x18c] sm:$0xf]
      %v379 = vld [vmem:[%s1 + $0x190] sm:$0xf]
      %v380 = vld [vmem:[%s1 + $0x194] sm:$0xf]
      %v381 = vld [vmem:[%s1 + $0x198] sm:$0xf]
      %v382 = vld [vmem:[%s1 + $0x19c] sm:$0xf]
      %v383 = vld [vmem:[%s1 + $0x1a0] sm:$0xf]
      %v384 = vld [vmem:[%s1 + $0x1a4] sm:$0xf]
      %v385 = vld [vmem:[%s1 + $0x1a8] sm:$0xf]
      %v386 = vld [vmem:[%s1 + $0x1ac] sm:$0xf]
      %v387 = vld [vmem:[%s1 + $0x1b0] sm:$0xf]
      %v388 = vld [vmem:[%s1 + $0x1b4] sm:$0xf]
      %v389 = vld [vmem:[%s1 + $0x1b8] sm:$0xf]
      %v390 = vld [vmem:[%s1 + $0x1bc] sm:$0xf]
      %v391 = vld [vmem:[%s1 + $0x1c0] sm:$0xf]
      %v392 = vld [vmem:[%s1 + $0x1c4] sm:$0xf]
      %v393 = vld [vmem:[%s1 + $0x1c8] sm:$0xf]
      %v394 = vld [vmem:[%s1 + $0x1cc] sm:$0xf]
      %v395 = vld [vmem:[%s1 + $0x1d0] sm:$0xf]
      %v396 = vld [vmem:[%s1 + $0x1d4] sm:$0xf]
      %v397 = vld [vmem:[%s1 + $0x1d8] sm:$0xf]
      %v398 = vld [vmem:[%s1 + $0x1dc] sm:$0xf]
      %v399 = vld [vmem:[%s1 + $0x1e0] sm:$0xf]
      %v400 = vld [vmem:[%s1 + $0x1e4] sm:$0xf]
      %v401 = vld [vmem:[%s1 + $0x1e8] sm:$0xf]
      %v402 = vld [vmem:[%s1 + $0x1ec] sm:$0xf]
      %v403 = vld [vmem:[%s1 + $0x1f0] sm:$0xf]
      %v404 = vld [vmem:[%s1 + $0x1f4] sm:$0xf]
      %v405 = vld [vmem:[%s1 + $0x1f8] sm:$0xf]
      %v406 = vld [vmem:[%s1 + $0x1fc] sm:$0xf]
      %v407 = vld [vmem:[%s1 + $0x200] sm:$0xf]
      %v408 = vld [vmem:[%s1 + $0x204] sm:$0xf]
      %v409 = vld [vmem:[%s1 + $0x208] sm:$0xf]
      %v410 = vld [vmem:[%s1 + $0x20c] sm:$0xf]
      %v411 = vld [vmem:[%s1 + $0x210] sm:$0xf]
      %v412 = vld [vmem:[%s1 + $0x214] sm:$0xf]
      %v413 = vld [vmem:[%s1 + $0x218] sm:$0xf]
      %v414 = vld [vmem:[%s1 + $0x21c] sm:$0xf]
      %v415 = vld [vmem:[%s1 + $0x220] sm:$0xf]
      %v416 = vld [vmem:[%s1 + $0x224] sm:$0xf]
      %v417 = vld [vmem:[%s1 + $0x228] sm:$0xf]
      %v418 = vld [vmem:[%s1 + $0x22c] sm:$0xf]
      %v419 = vld [vmem:[%s1 + $0x230] sm:$0xf]
      %v420 = vld [vmem:[%s1 + $0x234] sm:$0xf]
      %v421 = vld [vmem:[%s1 + $0x238] sm:$0xf]
      %v422 = vld [vmem:[%s1 + $0x23c] sm:$0xf]
      %v423 = vld [vmem:[%s1 + $0x240] sm:$0xf]
      %v424 = vld [vmem:[%s1 + $0x244] sm:$0xf]
      %v425 = vld [vmem:[%s1 + $0x248] sm:$0xf]
      %v426 = vld [vmem:[%s1 + $0x24c] sm:$0xf]
      %v427 = vld [vmem:[%s1 + $0x250] sm:$0xf]
      %v428 = vld [vmem:[%s1 + $0x254] sm:$0xf]
      %v429 = vld [vmem:[%s1 + $0x258] sm:$0xf]
      %v430 = vld [vmem:[%s1 + $0x25c] sm:$0xf]
      %v431 = vld [vmem:[%s1 + $0x260] sm:$0xf]
      %v432 = vld [vmem:[%s1 + $0x264] sm:$0xf]
      %v433 = vld [vmem:[%s1 + $0x268] sm:$0xf]
      %v434 = vld [vmem:[%s1 + $0x26c] sm:$0xf]
      %v435 = vld [vmem:[%s1 + $0x270] sm:$0xf]
      %v436 = vld [vmem:[%s1 + $0x274] sm:$0xf]
      %v437 = vld [vmem:[%s1 + $0x278] sm:$0xf]
      %v438 = vld [vmem:[%s1 + $0x27c] sm:$0xf]
      %v439 = vld [vmem:[%s1 + $0x280] sm:$0xf]
      %v440 = vld [vmem:[%s1 + $0x284] sm:$0xf]
      %v441 = vld [vmem:[%s1 + $0x288] sm:$0xf]
      %v442 = vld [vmem:[%s1 + $0x28c] sm:$0xf]
      %v443 = vld [vmem:[%s1 + $0x290] sm:$0xf]
      %v444 = vld [vmem:[%s1 + $0x294] sm:$0xf]
      %v445 = vld [vmem:[%s1 + $0x298] sm:$0xf]
      %v446 = vld [vmem:[%s1 + $0x29c] sm:$0xf]
      %v447 = vld [vmem:[%s1 + $0x2a0] sm:$0xf]
      %v448 = vld [vmem:[%s1 + $0x2a4] sm:$0xf]
      %v449 = vld [vmem:[%s1 + $0x2a8] sm:$0xf]
      %v450 = vld [vmem:[%s1 + $0x2ac] sm:$0xf]
      %v451 = vld [vmem:[%s1 + $0x2b0] sm:$0xf]
      %v452 = vld [vmem:[%s1 + $0x2b4] sm:$0xf]
      %v453 = vld [vmem:[%s1 + $0x2b8] sm:$0xf]
      %v454 = vld [vmem:[%s1 + $0x2bc] sm:$0xf]
      %v455 = vld [vmem:[%s1 + $0x2c0] sm:$0xf]
      %v456 = vld [vmem:[%s1 + $0x2c4] sm:$0xf]
      %v457 = vld [vmem:[%s1 + $0x2c8] sm:$0xf]
      %v458 = vld [vmem:[%s1 + $0x2cc] sm:$0xf]
      %v459 = vld [vmem:[%s1 + $0x2d0] sm:$0xf]
      %v460 = vld [vmem:[%s1 + $0x2d4] sm:$0xf]
      %v461 = vld [vmem:[%s1 + $0x2d8] sm:$0xf]
      %v462 = vld [vmem:[%s1 + $0x2dc] sm:$0xf]
      %v463 = vld [vmem:[%s1 + $0x2e0] sm:$0xf]
      %v464 = vld [vmem:[%s1 + $0x2e4] sm:$0xf]
      %v465 = vld [vmem:[%s1 + $0x2e8] sm:$0xf]
      %v466 = vld [vmem:[%s1 + $0x2ec] sm:$0xf]
      %v467 = vld [vmem:[%s1 + $0x2f0] sm:$0xf]
      %v468 = vld [vmem:[%s1 + $0x2f4] sm:$0xf]
      %v469 = vld [vmem:[%s1 + $0x2f8] sm:$0xf]
      %v470 = vld [vmem:[%s1 + $0x2fc] sm:$0xf]
      %v471 = vld [vmem:[%s1 + $0x300] sm:$0xf]
      %v472 = vld [vmem:[%s1 + $0x304] sm:$0xf]
      %v473 = vld [vmem:[%s1 + $0x308] sm:$0xf]
      %v474 = vld [vmem:[%s1 + $0x30c] sm:$0xf]
      %v475 = vld [vmem:[%s1 + $0x310] sm:$0xf]
      %v476 = vld [vmem:[%s1 + $0x314] sm:$0xf]
      %v477 = vld [vmem:[%s1 + $0x318] sm:$0xf]
      %v478 = vld [vmem:[%s1 + $0x31c] sm:$0xf]
      %v479 = vld [vmem:[%s1 + $0x320] sm:$0xf]
      %v480 = vld [vmem:[%s1 + $0x324] sm:$0xf]
      %v481 = vld [vmem:[%s1 + $0x328] sm:$0xf]
      %v482 = vld [vmem:[%s1 + $0x32c] sm:$0xf]
      %v483 = vld [vmem:[%s1 + $0x330] sm:$0xf]
      %v484 = vld [vmem:[%s1 + $0x334] sm:$0xf]
      %v485 = vld [vmem:[%s1 + $0x338] sm:$0xf]
      %v486 = vld [vmem:[%s1 + $0x33c] sm:$0xf]
      %v487 = vld [vmem:[%s1 + $0x340] sm:$0xf]
      %v488 = vld [vmem:[%s1 + $0x344] sm:$0xf]
      %v489 = vld [vmem:[%s1 + $0x348] sm:$0xf]
      %v490 = vld [vmem:[%s1 + $0x34c] sm:$0xf]
      %v491 = vld [vmem:[%s1 + $0x350] sm:$0xf]
      %v492 = vld [vmem:[%s1 + $0x354] sm:$0xf]
      %v493 = vld [vmem:[%s1 + $0x358] sm:$0xf]
      %v494 = vld [vmem:[%s1 + $0x35c] sm:$0xf]
      %v495 = vld [vmem:[%s1 + $0x360] sm:$0xf]
      %v496 = vld [vmem:[%s1 + $0x364] sm:$0xf]
      %v497 = vld [vmem:[%s1 + $0x368] sm:$0xf]
      %v498 = vld [vmem:[%s1 + $0x36c] sm:$0xf]
      %v499 = vld [vmem:[%s1 + $0x370] sm:$0xf]
      %v500 = vld [vmem:[%s1 + $0x374] sm:$0xf]
      %v501 = vld [vmem:[%s1 + $0x378] sm:$0xf]
      %v502 = vld [vmem:[%s1 + $0x37c] sm:$0xf]
      %v503 = vld [vmem:[%s1 + $0x380] sm:$0xf]
      %v504 = vld [vmem:[%s1 + $0x384] sm:$0xf]
      %v505 = vld [vmem:[%s1 + $0x388] sm:$0xf]
      %v506 = vld [vmem:[%s1 + $0x38c] sm:$0xf]
      %v507 = vld [vmem:[%s1 + $0x390] sm:$0xf]
      %v508 = vld [vmem:[%s1 + $0x394] sm:$0xf]
      %v509 = vld [vmem:[%s1 + $0x398] sm:$0xf]
      %v510 = vld [vmem:[%s1 + $0x39c] sm:$0xf]
      %v511 = vld [vmem:[%s1 + $0x3a0] sm:$0xf]
      %v512 = vld [vmem:[%s1 + $0x3a4] sm:$0xf]
      %v513 = vld [vmem:[%s1 + $0x3a8] sm:$0xf]
      %v514 = vld [vmem:[%s1 + $0x3ac] sm:$0xf]
      %v515 = vld [vmem:[%s1 + $0x3b0] sm:$0xf]
      %v516 = vld [vmem:[%s1 + $0x3b4] sm:$0xf]
      %v517 = vld [vmem:[%s1 + $0x3b8] sm:$0xf]
      %v518 = vld [vmem:[%s1 + $0x3bc] sm:$0xf]
      %v519 = vld [vmem:[%s1 + $0x3c0] sm:$0xf]
      %v520 = vld [vmem:[%s1 + $0x3c4] sm:$0xf]
      %v521 = vld [vmem:[%s1 + $0x3c8] sm:$0xf]
      %v522 = vld [vmem:[%s1 + $0x3cc] sm:$0xf]
      %v523 = vld [vmem:[%s1 + $0x3d0] sm:$0xf]
      %v524 = vld [vmem:[%s1 + $0x3d4] sm:$0xf]
      %v525 = vld [vmem:[%s1 + $0x3d8] sm:$0xf]
      %v526 = vld [vmem:[%s1 + $0x3dc] sm:$0xf]
      %v527 = vld [vmem:[%s1 + $0x3e0] sm:$0xf]
      %v528 = vld [vmem:[%s1 + $0x3e4] sm:$0xf]
      %v529 = vld [vmem:[%s1 + $0x3e8] sm:$0xf]
      %v530 = vld [vmem:[%s1 + $0x3ec] sm:$0xf]
      %v531 = vld [vmem:[%s1 + $0x3f0] sm:$0xf]
      %v532 = vld [vmem:[%s1 + $0x3f4] sm:$0xf]
      %v533 = vld [vmem:[%s1 + $0x3f8] sm:$0xf]
      %v534 = vld [vmem:[%s1 + $0x3fc] sm:$0xf]
      %v663 = vunpack.c.l.b16 %v151
      %v664 = vunpack.c.h.b16 %v151
      %v665 = vunpack.c.l.b16 %v152
      %v666 = vunpack.c.h.b16 %v152
      %v667 = vunpack.c.l.b16 %v153
      %v668 = vunpack.c.h.b16 %v153
      %v669 = vunpack.c.l.b16 %v154
      %v670 = vunpack.c.h.b16 %v154
      %v671 = vunpack.c.l.b16 %v155
      %v672 = vunpack.c.h.b16 %v155
      %v673 = vunpack.c.l.b16 %v156
      %v674 = vunpack.c.h.b16 %v156
      %v675 = vunpack.c.l.b16 %v157
      %v676 = vunpack.c.h.b16 %v157
      %v677 = vunpack.c.l.b16 %v158
      %v678 = vunpack.c.h.b16 %v158
      %v679 = vunpack.c.l.b16 %v159
      %v680 = vunpack.c.h.b16 %v159
      %v681 = vunpack.c.l.b16 %v160
      %v682 = vunpack.c.h.b16 %v160
      %v683 = vunpack.c.l.b16 %v161
      %v684 = vunpack.c.h.b16 %v161
      %v685 = vunpack.c.l.b16 %v162
      %v686 = vunpack.c.h.b16 %v162
      %v687 = vunpack.c.l.b16 %v163
      %v688 = vunpack.c.h.b16 %v163
      %v689 = vunpack.c.l.b16 %v164
      %v690 = vunpack.c.h.b16 %v164
      %v691 = vunpack.c.l.b16 %v165
      %v692 = vunpack.c.h.b16 %v165
      %v693 = vunpack.c.l.b16 %v166
      %v694 = vunpack.c.h.b16 %v166
      %v695 = vunpack.c.l.b16 %v167
      %v696 = vunpack.c.h.b16 %v167
      %v697 = vunpack.c.l.b16 %v168
      %v698 = vunpack.c.h.b16 %v168
      %v699 = vunpack.c.l.b16 %v169
      %v700 = vunpack.c.h.b16 %v169
      %v701 = vunpack.c.l.b16 %v170
      %v702 = vunpack.c.h.b16 %v170
      %v703 = vunpack.c.l.b16 %v171
      %v704 = vunpack.c.h.b16 %v171
      %v705 = vunpack.c.l.b16 %v172
      %v706 = vunpack.c.h.b16 %v172
      %v707 = vunpack.c.l.b16 %v173
      %v708 = vunpack.c.h.b16 %v173
      %v709 = vunpack.c.l.b16 %v174
      %v710 = vunpack.c.h.b16 %v174
      %v711 = vunpack.c.l.b16 %v175
      %v712 = vunpack.c.h.b16 %v175
      %v713 = vunpack.c.l.b16 %v176
      %v714 = vunpack.c.h.b16 %v176
      %v715 = vunpack.c.l.b16 %v177
      %v716 = vunpack.c.h.b16 %v177
      %v717 = vunpack.c.l.b16 %v178
      %v718 = vunpack.c.h.b16 %v178
      %v719 = vunpack.c.l.b16 %v179
      %v720 = vunpack.c.h.b16 %v179
      %v721 = vunpack.c.l.b16 %v180
      %v722 = vunpack.c.h.b16 %v180
      %v723 = vunpack.c.l.b16 %v181
      %v724 = vunpack.c.h.b16 %v181
      %v725 = vunpack.c.l.b16 %v182
      %v726 = vunpack.c.h.b16 %v182
      %v727 = vunpack.c.l.b16 %v183
      %v728 = vunpack.c.h.b16 %v183
      %v729 = vunpack.c.l.b16 %v184
      %v730 = vunpack.c.h.b16 %v184
      %v731 = vunpack.c.l.b16 %v185
      %v732 = vunpack.c.h.b16 %v185
      %v733 = vunpack.c.l.b16 %v186
      %v734 = vunpack.c.h.b16 %v186
      %v735 = vunpack.c.l.b16 %v187
      %v736 = vunpack.c.h.b16 %v187
      %v737 = vunpack.c.l.b16 %v188
      %v738 = vunpack.c.h.b16 %v188
      %v739 = vunpack.c.l.b16 %v189
      %v740 = vunpack.c.h.b16 %v189
      %v741 = vunpack.c.l.b16 %v190
      %v742 = vunpack.c.h.b16 %v190
      %v743 = vunpack.c.l.b16 %v191
      %v744 = vunpack.c.h.b16 %v191
      %v745 = vunpack.c.l.b16 %v192
      %v746 = vunpack.c.h.b16 %v192
      %v747 = vunpack.c.l.b16 %v193
      %v748 = vunpack.c.h.b16 %v193
      %v749 = vunpack.c.l.b16 %v194
      %v750 = vunpack.c.h.b16 %v194
      %v751 = vunpack.c.l.b16 %v195
      %v752 = vunpack.c.h.b16 %v195
      %v753 = vunpack.c.l.b16 %v196
      %v754 = vunpack.c.h.b16 %v196
      %v755 = vunpack.c.l.b16 %v197
      %v756 = vunpack.c.h.b16 %v197
      %v757 = vunpack.c.l.b16 %v198
      %v758 = vunpack.c.h.b16 %v198
      %v759 = vunpack.c.l.b16 %v199
      %v760 = vunpack.c.h.b16 %v199
      %v761 = vunpack.c.l.b16 %v200
      %v762 = vunpack.c.h.b16 %v200
      %v763 = vunpack.c.l.b16 %v201
      %v764 = vunpack.c.h.b16 %v201
      %v765 = vunpack.c.l.b16 %v202
      %v766 = vunpack.c.h.b16 %v202
      %v767 = vunpack.c.l.b16 %v203
      %v768 = vunpack.c.h.b16 %v203
      %v769 = vunpack.c.l.b16 %v204
      %v770 = vunpack.c.h.b16 %v204
      %v771 = vunpack.c.l.b16 %v205
      %v772 = vunpack.c.h.b16 %v205
      %v773 = vunpack.c.l.b16 %v206
      %v774 = vunpack.c.h.b16 %v206
      %v775 = vunpack.c.l.b16 %v207
      %v776 = vunpack.c.h.b16 %v207
      %v777 = vunpack.c.l.b16 %v208
      %v778 = vunpack.c.h.b16 %v208
      %v779 = vunpack.c.l.b16 %v209
      %v780 = vunpack.c.h.b16 %v209
      %v781 = vunpack.c.l.b16 %v210
      %v782 = vunpack.c.h.b16 %v210
      %v783 = vunpack.c.l.b16 %v211
      %v784 = vunpack.c.h.b16 %v211
      %v785 = vunpack.c.l.b16 %v212
      %v786 = vunpack.c.h.b16 %v212
      %v787 = vunpack.c.l.b16 %v213
      %v788 = vunpack.c.h.b16 %v213
      %v789 = vunpack.c.l.b16 %v214
      %v790 = vunpack.c.h.b16 %v214
      %v791 = vunpack.c.l.b16 %v215
      %v792 = vunpack.c.h.b16 %v215
      %v793 = vunpack.c.l.b16 %v216
      %v794 = vunpack.c.h.b16 %v216
      %v795 = vunpack.c.l.b16 %v217
      %v796 = vunpack.c.h.b16 %v217
      %v797 = vunpack.c.l.b16 %v218
      %v798 = vunpack.c.h.b16 %v218
      %v799 = vunpack.c.l.b16 %v219
      %v800 = vunpack.c.h.b16 %v219
      %v801 = vunpack.c.l.b16 %v220
      %v802 = vunpack.c.h.b16 %v220
      %v803 = vunpack.c.l.b16 %v221
      %v804 = vunpack.c.h.b16 %v221
      %v805 = vunpack.c.l.b16 %v222
      %v806 = vunpack.c.h.b16 %v222
      %v807 = vunpack.c.l.b16 %v223
      %v808 = vunpack.c.h.b16 %v223
      %v809 = vunpack.c.l.b16 %v224
      %v810 = vunpack.c.h.b16 %v224
      %v811 = vunpack.c.l.b16 %v225
      %v812 = vunpack.c.h.b16 %v225
      %v813 = vunpack.c.l.b16 %v226
      %v814 = vunpack.c.h.b16 %v226
      %v815 = vunpack.c.l.b16 %v227
      %v816 = vunpack.c.h.b16 %v227
      %v817 = vunpack.c.l.b16 %v228
      %v818 = vunpack.c.h.b16 %v228
      %v819 = vunpack.c.l.b16 %v229
      %v820 = vunpack.c.h.b16 %v229
      %v821 = vunpack.c.l.b16 %v230
      %v822 = vunpack.c.h.b16 %v230
      %v823 = vunpack.c.l.b16 %v231
      %v824 = vunpack.c.h.b16 %v231
      %v825 = vunpack.c.l.b16 %v232
      %v826 = vunpack.c.h.b16 %v232
      %v827 = vunpack.c.l.b16 %v233
      %v828 = vunpack.c.h.b16 %v233
      %v829 = vunpack.c.l.b16 %v234
      %v830 = vunpack.c.h.b16 %v234
      %v831 = vunpack.c.l.b16 %v235
      %v832 = vunpack.c.h.b16 %v235
      %v833 = vunpack.c.l.b16 %v236
      %v834 = vunpack.c.h.b16 %v236
      %v835 = vunpack.c.l.b16 %v237
      %v836 = vunpack.c.h.b16 %v237
      %v837 = vunpack.c.l.b16 %v238
      %v838 = vunpack.c.h.b16 %v238
      %v839 = vunpack.c.l.b16 %v239
      %v840 = vunpack.c.h.b16 %v239
      %v841 = vunpack.c.l.b16 %v240
      %v842 = vunpack.c.h.b16 %v240
      %v843 = vunpack.c.l.b16 %v241
      %v844 = vunpack.c.h.b16 %v241
      %v845 = vunpack.c.l.b16 %v242
      %v846 = vunpack.c.h.b16 %v242
      %v847 = vunpack.c.l.b16 %v243
      %v848 = vunpack.c.h.b16 %v243
      %v849 = vunpack.c.l.b16 %v244
      %v850 = vunpack.c.h.b16 %v244
      %v851 = vunpack.c.l.b16 %v245
      %v852 = vunpack.c.h.b16 %v245
      %v853 = vunpack.c.l.b16 %v246
      %v854 = vunpack.c.h.b16 %v246
      %v855 = vunpack.c.l.b16 %v247
      %v856 = vunpack.c.h.b16 %v247
      %v857 = vunpack.c.l.b16 %v248
      %v858 = vunpack.c.h.b16 %v248
      %v859 = vunpack.c.l.b16 %v249
      %v860 = vunpack.c.h.b16 %v249
      %v861 = vunpack.c.l.b16 %v250
      %v862 = vunpack.c.h.b16 %v250
      %v863 = vunpack.c.l.b16 %v251
      %v864 = vunpack.c.h.b16 %v251
      %v865 = vunpack.c.l.b16 %v252
      %v866 = vunpack.c.h.b16 %v252
      %v867 = vunpack.c.l.b16 %v253
      %v868 = vunpack.c.h.b16 %v253
      %v869 = vunpack.c.l.b16 %v254
      %v870 = vunpack.c.h.b16 %v254
      %v871 = vunpack.c.l.b16 %v255
      %v872 = vunpack.c.h.b16 %v255
      %v873 = vunpack.c.l.b16 %v256
      %v874 = vunpack.c.h.b16 %v256
      %v875 = vunpack.c.l.b16 %v257
      %v876 = vunpack.c.h.b16 %v257
      %v877 = vunpack.c.l.b16 %v258
      %v878 = vunpack.c.h.b16 %v258
      %v879 = vunpack.c.l.b16 %v259
      %v880 = vunpack.c.h.b16 %v259
      %v881 = vunpack.c.l.b16 %v260
      %v882 = vunpack.c.h.b16 %v260
      %v883 = vunpack.c.l.b16 %v261
      %v884 = vunpack.c.h.b16 %v261
      %v885 = vunpack.c.l.b16 %v262
      %v886 = vunpack.c.h.b16 %v262
      %v887 = vunpack.c.l.b16 %v263
      %v888 = vunpack.c.h.b16 %v263
      %v889 = vunpack.c.l.b16 %v264
      %v890 = vunpack.c.h.b16 %v264
      %v891 = vunpack.c.l.b16 %v265
      %v892 = vunpack.c.h.b16 %v265
      %v893 = vunpack.c.l.b16 %v266
      %v894 = vunpack.c.h.b16 %v266
      %v895 = vunpack.c.l.b16 %v267
      %v896 = vunpack.c.h.b16 %v267
      %v897 = vunpack.c.l.b16 %v268
      %v898 = vunpack.c.h.b16 %v268
      %v899 = vunpack.c.l.b16 %v269
      %v900 = vunpack.c.h.b16 %v269
      %v901 = vunpack.c.l.b16 %v270
      %v902 = vunpack.c.h.b16 %v270
      %v903 = vunpack.c.l.b16 %v271
      %v904 = vunpack.c.h.b16 %v271
      %v905 = vunpack.c.l.b16 %v272
      %v906 = vunpack.c.h.b16 %v272
      %v907 = vunpack.c.l.b16 %v273
      %v908 = vunpack.c.h.b16 %v273
      %v909 = vunpack.c.l.b16 %v274
      %v910 = vunpack.c.h.b16 %v274
      %v911 = vunpack.c.l.b16 %v275
      %v912 = vunpack.c.h.b16 %v275
      %v913 = vunpack.c.l.b16 %v276
      %v914 = vunpack.c.h.b16 %v276
      %v915 = vunpack.c.l.b16 %v277
      %v916 = vunpack.c.h.b16 %v277
      %v917 = vunpack.c.l.b16 %v278
      %v918 = vunpack.c.h.b16 %v278
      %v919 = vpack.c.b16 %v679, %v663
      %v920 = vpack.c.b16 %v680, %v664
      %v921 = vpack.c.b16 %v681, %v665
      %v922 = vpack.c.b16 %v682, %v666
      %v923 = vpack.c.b16 %v683, %v667
      %v924 = vpack.c.b16 %v684, %v668
      %v925 = vpack.c.b16 %v685, %v669
      %v926 = vpack.c.b16 %v686, %v670
      %v927 = vpack.c.b16 %v687, %v671
      %v928 = vpack.c.b16 %v688, %v672
      %v929 = vpack.c.b16 %v689, %v673
      %v930 = vpack.c.b16 %v690, %v674
      %v931 = vpack.c.b16 %v691, %v675
      %v932 = vpack.c.b16 %v692, %v676
      %v933 = vpack.c.b16 %v693, %v677
      %v934 = vpack.c.b16 %v694, %v678
      %v935 = vpack.c.b16 %v711, %v695
      %v936 = vpack.c.b16 %v712, %v696
      %v937 = vpack.c.b16 %v713, %v697
      %v938 = vpack.c.b16 %v714, %v698
      %v939 = vpack.c.b16 %v715, %v699
      %v940 = vpack.c.b16 %v716, %v700
      %v941 = vpack.c.b16 %v717, %v701
      %v942 = vpack.c.b16 %v718, %v702
      %v943 = vpack.c.b16 %v719, %v703
      %v944 = vpack.c.b16 %v720, %v704
      %v945 = vpack.c.b16 %v721, %v705
      %v946 = vpack.c.b16 %v722, %v706
      %v947 = vpack.c.b16 %v723, %v707
      %v948 = vpack.c.b16 %v724, %v708
      %v949 = vpack.c.b16 %v725, %v709
      %v950 = vpack.c.b16 %v726, %v710
      %v951 = vpack.c.b16 %v743, %v727
      %v952 = vpack.c.b16 %v744, %v728
      %v953 = vpack.c.b16 %v745, %v729
      %v954 = vpack.c.b16 %v746, %v730
      %v955 = vpack.c.b16 %v747, %v731
      %v956 = vpack.c.b16 %v748, %v732
      %v957 = vpack.c.b16 %v749, %v733
      %v958 = vpack.c.b16 %v750, %v734
      %v959 = vpack.c.b16 %v751, %v735
      %v960 = vpack.c.b16 %v752, %v736
      %v961 = vpack.c.b16 %v753, %v737
      %v962 = vpack.c.b16 %v754, %v738
      %v963 = vpack.c.b16 %v755, %v739
      %v964 = vpack.c.b16 %v756, %v740
      %v965 = vpack.c.b16 %v757, %v741
      %v966 = vpack.c.b16 %v758, %v742
      %v967 = vpack.c.b16 %v775, %v759
      %v968 = vpack.c.b16 %v776, %v760
      %v969 = vpack.c.b16 %v777, %v761
      %v970 = vpack.c.b16 %v778, %v762
      %v971 = vpack.c.b16 %v779, %v763
      %v972 = vpack.c.b16 %v780, %v764
      %v973 = vpack.c.b16 %v781, %v765
      %v974 = vpack.c.b16 %v782, %v766
      %v975 = vpack.c.b16 %v783, %v767
      %v976 = vpack.c.b16 %v784, %v768
      %v977 = vpack.c.b16 %v785, %v769
      %v978 = vpack.c.b16 %v786, %v770
      %v979 = vpack.c.b16 %v787, %v771
      %v980 = vpack.c.b16 %v788, %v772
      %v981 = vpack.c.b16 %v789, %v773
      %v982 = vpack.c.b16 %v790, %v774
      %v983 = vpack.c.b16 %v807, %v791
      %v984 = vpack.c.b16 %v808, %v792
      %v985 = vpack.c.b16 %v809, %v793
      %v986 = vpack.c.b16 %v810, %v794
      %v987 = vpack.c.b16 %v811, %v795
      %v988 = vpack.c.b16 %v812, %v796
      %v989 = vpack.c.b16 %v813, %v797
      %v990 = vpack.c.b16 %v814, %v798
      %v991 = vpack.c.b16 %v815, %v799
      %v992 = vpack.c.b16 %v816, %v800
      %v993 = vpack.c.b16 %v817, %v801
      %v994 = vpack.c.b16 %v818, %v802
      %v995 = vpack.c.b16 %v819, %v803
      %v996 = vpack.c.b16 %v820, %v804
      %v997 = vpack.c.b16 %v821, %v805
      %v998 = vpack.c.b16 %v822, %v806
      %v999 = vpack.c.b16 %v839, %v823
      %v1000 = vpack.c.b16 %v840, %v824
      %v1001 = vpack.c.b16 %v841, %v825
      %v1002 = vpack.c.b16 %v842, %v826
      %v1003 = vpack.c.b16 %v843, %v827
      %v1004 = vpack.c.b16 %v844, %v828
      %v1005 = vpack.c.b16 %v845, %v829
      %v1006 = vpack.c.b16 %v846, %v830
      %v1007 = vpack.c.b16 %v847, %v831
      %v1008 = vpack.c.b16 %v848, %v832
      %v1009 = vpack.c.b16 %v849, %v833
      %v1010 = vpack.c.b16 %v850, %v834
      %v1011 = vpack.c.b16 %v851, %v835
      %v1012 = vpack.c.b16 %v852, %v836
      %v1013 = vpack.c.b16 %v853, %v837
      %v1014 = vpack.c.b16 %v854, %v838
      %v1015 = vpack.c.b16 %v871, %v855
      %v1016 = vpack.c.b16 %v872, %v856
      %v1017 = vpack.c.b16 %v873, %v857
      %v1018 = vpack.c.b16 %v874, %v858
      %v1019 = vpack.c.b16 %v875, %v859
      %v1020 = vpack.c.b16 %v876, %v860
      %v1021 = vpack.c.b16 %v877, %v861
      %v1022 = vpack.c.b16 %v878, %v862
      %v1023 = vpack.c.b16 %v879, %v863
      %v1024 = vpack.c.b16 %v880, %v864
      %v1025 = vpack.c.b16 %v881, %v865
      %v1026 = vpack.c.b16 %v882, %v866
      %v1027 = vpack.c.b16 %v883, %v867
      %v1028 = vpack.c.b16 %v884, %v868
      %v1029 = vpack.c.b16 %v885, %v869
      %v1030 = vpack.c.b16 %v886, %v870
      %v1031 = vpack.c.b16 %v903, %v887
      %v1032 = vpack.c.b16 %v904, %v888
      %v1033 = vpack.c.b16 %v905, %v889
      %v1034 = vpack.c.b16 %v906, %v890
      %v1035 = vpack.c.b16 %v907, %v891
      %v1036 = vpack.c.b16 %v908, %v892
      %v1037 = vpack.c.b16 %v909, %v893
      %v1038 = vpack.c.b16 %v910, %v894
      %v1039 = vpack.c.b16 %v911, %v895
      %v1040 = vpack.c.b16 %v912, %v896
      %v1041 = vpack.c.b16 %v913, %v897
      %v1042 = vpack.c.b16 %v914, %v898
      %v1043 = vpack.c.b16 %v915, %v899
      %v1044 = vpack.c.b16 %v916, %v900
      %v1045 = vpack.c.b16 %v917, %v901
      %v1046 = vpack.c.b16 %v918, %v902
      %v1431 = vunpack.c.l.b16 %v279
      %v1432 = vunpack.c.l.b16 %v280
      %v1433 = vunpack.c.l.b16 %v281
      %v1434 = vunpack.c.l.b16 %v282
      %v1435 = vunpack.c.l.b16 %v283
      %v1436 = vunpack.c.l.b16 %v284
      %v1437 = vunpack.c.l.b16 %v285
      %v1438 = vunpack.c.l.b16 %v286
      %v1439 = vunpack.c.l.b16 %v287
      %v1440 = vunpack.c.l.b16 %v288
      %v1441 = vunpack.c.l.b16 %v289
      %v1442 = vunpack.c.l.b16 %v290
      %v1443 = vunpack.c.l.b16 %v291
      %v1444 = vunpack.c.l.b16 %v292
      %v1445 = vunpack.c.l.b16 %v293
      %v1446 = vunpack.c.l.b16 %v294
      %v1447 = vunpack.c.l.b16 %v295
      %v1448 = vunpack.c.l.b16 %v296
      %v1449 = vunpack.c.l.b16 %v297
      %v1450 = vunpack.c.l.b16 %v298
      %v1451 = vunpack.c.l.b16 %v299
      %v1452 = vunpack.c.l.b16 %v300
      %v1453 = vunpack.c.l.b16 %v301
      %v1454 = vunpack.c.l.b16 %v302
      %v1455 = vunpack.c.l.b16 %v303
      %v1456 = vunpack.c.l.b16 %v304
      %v1457 = vunpack.c.l.b16 %v305
      %v1458 = vunpack.c.l.b16 %v306
      %v1459 = vunpack.c.l.b16 %v307
      %v1460 = vunpack.c.l.b16 %v308
      %v1461 = vunpack.c.l.b16 %v309
      %v1462 = vunpack.c.l.b16 %v310
      %v1463 = vunpack.c.l.b16 %v311
      %v1464 = vunpack.c.l.b16 %v312
      %v1465 = vunpack.c.l.b16 %v313
      %v1466 = vunpack.c.l.b16 %v314
      %v1467 = vunpack.c.l.b16 %v315
      %v1468 = vunpack.c.l.b16 %v316
      %v1469 = vunpack.c.l.b16 %v317
      %v1470 = vunpack.c.l.b16 %v318
      %v1471 = vunpack.c.l.b16 %v319
      %v1472 = vunpack.c.l.b16 %v320
      %v1473 = vunpack.c.l.b16 %v321
      %v1474 = vunpack.c.l.b16 %v322
      %v1475 = vunpack.c.l.b16 %v323
      %v1476 = vunpack.c.l.b16 %v324
      %v1477 = vunpack.c.l.b16 %v325
      %v1478 = vunpack.c.l.b16 %v326
      %v1479 = vunpack.c.l.b16 %v327
      %v1480 = vunpack.c.l.b16 %v328
      %v1481 = vunpack.c.l.b16 %v329
      %v1482 = vunpack.c.l.b16 %v330
      %v1483 = vunpack.c.l.b16 %v331
      %v1484 = vunpack.c.l.b16 %v332
      %v1485 = vunpack.c.l.b16 %v333
      %v1486 = vunpack.c.l.b16 %v334
      %v1487 = vunpack.c.l.b16 %v335
      %v1488 = vunpack.c.l.b16 %v336
      %v1489 = vunpack.c.l.b16 %v337
      %v1490 = vunpack.c.l.b16 %v338
      %v1491 = vunpack.c.l.b16 %v339
      %v1492 = vunpack.c.l.b16 %v340
      %v1493 = vunpack.c.l.b16 %v341
      %v1494 = vunpack.c.l.b16 %v342
      %v1495 = vunpack.c.l.b16 %v343
      %v1496 = vunpack.c.l.b16 %v344
      %v1497 = vunpack.c.l.b16 %v345
      %v1498 = vunpack.c.l.b16 %v346
      %v1499 = vunpack.c.l.b16 %v347
      %v1500 = vunpack.c.l.b16 %v348
      %v1501 = vunpack.c.l.b16 %v349
      %v1502 = vunpack.c.l.b16 %v350
      %v1503 = vunpack.c.l.b16 %v351
      %v1504 = vunpack.c.l.b16 %v352
      %v1505 = vunpack.c.l.b16 %v353
      %v1506 = vunpack.c.l.b16 %v354
      %v1507 = vunpack.c.l.b16 %v355
      %v1508 = vunpack.c.l.b16 %v356
      %v1509 = vunpack.c.l.b16 %v357
      %v1510 = vunpack.c.l.b16 %v358
      %v1511 = vunpack.c.l.b16 %v359
      %v1512 = vunpack.c.l.b16 %v360
      %v1513 = vunpack.c.l.b16 %v361
      %v1514 = vunpack.c.l.b16 %v362
      %v1515 = vunpack.c.l.b16 %v363
      %v1516 = vunpack.c.l.b16 %v364
      %v1517 = vunpack.c.l.b16 %v365
      %v1518 = vunpack.c.l.b16 %v366
      %v1519 = vunpack.c.l.b16 %v367
      %v1520 = vunpack.c.l.b16 %v368
      %v1521 = vunpack.c.l.b16 %v369
      %v1522 = vunpack.c.l.b16 %v370
      %v1523 = vunpack.c.l.b16 %v371
      %v1524 = vunpack.c.l.b16 %v372
      %v1525 = vunpack.c.l.b16 %v373
      %v1526 = vunpack.c.l.b16 %v374
      %v1527 = vunpack.c.l.b16 %v375
      %v1528 = vunpack.c.l.b16 %v376
      %v1529 = vunpack.c.l.b16 %v377
      %v1530 = vunpack.c.l.b16 %v378
      %v1531 = vunpack.c.l.b16 %v379
      %v1532 = vunpack.c.l.b16 %v380
      %v1533 = vunpack.c.l.b16 %v381
      %v1534 = vunpack.c.l.b16 %v382
      %v1535 = vunpack.c.l.b16 %v383
      %v1536 = vunpack.c.l.b16 %v384
      %v1537 = vunpack.c.l.b16 %v385
      %v1538 = vunpack.c.l.b16 %v386
      %v1539 = vunpack.c.l.b16 %v387
      %v1540 = vunpack.c.l.b16 %v388
      %v1541 = vunpack.c.l.b16 %v389
      %v1542 = vunpack.c.l.b16 %v390
      %v1543 = vunpack.c.l.b16 %v391
      %v1544 = vunpack.c.l.b16 %v392
      %v1545 = vunpack.c.l.b16 %v393
      %v1546 = vunpack.c.l.b16 %v394
      %v1547 = vunpack.c.l.b16 %v395
      %v1548 = vunpack.c.l.b16 %v396
      %v1549 = vunpack.c.l.b16 %v397
      %v1550 = vunpack.c.l.b16 %v398
      %v1551 = vunpack.c.l.b16 %v399
      %v1552 = vunpack.c.l.b16 %v400
      %v1553 = vunpack.c.l.b16 %v401
      %v1554 = vunpack.c.l.b16 %v402
      %v1555 = vunpack.c.l.b16 %v403
      %v1556 = vunpack.c.l.b16 %v404
      %v1557 = vunpack.c.l.b16 %v405
      %v1558 = vunpack.c.l.b16 %v406
      %v1559 = vunpack.c.l.b16 %v407
      %v1560 = vunpack.c.l.b16 %v408
      %v1561 = vunpack.c.l.b16 %v409
      %v1562 = vunpack.c.l.b16 %v410
      %v1563 = vunpack.c.l.b16 %v411
      %v1564 = vunpack.c.l.b16 %v412
      %v1565 = vunpack.c.l.b16 %v413
      %v1566 = vunpack.c.l.b16 %v414
      %v1567 = vunpack.c.l.b16 %v415
      %v1568 = vunpack.c.l.b16 %v416
      %v1569 = vunpack.c.l.b16 %v417
      %v1570 = vunpack.c.l.b16 %v418
      %v1571 = vunpack.c.l.b16 %v419
      %v1572 = vunpack.c.l.b16 %v420
      %v1573 = vunpack.c.l.b16 %v421
      %v1574 = vunpack.c.l.b16 %v422
      %v1575 = vunpack.c.l.b16 %v423
      %v1576 = vunpack.c.l.b16 %v424
      %v1577 = vunpack.c.l.b16 %v425
      %v1578 = vunpack.c.l.b16 %v426
      %v1579 = vunpack.c.l.b16 %v427
      %v1580 = vunpack.c.l.b16 %v428
      %v1581 = vunpack.c.l.b16 %v429
      %v1582 = vunpack.c.l.b16 %v430
      %v1583 = vunpack.c.l.b16 %v431
      %v1584 = vunpack.c.l.b16 %v432
      %v1585 = vunpack.c.l.b16 %v433
      %v1586 = vunpack.c.l.b16 %v434
      %v1587 = vunpack.c.l.b16 %v435
      %v1588 = vunpack.c.l.b16 %v436
      %v1589 = vunpack.c.l.b16 %v437
      %v1590 = vunpack.c.l.b16 %v438
      %v1591 = vunpack.c.l.b16 %v439
      %v1592 = vunpack.c.l.b16 %v440
      %v1593 = vunpack.c.l.b16 %v441
      %v1594 = vunpack.c.l.b16 %v442
      %v1595 = vunpack.c.l.b16 %v443
      %v1596 = vunpack.c.l.b16 %v444
      %v1597 = vunpack.c.l.b16 %v445
      %v1598 = vunpack.c.l.b16 %v446
      %v1599 = vunpack.c.l.b16 %v447
      %v1600 = vunpack.c.l.b16 %v448
      %v1601 = vunpack.c.l.b16 %v449
      %v1602 = vunpack.c.l.b16 %v450
      %v1603 = vunpack.c.l.b16 %v451
      %v1604 = vunpack.c.l.b16 %v452
      %v1605 = vunpack.c.l.b16 %v453
      %v1606 = vunpack.c.l.b16 %v454
      %v1607 = vunpack.c.l.b16 %v455
      %v1608 = vunpack.c.l.b16 %v456
      %v1609 = vunpack.c.l.b16 %v457
      %v1610 = vunpack.c.l.b16 %v458
      %v1611 = vunpack.c.l.b16 %v459
      %v1612 = vunpack.c.l.b16 %v460
      %v1613 = vunpack.c.l.b16 %v461
      %v1614 = vunpack.c.l.b16 %v462
      %v1615 = vunpack.c.l.b16 %v463
      %v1616 = vunpack.c.l.b16 %v464
      %v1617 = vunpack.c.l.b16 %v465
      %v1618 = vunpack.c.l.b16 %v466
      %v1619 = vunpack.c.l.b16 %v467
      %v1620 = vunpack.c.l.b16 %v468
      %v1621 = vunpack.c.l.b16 %v469
      %v1622 = vunpack.c.l.b16 %v470
      %v1623 = vunpack.c.l.b16 %v471
      %v1624 = vunpack.c.l.b16 %v472
      %v1625 = vunpack.c.l.b16 %v473
      %v1626 = vunpack.c.l.b16 %v474
      %v1627 = vunpack.c.l.b16 %v475
      %v1628 = vunpack.c.l.b16 %v476
      %v1629 = vunpack.c.l.b16 %v477
      %v1630 = vunpack.c.l.b16 %v478
      %v1631 = vunpack.c.l.b16 %v479
      %v1632 = vunpack.c.l.b16 %v480
      %v1633 = vunpack.c.l.b16 %v481
      %v1634 = vunpack.c.l.b16 %v482
      %v1635 = vunpack.c.l.b16 %v483
      %v1636 = vunpack.c.l.b16 %v484
      %v1637 = vunpack.c.l.b16 %v485
      %v1638 = vunpack.c.l.b16 %v486
      %v1639 = vunpack.c.l.b16 %v487
      %v1640 = vunpack.c.l.b16 %v488
      %v1641 = vunpack.c.l.b16 %v489
      %v1642 = vunpack.c.l.b16 %v490
      %v1643 = vunpack.c.l.b16 %v491
      %v1644 = vunpack.c.l.b16 %v492
      %v1645 = vunpack.c.l.b16 %v493
      %v1646 = vunpack.c.l.b16 %v494
      %v1647 = vunpack.c.l.b16 %v495
      %v1648 = vunpack.c.l.b16 %v496
      %v1649 = vunpack.c.l.b16 %v497
      %v1650 = vunpack.c.l.b16 %v498
      %v1651 = vunpack.c.l.b16 %v499
      %v1652 = vunpack.c.l.b16 %v500
      %v1653 = vunpack.c.l.b16 %v501
      %v1654 = vunpack.c.l.b16 %v502
      %v1655 = vunpack.c.l.b16 %v503
      %v1656 = vunpack.c.l.b16 %v504
      %v1657 = vunpack.c.l.b16 %v505
      %v1658 = vunpack.c.l.b16 %v506
      %v1659 = vunpack.c.l.b16 %v507
      %v1660 = vunpack.c.l.b16 %v508
      %v1661 = vunpack.c.l.b16 %v509
      %v1662 = vunpack.c.l.b16 %v510
      %v1663 = vunpack.c.l.b16 %v511
      %v1664 = vunpack.c.l.b16 %v512
      %v1665 = vunpack.c.l.b16 %v513
      %v1666 = vunpack.c.l.b16 %v514
      %v1667 = vunpack.c.l.b16 %v515
      %v1668 = vunpack.c.l.b16 %v516
      %v1669 = vunpack.c.l.b16 %v517
      %v1670 = vunpack.c.l.b16 %v518
      %v1671 = vunpack.c.l.b16 %v519
      %v1672 = vunpack.c.l.b16 %v520
      %v1673 = vunpack.c.l.b16 %v521
      %v1674 = vunpack.c.l.b16 %v522
      %v1675 = vunpack.c.l.b16 %v523
      %v1676 = vunpack.c.l.b16 %v524
      %v1677 = vunpack.c.l.b16 %v525
      %v1678 = vunpack.c.l.b16 %v526
      %v1679 = vunpack.c.l.b16 %v527
      %v1680 = vunpack.c.l.b16 %v528
      %v1681 = vunpack.c.l.b16 %v529
      %v1682 = vunpack.c.l.b16 %v530
      %v1683 = vunpack.c.l.b16 %v531
      %v1684 = vunpack.c.l.b16 %v532
      %v1685 = vunpack.c.l.b16 %v533
      %v1686 = vunpack.c.l.b16 %v534
      %v1687 = vpack.c.b16 %v1432, %v1431
      %v1688 = vpack.c.b16 %v1434, %v1433
      %v1689 = vpack.c.b16 %v1436, %v1435
      %v1690 = vpack.c.b16 %v1438, %v1437
      %v1691 = vpack.c.b16 %v1440, %v1439
      %v1692 = vpack.c.b16 %v1442, %v1441
      %v1693 = vpack.c.b16 %v1444, %v1443
      %v1694 = vpack.c.b16 %v1446, %v1445
      %v1695 = vpack.c.b16 %v1448, %v1447
      %v1696 = vpack.c.b16 %v1450, %v1449
      %v1697 = vpack.c.b16 %v1452, %v1451
      %v1698 = vpack.c.b16 %v1454, %v1453
      %v1699 = vpack.c.b16 %v1456, %v1455
      %v1700 = vpack.c.b16 %v1458, %v1457
      %v1701 = vpack.c.b16 %v1460, %v1459
      %v1702 = vpack.c.b16 %v1462, %v1461
      %v1703 = vpack.c.b16 %v1464, %v1463
      %v1704 = vpack.c.b16 %v1466, %v1465
      %v1705 = vpack.c.b16 %v1468, %v1467
      %v1706 = vpack.c.b16 %v1470, %v1469
      %v1707 = vpack.c.b16 %v1472, %v1471
      %v1708 = vpack.c.b16 %v1474, %v1473
      %v1709 = vpack.c.b16 %v1476, %v1475
      %v1710 = vpack.c.b16 %v1478, %v1477
      %v1711 = vpack.c.b16 %v1480, %v1479
      %v1712 = vpack.c.b16 %v1482, %v1481
      %v1713 = vpack.c.b16 %v1484, %v1483
      %v1714 = vpack.c.b16 %v1486, %v1485
      %v1715 = vpack.c.b16 %v1488, %v1487
      %v1716 = vpack.c.b16 %v1490, %v1489
      %v1717 = vpack.c.b16 %v1492, %v1491
      %v1718 = vpack.c.b16 %v1494, %v1493
      %v1719 = vpack.c.b16 %v1496, %v1495
      %v1720 = vpack.c.b16 %v1498, %v1497
      %v1721 = vpack.c.b16 %v1500, %v1499
      %v1722 = vpack.c.b16 %v1502, %v1501
      %v1723 = vpack.c.b16 %v1504, %v1503
      %v1724 = vpack.c.b16 %v1506, %v1505
      %v1725 = vpack.c.b16 %v1508, %v1507
      %v1726 = vpack.c.b16 %v1510, %v1509
      %v1727 = vpack.c.b16 %v1512, %v1511
      %v1728 = vpack.c.b16 %v1514, %v1513
      %v1729 = vpack.c.b16 %v1516, %v1515
      %v1730 = vpack.c.b16 %v1518, %v1517
      %v1731 = vpack.c.b16 %v1520, %v1519
      %v1732 = vpack.c.b16 %v1522, %v1521
      %v1733 = vpack.c.b16 %v1524, %v1523
      %v1734 = vpack.c.b16 %v1526, %v1525
      %v1735 = vpack.c.b16 %v1528, %v1527
      %v1736 = vpack.c.b16 %v1530, %v1529
      %v1737 = vpack.c.b16 %v1532, %v1531
      %v1738 = vpack.c.b16 %v1534, %v1533
      %v1739 = vpack.c.b16 %v1536, %v1535
      %v1740 = vpack.c.b16 %v1538, %v1537
      %v1741 = vpack.c.b16 %v1540, %v1539
      %v1742 = vpack.c.b16 %v1542, %v1541
      %v1743 = vpack.c.b16 %v1544, %v1543
      %v1744 = vpack.c.b16 %v1546, %v1545
      %v1745 = vpack.c.b16 %v1548, %v1547
      %v1746 = vpack.c.b16 %v1550, %v1549
      %v1747 = vpack.c.b16 %v1552, %v1551
      %v1748 = vpack.c.b16 %v1554, %v1553
      %v1749 = vpack.c.b16 %v1556, %v1555
      %v1750 = vpack.c.b16 %v1558, %v1557
      %v1751 = vpack.c.b16 %v1560, %v1559
      %v1752 = vpack.c.b16 %v1562, %v1561
      %v1753 = vpack.c.b16 %v1564, %v1563
      %v1754 = vpack.c.b16 %v1566, %v1565
      %v1755 = vpack.c.b16 %v1568, %v1567
      %v1756 = vpack.c.b16 %v1570, %v1569
      %v1757 = vpack.c.b16 %v1572, %v1571
      %v1758 = vpack.c.b16 %v1574, %v1573
      %v1759 = vpack.c.b16 %v1576, %v1575
      %v1760 = vpack.c.b16 %v1578, %v1577
      %v1761 = vpack.c.b16 %v1580, %v1579
      %v1762 = vpack.c.b16 %v1582, %v1581
      %v1763 = vpack.c.b16 %v1584, %v1583
      %v1764 = vpack.c.b16 %v1586, %v1585
      %v1765 = vpack.c.b16 %v1588, %v1587
      %v1766 = vpack.c.b16 %v1590, %v1589
      %v1767 = vpack.c.b16 %v1592, %v1591
      %v1768 = vpack.c.b16 %v1594, %v1593
      %v1769 = vpack.c.b16 %v1596, %v1595
      %v1770 = vpack.c.b16 %v1598, %v1597
      %v1771 = vpack.c.b16 %v1600, %v1599
      %v1772 = vpack.c.b16 %v1602, %v1601
      %v1773 = vpack.c.b16 %v1604, %v1603
      %v1774 = vpack.c.b16 %v1606, %v1605
      %v1775 = vpack.c.b16 %v1608, %v1607
      %v1776 = vpack.c.b16 %v1610, %v1609
      %v1777 = vpack.c.b16 %v1612, %v1611
      %v1778 = vpack.c.b16 %v1614, %v1613
      %v1779 = vpack.c.b16 %v1616, %v1615
      %v1780 = vpack.c.b16 %v1618, %v1617
      %v1781 = vpack.c.b16 %v1620, %v1619
      %v1782 = vpack.c.b16 %v1622, %v1621
      %v1783 = vpack.c.b16 %v1624, %v1623
      %v1784 = vpack.c.b16 %v1626, %v1625
      %v1785 = vpack.c.b16 %v1628, %v1627
      %v1786 = vpack.c.b16 %v1630, %v1629
      %v1787 = vpack.c.b16 %v1632, %v1631
      %v1788 = vpack.c.b16 %v1634, %v1633
      %v1789 = vpack.c.b16 %v1636, %v1635
      %v1790 = vpack.c.b16 %v1638, %v1637
      %v1791 = vpack.c.b16 %v1640, %v1639
      %v1792 = vpack.c.b16 %v1642, %v1641
      %v1793 = vpack.c.b16 %v1644, %v1643
      %v1794 = vpack.c.b16 %v1646, %v1645
      %v1795 = vpack.c.b16 %v1648, %v1647
      %v1796 = vpack.c.b16 %v1650, %v1649
      %v1797 = vpack.c.b16 %v1652, %v1651
      %v1798 = vpack.c.b16 %v1654, %v1653
      %v1799 = vpack.c.b16 %v1656, %v1655
      %v1800 = vpack.c.b16 %v1658, %v1657
      %v1801 = vpack.c.b16 %v1660, %v1659
      %v1802 = vpack.c.b16 %v1662, %v1661
      %v1803 = vpack.c.b16 %v1664, %v1663
      %v1804 = vpack.c.b16 %v1666, %v1665
      %v1805 = vpack.c.b16 %v1668, %v1667
      %v1806 = vpack.c.b16 %v1670, %v1669
      %v1807 = vpack.c.b16 %v1672, %v1671
      %v1808 = vpack.c.b16 %v1674, %v1673
      %v1809 = vpack.c.b16 %v1676, %v1675
      %v1810 = vpack.c.b16 %v1678, %v1677
      %v1811 = vpack.c.b16 %v1680, %v1679
      %v1812 = vpack.c.b16 %v1682, %v1681
      %v1813 = vpack.c.b16 %v1684, %v1683
      %v1814 = vpack.c.b16 %v1686, %v1685
      %1943 = vmatprep.subr.bf16.mxu0 0
      %1944 = vmatpush1.bf16.msra.mxu0 %v1687
      %1945 = vmatprep.subr.bf16.mxu0 0
      %1946 = vmatpush1.bf16.msra.mxu0 %v1688
      %1947 = vmatprep.subr.bf16.mxu0 0
      %1948 = vmatpush1.bf16.msra.mxu0 %v1689
      %1949 = vmatprep.subr.bf16.mxu0 0
      %1950 = vmatpush1.bf16.msra.mxu0 %v1690
      %1951 = vmatprep.subr.bf16.mxu0 0
      %1952 = vmatpush1.bf16.msra.mxu0 %v1691
      %1953 = vmatprep.subr.bf16.mxu0 0
      %1954 = vmatpush1.bf16.msra.mxu0 %v1692
      %1955 = vmatprep.subr.bf16.mxu0 0
      %1956 = vmatpush1.bf16.msra.mxu0 %v1693
      %1957 = vmatprep.subr.bf16.mxu0 0
      %1958 = vmatpush1.bf16.msra.mxu0 %v1694
      %1959 = vmatprep.subr.bf16.mxu0 0
      %1960 = vmatpush1.bf16.msra.mxu0 %v1695
      %1961 = vmatprep.subr.bf16.mxu0 0
      %1962 = vmatpush1.bf16.msra.mxu0 %v1696
      %1963 = vmatprep.subr.bf16.mxu0 0
      %1964 = vmatpush1.bf16.msra.mxu0 %v1697
      %1965 = vmatprep.subr.bf16.mxu0 0
      %1966 = vmatpush1.bf16.msra.mxu0 %v1698
      %1967 = vmatprep.subr.bf16.mxu0 0
      %1968 = vmatpush1.bf16.msra.mxu0 %v1699
      %1969 = vmatprep.subr.bf16.mxu0 0
      %1970 = vmatpush1.bf16.msra.mxu0 %v1700
      %1971 = vmatprep.subr.bf16.mxu0 0
      %1972 = vmatpush1.bf16.msra.mxu0 %v1701
      %1973 = vmatprep.subr.bf16.mxu0 0
      %1974 = vmatpush1.bf16.msra.mxu0 %v1702
      %1975 = vmatprep.mubr.bf16.mxu0 %v920
      %1976 = vmatmul.mubr.bf16.gmra.mrb[0].mxu0 %v919
      %v1977 = vpop.f32.mrb[0].mxu0
      %v1978 = vadd.f32 0.0, %v1977
      %v1979 = vpop.f32.mrb[0].mxu0
      %v1980 = vpop.f32.mrb[0].mxu0
      %v1981 = vadd.f32 0.0, %v1980
      %v1982 = vpop.f32.mrb[0].mxu0
      %1983 = vmatprep.mubr.bf16.mxu0 %v936
      %1984 = vmatmul.mubr.bf16.gmra.mrb[0].mxu0 %v935
      %v1985 = vpop.f32.mrb[0].mxu0
      %v1986 = vadd.f32 0.0, %v1985
      %v1987 = vpop.f32.mrb[0].mxu0
      %v1988 = vpop.f32.mrb[0].mxu0
      %v1989 = vadd.f32 0.0, %v1988
      %v1990 = vpop.f32.mrb[0].mxu0
      %1991 = vmatprep.mubr.bf16.mxu0 %v952
      %1992 = vmatmul.mubr.bf16.gmra.mrb[0].mxu0 %v951
      %v1993 = vpop.f32.mrb[0].mxu0
      %v1994 = vadd.f32 0.0, %v1993
      %v1995 = vpop.f32.mrb[0].mxu0
      %v1996 = vpop.f32.mrb[0].mxu0
      %v1997 = vadd.f32 0.0, %v1996
      %v1998 = vpop.f32.mrb[0].mxu0
      %1999 = vmatprep.mubr.bf16.mxu0 %v968
      %2000 = vmatmul.mubr.bf16.gmra.mrb[0].mxu0 %v967
      %v2001 = vpop.f32.mrb[0].mxu0
      %v2002 = vadd.f32 0.0, %v2001
      %v2003 = vpop.f32.mrb[0].mxu0
      %v2004 = vpop.f32.mrb[0].mxu0
      %v2005 = vadd.f32 0.0, %v2004
      %v2006 = vpop.f32.mrb[0].mxu0
      %2007 = vmatprep.mubr.bf16.mxu0 %v984
      %2008 = vmatmul.mubr.bf16.gmra.mrb[0].mxu0 %v983
      %v2009 = vpop.f32.mrb[0].mxu0
      %v2010 = vadd.f32 0.0, %v2009
      %v2011 = vpop.f32.mrb[0].mxu0
      %v2012 = vpop.f32.mrb[0].mxu0
      %v2013 = vadd.f32 0.0, %v2012
      %v2014 = vpop.f32.mrb[0].mxu0
      %2015 = vmatprep.mubr.bf16.mxu0 %v1000
      %2016 = vmatmul.mubr.bf16.gmra.mrb[0].mxu0 %v999
      %v2017 = vpop.f32.mrb[0].mxu0
      %v2018 = vadd.f32 0.0, %v2017
      %v2019 = vpop.f32.mrb[0].mxu0
      %v2020 = vpop.f32.mrb[0].mxu0
      %v2021 = vadd.f32 0.0, %v2020
      %v2022 = vpop.f32.mrb[0].mxu0
      %2023 = vmatprep.mubr.bf16.mxu0 %v1016
      %2024 = vmatmul.mubr.bf16.gmra.mrb[0].mxu0 %v1015
      %v2025 = vpop.f32.mrb[0].mxu0
      %v2026 = vadd.f32 0.0, %v2025
      %v2027 = vpop.f32.mrb[0].mxu0
      %v2028 = vpop.f32.mrb[0].mxu0
      %v2029 = vadd.f32 0.0, %v2028
      %v2030 = vpop.f32.mrb[0].mxu0
      %2031 = vmatprep.mubr.bf16.mxu0 %v1032
      %2032 = vmatmul.mubr.bf16.gmra.mrb[0].mxu0 %v1031
      %v2033 = vpop.f32.mrb[0].mxu0
      %v2034 = vadd.f32 0.0, %v2033
      %v2035 = vpop.f32.mrb[0].mxu0
      %v2036 = vpop.f32.mrb[0].mxu0
      %v2037 = vadd.f32 0.0, %v2036
      %v2038 = vpop.f32.mrb[0].mxu0
      %2039 = vdwg.mxu0
      %2040 = vmatprep.subr.bf16.mxu0 0
      %2041 = vmatpush1.bf16.msra.mxu0 %v1703
      %2042 = vmatprep.subr.bf16.mxu0 0
      %2043 = vmatpush1.bf16.msra.mxu0 %v1704
      %2044 = vmatprep.subr.bf16.mxu0 0
      %2045 = vmatpush1.bf16.msra.mxu0 %v1705
      %2046 = vmatprep.subr.bf16.mxu0 0
      %2047 = vmatpush1.bf16.msra.mxu0 %v1706
      %2048 = vmatprep.subr.bf16.mxu0 0
      %2049 = vmatpush1.bf16.msra.mxu0 %v1707
      %2050 = vmatprep.subr.bf16.mxu0 0
      %2051 = vmatpush1.bf16.msra.mxu0 %v1708
      %2052 = vmatprep.subr.bf16.mxu0 0
      %2053 = vmatpush1.bf16.msra.mxu0 %v1709
      %2054 = vmatprep.subr.bf16.mxu0 0
      %2055 = vmatpush1.bf16.msra.mxu0 %v1710
      %2056 = vmatprep.subr.bf16.mxu0 0
      %2057 = vmatpush1.bf16.msra.mxu0 %v1711
      %2058 = vmatprep.subr.bf16.mxu0 0
      %2059 = vmatpush1.bf16.msra.mxu0 %v1712
      %2060 = vmatprep.subr.bf16.mxu0 0
      %2061 = vmatpush1.bf16.msra.mxu0 %v1713
      %2062 = vmatprep.subr.bf16.mxu0 0
      %2063 = vmatpush1.bf16.msra.mxu0 %v1714
      %2064 = vmatprep.subr.bf16.mxu0 0
      %2065 = vmatpush1.bf16.msra.mxu0 %v1715
      %2066 = vmatprep.subr.bf16.mxu0 0
      %2067 = vmatpush1.bf16.msra.mxu0 %v1716
      %2068 = vmatprep.subr.bf16.mxu0 0
      %2069 = vmatpush1.bf16.msra.mxu0 %v1717
      %2070 = vmatprep.subr.bf16.mxu0 0
      %2071 = vmatpush1.bf16.msra.mxu0 %v1718
      %2072 = vmatprep.mubr.bf16.mxu0 %v922
      %2073 = vmatmul.mubr.bf16.gmra.mrb[0].mxu0 %v921
      %v2074 = vpop.f32.mrb[0].mxu0
      %v2075 = vadd.f32 %v1978, %v2074
      %v2076 = vpop.f32.mrb[0].mxu0
      %v2077 = vpop.f32.mrb[0].mxu0
      %v2078 = vadd.f32 %v1981, %v2077
      %v2079 = vpop.f32.mrb[0].mxu0
      %2080 = vmatprep.mubr.bf16.mxu0 %v938
      %2081 = vmatmul.mubr.bf16.gmra.mrb[0].mxu0 %v937
      %v2082 = vpop.f32.mrb[0].mxu0
      %v2083 = vadd.f32 %v1986, %v2082
      %v2084 = vpop.f32.mrb[0].mxu0
      %v2085 = vpop.f32.mrb[0].mxu0
      %v2086 = vadd.f32 %v1989, %v2085
      %v2087 = vpop.f32.mrb[0].mxu0
      %2088 = vmatprep.mubr.bf16.mxu0 %v954
      %2089 = vmatmul.mubr.bf16.gmra.mrb[0].mxu0 %v953
      %v2090 = vpop.f32.mrb[0].mxu0
      %v2091 = vadd.f32 %v1994, %v2090
      %v2092 = vpop.f32.mrb[0].mxu0
      %v2093 = vpop.f32.mrb[0].mxu0
      %v2094 = vadd.f32 %v1997, %v2093
      %v2095 = vpop.f32.mrb[0].mxu0
      %2096 = vmatprep.mubr.bf16.mxu0 %v970
      %2097 = vmatmul.mubr.bf16.gmra.mrb[0].mxu0 %v969
      %v2098 = vpop.f32.mrb[0].mxu0
      %v2099 = vadd.f32 %v2002, %v2098
      %v2100 = vpop.f32.mrb[0].mxu0
      %v2101 = vpop.f32.mrb[0].mxu0
      %v2102 = vadd.f32 %v2005, %v2101
      %v2103 = vpop.f32.mrb[0].mxu0
      %2104 = vmatprep.mubr.bf16.mxu0 %v986
      %2105 = vmatmul.mubr.bf16.gmra.mrb[0].mxu0 %v985
      %v2106 = vpop.f32.mrb[0].mxu0
      %v2107 = vadd.f32 %v2010, %v2106
      %v2108 = vpop.f32.mrb[0].mxu0
      %v2109 = vpop.f32.mrb[0].mxu0
      %v2110 = vadd.f32 %v2013, %v2109
      %v2111 = vpop.f32.mrb[0].mxu0
      %2112 = vmatprep.mubr.bf16.mxu0 %v1002
      %2113 = vmatmul.mubr.bf16.gmra.mrb[0].mxu0 %v1001
      %v2114 = vpop.f32.mrb[0].mxu0
      %v2115 = vadd.f32 %v2018, %v2114
      %v2116 = vpop.f32.mrb[0].mxu0
      %v2117 = vpop.f32.mrb[0].mxu0
      %v2118 = vadd.f32 %v2021, %v2117
      %v2119 = vpop.f32.mrb[0].mxu0
      %2120 = vmatprep.mubr.bf16.mxu0 %v1018
      %2121 = vmatmul.mubr.bf16.gmra.mrb[0].mxu0 %v1017
      %v2122 = vpop.f32.mrb[0].mxu0
      %v2123 = vadd.f32 %v2026, %v2122
      %v2124 = vpop.f32.mrb[0].mxu0
      %v2125 = vpop.f32.mrb[0].mxu0
      %v2126 = vadd.f32 %v2029, %v2125
      %v2127 = vpop.f32.mrb[0].mxu0
      %2128 = vmatprep.mubr.bf16.mxu0 %v1034
      %2129 = vmatmul.mubr.bf16.gmra.mrb[0].mxu0 %v1033
      %v2130 = vpop.f32.mrb[0].mxu0
      %v2131 = vadd.f32 %v2034, %v2130
      %v2132 = vpop.f32.mrb[0].mxu0
      %v2133 = vpop.f32.mrb[0].mxu0
      %v2134 = vadd.f32 %v2037, %v2133
      %v2135 = vpop.f32.mrb[0].mxu0
      %2136 = vdwg.mxu0
      %2137 = vmatprep.subr.bf16.mxu0 0
      %2138 = vmatpush1.bf16.msra.mxu0 %v1719
      %2139 = vmatprep.subr.bf16.mxu0 0
      %2140 = vmatpush1.bf16.msra.mxu0 %v1720
      %2141 = vmatprep.subr.bf16.mxu0 0
      %2142 = vmatpush1.bf16.msra.mxu0 %v1721
      %2143 = vmatprep.subr.bf16.mxu0 0
      %2144 = vmatpush1.bf16.msra.mxu0 %v1722
      %2145 = vmatprep.subr.bf16.mxu0 0
      %2146 = vmatpush1.bf16.msra.mxu0 %v1723
      %2147 = vmatprep.subr.bf16.mxu0 0
      %2148 = vmatpush1.bf16.msra.mxu0 %v1724
      %2149 = vmatprep.subr.bf16.mxu0 0
      %2150 = vmatpush1.bf16.msra.mxu0 %v1725
      %2151 = vmatprep.subr.bf16.mxu0 0
      %2152 = vmatpush1.bf16.msra.mxu0 %v1726
      %2153 = vmatprep.subr.bf16.mxu0 0
      %2154 = vmatpush1.bf16.msra.mxu0 %v1727
      %2155 = vmatprep.subr.bf16.mxu0 0
      %2156 = vmatpush1.bf16.msra.mxu0 %v1728
      %2157 = vmatprep.subr.bf16.mxu0 0
      %2158 = vmatpush1.bf16.msra.mxu0 %v1729
      %2159 = vmatprep.subr.bf16.mxu0 0
      %2160 = vmatpush1.bf16.msra.mxu0 %v1730
      %2161 = vmatprep.subr.bf16.mxu0 0
      %2162 = vmatpush1.bf16.msra.mxu0 %v1731
      %2163 = vmatprep.subr.bf16.mxu0 0
      %2164 = vmatpush1.bf16.msra.mxu0 %v1732
      %2165 = vmatprep.subr.bf16.mxu0 0
      %2166 = vmatpush1.bf16.msra.mxu0 %v1733
      %2167 = vmatprep.subr.bf16.mxu0 0
      %2168 = vmatpush1.bf16.msra.mxu0 %v1734
      %2169 = vmatprep.mubr.bf16.mxu0 %v924
      %2170 = vmatmul.mubr.bf16.gmra.mrb[0].mxu0 %v923
      %v2171 = vpop.f32.mrb[0].mxu0
      %v2172 = vadd.f32 %v2075, %v2171
      %v2173 = vpop.f32.mrb[0].mxu0
      %v2174 = vpop.f32.mrb[0].mxu0
      %v2175 = vadd.f32 %v2078, %v2174
      %v2176 = vpop.f32.mrb[0].mxu0
      %2177 = vmatprep.mubr.bf16.mxu0 %v940
      %2178 = vmatmul.mubr.bf16.gmra.mrb[0].mxu0 %v939
      %v2179 = vpop.f32.mrb[0].mxu0
      %v2180 = vadd.f32 %v2083, %v2179
      %v2181 = vpop.f32.mrb[0].mxu0
      %v2182 = vpop.f32.mrb[0].mxu0
      %v2183 = vadd.f32 %v2086, %v2182
      %v2184 = vpop.f32.mrb[0].mxu0
      %2185 = vmatprep.mubr.bf16.mxu0 %v956
      %2186 = vmatmul.mubr.bf16.gmra.mrb[0].mxu0 %v955
      %v2187 = vpop.f32.mrb[0].mxu0
      %v2188 = vadd.f32 %v2091, %v2187
      %v2189 = vpop.f32.mrb[0].mxu0
      %v2190 = vpop.f32.mrb[0].mxu0
      %v2191 = vadd.f32 %v2094, %v2190
      %v2192 = vpop.f32.mrb[0].mxu0
      %2193 = vmatprep.mubr.bf16.mxu0 %v972
      %2194 = vmatmul.mubr.bf16.gmra.mrb[0].mxu0 %v971
      %v2195 = vpop.f32.mrb[0].mxu0
      %v2196 = vadd.f32 %v2099, %v2195
      %v2197 = vpop.f32.mrb[0].mxu0
      %v2198 = vpop.f32.mrb[0].mxu0
      %v2199 = vadd.f32 %v2102, %v2198
      %v2200 = vpop.f32.mrb[0].mxu0
      %2201 = vmatprep.mubr.bf16.mxu0 %v988
      %2202 = vmatmul.mubr.bf16.gmra.mrb[0].mxu0 %v987
      %v2203 = vpop.f32.mrb[0].mxu0
      %v2204 = vadd.f32 %v2107, %v2203
      %v2205 = vpop.f32.mrb[0].mxu0
      %v2206 = vpop.f32.mrb[0].mxu0
      %v2207 = vadd.f32 %v2110, %v2206
      %v2208 = vpop.f32.mrb[0].mxu0
      %2209 = vmatprep.mubr.bf16.mxu0 %v1004
      %2210 = vmatmul.mubr.bf16.gmra.mrb[0].mxu0 %v1003
      %v2211 = vpop.f32.mrb[0].mxu0
      %v2212 = vadd.f32 %v2115, %v2211
      %v2213 = vpop.f32.mrb[0].mxu0
      %v2214 = vpop.f32.mrb[0].mxu0
      %v2215 = vadd.f32 %v2118, %v2214
      %v2216 = vpop.f32.mrb[0].mxu0
      %2217 = vmatprep.mubr.bf16.mxu0 %v1020
      %2218 = vmatmul.mubr.bf16.gmra.mrb[0].mxu0 %v1019
      %v2219 = vpop.f32.mrb[0].mxu0
      %v2220 = vadd.f32 %v2123, %v2219
      %v2221 = vpop.f32.mrb[0].mxu0
      %v2222 = vpop.f32.mrb[0].mxu0
      %v2223 = vadd.f32 %v2126, %v2222
      %v2224 = vpop.f32.mrb[0].mxu0
      %2225 = vmatprep.mubr.bf16.mxu0 %v1036
      %2226 = vmatmul.mubr.bf16.gmra.mrb[0].mxu0 %v1035
      %v2227 = vpop.f32.mrb[0].mxu0
      %v2228 = vadd.f32 %v2131, %v2227
      %v2229 = vpop.f32.mrb[0].mxu0
      %v2230 = vpop.f32.mrb[0].mxu0
      %v2231 = vadd.f32 %v2134, %v2230
      %v2232 = vpop.f32.mrb[0].mxu0
      %2233 = vdwg.mxu0
      %2234 = vmatprep.subr.bf16.mxu0 0
      %2235 = vmatpush1.bf16.msra.mxu0 %v1735
      %2236 = vmatprep.subr.bf16.mxu0 0
      %2237 = vmatpush1.bf16.msra.mxu0 %v1736
      %2238 = vmatprep.subr.bf16.mxu0 0
      %2239 = vmatpush1.bf16.msra.mxu0 %v1737
      %2240 = vmatprep.subr.bf16.mxu0 0
      %2241 = vmatpush1.bf16.msra.mxu0 %v1738
      %2242 = vmatprep.subr.bf16.mxu0 0
      %2243 = vmatpush1.bf16.msra.mxu0 %v1739
      %2244 = vmatprep.subr.bf16.mxu0 0
      %2245 = vmatpush1.bf16.msra.mxu0 %v1740
      %2246 = vmatprep.subr.bf16.mxu0 0
      %2247 = vmatpush1.bf16.msra.mxu0 %v1741
      %2248 = vmatprep.subr.bf16.mxu0 0
      %2249 = vmatpush1.bf16.msra.mxu0 %v1742
      %2250 = vmatprep.subr.bf16.mxu0 0
      %2251 = vmatpush1.bf16.msra.mxu0 %v1743
      %2252 = vmatprep.subr.bf16.mxu0 0
      %2253 = vmatpush1.bf16.msra.mxu0 %v1744
      %2254 = vmatprep.subr.bf16.mxu0 0
      %2255 = vmatpush1.bf16.msra.mxu0 %v1745
      %2256 = vmatprep.subr.bf16.mxu0 0
      %2257 = vmatpush1.bf16.msra.mxu0 %v1746
      %2258 = vmatprep.subr.bf16.mxu0 0
      %2259 = vmatpush1.bf16.msra.mxu0 %v1747
      %2260 = vmatprep.subr.bf16.mxu0 0
      %2261 = vmatpush1.bf16.msra.mxu0 %v1748
      %2262 = vmatprep.subr.bf16.mxu0 0
      %2263 = vmatpush1.bf16.msra.mxu0 %v1749
      %2264 = vmatprep.subr.bf16.mxu0 0
      %2265 = vmatpush1.bf16.msra.mxu0 %v1750
      %2266 = vmatprep.mubr.bf16.mxu0 %v926
      %2267 = vmatmul.mubr.bf16.gmra.mrb[0].mxu0 %v925
      %v2268 = vpop.f32.mrb[0].mxu0
      %v2269 = vadd.f32 %v2172, %v2268
      %v2270 = vpop.f32.mrb[0].mxu0
      %v2271 = vpop.f32.mrb[0].mxu0
      %v2272 = vadd.f32 %v2175, %v2271
      %v2273 = vpop.f32.mrb[0].mxu0
      %2274 = vmatprep.mubr.bf16.mxu0 %v942
      %2275 = vmatmul.mubr.bf16.gmra.mrb[0].mxu0 %v941
      %v2276 = vpop.f32.mrb[0].mxu0
      %v2277 = vadd.f32 %v2180, %v2276
      %v2278 = vpop.f32.mrb[0].mxu0
      %v2279 = vpop.f32.mrb[0].mxu0
      %v2280 = vadd.f32 %v2183, %v2279
      %v2281 = vpop.f32.mrb[0].mxu0
      %2282 = vmatprep.mubr.bf16.mxu0 %v958
      %2283 = vmatmul.mubr.bf16.gmra.mrb[0].mxu0 %v957
      %v2284 = vpop.f32.mrb[0].mxu0
      %v2285 = vadd.f32 %v2188, %v2284
      %v2286 = vpop.f32.mrb[0].mxu0
      %v2287 = vpop.f32.mrb[0].mxu0
      %v2288 = vadd.f32 %v2191, %v2287
      %v2289 = vpop.f32.mrb[0].mxu0
      %2290 = vmatprep.mubr.bf16.mxu0 %v974
      %2291 = vmatmul.mubr.bf16.gmra.mrb[0].mxu0 %v973
      %v2292 = vpop.f32.mrb[0].mxu0
      %v2293 = vadd.f32 %v2196, %v2292
      %v2294 = vpop.f32.mrb[0].mxu0
      %v2295 = vpop.f32.mrb[0].mxu0
      %v2296 = vadd.f32 %v2199, %v2295
      %v2297 = vpop.f32.mrb[0].mxu0
      %2298 = vmatprep.mubr.bf16.mxu0 %v990
      %2299 = vmatmul.mubr.bf16.gmra.mrb[0].mxu0 %v989
      %v2300 = vpop.f32.mrb[0].mxu0
      %v2301 = vadd.f32 %v2204, %v2300
      %v2302 = vpop.f32.mrb[0].mxu0
      %v2303 = vpop.f32.mrb[0].mxu0
      %v2304 = vadd.f32 %v2207, %v2303
      %v2305 = vpop.f32.mrb[0].mxu0
      %2306 = vmatprep.mubr.bf16.mxu0 %v1006
      %2307 = vmatmul.mubr.bf16.gmra.mrb[0].mxu0 %v1005
      %v2308 = vpop.f32.mrb[0].mxu0
      %v2309 = vadd.f32 %v2212, %v2308
      %v2310 = vpop.f32.mrb[0].mxu0
      %v2311 = vpop.f32.mrb[0].mxu0
      %v2312 = vadd.f32 %v2215, %v2311
      %v2313 = vpop.f32.mrb[0].mxu0
      %2314 = vmatprep.mubr.bf16.mxu0 %v1022
      %2315 = vmatmul.mubr.bf16.gmra.mrb[0].mxu0 %v1021
      %v2316 = vpop.f32.mrb[0].mxu0
      %v2317 = vadd.f32 %v2220, %v2316
      %v2318 = vpop.f32.mrb[0].mxu0
      %v2319 = vpop.f32.mrb[0].mxu0
      %v2320 = vadd.f32 %v2223, %v2319
      %v2321 = vpop.f32.mrb[0].mxu0
      %2322 = vmatprep.mubr.bf16.mxu0 %v1038
      %2323 = vmatmul.mubr.bf16.gmra.mrb[0].mxu0 %v1037
      %v2324 = vpop.f32.mrb[0].mxu0
      %v2325 = vadd.f32 %v2228, %v2324
      %v2326 = vpop.f32.mrb[0].mxu0
      %v2327 = vpop.f32.mrb[0].mxu0
      %v2328 = vadd.f32 %v2231, %v2327
      %v2329 = vpop.f32.mrb[0].mxu0
      %2330 = vdwg.mxu0
      %2331 = vmatprep.subr.bf16.mxu0 0
      %2332 = vmatpush1.bf16.msra.mxu0 %v1751
      %2333 = vmatprep.subr.bf16.mxu0 0
      %2334 = vmatpush1.bf16.msra.mxu0 %v1752
      %2335 = vmatprep.subr.bf16.mxu0 0
      %2336 = vmatpush1.bf16.msra.mxu0 %v1753
      %2337 = vmatprep.subr.bf16.mxu0 0
      %2338 = vmatpush1.bf16.msra.mxu0 %v1754
      %2339 = vmatprep.subr.bf16.mxu0 0
      %2340 = vmatpush1.bf16.msra.mxu0 %v1755
      %2341 = vmatprep.subr.bf16.mxu0 0
      %2342 = vmatpush1.bf16.msra.mxu0 %v1756
      %2343 = vmatprep.subr.bf16.mxu0 0
      %2344 = vmatpush1.bf16.msra.mxu0 %v1757
      %2345 = vmatprep.subr.bf16.mxu0 0
      %2346 = vmatpush1.bf16.msra.mxu0 %v1758
      %2347 = vmatprep.subr.bf16.mxu0 0
      %2348 = vmatpush1.bf16.msra.mxu0 %v1759
      %2349 = vmatprep.subr.bf16.mxu0 0
      %2350 = vmatpush1.bf16.msra.mxu0 %v1760
      %2351 = vmatprep.subr.bf16.mxu0 0
      %2352 = vmatpush1.bf16.msra.mxu0 %v1761
      %2353 = vmatprep.subr.bf16.mxu0 0
      %2354 = vmatpush1.bf16.msra.mxu0 %v1762
      %2355 = vmatprep.subr.bf16.mxu0 0
      %2356 = vmatpush1.bf16.msra.mxu0 %v1763
      %2357 = vmatprep.subr.bf16.mxu0 0
      %2358 = vmatpush1.bf16.msra.mxu0 %v1764
      %2359 = vmatprep.subr.bf16.mxu0 0
      %2360 = vmatpush1.bf16.msra.mxu0 %v1765
      %2361 = vmatprep.subr.bf16.mxu0 0
      %2362 = vmatpush1.bf16.msra.mxu0 %v1766
      %2363 = vmatprep.mubr.bf16.mxu0 %v928
      %2364 = vmatmul.mubr.bf16.gmra.mrb[0].mxu0 %v927
      %v2365 = vpop.f32.mrb[0].mxu0
      %v2366 = vadd.f32 %v2269, %v2365
      %v2367 = vpop.f32.mrb[0].mxu0
      %v2368 = vpop.f32.mrb[0].mxu0
      %v2369 = vadd.f32 %v2272, %v2368
      %v2370 = vpop.f32.mrb[0].mxu0
      %2371 = vmatprep.mubr.bf16.mxu0 %v944
      %2372 = vmatmul.mubr.bf16.gmra.mrb[0].mxu0 %v943
      %v2373 = vpop.f32.mrb[0].mxu0
      %v2374 = vadd.f32 %v2277, %v2373
      %v2375 = vpop.f32.mrb[0].mxu0
      %v2376 = vpop.f32.mrb[0].mxu0
      %v2377 = vadd.f32 %v2280, %v2376
      %v2378 = vpop.f32.mrb[0].mxu0
      %2379 = vmatprep.mubr.bf16.mxu0 %v960
      %2380 = vmatmul.mubr.bf16.gmra.mrb[0].mxu0 %v959
      %v2381 = vpop.f32.mrb[0].mxu0
      %v2382 = vadd.f32 %v2285, %v2381
      %v2383 = vpop.f32.mrb[0].mxu0
      %v2384 = vpop.f32.mrb[0].mxu0
      %v2385 = vadd.f32 %v2288, %v2384
      %v2386 = vpop.f32.mrb[0].mxu0
      %2387 = vmatprep.mubr.bf16.mxu0 %v976
      %2388 = vmatmul.mubr.bf16.gmra.mrb[0].mxu0 %v975
      %v2389 = vpop.f32.mrb[0].mxu0
      %v2390 = vadd.f32 %v2293, %v2389
      %v2391 = vpop.f32.mrb[0].mxu0
      %v2392 = vpop.f32.mrb[0].mxu0
      %v2393 = vadd.f32 %v2296, %v2392
      %v2394 = vpop.f32.mrb[0].mxu0
      %2395 = vmatprep.mubr.bf16.mxu0 %v992
      %2396 = vmatmul.mubr.bf16.gmra.mrb[0].mxu0 %v991
      %v2397 = vpop.f32.mrb[0].mxu0
      %v2398 = vadd.f32 %v2301, %v2397
      %v2399 = vpop.f32.mrb[0].mxu0
      %v2400 = vpop.f32.mrb[0].mxu0
      %v2401 = vadd.f32 %v2304, %v2400
      %v2402 = vpop.f32.mrb[0].mxu0
      %2403 = vmatprep.mubr.bf16.mxu0 %v1008
      %2404 = vmatmul.mubr.bf16.gmra.mrb[0].mxu0 %v1007
      %v2405 = vpop.f32.mrb[0].mxu0
      %v2406 = vadd.f32 %v2309, %v2405
      %v2407 = vpop.f32.mrb[0].mxu0
      %v2408 = vpop.f32.mrb[0].mxu0
      %v2409 = vadd.f32 %v2312, %v2408
      %v2410 = vpop.f32.mrb[0].mxu0
      %2411 = vmatprep.mubr.bf16.mxu0 %v1024
      %2412 = vmatmul.mubr.bf16.gmra.mrb[0].mxu0 %v1023
      %v2413 = vpop.f32.mrb[0].mxu0
      %v2414 = vadd.f32 %v2317, %v2413
      %v2415 = vpop.f32.mrb[0].mxu0
      %v2416 = vpop.f32.mrb[0].mxu0
      %v2417 = vadd.f32 %v2320, %v2416
      %v2418 = vpop.f32.mrb[0].mxu0
      %2419 = vmatprep.mubr.bf16.mxu0 %v1040
      %2420 = vmatmul.mubr.bf16.gmra.mrb[0].mxu0 %v1039
      %v2421 = vpop.f32.mrb[0].mxu0
      %v2422 = vadd.f32 %v2325, %v2421
      %v2423 = vpop.f32.mrb[0].mxu0
      %v2424 = vpop.f32.mrb[0].mxu0
      %v2425 = vadd.f32 %v2328, %v2424
      %v2426 = vpop.f32.mrb[0].mxu0
      %2427 = vdwg.mxu0
      %2428 = vmatprep.subr.bf16.mxu0 0
      %2429 = vmatpush1.bf16.msra.mxu0 %v1767
      %2430 = vmatprep.subr.bf16.mxu0 0
      %2431 = vmatpush1.bf16.msra.mxu0 %v1768
      %2432 = vmatprep.subr.bf16.mxu0 0
      %2433 = vmatpush1.bf16.msra.mxu0 %v1769
      %2434 = vmatprep.subr.bf16.mxu0 0
      %2435 = vmatpush1.bf16.msra.mxu0 %v1770
      %2436 = vmatprep.subr.bf16.mxu0 0
      %2437 = vmatpush1.bf16.msra.mxu0 %v1771
      %2438 = vmatprep.subr.bf16.mxu0 0
      %2439 = vmatpush1.bf16.msra.mxu0 %v1772
      %2440 = vmatprep.subr.bf16.mxu0 0
      %2441 = vmatpush1.bf16.msra.mxu0 %v1773
      %2442 = vmatprep.subr.bf16.mxu0 0
      %2443 = vmatpush1.bf16.msra.mxu0 %v1774
      %2444 = vmatprep.subr.bf16.mxu0 0
      %2445 = vmatpush1.bf16.msra.mxu0 %v1775
      %2446 = vmatprep.subr.bf16.mxu0 0
      %2447 = vmatpush1.bf16.msra.mxu0 %v1776
      %2448 = vmatprep.subr.bf16.mxu0 0
      %2449 = vmatpush1.bf16.msra.mxu0 %v1777
      %2450 = vmatprep.subr.bf16.mxu0 0
      %2451 = vmatpush1.bf16.msra.mxu0 %v1778
      %2452 = vmatprep.subr.bf16.mxu0 0
      %2453 = vmatpush1.bf16.msra.mxu0 %v1779
      %2454 = vmatprep.subr.bf16.mxu0 0
      %2455 = vmatpush1.bf16.msra.mxu0 %v1780
      %2456 = vmatprep.subr.bf16.mxu0 0
      %2457 = vmatpush1.bf16.msra.mxu0 %v1781
      %2458 = vmatprep.subr.bf16.mxu0 0
      %2459 = vmatpush1.bf16.msra.mxu0 %v1782
      %2460 = vmatprep.mubr.bf16.mxu0 %v930
      %2461 = vmatmul.mubr.bf16.gmra.mrb[0].mxu0 %v929
      %v2462 = vpop.f32.mrb[0].mxu0
      %v2463 = vadd.f32 %v2366, %v2462
      %v2464 = vpop.f32.mrb[0].mxu0
      %v2465 = vpop.f32.mrb[0].mxu0
      %v2466 = vadd.f32 %v2369, %v2465
      %v2467 = vpop.f32.mrb[0].mxu0
      %2468 = vmatprep.mubr.bf16.mxu0 %v946
      %2469 = vmatmul.mubr.bf16.gmra.mrb[0].mxu0 %v945
      %v2470 = vpop.f32.mrb[0].mxu0
      %v2471 = vadd.f32 %v2374, %v2470
      %v2472 = vpop.f32.mrb[0].mxu0
      %v2473 = vpop.f32.mrb[0].mxu0
      %v2474 = vadd.f32 %v2377, %v2473
      %v2475 = vpop.f32.mrb[0].mxu0
      %2476 = vmatprep.mubr.bf16.mxu0 %v962
      %2477 = vmatmul.mubr.bf16.gmra.mrb[0].mxu0 %v961
      %v2478 = vpop.f32.mrb[0].mxu0
      %v2479 = vadd.f32 %v2382, %v2478
      %v2480 = vpop.f32.mrb[0].mxu0
      %v2481 = vpop.f32.mrb[0].mxu0
      %v2482 = vadd.f32 %v2385, %v2481
      %v2483 = vpop.f32.mrb[0].mxu0
      %2484 = vmatprep.mubr.bf16.mxu0 %v978
      %2485 = vmatmul.mubr.bf16.gmra.mrb[0].mxu0 %v977
      %v2486 = vpop.f32.mrb[0].mxu0
      %v2487 = vadd.f32 %v2390, %v2486
      %v2488 = vpop.f32.mrb[0].mxu0
      %v2489 = vpop.f32.mrb[0].mxu0
      %v2490 = vadd.f32 %v2393, %v2489
      %v2491 = vpop.f32.mrb[0].mxu0
      %2492 = vmatprep.mubr.bf16.mxu0 %v994
      %2493 = vmatmul.mubr.bf16.gmra.mrb[0].mxu0 %v993
      %v2494 = vpop.f32.mrb[0].mxu0
      %v2495 = vadd.f32 %v2398, %v2494
      %v2496 = vpop.f32.mrb[0].mxu0
      %v2497 = vpop.f32.mrb[0].mxu0
      %v2498 = vadd.f32 %v2401, %v2497
      %v2499 = vpop.f32.mrb[0].mxu0
      %2500 = vmatprep.mubr.bf16.mxu0 %v1010
      %2501 = vmatmul.mubr.bf16.gmra.mrb[0].mxu0 %v1009
      %v2502 = vpop.f32.mrb[0].mxu0
      %v2503 = vadd.f32 %v2406, %v2502
      %v2504 = vpop.f32.mrb[0].mxu0
      %v2505 = vpop.f32.mrb[0].mxu0
      %v2506 = vadd.f32 %v2409, %v2505
      %v2507 = vpop.f32.mrb[0].mxu0
      %2508 = vmatprep.mubr.bf16.mxu0 %v1026
      %2509 = vmatmul.mubr.bf16.gmra.mrb[0].mxu0 %v1025
      %v2510 = vpop.f32.mrb[0].mxu0
      %v2511 = vadd.f32 %v2414, %v2510
      %v2512 = vpop.f32.mrb[0].mxu0
      %v2513 = vpop.f32.mrb[0].mxu0
      %v2514 = vadd.f32 %v2417, %v2513
      %v2515 = vpop.f32.mrb[0].mxu0
      %2516 = vmatprep.mubr.bf16.mxu0 %v1042
      %2517 = vmatmul.mubr.bf16.gmra.mrb[0].mxu0 %v1041
      %v2518 = vpop.f32.mrb[0].mxu0
      %v2519 = vadd.f32 %v2422, %v2518
      %v2520 = vpop.f32.mrb[0].mxu0
      %v2521 = vpop.f32.mrb[0].mxu0
      %v2522 = vadd.f32 %v2425, %v2521
      %v2523 = vpop.f32.mrb[0].mxu0
      %2524 = vdwg.mxu0
      %2525 = vmatprep.subr.bf16.mxu0 0
      %2526 = vmatpush1.bf16.msra.mxu0 %v1783
      %2527 = vmatprep.subr.bf16.mxu0 0
      %2528 = vmatpush1.bf16.msra.mxu0 %v1784
      %2529 = vmatprep.subr.bf16.mxu0 0
      %2530 = vmatpush1.bf16.msra.mxu0 %v1785
      %2531 = vmatprep.subr.bf16.mxu0 0
      %2532 = vmatpush1.bf16.msra.mxu0 %v1786
      %2533 = vmatprep.subr.bf16.mxu0 0
      %2534 = vmatpush1.bf16.msra.mxu0 %v1787
      %2535 = vmatprep.subr.bf16.mxu0 0
      %2536 = vmatpush1.bf16.msra.mxu0 %v1788
      %2537 = vmatprep.subr.bf16.mxu0 0
      %2538 = vmatpush1.bf16.msra.mxu0 %v1789
      %2539 = vmatprep.subr.bf16.mxu0 0
      %2540 = vmatpush1.bf16.msra.mxu0 %v1790
      %2541 = vmatprep.subr.bf16.mxu0 0
      %2542 = vmatpush1.bf16.msra.mxu0 %v1791
      %2543 = vmatprep.subr.bf16.mxu0 0
      %2544 = vmatpush1.bf16.msra.mxu0 %v1792
      %2545 = vmatprep.subr.bf16.mxu0 0
      %2546 = vmatpush1.bf16.msra.mxu0 %v1793
      %2547 = vmatprep.subr.bf16.mxu0 0
      %2548 = vmatpush1.bf16.msra.mxu0 %v1794
      %2549 = vmatprep.subr.bf16.mxu0 0
      %2550 = vmatpush1.bf16.msra.mxu0 %v1795
      %2551 = vmatprep.subr.bf16.mxu0 0
      %2552 = vmatpush1.bf16.msra.mxu0 %v1796
      %2553 = vmatprep.subr.bf16.mxu0 0
      %2554 = vmatpush1.bf16.msra.mxu0 %v1797
      %2555 = vmatprep.subr.bf16.mxu0 0
      %2556 = vmatpush1.bf16.msra.mxu0 %v1798
      %2557 = vmatprep.mubr.bf16.mxu0 %v932
      %2558 = vmatmul.mubr.bf16.gmra.mrb[0].mxu0 %v931
      %v2559 = vpop.f32.mrb[0].mxu0
      %v2560 = vadd.f32 %v2463, %v2559
      %v2561 = vpop.f32.mrb[0].mxu0
      %v2562 = vpop.f32.mrb[0].mxu0
      %v2563 = vadd.f32 %v2466, %v2562
      %v2564 = vpop.f32.mrb[0].mxu0
      %2565 = vmatprep.mubr.bf16.mxu0 %v948
      %2566 = vmatmul.mubr.bf16.gmra.mrb[0].mxu0 %v947
      %v2567 = vpop.f32.mrb[0].mxu0
      %v2568 = vadd.f32 %v2471, %v2567
      %v2569 = vpop.f32.mrb[0].mxu0
      %v2570 = vpop.f32.mrb[0].mxu0
      %v2571 = vadd.f32 %v2474, %v2570
      %v2572 = vpop.f32.mrb[0].mxu0
      %2573 = vmatprep.mubr.bf16.mxu0 %v964
      %2574 = vmatmul.mubr.bf16.gmra.mrb[0].mxu0 %v963
      %v2575 = vpop.f32.mrb[0].mxu0
      %v2576 = vadd.f32 %v2479, %v2575
      %v2577 = vpop.f32.mrb[0].mxu0
      %v2578 = vpop.f32.mrb[0].mxu0
      %v2579 = vadd.f32 %v2482, %v2578
      %v2580 = vpop.f32.mrb[0].mxu0
      %2581 = vmatprep.mubr.bf16.mxu0 %v980
      %2582 = vmatmul.mubr.bf16.gmra.mrb[0].mxu0 %v979
      %v2583 = vpop.f32.mrb[0].mxu0
      %v2584 = vadd.f32 %v2487, %v2583
      %v2585 = vpop.f32.mrb[0].mxu0
      %v2586 = vpop.f32.mrb[0].mxu0
      %v2587 = vadd.f32 %v2490, %v2586
      %v2588 = vpop.f32.mrb[0].mxu0
      %2589 = vmatprep.mubr.bf16.mxu0 %v996
      %2590 = vmatmul.mubr.bf16.gmra.mrb[0].mxu0 %v995
      %v2591 = vpop.f32.mrb[0].mxu0
      %v2592 = vadd.f32 %v2495, %v2591
      %v2593 = vpop.f32.mrb[0].mxu0
      %v2594 = vpop.f32.mrb[0].mxu0
      %v2595 = vadd.f32 %v2498, %v2594
      %v2596 = vpop.f32.mrb[0].mxu0
      %2597 = vmatprep.mubr.bf16.mxu0 %v1012
      %2598 = vmatmul.mubr.bf16.gmra.mrb[0].mxu0 %v1011
      %v2599 = vpop.f32.mrb[0].mxu0
      %v2600 = vadd.f32 %v2503, %v2599
      %v2601 = vpop.f32.mrb[0].mxu0
      %v2602 = vpop.f32.mrb[0].mxu0
      %v2603 = vadd.f32 %v2506, %v2602
      %v2604 = vpop.f32.mrb[0].mxu0
      %2605 = vmatprep.mubr.bf16.mxu0 %v1028
      %2606 = vmatmul.mubr.bf16.gmra.mrb[0].mxu0 %v1027
      %v2607 = vpop.f32.mrb[0].mxu0
      %v2608 = vadd.f32 %v2511, %v2607
      %v2609 = vpop.f32.mrb[0].mxu0
      %v2610 = vpop.f32.mrb[0].mxu0
      %v2611 = vadd.f32 %v2514, %v2610
      %v2612 = vpop.f32.mrb[0].mxu0
      %2613 = vmatprep.mubr.bf16.mxu0 %v1044
      %2614 = vmatmul.mubr.bf16.gmra.mrb[0].mxu0 %v1043
      %v2615 = vpop.f32.mrb[0].mxu0
      %v2616 = vadd.f32 %v2519, %v2615
      %v2617 = vpop.f32.mrb[0].mxu0
      %v2618 = vpop.f32.mrb[0].mxu0
      %v2619 = vadd.f32 %v2522, %v2618
      %v2620 = vpop.f32.mrb[0].mxu0
      %2621 = vdwg.mxu0
      %2622 = vmatprep.subr.bf16.mxu0 0
      %2623 = vmatpush1.bf16.msra.mxu0 %v1799
      %2624 = vmatprep.subr.bf16.mxu0 0
      %2625 = vmatpush1.bf16.msra.mxu0 %v1800
      %2626 = vmatprep.subr.bf16.mxu0 0
      %2627 = vmatpush1.bf16.msra.mxu0 %v1801
      %2628 = vmatprep.subr.bf16.mxu0 0
      %2629 = vmatpush1.bf16.msra.mxu0 %v1802
      %2630 = vmatprep.subr.bf16.mxu0 0
      %2631 = vmatpush1.bf16.msra.mxu0 %v1803
      %2632 = vmatprep.subr.bf16.mxu0 0
      %2633 = vmatpush1.bf16.msra.mxu0 %v1804
      %2634 = vmatprep.subr.bf16.mxu0 0
      %2635 = vmatpush1.bf16.msra.mxu0 %v1805
      %2636 = vmatprep.subr.bf16.mxu0 0
      %2637 = vmatpush1.bf16.msra.mxu0 %v1806
      %2638 = vmatprep.subr.bf16.mxu0 0
      %2639 = vmatpush1.bf16.msra.mxu0 %v1807
      %2640 = vmatprep.subr.bf16.mxu0 0
      %2641 = vmatpush1.bf16.msra.mxu0 %v1808
      %2642 = vmatprep.subr.bf16.mxu0 0
      %2643 = vmatpush1.bf16.msra.mxu0 %v1809
      %2644 = vmatprep.subr.bf16.mxu0 0
      %2645 = vmatpush1.bf16.msra.mxu0 %v1810
      %2646 = vmatprep.subr.bf16.mxu0 0
      %2647 = vmatpush1.bf16.msra.mxu0 %v1811
      %2648 = vmatprep.subr.bf16.mxu0 0
      %2649 = vmatpush1.bf16.msra.mxu0 %v1812
      %2650 = vmatprep.subr.bf16.mxu0 0
      %2651 = vmatpush1.bf16.msra.mxu0 %v1813
      %2652 = vmatprep.subr.bf16.mxu0 0
      %2653 = vmatpush1.bf16.msra.mxu0 %v1814
      %2654 = vmatprep.mubr.bf16.mxu0 %v934
      %2655 = vmatmul.mubr.bf16.gmra.mrb[0].mxu0 %v933
      %v2656 = vpop.f32.mrb[0].mxu0
      %v2657 = vadd.f32 %v2560, %v2656
      %v2658 = vpop.f32.mrb[0].mxu0
      %v2659 = vpop.f32.mrb[0].mxu0
      %v2660 = vadd.f32 %v2563, %v2659
      %v2661 = vpop.f32.mrb[0].mxu0
      %2662 = vmatprep.mubr.bf16.mxu0 %v950
      %2663 = vmatmul.mubr.bf16.gmra.mrb[0].mxu0 %v949
      %v2664 = vpop.f32.mrb[0].mxu0
      %v2665 = vadd.f32 %v2568, %v2664
      %v2666 = vpop.f32.mrb[0].mxu0
      %v2667 = vpop.f32.mrb[0].mxu0
      %v2668 = vadd.f32 %v2571, %v2667
      %v2669 = vpop.f32.mrb[0].mxu0
      %2670 = vmatprep.mubr.bf16.mxu0 %v966
      %2671 = vmatmul.mubr.bf16.gmra.mrb[0].mxu0 %v965
      %v2672 = vpop.f32.mrb[0].mxu0
      %v2673 = vadd.f32 %v2576, %v2672
      %v2674 = vpop.f32.mrb[0].mxu0
      %v2675 = vpop.f32.mrb[0].mxu0
      %v2676 = vadd.f32 %v2579, %v2675
      %v2677 = vpop.f32.mrb[0].mxu0
      %2678 = vmatprep.mubr.bf16.mxu0 %v982
      %2679 = vmatmul.mubr.bf16.gmra.mrb[0].mxu0 %v981
      %v2680 = vpop.f32.mrb[0].mxu0
      %v2681 = vadd.f32 %v2584, %v2680
      %v2682 = vpop.f32.mrb[0].mxu0
      %v2683 = vpop.f32.mrb[0].mxu0
      %v2684 = vadd.f32 %v2587, %v2683
      %v2685 = vpop.f32.mrb[0].mxu0
      %2686 = vmatprep.mubr.bf16.mxu0 %v998
      %2687 = vmatmul.mubr.bf16.gmra.mrb[0].mxu0 %v997
      %v2688 = vpop.f32.mrb[0].mxu0
      %v2689 = vadd.f32 %v2592, %v2688
      %v2690 = vpop.f32.mrb[0].mxu0
      %v2691 = vpop.f32.mrb[0].mxu0
      %v2692 = vadd.f32 %v2595, %v2691
      %v2693 = vpop.f32.mrb[0].mxu0
      %2694 = vmatprep.mubr.bf16.mxu0 %v1014
      %2695 = vmatmul.mubr.bf16.gmra.mrb[0].mxu0 %v1013
      %v2696 = vpop.f32.mrb[0].mxu0
      %v2697 = vadd.f32 %v2600, %v2696
      %v2698 = vpop.f32.mrb[0].mxu0
      %v2699 = vpop.f32.mrb[0].mxu0
      %v2700 = vadd.f32 %v2603, %v2699
      %v2701 = vpop.f32.mrb[0].mxu0
      %2702 = vmatprep.mubr.bf16.mxu0 %v1030
      %2703 = vmatmul.mubr.bf16.gmra.mrb[0].mxu0 %v1029
      %v2704 = vpop.f32.mrb[0].mxu0
      %v2705 = vadd.f32 %v2608, %v2704
      %v2706 = vpop.f32.mrb[0].mxu0
      %v2707 = vpop.f32.mrb[0].mxu0
      %v2708 = vadd.f32 %v2611, %v2707
      %v2709 = vpop.f32.mrb[0].mxu0
      %2710 = vmatprep.mubr.bf16.mxu0 %v1046
      %2711 = vmatmul.mubr.bf16.gmra.mrb[0].mxu0 %v1045
      %v2712 = vpop.f32.mrb[0].mxu0
      %v2713 = vadd.f32 %v2616, %v2712
      %v2714 = vpop.f32.mrb[0].mxu0
      %v2715 = vpop.f32.mrb[0].mxu0
      %v2716 = vadd.f32 %v2619, %v2715
      %v2717 = vpop.f32.mrb[0].mxu0
      %2718 = vdwg.mxu0
      %vm2719 = vcmp.ge.f32.partialorder %v2657, 0.0
      %vm2720 = vcmp.ge.f32.partialorder %v2660, 0.0
      %vm2721 = vcmp.ge.f32.partialorder %v2665, 0.0
      %vm2722 = vcmp.ge.f32.partialorder %v2668, 0.0
      %vm2723 = vcmp.ge.f32.partialorder %v2673, 0.0
      %vm2724 = vcmp.ge.f32.partialorder %v2676, 0.0
      %vm2725 = vcmp.ge.f32.partialorder %v2681, 0.0
      %vm2726 = vcmp.ge.f32.partialorder %v2684, 0.0
      %vm2727 = vcmp.ge.f32.partialorder %v2689, 0.0
      %vm2728 = vcmp.ge.f32.partialorder %v2692, 0.0
      %vm2729 = vcmp.ge.f32.partialorder %v2697, 0.0
      %vm2730 = vcmp.ge.f32.partialorder %v2700, 0.0
      %vm2731 = vcmp.ge.f32.partialorder %v2705, 0.0
      %vm2732 = vcmp.ge.f32.partialorder %v2708, 0.0
      %vm2733 = vcmp.ge.f32.partialorder %v2713, 0.0
      %vm2734 = vcmp.ge.f32.partialorder %v2716, 0.0
      %v2735 = vmul.f32 %v2657, 0.2
      %v2736 = vmul.f32 %v2660, 0.2
      %v2737 = vmul.f32 %v2665, 0.2
      %v2738 = vmul.f32 %v2668, 0.2
      %v2739 = vmul.f32 %v2673, 0.2
      %v2740 = vmul.f32 %v2676, 0.2
      %v2741 = vmul.f32 %v2681, 0.2
      %v2742 = vmul.f32 %v2684, 0.2
      %v2743 = vmul.f32 %v2689, 0.2
      %v2744 = vmul.f32 %v2692, 0.2
      %v2745 = vmul.f32 %v2697, 0.2
      %v2746 = vmul.f32 %v2700, 0.2
      %v2747 = vmul.f32 %v2705, 0.2
      %v2748 = vmul.f32 %v2708, 0.2
      %v2749 = vmul.f32 %v2713, 0.2
      %v2750 = vmul.f32 %v2716, 0.2
      %v2751 = vsel %vm2719, %v2657, %v2735
      %v2752 = vsel %vm2720, %v2660, %v2736
      %v2753 = vsel %vm2721, %v2665, %v2737
      %v2754 = vsel %vm2722, %v2668, %v2738
      %v2755 = vsel %vm2723, %v2673, %v2739
      %v2756 = vsel %vm2724, %v2676, %v2740
      %v2757 = vsel %vm2725, %v2681, %v2741
      %v2758 = vsel %vm2726, %v2684, %v2742
      %v2759 = vsel %vm2727, %v2689, %v2743
      %v2760 = vsel %vm2728, %v2692, %v2744
      %v2761 = vsel %vm2729, %v2697, %v2745
      %v2762 = vsel %vm2730, %v2700, %v2746
      %v2763 = vsel %vm2731, %v2705, %v2747
      %v2764 = vsel %vm2732, %v2708, %v2748
      %v2765 = vsel %vm2733, %v2713, %v2749
      %v2766 = vsel %vm2734, %v2716, %v2750
      %v2767 = vpack.c.bf16 %v2752, %v2751
      %v2768 = vpack.c.bf16 %v2754, %v2753
      %v2769 = vpack.c.bf16 %v2756, %v2755
      %v2770 = vpack.c.bf16 %v2758, %v2757
      %v2771 = vpack.c.bf16 %v2760, %v2759
      %v2772 = vpack.c.bf16 %v2762, %v2761
      %v2773 = vpack.c.bf16 %v2764, %v2763
      %v2774 = vpack.c.bf16 %v2766, %v2765
      %v2783 = vunpack.c.l.b16 %v2767
      %v2784 = vunpack.c.h.b16 %v2767
      %v2785 = vunpack.c.l.b16 %v2768
      %v2786 = vunpack.c.h.b16 %v2768
      %v2787 = vunpack.c.l.b16 %v2769
      %v2788 = vunpack.c.h.b16 %v2769
      %v2789 = vunpack.c.l.b16 %v2770
      %v2790 = vunpack.c.h.b16 %v2770
      %v2791 = vunpack.c.l.b16 %v2771
      %v2792 = vunpack.c.h.b16 %v2771
      %v2793 = vunpack.c.l.b16 %v2772
      %v2794 = vunpack.c.h.b16 %v2772
      %v2795 = vunpack.c.l.b16 %v2773
      %v2796 = vunpack.c.h.b16 %v2773
      %v2797 = vunpack.c.l.b16 %v2774
      %v2798 = vunpack.c.h.b16 %v2774
      %v2799 = vpack.c.b16 %v2783, %v2783
      %v2800 = vpack.c.b16 %v2784, %v2784
      %v2801 = vpack.c.b16 %v2785, %v2785
      %v2802 = vpack.c.b16 %v2786, %v2786
      %v2803 = vpack.c.b16 %v2787, %v2787
      %v2804 = vpack.c.b16 %v2788, %v2788
      %v2805 = vpack.c.b16 %v2789, %v2789
      %v2806 = vpack.c.b16 %v2790, %v2790
      %v2807 = vpack.c.b16 %v2791, %v2791
      %v2808 = vpack.c.b16 %v2792, %v2792
      %v2809 = vpack.c.b16 %v2793, %v2793
      %v2810 = vpack.c.b16 %v2794, %v2794
      %v2811 = vpack.c.b16 %v2795, %v2795
      %v2812 = vpack.c.b16 %v2796, %v2796
      %v2813 = vpack.c.b16 %v2797, %v2797
      %v2814 = vpack.c.b16 %v2798, %v2798
      %2831 = vst [vmem:[%s148] sm:$0xf] %v2799
      %2832 = vst [vmem:[%s148 + $0x4] sm:$0xf] %v2800
      %2833 = vst [vmem:[%s148 + $0x8] sm:$0xf] %v2801
      %2834 = vst [vmem:[%s148 + $0xc] sm:$0xf] %v2802
      %2835 = vst [vmem:[%s148 + $0x10] sm:$0xf] %v2803
      %2836 = vst [vmem:[%s148 + $0x14] sm:$0xf] %v2804
      %2837 = vst [vmem:[%s148 + $0x18] sm:$0xf] %v2805
      %2838 = vst [vmem:[%s148 + $0x1c] sm:$0xf] %v2806
      %2839 = vst [vmem:[%s148 + $0x20] sm:$0xf] %v2807
      %2840 = vst [vmem:[%s148 + $0x24] sm:$0xf] %v2808
      %2841 = vst [vmem:[%s148 + $0x28] sm:$0xf] %v2809
      %2842 = vst [vmem:[%s148 + $0x2c] sm:$0xf] %v2810
      %2843 = vst [vmem:[%s148 + $0x30] sm:$0xf] %v2811
      %2844 = vst [vmem:[%s148 + $0x34] sm:$0xf] %v2812
      %2845 = vst [vmem:[%s148 + $0x38] sm:$0xf] %v2813
      %2846 = vst [vmem:[%s148 + $0x3c] sm:$0xf] %v2814
      %s2847 = smul.u32 16, %s13
      %p2848 = scmp.lt.s32.totalorder %s2847, 31
      %s2849 = scalar_select %p2848, %s2847, 31
      %s2850 = smul.addr %s2849, 4
      %s2851 = scalar_lea.vmem %s2, %s2850
      // Predicated region
      $region29: #{discriminator_forward.3} parent=27 // pred_check
        %p2852 = pneg %p78
      $region30: #{discriminator_forward.3} parent=27 // pred_check_branch
        %2854 = sbr.rel (%p2852) target = $region32
      $region31: #{discriminator_forward.3} parent=27 // pred_region
        %s2855 = smul.u32 16, %s13
      $region32: #{discriminator_forward.3} parent=27 // pred_fallthru
        _
    $region28: #{discriminator_forward.3} parent=5 // pred_fallthru
      _
    %p2856 = scmp.le.s32.totalorder 2, %s8
    // Predicated region
    $region33: #{discriminator_forward.3} parent=5 // pred_check
      %p2857 = pneg %p2856
    $region34: #{discriminator_forward.3} parent=5 // pred_check_branch
      %2859 = sbr.rel (%p2857) target = $region36
    $region35: #{discriminator_forward.3} parent=5 // pred_region
      %s2860 = ssub.s32 %s8, 2
      // Predicated region
      $region37: #{discriminator_forward.3} parent=35 // pred_check
        %p2861 = pneg %p84
      $region38: #{discriminator_forward.3} parent=35 // pred_check_branch
        %2863 = sbr.rel (%p2861) target = $region40
      $region39: #{discriminator_forward.3} parent=35 // pred_region
        %s2864 = smul.u32 16, %s14
        %p2865 = scmp.lt.s32.totalorder %s2864, 31
        %s2866 = scalar_select %p2865, %s2864, 31
        %s2867 = smul.addr %s2866, 4
        %s2868 = scalar_lea.vmem %s2, %s2867
      $region40: #{discriminator_forward.3} parent=35 // pred_fallthru
        _
    $region36: #{discriminator_forward.3} parent=5 // pred_fallthru
      _
  $region6: #{discriminator_forward.3} parent=0 // loop_footer
    %s12 = sadd.s32 1, %s8
  $region7: #{discriminator_forward.3} parent=0 // loop_footer_branch
    %7 = sbr.rel target = $region3
  $region8: #{discriminator_forward.3} parent=0 // loop_exit
    _

// kernel: discriminator_forward.4
$region0: #{discriminator_forward.4}
  #allocation0 [shape = 'u32[]', space=smem, size = 0x4, offset = 0x4, fixed_abs, tag = 'smem constant byte address 0x4 - core index']
  #allocation1 [shape = 'u32[144,128]{1,0:T(1,128)}', space=vmem, size = 0x12000, scoped, tag = 'internal scratch']
  %s0 = inlined_call_operand.vmem [shape: bf16[1024,256], index: 0, kind: input, shape index: {}]
  %s1 = inlined_call_operand.vmem [shape: bf16[256,8], index: 1, kind: input, shape index: {}]
  %s2 = inlined_call_operand.vmem [shape: f32[1,8], index: 2, kind: input, shape index: {}]
  %s3 = inlined_call_operand.vmem [shape: f32[1,8], index: 3, kind: input, shape index: {}]
  %s4 = inlined_call_operand.vmem [shape: bf16[1024,8], index: 4, kind: output, shape index: {}]
  %s5 = sld [smem:[#allocation0]]
  $region26: #{discriminator_forward.4} parent=0
    _
  %s7 = ssub.s32 1, %s5
  %s8 = scalar_select 0, %s7, %s5
  // Predicated region
  $region2: #{discriminator_forward.4} parent=0 // pred_check
    _
  $region3: #{discriminator_forward.4} parent=0 // pred_check_branch
    %10 = sbr.rel (0) target = $region5
  $region4: #{discriminator_forward.4} parent=0 // pred_region
    _
  $region5: #{discriminator_forward.4} parent=0 // pred_fallthru
    _
  // Predicated region
  $region6: #{discriminator_forward.4} parent=0 // pred_check
    _
  $region7: #{discriminator_forward.4} parent=0 // pred_check_branch
    %12 = sbr.rel (0) target = $region9
  $region8: #{discriminator_forward.4} parent=0 // pred_region
    _
  $region9: #{discriminator_forward.4} parent=0 // pred_fallthru
    _
  // Predicated region
  $region10: #{discriminator_forward.4} parent=0 // pred_check
    _
  $region11: #{discriminator_forward.4} parent=0 // pred_check_branch
    %14 = sbr.rel (0) target = $region13
  $region12: #{discriminator_forward.4} parent=0 // pred_region
    _
  $region13: #{discriminator_forward.4} parent=0 // pred_fallthru
    _
  // Predicated region
  $region14: #{discriminator_forward.4} parent=0 // pred_check
    _
  $region15: #{discriminator_forward.4} parent=0 // pred_check_branch
    %16 = sbr.rel (0) target = $region17
  $region16: #{discriminator_forward.4} parent=0 // pred_region
    _
  $region17: #{discriminator_forward.4} parent=0 // pred_fallthru
    _
  %v18 = vld [vmem:[%s0] sm:$0xff]
  %v19 = vld [vmem:[%s0 + $0x8] sm:$0xff]
  %v20 = vld [vmem:[%s0 + $0x10] sm:$0xff]
  %v21 = vld [vmem:[%s0 + $0x18] sm:$0xff]
  %v22 = vld [vmem:[%s0 + $0x20] sm:$0xff]
  %v23 = vld [vmem:[%s0 + $0x28] sm:$0xff]
  %v24 = vld [vmem:[%s0 + $0x30] sm:$0xff]
  %v25 = vld [vmem:[%s0 + $0x38] sm:$0xff]
  %v26 = vld [vmem:[%s0 + $0x40] sm:$0xff]
  %v27 = vld [vmem:[%s0 + $0x48] sm:$0xff]
  %v28 = vld [vmem:[%s0 + $0x50] sm:$0xff]
  %v29 = vld [vmem:[%s0 + $0x58] sm:$0xff]
  %v30 = vld [vmem:[%s0 + $0x60] sm:$0xff]
  %v31 = vld [vmem:[%s0 + $0x68] sm:$0xff]
  %v32 = vld [vmem:[%s0 + $0x70] sm:$0xff]
  %v33 = vld [vmem:[%s0 + $0x78] sm:$0xff]
  %v34 = vld [vmem:[%s0 + $0x80] sm:$0xff]
  %v35 = vld [vmem:[%s0 + $0x88] sm:$0xff]
  %v36 = vld [vmem:[%s0 + $0x90] sm:$0xff]
  %v37 = vld [vmem:[%s0 + $0x98] sm:$0xff]
  %v38 = vld [vmem:[%s0 + $0xa0] sm:$0xff]
  %v39 = vld [vmem:[%s0 + $0xa8] sm:$0xff]
  %v40 = vld [vmem:[%s0 + $0xb0] sm:$0xff]
  %v41 = vld [vmem:[%s0 + $0xb8] sm:$0xff]
  %v42 = vld [vmem:[%s0 + $0xc0] sm:$0xff]
  %v43 = vld [vmem:[%s0 + $0xc8] sm:$0xff]
  %v44 = vld [vmem:[%s0 + $0xd0] sm:$0xff]
  %v45 = vld [vmem:[%s0 + $0xd8] sm:$0xff]
  %v46 = vld [vmem:[%s0 + $0xe0] sm:$0xff]
  %v47 = vld [vmem:[%s0 + $0xe8] sm:$0xff]
  %v48 = vld [vmem:[%s0 + $0xf0] sm:$0xff]
  %v49 = vld [vmem:[%s0 + $0xf8] sm:$0xff]
  %v50 = vld [vmem:[%s0 + $0x100] sm:$0xff]
  %v51 = vld [vmem:[%s0 + $0x108] sm:$0xff]
  %v52 = vld [vmem:[%s0 + $0x110] sm:$0xff]
  %v53 = vld [vmem:[%s0 + $0x118] sm:$0xff]
  %v54 = vld [vmem:[%s0 + $0x120] sm:$0xff]
  %v55 = vld [vmem:[%s0 + $0x128] sm:$0xff]
  %v56 = vld [vmem:[%s0 + $0x130] sm:$0xff]
  %v57 = vld [vmem:[%s0 + $0x138] sm:$0xff]
  %v58 = vld [vmem:[%s0 + $0x140] sm:$0xff]
  %v59 = vld [vmem:[%s0 + $0x148] sm:$0xff]
  %v60 = vld [vmem:[%s0 + $0x150] sm:$0xff]
  %v61 = vld [vmem:[%s0 + $0x158] sm:$0xff]
  %v62 = vld [vmem:[%s0 + $0x160] sm:$0xff]
  %v63 = vld [vmem:[%s0 + $0x168] sm:$0xff]
  %v64 = vld [vmem:[%s0 + $0x170] sm:$0xff]
  %v65 = vld [vmem:[%s0 + $0x178] sm:$0xff]
  %v66 = vld [vmem:[%s0 + $0x180] sm:$0xff]
  %v67 = vld [vmem:[%s0 + $0x188] sm:$0xff]
  %v68 = vld [vmem:[%s0 + $0x190] sm:$0xff]
  %v69 = vld [vmem:[%s0 + $0x198] sm:$0xff]
  %v70 = vld [vmem:[%s0 + $0x1a0] sm:$0xff]
  %v71 = vld [vmem:[%s0 + $0x1a8] sm:$0xff]
  %v72 = vld [vmem:[%s0 + $0x1b0] sm:$0xff]
  %v73 = vld [vmem:[%s0 + $0x1b8] sm:$0xff]
  %v74 = vld [vmem:[%s0 + $0x1c0] sm:$0xff]
  %v75 = vld [vmem:[%s0 + $0x1c8] sm:$0xff]
  %v76 = vld [vmem:[%s0 + $0x1d0] sm:$0xff]
  %v77 = vld [vmem:[%s0 + $0x1d8] sm:$0xff]
  %v78 = vld [vmem:[%s0 + $0x1e0] sm:$0xff]
  %v79 = vld [vmem:[%s0 + $0x1e8] sm:$0xff]
  %v80 = vld [vmem:[%s0 + $0x1f0] sm:$0xff]
  %v81 = vld [vmem:[%s0 + $0x1f8] sm:$0xff]
  %v82 = vld [vmem:[%s0 + $0x200] sm:$0xff]
  %v83 = vld [vmem:[%s0 + $0x208] sm:$0xff]
  %v84 = vld [vmem:[%s0 + $0x210] sm:$0xff]
  %v85 = vld [vmem:[%s0 + $0x218] sm:$0xff]
  %v86 = vld [vmem:[%s0 + $0x220] sm:$0xff]
  %v87 = vld [vmem:[%s0 + $0x228] sm:$0xff]
  %v88 = vld [vmem:[%s0 + $0x230] sm:$0xff]
  %v89 = vld [vmem:[%s0 + $0x238] sm:$0xff]
  %v90 = vld [vmem:[%s0 + $0x240] sm:$0xff]
  %v91 = vld [vmem:[%s0 + $0x248] sm:$0xff]
  %v92 = vld [vmem:[%s0 + $0x250] sm:$0xff]
  %v93 = vld [vmem:[%s0 + $0x258] sm:$0xff]
  %v94 = vld [vmem:[%s0 + $0x260] sm:$0xff]
  %v95 = vld [vmem:[%s0 + $0x268] sm:$0xff]
  %v96 = vld [vmem:[%s0 + $0x270] sm:$0xff]
  %v97 = vld [vmem:[%s0 + $0x278] sm:$0xff]
  %v98 = vld [vmem:[%s0 + $0x280] sm:$0xff]
  %v99 = vld [vmem:[%s0 + $0x288] sm:$0xff]
  %v100 = vld [vmem:[%s0 + $0x290] sm:$0xff]
  %v101 = vld [vmem:[%s0 + $0x298] sm:$0xff]
  %v102 = vld [vmem:[%s0 + $0x2a0] sm:$0xff]
  %v103 = vld [vmem:[%s0 + $0x2a8] sm:$0xff]
  %v104 = vld [vmem:[%s0 + $0x2b0] sm:$0xff]
  %v105 = vld [vmem:[%s0 + $0x2b8] sm:$0xff]
  %v106 = vld [vmem:[%s0 + $0x2c0] sm:$0xff]
  %v107 = vld [vmem:[%s0 + $0x2c8] sm:$0xff]
  %v108 = vld [vmem:[%s0 + $0x2d0] sm:$0xff]
  %v109 = vld [vmem:[%s0 + $0x2d8] sm:$0xff]
  %v110 = vld [vmem:[%s0 + $0x2e0] sm:$0xff]
  %v111 = vld [vmem:[%s0 + $0x2e8] sm:$0xff]
  %v112 = vld [vmem:[%s0 + $0x2f0] sm:$0xff]
  %v113 = vld [vmem:[%s0 + $0x2f8] sm:$0xff]
  %v114 = vld [vmem:[%s0 + $0x300] sm:$0xff]
  %v115 = vld [vmem:[%s0 + $0x308] sm:$0xff]
  %v116 = vld [vmem:[%s0 + $0x310] sm:$0xff]
  %v117 = vld [vmem:[%s0 + $0x318] sm:$0xff]
  %v118 = vld [vmem:[%s0 + $0x320] sm:$0xff]
  %v119 = vld [vmem:[%s0 + $0x328] sm:$0xff]
  %v120 = vld [vmem:[%s0 + $0x330] sm:$0xff]
  %v121 = vld [vmem:[%s0 + $0x338] sm:$0xff]
  %v122 = vld [vmem:[%s0 + $0x340] sm:$0xff]
  %v123 = vld [vmem:[%s0 + $0x348] sm:$0xff]
  %v124 = vld [vmem:[%s0 + $0x350] sm:$0xff]
  %v125 = vld [vmem:[%s0 + $0x358] sm:$0xff]
  %v126 = vld [vmem:[%s0 + $0x360] sm:$0xff]
  %v127 = vld [vmem:[%s0 + $0x368] sm:$0xff]
  %v128 = vld [vmem:[%s0 + $0x370] sm:$0xff]
  %v129 = vld [vmem:[%s0 + $0x378] sm:$0xff]
  %v130 = vld [vmem:[%s0 + $0x380] sm:$0xff]
  %v131 = vld [vmem:[%s0 + $0x388] sm:$0xff]
  %v132 = vld [vmem:[%s0 + $0x390] sm:$0xff]
  %v133 = vld [vmem:[%s0 + $0x398] sm:$0xff]
  %v134 = vld [vmem:[%s0 + $0x3a0] sm:$0xff]
  %v135 = vld [vmem:[%s0 + $0x3a8] sm:$0xff]
  %v136 = vld [vmem:[%s0 + $0x3b0] sm:$0xff]
  %v137 = vld [vmem:[%s0 + $0x3b8] sm:$0xff]
  %v138 = vld [vmem:[%s0 + $0x3c0] sm:$0xff]
  %v139 = vld [vmem:[%s0 + $0x3c8] sm:$0xff]
  %v140 = vld [vmem:[%s0 + $0x3d0] sm:$0xff]
  %v141 = vld [vmem:[%s0 + $0x3d8] sm:$0xff]
  %v142 = vld [vmem:[%s0 + $0x3e0] sm:$0xff]
  %v143 = vld [vmem:[%s0 + $0x3e8] sm:$0xff]
  %v144 = vld [vmem:[%s0 + $0x3f0] sm:$0xff]
  %v145 = vld [vmem:[%s0 + $0x3f8] sm:$0xff]
  %v146 = vld [vmem:[%s1] sm:$0xf]
  %v147 = vld [vmem:[%s1 + $0x4] sm:$0xf]
  %v148 = vld [vmem:[%s1 + $0x8] sm:$0xf]
  %v149 = vld [vmem:[%s1 + $0xc] sm:$0xf]
  %v150 = vld [vmem:[%s1 + $0x10] sm:$0xf]
  %v151 = vld [vmem:[%s1 + $0x14] sm:$0xf]
  %v152 = vld [vmem:[%s1 + $0x18] sm:$0xf]
  %v153 = vld [vmem:[%s1 + $0x1c] sm:$0xf]
  %v154 = vld [vmem:[%s1 + $0x20] sm:$0xf]
  %v155 = vld [vmem:[%s1 + $0x24] sm:$0xf]
  %v156 = vld [vmem:[%s1 + $0x28] sm:$0xf]
  %v157 = vld [vmem:[%s1 + $0x2c] sm:$0xf]
  %v158 = vld [vmem:[%s1 + $0x30] sm:$0xf]
  %v159 = vld [vmem:[%s1 + $0x34] sm:$0xf]
  %v160 = vld [vmem:[%s1 + $0x38] sm:$0xf]
  %v161 = vld [vmem:[%s1 + $0x3c] sm:$0xf]
  %v162 = vld [vmem:[%s1 + $0x40] sm:$0xf]
  %v163 = vld [vmem:[%s1 + $0x44] sm:$0xf]
  %v164 = vld [vmem:[%s1 + $0x48] sm:$0xf]
  %v165 = vld [vmem:[%s1 + $0x4c] sm:$0xf]
  %v166 = vld [vmem:[%s1 + $0x50] sm:$0xf]
  %v167 = vld [vmem:[%s1 + $0x54] sm:$0xf]
  %v168 = vld [vmem:[%s1 + $0x58] sm:$0xf]
  %v169 = vld [vmem:[%s1 + $0x5c] sm:$0xf]
  %v170 = vld [vmem:[%s1 + $0x60] sm:$0xf]
  %v171 = vld [vmem:[%s1 + $0x64] sm:$0xf]
  %v172 = vld [vmem:[%s1 + $0x68] sm:$0xf]
  %v173 = vld [vmem:[%s1 + $0x6c] sm:$0xf]
  %v174 = vld [vmem:[%s1 + $0x70] sm:$0xf]
  %v175 = vld [vmem:[%s1 + $0x74] sm:$0xf]
  %v176 = vld [vmem:[%s1 + $0x78] sm:$0xf]
  %v177 = vld [vmem:[%s1 + $0x7c] sm:$0xf]
  %v306 = vunpack.c.l.b16 %v18
  %v307 = vunpack.c.h.b16 %v18
  %v308 = vunpack.c.l.b16 %v19
  %v309 = vunpack.c.h.b16 %v19
  %v310 = vunpack.c.l.b16 %v20
  %v311 = vunpack.c.h.b16 %v20
  %v312 = vunpack.c.l.b16 %v21
  %v313 = vunpack.c.h.b16 %v21
  %v314 = vunpack.c.l.b16 %v22
  %v315 = vunpack.c.h.b16 %v22
  %v316 = vunpack.c.l.b16 %v23
  %v317 = vunpack.c.h.b16 %v23
  %v318 = vunpack.c.l.b16 %v24
  %v319 = vunpack.c.h.b16 %v24
  %v320 = vunpack.c.l.b16 %v25
  %v321 = vunpack.c.h.b16 %v25
  %v322 = vunpack.c.l.b16 %v26
  %v323 = vunpack.c.h.b16 %v26
  %v324 = vunpack.c.l.b16 %v27
  %v325 = vunpack.c.h.b16 %v27
  %v326 = vunpack.c.l.b16 %v28
  %v327 = vunpack.c.h.b16 %v28
  %v328 = vunpack.c.l.b16 %v29
  %v329 = vunpack.c.h.b16 %v29
  %v330 = vunpack.c.l.b16 %v30
  %v331 = vunpack.c.h.b16 %v30
  %v332 = vunpack.c.l.b16 %v31
  %v333 = vunpack.c.h.b16 %v31
  %v334 = vunpack.c.l.b16 %v32
  %v335 = vunpack.c.h.b16 %v32
  %v336 = vunpack.c.l.b16 %v33
  %v337 = vunpack.c.h.b16 %v33
  %v338 = vunpack.c.l.b16 %v34
  %v339 = vunpack.c.h.b16 %v34
  %v340 = vunpack.c.l.b16 %v35
  %v341 = vunpack.c.h.b16 %v35
  %v342 = vunpack.c.l.b16 %v36
  %v343 = vunpack.c.h.b16 %v36
  %v344 = vunpack.c.l.b16 %v37
  %v345 = vunpack.c.h.b16 %v37
  %v346 = vunpack.c.l.b16 %v38
  %v347 = vunpack.c.h.b16 %v38
  %v348 = vunpack.c.l.b16 %v39
  %v349 = vunpack.c.h.b16 %v39
  %v350 = vunpack.c.l.b16 %v40
  %v351 = vunpack.c.h.b16 %v40
  %v352 = vunpack.c.l.b16 %v41
  %v353 = vunpack.c.h.b16 %v41
  %v354 = vunpack.c.l.b16 %v42
  %v355 = vunpack.c.h.b16 %v42
  %v356 = vunpack.c.l.b16 %v43
  %v357 = vunpack.c.h.b16 %v43
  %v358 = vunpack.c.l.b16 %v44
  %v359 = vunpack.c.h.b16 %v44
  %v360 = vunpack.c.l.b16 %v45
  %v361 = vunpack.c.h.b16 %v45
  %v362 = vunpack.c.l.b16 %v46
  %v363 = vunpack.c.h.b16 %v46
  %v364 = vunpack.c.l.b16 %v47
  %v365 = vunpack.c.h.b16 %v47
  %v366 = vunpack.c.l.b16 %v48
  %v367 = vunpack.c.h.b16 %v48
  %v368 = vunpack.c.l.b16 %v49
  %v369 = vunpack.c.h.b16 %v49
  %v370 = vunpack.c.l.b16 %v50
  %v371 = vunpack.c.h.b16 %v50
  %v372 = vunpack.c.l.b16 %v51
  %v373 = vunpack.c.h.b16 %v51
  %v374 = vunpack.c.l.b16 %v52
  %v375 = vunpack.c.h.b16 %v52
  %v376 = vunpack.c.l.b16 %v53
  %v377 = vunpack.c.h.b16 %v53
  %v378 = vunpack.c.l.b16 %v54
  %v379 = vunpack.c.h.b16 %v54
  %v380 = vunpack.c.l.b16 %v55
  %v381 = vunpack.c.h.b16 %v55
  %v382 = vunpack.c.l.b16 %v56
  %v383 = vunpack.c.h.b16 %v56
  %v384 = vunpack.c.l.b16 %v57
  %v385 = vunpack.c.h.b16 %v57
  %v386 = vunpack.c.l.b16 %v58
  %v387 = vunpack.c.h.b16 %v58
  %v388 = vunpack.c.l.b16 %v59
  %v389 = vunpack.c.h.b16 %v59
  %v390 = vunpack.c.l.b16 %v60
  %v391 = vunpack.c.h.b16 %v60
  %v392 = vunpack.c.l.b16 %v61
  %v393 = vunpack.c.h.b16 %v61
  %v394 = vunpack.c.l.b16 %v62
  %v395 = vunpack.c.h.b16 %v62
  %v396 = vunpack.c.l.b16 %v63
  %v397 = vunpack.c.h.b16 %v63
  %v398 = vunpack.c.l.b16 %v64
  %v399 = vunpack.c.h.b16 %v64
  %v400 = vunpack.c.l.b16 %v65
  %v401 = vunpack.c.h.b16 %v65
  %v402 = vunpack.c.l.b16 %v66
  %v403 = vunpack.c.h.b16 %v66
  %v404 = vunpack.c.l.b16 %v67
  %v405 = vunpack.c.h.b16 %v67
  %v406 = vunpack.c.l.b16 %v68
  %v407 = vunpack.c.h.b16 %v68
  %v408 = vunpack.c.l.b16 %v69
  %v409 = vunpack.c.h.b16 %v69
  %v410 = vunpack.c.l.b16 %v70
  %v411 = vunpack.c.h.b16 %v70
  %v412 = vunpack.c.l.b16 %v71
  %v413 = vunpack.c.h.b16 %v71
  %v414 = vunpack.c.l.b16 %v72
  %v415 = vunpack.c.h.b16 %v72
  %v416 = vunpack.c.l.b16 %v73
  %v417 = vunpack.c.h.b16 %v73
  %v418 = vunpack.c.l.b16 %v74
  %v419 = vunpack.c.h.b16 %v74
  %v420 = vunpack.c.l.b16 %v75
  %v421 = vunpack.c.h.b16 %v75
  %v422 = vunpack.c.l.b16 %v76
  %v423 = vunpack.c.h.b16 %v76
  %v424 = vunpack.c.l.b16 %v77
  %v425 = vunpack.c.h.b16 %v77
  %v426 = vunpack.c.l.b16 %v78
  %v427 = vunpack.c.h.b16 %v78
  %v428 = vunpack.c.l.b16 %v79
  %v429 = vunpack.c.h.b16 %v79
  %v430 = vunpack.c.l.b16 %v80
  %v431 = vunpack.c.h.b16 %v80
  %v432 = vunpack.c.l.b16 %v81
  %v433 = vunpack.c.h.b16 %v81
  %v434 = vunpack.c.l.b16 %v82
  %v435 = vunpack.c.h.b16 %v82
  %v436 = vunpack.c.l.b16 %v83
  %v437 = vunpack.c.h.b16 %v83
  %v438 = vunpack.c.l.b16 %v84
  %v439 = vunpack.c.h.b16 %v84
  %v440 = vunpack.c.l.b16 %v85
  %v441 = vunpack.c.h.b16 %v85
  %v442 = vunpack.c.l.b16 %v86
  %v443 = vunpack.c.h.b16 %v86
  %v444 = vunpack.c.l.b16 %v87
  %v445 = vunpack.c.h.b16 %v87
  %v446 = vunpack.c.l.b16 %v88
  %v447 = vunpack.c.h.b16 %v88
  %v448 = vunpack.c.l.b16 %v89
  %v449 = vunpack.c.h.b16 %v89
  %v450 = vunpack.c.l.b16 %v90
  %v451 = vunpack.c.h.b16 %v90
  %v452 = vunpack.c.l.b16 %v91
  %v453 = vunpack.c.h.b16 %v91
  %v454 = vunpack.c.l.b16 %v92
  %v455 = vunpack.c.h.b16 %v92
  %v456 = vunpack.c.l.b16 %v93
  %v457 = vunpack.c.h.b16 %v93
  %v458 = vunpack.c.l.b16 %v94
  %v459 = vunpack.c.h.b16 %v94
  %v460 = vunpack.c.l.b16 %v95
  %v461 = vunpack.c.h.b16 %v95
  %v462 = vunpack.c.l.b16 %v96
  %v463 = vunpack.c.h.b16 %v96
  %v464 = vunpack.c.l.b16 %v97
  %v465 = vunpack.c.h.b16 %v97
  %v466 = vunpack.c.l.b16 %v98
  %v467 = vunpack.c.h.b16 %v98
  %v468 = vunpack.c.l.b16 %v99
  %v469 = vunpack.c.h.b16 %v99
  %v470 = vunpack.c.l.b16 %v100
  %v471 = vunpack.c.h.b16 %v100
  %v472 = vunpack.c.l.b16 %v101
  %v473 = vunpack.c.h.b16 %v101
  %v474 = vunpack.c.l.b16 %v102
  %v475 = vunpack.c.h.b16 %v102
  %v476 = vunpack.c.l.b16 %v103
  %v477 = vunpack.c.h.b16 %v103
  %v478 = vunpack.c.l.b16 %v104
  %v479 = vunpack.c.h.b16 %v104
  %v480 = vunpack.c.l.b16 %v105
  %v481 = vunpack.c.h.b16 %v105
  %v482 = vunpack.c.l.b16 %v106
  %v483 = vunpack.c.h.b16 %v106
  %v484 = vunpack.c.l.b16 %v107
  %v485 = vunpack.c.h.b16 %v107
  %v486 = vunpack.c.l.b16 %v108
  %v487 = vunpack.c.h.b16 %v108
  %v488 = vunpack.c.l.b16 %v109
  %v489 = vunpack.c.h.b16 %v109
  %v490 = vunpack.c.l.b16 %v110
  %v491 = vunpack.c.h.b16 %v110
  %v492 = vunpack.c.l.b16 %v111
  %v493 = vunpack.c.h.b16 %v111
  %v494 = vunpack.c.l.b16 %v112
  %v495 = vunpack.c.h.b16 %v112
  %v496 = vunpack.c.l.b16 %v113
  %v497 = vunpack.c.h.b16 %v113
  %v498 = vunpack.c.l.b16 %v114
  %v499 = vunpack.c.h.b16 %v114
  %v500 = vunpack.c.l.b16 %v115
  %v501 = vunpack.c.h.b16 %v115
  %v502 = vunpack.c.l.b16 %v116
  %v503 = vunpack.c.h.b16 %v116
  %v504 = vunpack.c.l.b16 %v117
  %v505 = vunpack.c.h.b16 %v117
  %v506 = vunpack.c.l.b16 %v118
  %v507 = vunpack.c.h.b16 %v118
  %v508 = vunpack.c.l.b16 %v119
  %v509 = vunpack.c.h.b16 %v119
  %v510 = vunpack.c.l.b16 %v120
  %v511 = vunpack.c.h.b16 %v120
  %v512 = vunpack.c.l.b16 %v121
  %v513 = vunpack.c.h.b16 %v121
  %v514 = vunpack.c.l.b16 %v122
  %v515 = vunpack.c.h.b16 %v122
  %v516 = vunpack.c.l.b16 %v123
  %v517 = vunpack.c.h.b16 %v123
  %v518 = vunpack.c.l.b16 %v124
  %v519 = vunpack.c.h.b16 %v124
  %v520 = vunpack.c.l.b16 %v125
  %v521 = vunpack.c.h.b16 %v125
  %v522 = vunpack.c.l.b16 %v126
  %v523 = vunpack.c.h.b16 %v126
  %v524 = vunpack.c.l.b16 %v127
  %v525 = vunpack.c.h.b16 %v127
  %v526 = vunpack.c.l.b16 %v128
  %v527 = vunpack.c.h.b16 %v128
  %v528 = vunpack.c.l.b16 %v129
  %v529 = vunpack.c.h.b16 %v129
  %v530 = vunpack.c.l.b16 %v130
  %v531 = vunpack.c.h.b16 %v130
  %v532 = vunpack.c.l.b16 %v131
  %v533 = vunpack.c.h.b16 %v131
  %v534 = vunpack.c.l.b16 %v132
  %v535 = vunpack.c.h.b16 %v132
  %v536 = vunpack.c.l.b16 %v133
  %v537 = vunpack.c.h.b16 %v133
  %v538 = vunpack.c.l.b16 %v134
  %v539 = vunpack.c.h.b16 %v134
  %v540 = vunpack.c.l.b16 %v135
  %v541 = vunpack.c.h.b16 %v135
  %v542 = vunpack.c.l.b16 %v136
  %v543 = vunpack.c.h.b16 %v136
  %v544 = vunpack.c.l.b16 %v137
  %v545 = vunpack.c.h.b16 %v137
  %v546 = vunpack.c.l.b16 %v138
  %v547 = vunpack.c.h.b16 %v138
  %v548 = vunpack.c.l.b16 %v139
  %v549 = vunpack.c.h.b16 %v139
  %v550 = vunpack.c.l.b16 %v140
  %v551 = vunpack.c.h.b16 %v140
  %v552 = vunpack.c.l.b16 %v141
  %v553 = vunpack.c.h.b16 %v141
  %v554 = vunpack.c.l.b16 %v142
  %v555 = vunpack.c.h.b16 %v142
  %v556 = vunpack.c.l.b16 %v143
  %v557 = vunpack.c.h.b16 %v143
  %v558 = vunpack.c.l.b16 %v144
  %v559 = vunpack.c.h.b16 %v144
  %v560 = vunpack.c.l.b16 %v145
  %v561 = vunpack.c.h.b16 %v145
  %v562 = vpack.c.b16 %v308, %v306
  %v563 = vpack.c.b16 %v309, %v307
  %v564 = vpack.c.b16 %v312, %v310
  %v565 = vpack.c.b16 %v313, %v311
  %v566 = vpack.c.b16 %v316, %v314
  %v567 = vpack.c.b16 %v317, %v315
  %v568 = vpack.c.b16 %v320, %v318
  %v569 = vpack.c.b16 %v321, %v319
  %v570 = vpack.c.b16 %v324, %v322
  %v571 = vpack.c.b16 %v325, %v323
  %v572 = vpack.c.b16 %v328, %v326
  %v573 = vpack.c.b16 %v329, %v327
  %v574 = vpack.c.b16 %v332, %v330
  %v575 = vpack.c.b16 %v333, %v331
  %v576 = vpack.c.b16 %v336, %v334
  %v577 = vpack.c.b16 %v337, %v335
  %v578 = vpack.c.b16 %v340, %v338
  %v579 = vpack.c.b16 %v341, %v339
  %v580 = vpack.c.b16 %v344, %v342
  %v581 = vpack.c.b16 %v345, %v343
  %v582 = vpack.c.b16 %v348, %v346
  %v583 = vpack.c.b16 %v349, %v347
  %v584 = vpack.c.b16 %v352, %v350
  %v585 = vpack.c.b16 %v353, %v351
  %v586 = vpack.c.b16 %v356, %v354
  %v587 = vpack.c.b16 %v357, %v355
  %v588 = vpack.c.b16 %v360, %v358
  %v589 = vpack.c.b16 %v361, %v359
  %v590 = vpack.c.b16 %v364, %v362
  %v591 = vpack.c.b16 %v365, %v363
  %v592 = vpack.c.b16 %v368, %v366
  %v593 = vpack.c.b16 %v369, %v367
  %v594 = vpack.c.b16 %v372, %v370
  %v595 = vpack.c.b16 %v373, %v371
  %v596 = vpack.c.b16 %v376, %v374
  %v597 = vpack.c.b16 %v377, %v375
  %v598 = vpack.c.b16 %v380, %v378
  %v599 = vpack.c.b16 %v381, %v379
  %v600 = vpack.c.b16 %v384, %v382
  %v601 = vpack.c.b16 %v385, %v383
  %v602 = vpack.c.b16 %v388, %v386
  %v603 = vpack.c.b16 %v389, %v387
  %v604 = vpack.c.b16 %v392, %v390
  %v605 = vpack.c.b16 %v393, %v391
  %v606 = vpack.c.b16 %v396, %v394
  %v607 = vpack.c.b16 %v397, %v395
  %v608 = vpack.c.b16 %v400, %v398
  %v609 = vpack.c.b16 %v401, %v399
  %v610 = vpack.c.b16 %v404, %v402
  %v611 = vpack.c.b16 %v405, %v403
  %v612 = vpack.c.b16 %v408, %v406
  %v613 = vpack.c.b16 %v409, %v407
  %v614 = vpack.c.b16 %v412, %v410
  %v615 = vpack.c.b16 %v413, %v411
  %v616 = vpack.c.b16 %v416, %v414
  %v617 = vpack.c.b16 %v417, %v415
  %v618 = vpack.c.b16 %v420, %v418
  %v619 = vpack.c.b16 %v421, %v419
  %v620 = vpack.c.b16 %v424, %v422
  %v621 = vpack.c.b16 %v425, %v423
  %v622 = vpack.c.b16 %v428, %v426
  %v623 = vpack.c.b16 %v429, %v427
  %v624 = vpack.c.b16 %v432, %v430
  %v625 = vpack.c.b16 %v433, %v431
  %v626 = vpack.c.b16 %v436, %v434
  %v627 = vpack.c.b16 %v437, %v435
  %v628 = vpack.c.b16 %v440, %v438
  %v629 = vpack.c.b16 %v441, %v439
  %v630 = vpack.c.b16 %v444, %v442
  %v631 = vpack.c.b16 %v445, %v443
  %v632 = vpack.c.b16 %v448, %v446
  %v633 = vpack.c.b16 %v449, %v447
  %v634 = vpack.c.b16 %v452, %v450
  %v635 = vpack.c.b16 %v453, %v451
  %v636 = vpack.c.b16 %v456, %v454
  %v637 = vpack.c.b16 %v457, %v455
  %v638 = vpack.c.b16 %v460, %v458
  %v639 = vpack.c.b16 %v461, %v459
  %v640 = vpack.c.b16 %v464, %v462
  %v641 = vpack.c.b16 %v465, %v463
  %v642 = vpack.c.b16 %v468, %v466
  %v643 = vpack.c.b16 %v469, %v467
  %v644 = vpack.c.b16 %v472, %v470
  %v645 = vpack.c.b16 %v473, %v471
  %v646 = vpack.c.b16 %v476, %v474
  %v647 = vpack.c.b16 %v477, %v475
  %v648 = vpack.c.b16 %v480, %v478
  %v649 = vpack.c.b16 %v481, %v479
  %v650 = vpack.c.b16 %v484, %v482
  %v651 = vpack.c.b16 %v485, %v483
  %v652 = vpack.c.b16 %v488, %v486
  %v653 = vpack.c.b16 %v489, %v487
  %v654 = vpack.c.b16 %v492, %v490
  %v655 = vpack.c.b16 %v493, %v491
  %v656 = vpack.c.b16 %v496, %v494
  %v657 = vpack.c.b16 %v497, %v495
  %v658 = vpack.c.b16 %v500, %v498
  %v659 = vpack.c.b16 %v501, %v499
  %v660 = vpack.c.b16 %v504, %v502
  %v661 = vpack.c.b16 %v505, %v503
  %v662 = vpack.c.b16 %v508, %v506
  %v663 = vpack.c.b16 %v509, %v507
  %v664 = vpack.c.b16 %v512, %v510
  %v665 = vpack.c.b16 %v513, %v511
  %v666 = vpack.c.b16 %v516, %v514
  %v667 = vpack.c.b16 %v517, %v515
  %v668 = vpack.c.b16 %v520, %v518
  %v669 = vpack.c.b16 %v521, %v519
  %v670 = vpack.c.b16 %v524, %v522
  %v671 = vpack.c.b16 %v525, %v523
  %v672 = vpack.c.b16 %v528, %v526
  %v673 = vpack.c.b16 %v529, %v527
  %v674 = vpack.c.b16 %v532, %v530
  %v675 = vpack.c.b16 %v533, %v531
  %v676 = vpack.c.b16 %v536, %v534
  %v677 = vpack.c.b16 %v537, %v535
  %v678 = vpack.c.b16 %v540, %v538
  %v679 = vpack.c.b16 %v541, %v539
  %v680 = vpack.c.b16 %v544, %v542
  %v681 = vpack.c.b16 %v545, %v543
  %v682 = vpack.c.b16 %v548, %v546
  %v683 = vpack.c.b16 %v549, %v547
  %v684 = vpack.c.b16 %v552, %v550
  %v685 = vpack.c.b16 %v553, %v551
  %v686 = vpack.c.b16 %v556, %v554
  %v687 = vpack.c.b16 %v557, %v555
  %v688 = vpack.c.b16 %v560, %v558
  %v689 = vpack.c.b16 %v561, %v559
  %v850 = vunpack.c.l.b16 %v146
  %v851 = vunpack.c.l.b16 %v147
  %v852 = vunpack.c.l.b16 %v148
  %v853 = vunpack.c.l.b16 %v149
  %v854 = vunpack.c.l.b16 %v150
  %v855 = vunpack.c.l.b16 %v151
  %v856 = vunpack.c.l.b16 %v152
  %v857 = vunpack.c.l.b16 %v153
  %v858 = vunpack.c.l.b16 %v154
  %v859 = vunpack.c.l.b16 %v155
  %v860 = vunpack.c.l.b16 %v156
  %v861 = vunpack.c.l.b16 %v157
  %v862 = vunpack.c.l.b16 %v158
  %v863 = vunpack.c.l.b16 %v159
  %v864 = vunpack.c.l.b16 %v160
  %v865 = vunpack.c.l.b16 %v161
  %v866 = vunpack.c.l.b16 %v162
  %v867 = vunpack.c.l.b16 %v163
  %v868 = vunpack.c.l.b16 %v164
  %v869 = vunpack.c.l.b16 %v165
  %v870 = vunpack.c.l.b16 %v166
  %v871 = vunpack.c.l.b16 %v167
  %v872 = vunpack.c.l.b16 %v168
  %v873 = vunpack.c.l.b16 %v169
  %v874 = vunpack.c.l.b16 %v170
  %v875 = vunpack.c.l.b16 %v171
  %v876 = vunpack.c.l.b16 %v172
  %v877 = vunpack.c.l.b16 %v173
  %v878 = vunpack.c.l.b16 %v174
  %v879 = vunpack.c.l.b16 %v175
  %v880 = vunpack.c.l.b16 %v176
  %v881 = vunpack.c.l.b16 %v177
  %v882 = vpack.c.b16 %v851, %v850
  %v883 = vpack.c.b16 %v853, %v852
  %v884 = vpack.c.b16 %v855, %v854
  %v885 = vpack.c.b16 %v857, %v856
  %v886 = vpack.c.b16 %v859, %v858
  %v887 = vpack.c.b16 %v861, %v860
  %v888 = vpack.c.b16 %v863, %v862
  %v889 = vpack.c.b16 %v865, %v864
  %v890 = vpack.c.b16 %v867, %v866
  %v891 = vpack.c.b16 %v869, %v868
  %v892 = vpack.c.b16 %v871, %v870
  %v893 = vpack.c.b16 %v873, %v872
  %v894 = vpack.c.b16 %v875, %v874
  %v895 = vpack.c.b16 %v877, %v876
  %v896 = vpack.c.b16 %v879, %v878
  %v897 = vpack.c.b16 %v881, %v880
  %914 = vmatprep.subr.bf16.mxu0 0
  %915 = vmatpush1.bf16.msra.mxu0 %v882
  %916 = vmatprep.subr.bf16.mxu0 0
  %917 = vmatpush1.bf16.msra.mxu0 %v883
  %918 = vmatprep.subr.bf16.mxu0 0
  %919 = vmatpush1.bf16.msra.mxu0 %v884
  %920 = vmatprep.subr.bf16.mxu0 0
  %921 = vmatpush1.bf16.msra.mxu0 %v885
  %922 = vmatprep.subr.bf16.mxu0 0
  %923 = vmatpush1.bf16.msra.mxu0 %v886
  %924 = vmatprep.subr.bf16.mxu0 0
  %925 = vmatpush1.bf16.msra.mxu0 %v887
  %926 = vmatprep.subr.bf16.mxu0 0
  %927 = vmatpush1.bf16.msra.mxu0 %v888
  %928 = vmatprep.subr.bf16.mxu0 0
  %929 = vmatpush1.bf16.msra.mxu0 %v889
  %930 = vmatprep.subr.bf16.mxu0 0
  %931 = vmatpush1.bf16.msra.mxu0 %v890
  %932 = vmatprep.subr.bf16.mxu0 0
  %933 = vmatpush1.bf16.msra.mxu0 %v891
  %934 = vmatprep.subr.bf16.mxu0 0
  %935 = vmatpush1.bf16.msra.mxu0 %v892
  %936 = vmatprep.subr.bf16.mxu0 0
  %937 = vmatpush1.bf16.msra.mxu0 %v893
  %938 = vmatprep.subr.bf16.mxu0 0
  %939 = vmatpush1.bf16.msra.mxu0 %v894
  %940 = vmatprep.subr.bf16.mxu0 0
  %941 = vmatpush1.bf16.msra.mxu0 %v895
  %942 = vmatprep.subr.bf16.mxu0 0
  %943 = vmatpush1.bf16.msra.mxu0 %v896
  %944 = vmatprep.subr.bf16.mxu0 0
  %945 = vmatpush1.bf16.msra.mxu0 %v897
  %946 = vmatprep.mubr.bf16.mxu0 %v563
  %947 = vmatmul.mubr.bf16.gmra.mrb[0].mxu0 %v562
  %v948 = vpop.f32.mrb[0].mxu0
  %v949 = vadd.f32 0.0, %v948
  %v950 = vpop.f32.mrb[0].mxu0
  %v951 = vpop.f32.mrb[0].mxu0
  %v952 = vadd.f32 0.0, %v951
  %v953 = vpop.f32.mrb[0].mxu0
  %954 = vmatprep.mubr.bf16.mxu0 %v565
  %955 = vmatmul.mubr.bf16.gmra.mrb[0].mxu0 %v564
  %v956 = vpop.f32.mrb[0].mxu0
  %v957 = vadd.f32 0.0, %v956
  %v958 = vpop.f32.mrb[0].mxu0
  %v959 = vpop.f32.mrb[0].mxu0
  %v960 = vadd.f32 0.0, %v959
  %v961 = vpop.f32.mrb[0].mxu0
  %962 = vmatprep.mubr.bf16.mxu0 %v567
  %963 = vmatmul.mubr.bf16.gmra.mrb[0].mxu0 %v566
  %v964 = vpop.f32.mrb[0].mxu0
  %v965 = vadd.f32 0.0, %v964
  %v966 = vpop.f32.mrb[0].mxu0
  %v967 = vpop.f32.mrb[0].mxu0
  %v968 = vadd.f32 0.0, %v967
  %v969 = vpop.f32.mrb[0].mxu0
  %970 = vmatprep.mubr.bf16.mxu0 %v569
  %971 = vmatmul.mubr.bf16.gmra.mrb[0].mxu0 %v568
  %v972 = vpop.f32.mrb[0].mxu0
  %v973 = vadd.f32 0.0, %v972
  %v974 = vpop.f32.mrb[0].mxu0
  %v975 = vpop.f32.mrb[0].mxu0
  %v976 = vadd.f32 0.0, %v975
  %v977 = vpop.f32.mrb[0].mxu0
  %978 = vmatprep.mubr.bf16.mxu0 %v571
  %979 = vmatmul.mubr.bf16.gmra.mrb[0].mxu0 %v570
  %v980 = vpop.f32.mrb[0].mxu0
  %v981 = vadd.f32 0.0, %v980
  %v982 = vpop.f32.mrb[0].mxu0
  %v983 = vpop.f32.mrb[0].mxu0
  %v984 = vadd.f32 0.0, %v983
  %v985 = vpop.f32.mrb[0].mxu0
  %986 = vmatprep.mubr.bf16.mxu0 %v573
  %987 = vmatmul.mubr.bf16.gmra.mrb[0].mxu0 %v572
  %v988 = vpop.f32.mrb[0].mxu0
  %v989 = vadd.f32 0.0, %v988
  %v990 = vpop.f32.mrb[0].mxu0
  %v991 = vpop.f32.mrb[0].mxu0
  %v992 = vadd.f32 0.0, %v991
  %v993 = vpop.f32.mrb[0].mxu0
  %994 = vmatprep.mubr.bf16.mxu0 %v575
  %995 = vmatmul.mubr.bf16.gmra.mrb[0].mxu0 %v574
  %v996 = vpop.f32.mrb[0].mxu0
  %v997 = vadd.f32 0.0, %v996
  %v998 = vpop.f32.mrb[0].mxu0
  %v999 = vpop.f32.mrb[0].mxu0
  %v1000 = vadd.f32 0.0, %v999
  %v1001 = vpop.f32.mrb[0].mxu0
  %1002 = vmatprep.mubr.bf16.mxu0 %v577
  %1003 = vmatmul.mubr.bf16.gmra.mrb[0].mxu0 %v576
  %v1004 = vpop.f32.mrb[0].mxu0
  %v1005 = vadd.f32 0.0, %v1004
  %v1006 = vpop.f32.mrb[0].mxu0
  %v1007 = vpop.f32.mrb[0].mxu0
  %v1008 = vadd.f32 0.0, %v1007
  %v1009 = vpop.f32.mrb[0].mxu0
  %1010 = vmatprep.mubr.bf16.mxu0 %v579
  %1011 = vmatmul.mubr.bf16.gmra.mrb[0].mxu0 %v578
  %v1012 = vpop.f32.mrb[0].mxu0
  %v1013 = vadd.f32 0.0, %v1012
  %v1014 = vpop.f32.mrb[0].mxu0
  %v1015 = vpop.f32.mrb[0].mxu0
  %v1016 = vadd.f32 0.0, %v1015
  %v1017 = vpop.f32.mrb[0].mxu0
  %1018 = vmatprep.mubr.bf16.mxu0 %v581
  %1019 = vmatmul.mubr.bf16.gmra.mrb[0].mxu0 %v580
  %v1020 = vpop.f32.mrb[0].mxu0
  %v1021 = vadd.f32 0.0, %v1020
  %v1022 = vpop.f32.mrb[0].mxu0
  %v1023 = vpop.f32.mrb[0].mxu0
  %v1024 = vadd.f32 0.0, %v1023
  %v1025 = vpop.f32.mrb[0].mxu0
  %1026 = vmatprep.mubr.bf16.mxu0 %v583
  %1027 = vmatmul.mubr.bf16.gmra.mrb[0].mxu0 %v582
  %v1028 = vpop.f32.mrb[0].mxu0
  %v1029 = vadd.f32 0.0, %v1028
  %v1030 = vpop.f32.mrb[0].mxu0
  %v1031 = vpop.f32.mrb[0].mxu0
  %v1032 = vadd.f32 0.0, %v1031
  %v1033 = vpop.f32.mrb[0].mxu0
  %1034 = vmatprep.mubr.bf16.mxu0 %v585
  %1035 = vmatmul.mubr.bf16.gmra.mrb[0].mxu0 %v584
  %v1036 = vpop.f32.mrb[0].mxu0
  %v1037 = vadd.f32 0.0, %v1036
  %v1038 = vpop.f32.mrb[0].mxu0
  %v1039 = vpop.f32.mrb[0].mxu0
  %v1040 = vadd.f32 0.0, %v1039
  %v1041 = vpop.f32.mrb[0].mxu0
  %1042 = vmatprep.mubr.bf16.mxu0 %v587
  %1043 = vmatmul.mubr.bf16.gmra.mrb[0].mxu0 %v586
  %v1044 = vpop.f32.mrb[0].mxu0
  %v1045 = vadd.f32 0.0, %v1044
  %v1046 = vpop.f32.mrb[0].mxu0
  %v1047 = vpop.f32.mrb[0].mxu0
  %v1048 = vadd.f32 0.0, %v1047
  %v1049 = vpop.f32.mrb[0].mxu0
  %1050 = vmatprep.mubr.bf16.mxu0 %v589
  %1051 = vmatmul.mubr.bf16.gmra.mrb[0].mxu0 %v588
  %v1052 = vpop.f32.mrb[0].mxu0
  %v1053 = vadd.f32 0.0, %v1052
  %v1054 = vpop.f32.mrb[0].mxu0
  %v1055 = vpop.f32.mrb[0].mxu0
  %v1056 = vadd.f32 0.0, %v1055
  %v1057 = vpop.f32.mrb[0].mxu0
  %1058 = vmatprep.mubr.bf16.mxu0 %v591
  %1059 = vmatmul.mubr.bf16.gmra.mrb[0].mxu0 %v590
  %v1060 = vpop.f32.mrb[0].mxu0
  %v1061 = vadd.f32 0.0, %v1060
  %v1062 = vpop.f32.mrb[0].mxu0
  %v1063 = vpop.f32.mrb[0].mxu0
  %v1064 = vadd.f32 0.0, %v1063
  %v1065 = vpop.f32.mrb[0].mxu0
  %1066 = vmatprep.mubr.bf16.mxu0 %v593
  %1067 = vmatmul.mubr.bf16.gmra.mrb[0].mxu0 %v592
  %v1068 = vpop.f32.mrb[0].mxu0
  %v1069 = vadd.f32 0.0, %v1068
  %v1070 = vpop.f32.mrb[0].mxu0
  %v1071 = vpop.f32.mrb[0].mxu0
  %v1072 = vadd.f32 0.0, %v1071
  %v1073 = vpop.f32.mrb[0].mxu0
  %1074 = vmatprep.mubr.bf16.mxu0 %v595
  %1075 = vmatmul.mubr.bf16.gmra.mrb[0].mxu0 %v594
  %v1076 = vpop.f32.mrb[0].mxu0
  %v1077 = vadd.f32 0.0, %v1076
  %v1078 = vpop.f32.mrb[0].mxu0
  %v1079 = vpop.f32.mrb[0].mxu0
  %v1080 = vadd.f32 0.0, %v1079
  %v1081 = vpop.f32.mrb[0].mxu0
  %1082 = vmatprep.mubr.bf16.mxu0 %v597
  %1083 = vmatmul.mubr.bf16.gmra.mrb[0].mxu0 %v596
  %v1084 = vpop.f32.mrb[0].mxu0
  %v1085 = vadd.f32 0.0, %v1084
  %v1086 = vpop.f32.mrb[0].mxu0
  %v1087 = vpop.f32.mrb[0].mxu0
  %v1088 = vadd.f32 0.0, %v1087
  %v1089 = vpop.f32.mrb[0].mxu0
  %1090 = vmatprep.mubr.bf16.mxu0 %v599
  %1091 = vmatmul.mubr.bf16.gmra.mrb[0].mxu0 %v598
  %v1092 = vpop.f32.mrb[0].mxu0
  %v1093 = vadd.f32 0.0, %v1092
  %v1094 = vpop.f32.mrb[0].mxu0
  %v1095 = vpop.f32.mrb[0].mxu0
  %v1096 = vadd.f32 0.0, %v1095
  %v1097 = vpop.f32.mrb[0].mxu0
  %1098 = vmatprep.mubr.bf16.mxu0 %v601
  %1099 = vmatmul.mubr.bf16.gmra.mrb[0].mxu0 %v600
  %v1100 = vpop.f32.mrb[0].mxu0
  %v1101 = vadd.f32 0.0, %v1100
  %v1102 = vpop.f32.mrb[0].mxu0
  %v1103 = vpop.f32.mrb[0].mxu0
  %v1104 = vadd.f32 0.0, %v1103
  %v1105 = vpop.f32.mrb[0].mxu0
  %1106 = vmatprep.mubr.bf16.mxu0 %v603
  %1107 = vmatmul.mubr.bf16.gmra.mrb[0].mxu0 %v602
  %v1108 = vpop.f32.mrb[0].mxu0
  %v1109 = vadd.f32 0.0, %v1108
  %v1110 = vpop.f32.mrb[0].mxu0
  %v1111 = vpop.f32.mrb[0].mxu0
  %v1112 = vadd.f32 0.0, %v1111
  %v1113 = vpop.f32.mrb[0].mxu0
  %1114 = vmatprep.mubr.bf16.mxu0 %v605
  %1115 = vmatmul.mubr.bf16.gmra.mrb[0].mxu0 %v604
  %v1116 = vpop.f32.mrb[0].mxu0
  %v1117 = vadd.f32 0.0, %v1116
  %v1118 = vpop.f32.mrb[0].mxu0
  %v1119 = vpop.f32.mrb[0].mxu0
  %v1120 = vadd.f32 0.0, %v1119
  %v1121 = vpop.f32.mrb[0].mxu0
  %1122 = vmatprep.mubr.bf16.mxu0 %v607
  %1123 = vmatmul.mubr.bf16.gmra.mrb[0].mxu0 %v606
  %v1124 = vpop.f32.mrb[0].mxu0
  %v1125 = vadd.f32 0.0, %v1124
  %v1126 = vpop.f32.mrb[0].mxu0
  %v1127 = vpop.f32.mrb[0].mxu0
  %v1128 = vadd.f32 0.0, %v1127
  %v1129 = vpop.f32.mrb[0].mxu0
  %1130 = vmatprep.mubr.bf16.mxu0 %v609
  %1131 = vmatmul.mubr.bf16.gmra.mrb[0].mxu0 %v608
  %v1132 = vpop.f32.mrb[0].mxu0
  %v1133 = vadd.f32 0.0, %v1132
  %v1134 = vpop.f32.mrb[0].mxu0
  %v1135 = vpop.f32.mrb[0].mxu0
  %v1136 = vadd.f32 0.0, %v1135
  %v1137 = vpop.f32.mrb[0].mxu0
  %1138 = vmatprep.mubr.bf16.mxu0 %v611
  %1139 = vmatmul.mubr.bf16.gmra.mrb[0].mxu0 %v610
  %v1140 = vpop.f32.mrb[0].mxu0
  %v1141 = vadd.f32 0.0, %v1140
  %v1142 = vpop.f32.mrb[0].mxu0
  %v1143 = vpop.f32.mrb[0].mxu0
  %v1144 = vadd.f32 0.0, %v1143
  %v1145 = vpop.f32.mrb[0].mxu0
  %1146 = vmatprep.mubr.bf16.mxu0 %v613
  %1147 = vmatmul.mubr.bf16.gmra.mrb[0].mxu0 %v612
  %v1148 = vpop.f32.mrb[0].mxu0
  %v1149 = vadd.f32 0.0, %v1148
  %v1150 = vpop.f32.mrb[0].mxu0
  %v1151 = vpop.f32.mrb[0].mxu0
  %v1152 = vadd.f32 0.0, %v1151
  %v1153 = vpop.f32.mrb[0].mxu0
  %1154 = vmatprep.mubr.bf16.mxu0 %v615
  %1155 = vmatmul.mubr.bf16.gmra.mrb[0].mxu0 %v614
  %v1156 = vpop.f32.mrb[0].mxu0
  %v1157 = vadd.f32 0.0, %v1156
  %v1158 = vpop.f32.mrb[0].mxu0
  %v1159 = vpop.f32.mrb[0].mxu0
  %v1160 = vadd.f32 0.0, %v1159
  %v1161 = vpop.f32.mrb[0].mxu0
  %1162 = vmatprep.mubr.bf16.mxu0 %v617
  %1163 = vmatmul.mubr.bf16.gmra.mrb[0].mxu0 %v616
  %v1164 = vpop.f32.mrb[0].mxu0
  %v1165 = vadd.f32 0.0, %v1164
  %v1166 = vpop.f32.mrb[0].mxu0
  %v1167 = vpop.f32.mrb[0].mxu0
  %v1168 = vadd.f32 0.0, %v1167
  %v1169 = vpop.f32.mrb[0].mxu0
  %1170 = vmatprep.mubr.bf16.mxu0 %v619
  %1171 = vmatmul.mubr.bf16.gmra.mrb[0].mxu0 %v618
  %v1172 = vpop.f32.mrb[0].mxu0
  %v1173 = vadd.f32 0.0, %v1172
  %v1174 = vpop.f32.mrb[0].mxu0
  %v1175 = vpop.f32.mrb[0].mxu0
  %v1176 = vadd.f32 0.0, %v1175
  %v1177 = vpop.f32.mrb[0].mxu0
  %1178 = vmatprep.mubr.bf16.mxu0 %v621
  %1179 = vmatmul.mubr.bf16.gmra.mrb[0].mxu0 %v620
  %v1180 = vpop.f32.mrb[0].mxu0
  %v1181 = vadd.f32 0.0, %v1180
  %v1182 = vpop.f32.mrb[0].mxu0
  %v1183 = vpop.f32.mrb[0].mxu0
  %v1184 = vadd.f32 0.0, %v1183
  %v1185 = vpop.f32.mrb[0].mxu0
  %1186 = vmatprep.mubr.bf16.mxu0 %v623
  %1187 = vmatmul.mubr.bf16.gmra.mrb[0].mxu0 %v622
  %v1188 = vpop.f32.mrb[0].mxu0
  %v1189 = vadd.f32 0.0, %v1188
  %v1190 = vpop.f32.mrb[0].mxu0
  %v1191 = vpop.f32.mrb[0].mxu0
  %v1192 = vadd.f32 0.0, %v1191
  %v1193 = vpop.f32.mrb[0].mxu0
  %1194 = vmatprep.mubr.bf16.mxu0 %v625
  %1195 = vmatmul.mubr.bf16.gmra.mrb[0].mxu0 %v624
  %v1196 = vpop.f32.mrb[0].mxu0
  %v1197 = vadd.f32 0.0, %v1196
  %v1198 = vpop.f32.mrb[0].mxu0
  %v1199 = vpop.f32.mrb[0].mxu0
  %v1200 = vadd.f32 0.0, %v1199
  %v1201 = vpop.f32.mrb[0].mxu0
  %1202 = vmatprep.mubr.bf16.mxu0 %v627
  %1203 = vmatmul.mubr.bf16.gmra.mrb[0].mxu0 %v626
  %v1204 = vpop.f32.mrb[0].mxu0
  %v1205 = vadd.f32 0.0, %v1204
  %v1206 = vpop.f32.mrb[0].mxu0
  %v1207 = vpop.f32.mrb[0].mxu0
  %v1208 = vadd.f32 0.0, %v1207
  %v1209 = vpop.f32.mrb[0].mxu0
  %1210 = vmatprep.mubr.bf16.mxu0 %v629
  %1211 = vmatmul.mubr.bf16.gmra.mrb[0].mxu0 %v628
  %v1212 = vpop.f32.mrb[0].mxu0
  %v1213 = vadd.f32 0.0, %v1212
  %v1214 = vpop.f32.mrb[0].mxu0
  %v1215 = vpop.f32.mrb[0].mxu0
  %v1216 = vadd.f32 0.0, %v1215
  %v1217 = vpop.f32.mrb[0].mxu0
  %1218 = vmatprep.mubr.bf16.mxu0 %v631
  %1219 = vmatmul.mubr.bf16.gmra.mrb[0].mxu0 %v630
  %v1220 = vpop.f32.mrb[0].mxu0
  %v1221 = vadd.f32 0.0, %v1220
  %v1222 = vpop.f32.mrb[0].mxu0
  %v1223 = vpop.f32.mrb[0].mxu0
  %v1224 = vadd.f32 0.0, %v1223
  %v1225 = vpop.f32.mrb[0].mxu0
  %1226 = vmatprep.mubr.bf16.mxu0 %v633
  %1227 = vmatmul.mubr.bf16.gmra.mrb[0].mxu0 %v632
  %v1228 = vpop.f32.mrb[0].mxu0
  %v1229 = vadd.f32 0.0, %v1228
  %v1230 = vpop.f32.mrb[0].mxu0
  %v1231 = vpop.f32.mrb[0].mxu0
  %v1232 = vadd.f32 0.0, %v1231
  %v1233 = vpop.f32.mrb[0].mxu0
  %1234 = vmatprep.mubr.bf16.mxu0 %v635
  %1235 = vmatmul.mubr.bf16.gmra.mrb[0].mxu0 %v634
  %v1236 = vpop.f32.mrb[0].mxu0
  %v1237 = vadd.f32 0.0, %v1236
  %v1238 = vpop.f32.mrb[0].mxu0
  %v1239 = vpop.f32.mrb[0].mxu0
  %v1240 = vadd.f32 0.0, %v1239
  %v1241 = vpop.f32.mrb[0].mxu0
  %1242 = vmatprep.mubr.bf16.mxu0 %v637
  %1243 = vmatmul.mubr.bf16.gmra.mrb[0].mxu0 %v636
  %v1244 = vpop.f32.mrb[0].mxu0
  %v1245 = vadd.f32 0.0, %v1244
  %v1246 = vpop.f32.mrb[0].mxu0
  %v1247 = vpop.f32.mrb[0].mxu0
  %v1248 = vadd.f32 0.0, %v1247
  %v1249 = vpop.f32.mrb[0].mxu0
  %1250 = vmatprep.mubr.bf16.mxu0 %v639
  %1251 = vmatmul.mubr.bf16.gmra.mrb[0].mxu0 %v638
  %v1252 = vpop.f32.mrb[0].mxu0
  %v1253 = vadd.f32 0.0, %v1252
  %v1254 = vpop.f32.mrb[0].mxu0
  %v1255 = vpop.f32.mrb[0].mxu0
  %v1256 = vadd.f32 0.0, %v1255
  %v1257 = vpop.f32.mrb[0].mxu0
  %1258 = vmatprep.mubr.bf16.mxu0 %v641
  %1259 = vmatmul.mubr.bf16.gmra.mrb[0].mxu0 %v640
  %v1260 = vpop.f32.mrb[0].mxu0
  %v1261 = vadd.f32 0.0, %v1260
  %v1262 = vpop.f32.mrb[0].mxu0
  %v1263 = vpop.f32.mrb[0].mxu0
  %v1264 = vadd.f32 0.0, %v1263
  %v1265 = vpop.f32.mrb[0].mxu0
  %1266 = vmatprep.mubr.bf16.mxu0 %v643
  %1267 = vmatmul.mubr.bf16.gmra.mrb[0].mxu0 %v642
  %v1268 = vpop.f32.mrb[0].mxu0
  %v1269 = vadd.f32 0.0, %v1268
  %v1270 = vpop.f32.mrb[0].mxu0
  %v1271 = vpop.f32.mrb[0].mxu0
  %v1272 = vadd.f32 0.0, %v1271
  %v1273 = vpop.f32.mrb[0].mxu0
  %1274 = vmatprep.mubr.bf16.mxu0 %v645
  %1275 = vmatmul.mubr.bf16.gmra.mrb[0].mxu0 %v644
  %v1276 = vpop.f32.mrb[0].mxu0
  %v1277 = vadd.f32 0.0, %v1276
  %v1278 = vpop.f32.mrb[0].mxu0
  %v1279 = vpop.f32.mrb[0].mxu0
  %v1280 = vadd.f32 0.0, %v1279
  %v1281 = vpop.f32.mrb[0].mxu0
  %1282 = vmatprep.mubr.bf16.mxu0 %v647
  %1283 = vmatmul.mubr.bf16.gmra.mrb[0].mxu0 %v646
  %v1284 = vpop.f32.mrb[0].mxu0
  %v1285 = vadd.f32 0.0, %v1284
  %v1286 = vpop.f32.mrb[0].mxu0
  %v1287 = vpop.f32.mrb[0].mxu0
  %v1288 = vadd.f32 0.0, %v1287
  %v1289 = vpop.f32.mrb[0].mxu0
  %1290 = vmatprep.mubr.bf16.mxu0 %v649
  %1291 = vmatmul.mubr.bf16.gmra.mrb[0].mxu0 %v648
  %v1292 = vpop.f32.mrb[0].mxu0
  %v1293 = vadd.f32 0.0, %v1292
  %v1294 = vpop.f32.mrb[0].mxu0
  %v1295 = vpop.f32.mrb[0].mxu0
  %v1296 = vadd.f32 0.0, %v1295
  %v1297 = vpop.f32.mrb[0].mxu0
  %1298 = vmatprep.mubr.bf16.mxu0 %v651
  %1299 = vmatmul.mubr.bf16.gmra.mrb[0].mxu0 %v650
  %v1300 = vpop.f32.mrb[0].mxu0
  %v1301 = vadd.f32 0.0, %v1300
  %v1302 = vpop.f32.mrb[0].mxu0
  %v1303 = vpop.f32.mrb[0].mxu0
  %v1304 = vadd.f32 0.0, %v1303
  %v1305 = vpop.f32.mrb[0].mxu0
  %1306 = vmatprep.mubr.bf16.mxu0 %v653
  %1307 = vmatmul.mubr.bf16.gmra.mrb[0].mxu0 %v652
  %v1308 = vpop.f32.mrb[0].mxu0
  %v1309 = vadd.f32 0.0, %v1308
  %v1310 = vpop.f32.mrb[0].mxu0
  %v1311 = vpop.f32.mrb[0].mxu0
  %v1312 = vadd.f32 0.0, %v1311
  %v1313 = vpop.f32.mrb[0].mxu0
  %1314 = vmatprep.mubr.bf16.mxu0 %v655
  %1315 = vmatmul.mubr.bf16.gmra.mrb[0].mxu0 %v654
  %v1316 = vpop.f32.mrb[0].mxu0
  %v1317 = vadd.f32 0.0, %v1316
  %v1318 = vpop.f32.mrb[0].mxu0
  %v1319 = vpop.f32.mrb[0].mxu0
  %v1320 = vadd.f32 0.0, %v1319
  %v1321 = vpop.f32.mrb[0].mxu0
  %1322 = vmatprep.mubr.bf16.mxu0 %v657
  %1323 = vmatmul.mubr.bf16.gmra.mrb[0].mxu0 %v656
  %v1324 = vpop.f32.mrb[0].mxu0
  %v1325 = vadd.f32 0.0, %v1324
  %v1326 = vpop.f32.mrb[0].mxu0
  %v1327 = vpop.f32.mrb[0].mxu0
  %v1328 = vadd.f32 0.0, %v1327
  %v1329 = vpop.f32.mrb[0].mxu0
  %1330 = vmatprep.mubr.bf16.mxu0 %v659
  %1331 = vmatmul.mubr.bf16.gmra.mrb[0].mxu0 %v658
  %v1332 = vpop.f32.mrb[0].mxu0
  %v1333 = vadd.f32 0.0, %v1332
  %v1334 = vpop.f32.mrb[0].mxu0
  %v1335 = vpop.f32.mrb[0].mxu0
  %v1336 = vadd.f32 0.0, %v1335
  %v1337 = vpop.f32.mrb[0].mxu0
  %1338 = vmatprep.mubr.bf16.mxu0 %v661
  %1339 = vmatmul.mubr.bf16.gmra.mrb[0].mxu0 %v660
  %v1340 = vpop.f32.mrb[0].mxu0
  %v1341 = vadd.f32 0.0, %v1340
  %v1342 = vpop.f32.mrb[0].mxu0
  %v1343 = vpop.f32.mrb[0].mxu0
  %v1344 = vadd.f32 0.0, %v1343
  %v1345 = vpop.f32.mrb[0].mxu0
  %1346 = vmatprep.mubr.bf16.mxu0 %v663
  %1347 = vmatmul.mubr.bf16.gmra.mrb[0].mxu0 %v662
  %v1348 = vpop.f32.mrb[0].mxu0
  %v1349 = vadd.f32 0.0, %v1348
  %v1350 = vpop.f32.mrb[0].mxu0
  %v1351 = vpop.f32.mrb[0].mxu0
  %v1352 = vadd.f32 0.0, %v1351
  %v1353 = vpop.f32.mrb[0].mxu0
  %1354 = vmatprep.mubr.bf16.mxu0 %v665
  %1355 = vmatmul.mubr.bf16.gmra.mrb[0].mxu0 %v664
  %v1356 = vpop.f32.mrb[0].mxu0
  %v1357 = vadd.f32 0.0, %v1356
  %v1358 = vpop.f32.mrb[0].mxu0
  %v1359 = vpop.f32.mrb[0].mxu0
  %v1360 = vadd.f32 0.0, %v1359
  %v1361 = vpop.f32.mrb[0].mxu0
  %1362 = vmatprep.mubr.bf16.mxu0 %v667
  %1363 = vmatmul.mubr.bf16.gmra.mrb[0].mxu0 %v666
  %v1364 = vpop.f32.mrb[0].mxu0
  %v1365 = vadd.f32 0.0, %v1364
  %v1366 = vpop.f32.mrb[0].mxu0
  %v1367 = vpop.f32.mrb[0].mxu0
  %v1368 = vadd.f32 0.0, %v1367
  %v1369 = vpop.f32.mrb[0].mxu0
  %1370 = vmatprep.mubr.bf16.mxu0 %v669
  %1371 = vmatmul.mubr.bf16.gmra.mrb[0].mxu0 %v668
  %v1372 = vpop.f32.mrb[0].mxu0
  %v1373 = vadd.f32 0.0, %v1372
  %v1374 = vpop.f32.mrb[0].mxu0
  %v1375 = vpop.f32.mrb[0].mxu0
  %v1376 = vadd.f32 0.0, %v1375
  %v1377 = vpop.f32.mrb[0].mxu0
  %1378 = vmatprep.mubr.bf16.mxu0 %v671
  %1379 = vmatmul.mubr.bf16.gmra.mrb[0].mxu0 %v670
  %v1380 = vpop.f32.mrb[0].mxu0
  %v1381 = vadd.f32 0.0, %v1380
  %v1382 = vpop.f32.mrb[0].mxu0
  %v1383 = vpop.f32.mrb[0].mxu0
  %v1384 = vadd.f32 0.0, %v1383
  %v1385 = vpop.f32.mrb[0].mxu0
  %1386 = vmatprep.mubr.bf16.mxu0 %v673
  %1387 = vmatmul.mubr.bf16.gmra.mrb[0].mxu0 %v672
  %v1388 = vpop.f32.mrb[0].mxu0
  %v1389 = vadd.f32 0.0, %v1388
  %v1390 = vpop.f32.mrb[0].mxu0
  %v1391 = vpop.f32.mrb[0].mxu0
  %v1392 = vadd.f32 0.0, %v1391
  %v1393 = vpop.f32.mrb[0].mxu0
  %1394 = vmatprep.mubr.bf16.mxu0 %v675
  %1395 = vmatmul.mubr.bf16.gmra.mrb[0].mxu0 %v674
  %v1396 = vpop.f32.mrb[0].mxu0
  %v1397 = vadd.f32 0.0, %v1396
  %v1398 = vpop.f32.mrb[0].mxu0
  %v1399 = vpop.f32.mrb[0].mxu0
  %v1400 = vadd.f32 0.0, %v1399
  %v1401 = vpop.f32.mrb[0].mxu0
  %1402 = vmatprep.mubr.bf16.mxu0 %v677
  %1403 = vmatmul.mubr.bf16.gmra.mrb[0].mxu0 %v676
  %v1404 = vpop.f32.mrb[0].mxu0
  %v1405 = vadd.f32 0.0, %v1404
  %v1406 = vpop.f32.mrb[0].mxu0
  %v1407 = vpop.f32.mrb[0].mxu0
  %v1408 = vadd.f32 0.0, %v1407
  %v1409 = vpop.f32.mrb[0].mxu0
  %1410 = vmatprep.mubr.bf16.mxu0 %v679
  %1411 = vmatmul.mubr.bf16.gmra.mrb[0].mxu0 %v678
  %v1412 = vpop.f32.mrb[0].mxu0
  %v1413 = vadd.f32 0.0, %v1412
  %v1414 = vpop.f32.mrb[0].mxu0
  %v1415 = vpop.f32.mrb[0].mxu0
  %v1416 = vadd.f32 0.0, %v1415
  %v1417 = vpop.f32.mrb[0].mxu0
  %1418 = vmatprep.mubr.bf16.mxu0 %v681
  %1419 = vmatmul.mubr.bf16.gmra.mrb[0].mxu0 %v680
  %v1420 = vpop.f32.mrb[0].mxu0
  %v1421 = vadd.f32 0.0, %v1420
  %v1422 = vpop.f32.mrb[0].mxu0
  %v1423 = vpop.f32.mrb[0].mxu0
  %v1424 = vadd.f32 0.0, %v1423
  %v1425 = vpop.f32.mrb[0].mxu0
  %1426 = vmatprep.mubr.bf16.mxu0 %v683
  %1427 = vmatmul.mubr.bf16.gmra.mrb[0].mxu0 %v682
  %v1428 = vpop.f32.mrb[0].mxu0
  %v1429 = vadd.f32 0.0, %v1428
  %v1430 = vpop.f32.mrb[0].mxu0
  %v1431 = vpop.f32.mrb[0].mxu0
  %v1432 = vadd.f32 0.0, %v1431
  %v1433 = vpop.f32.mrb[0].mxu0
  %1434 = vmatprep.mubr.bf16.mxu0 %v685
  %1435 = vmatmul.mubr.bf16.gmra.mrb[0].mxu0 %v684
  %v1436 = vpop.f32.mrb[0].mxu0
  %v1437 = vadd.f32 0.0, %v1436
  %v1438 = vpop.f32.mrb[0].mxu0
  %v1439 = vpop.f32.mrb[0].mxu0
  %v1440 = vadd.f32 0.0, %v1439
  %v1441 = vpop.f32.mrb[0].mxu0
  %1442 = vmatprep.mubr.bf16.mxu0 %v687
  %1443 = vmatmul.mubr.bf16.gmra.mrb[0].mxu0 %v686
  %v1444 = vpop.f32.mrb[0].mxu0
  %v1445 = vadd.f32 0.0, %v1444
  %v1446 = vpop.f32.mrb[0].mxu0
  %v1447 = vpop.f32.mrb[0].mxu0
  %v1448 = vadd.f32 0.0, %v1447
  %v1449 = vpop.f32.mrb[0].mxu0
  %1450 = vmatprep.mubr.bf16.mxu0 %v689
  %1451 = vmatmul.mubr.bf16.gmra.mrb[0].mxu0 %v688
  %v1452 = vpop.f32.mrb[0].mxu0
  %v1453 = vadd.f32 0.0, %v1452
  %v1454 = vpop.f32.mrb[0].mxu0
  %v1455 = vpop.f32.mrb[0].mxu0
  %v1456 = vadd.f32 0.0, %v1455
  %v1457 = vpop.f32.mrb[0].mxu0
  %1458 = vdwg.mxu0
  %vm1459 = vcmask 64512
  %v1460 = vsel %vm1459, %v949, 0.0
  %v1461 = vsel %vm1459, %v952, 0.0
  %v1462 = vadd.f32 %v1460, %v1461
  %v1463 = vsel %vm1459, %v957, 0.0
  %v1464 = vadd.f32 %v1462, %v1463
  %v1465 = vsel %vm1459, %v960, 0.0
  %v1466 = vadd.f32 %v1464, %v1465
  %v1467 = vsel %vm1459, %v965, 0.0
  %v1468 = vadd.f32 %v1466, %v1467
  %v1469 = vsel %vm1459, %v968, 0.0
  %v1470 = vadd.f32 %v1468, %v1469
  %v1471 = vsel %vm1459, %v973, 0.0
  %v1472 = vadd.f32 %v1470, %v1471
  %v1473 = vsel %vm1459, %v976, 0.0
  %v1474 = vadd.f32 %v1472, %v1473
  %v1475 = vsel %vm1459, %v981, 0.0
  %v1476 = vadd.f32 %v1474, %v1475
  %v1477 = vsel %vm1459, %v984, 0.0
  %v1478 = vadd.f32 %v1476, %v1477
  %v1479 = vsel %vm1459, %v989, 0.0
  %v1480 = vadd.f32 %v1478, %v1479
  %v1481 = vsel %vm1459, %v992, 0.0
  %v1482 = vadd.f32 %v1480, %v1481
  %v1483 = vsel %vm1459, %v997, 0.0
  %v1484 = vadd.f32 %v1482, %v1483
  %v1485 = vsel %vm1459, %v1000, 0.0
  %v1486 = vadd.f32 %v1484, %v1485
  %v1487 = vsel %vm1459, %v1005, 0.0
  %v1488 = vadd.f32 %v1486, %v1487
  %v1489 = vsel %vm1459, %v1008, 0.0
  %v1490 = vadd.f32 %v1488, %v1489
  %v1491 = vsel %vm1459, %v1013, 0.0
  %v1492 = vadd.f32 %v1490, %v1491
  %v1493 = vsel %vm1459, %v1016, 0.0
  %v1494 = vadd.f32 %v1492, %v1493
  %v1495 = vsel %vm1459, %v1021, 0.0
  %v1496 = vadd.f32 %v1494, %v1495
  %v1497 = vsel %vm1459, %v1024, 0.0
  %v1498 = vadd.f32 %v1496, %v1497
  %v1499 = vsel %vm1459, %v1029, 0.0
  %v1500 = vadd.f32 %v1498, %v1499
  %v1501 = vsel %vm1459, %v1032, 0.0
  %v1502 = vadd.f32 %v1500, %v1501
  %v1503 = vsel %vm1459, %v1037, 0.0
  %v1504 = vadd.f32 %v1502, %v1503
  %v1505 = vsel %vm1459, %v1040, 0.0
  %v1506 = vadd.f32 %v1504, %v1505
  %v1507 = vsel %vm1459, %v1045, 0.0
  %v1508 = vadd.f32 %v1506, %v1507
  %v1509 = vsel %vm1459, %v1048, 0.0
  %v1510 = vadd.f32 %v1508, %v1509
  %v1511 = vsel %vm1459, %v1053, 0.0
  %v1512 = vadd.f32 %v1510, %v1511
  %v1513 = vsel %vm1459, %v1056, 0.0
  %v1514 = vadd.f32 %v1512, %v1513
  %v1515 = vsel %vm1459, %v1061, 0.0
  %v1516 = vadd.f32 %v1514, %v1515
  %v1517 = vsel %vm1459, %v1064, 0.0
  %v1518 = vadd.f32 %v1516, %v1517
  %v1519 = vsel %vm1459, %v1069, 0.0
  %v1520 = vadd.f32 %v1518, %v1519
  %v1521 = vsel %vm1459, %v1072, 0.0
  %v1522 = vadd.f32 %v1520, %v1521
  %v1523 = vsel %vm1459, %v1077, 0.0
  %v1524 = vadd.f32 %v1522, %v1523
  %v1525 = vsel %vm1459, %v1080, 0.0
  %v1526 = vadd.f32 %v1524, %v1525
  %v1527 = vsel %vm1459, %v1085, 0.0
  %v1528 = vadd.f32 %v1526, %v1527
  %v1529 = vsel %vm1459, %v1088, 0.0
  %v1530 = vadd.f32 %v1528, %v1529
  %v1531 = vsel %vm1459, %v1093, 0.0
  %v1532 = vadd.f32 %v1530, %v1531
  %v1533 = vsel %vm1459, %v1096, 0.0
  %v1534 = vadd.f32 %v1532, %v1533
  %v1535 = vsel %vm1459, %v1101, 0.0
  %v1536 = vadd.f32 %v1534, %v1535
  %v1537 = vsel %vm1459, %v1104, 0.0
  %v1538 = vadd.f32 %v1536, %v1537
  %v1539 = vsel %vm1459, %v1109, 0.0
  %v1540 = vadd.f32 %v1538, %v1539
  %v1541 = vsel %vm1459, %v1112, 0.0
  %v1542 = vadd.f32 %v1540, %v1541
  %v1543 = vsel %vm1459, %v1117, 0.0
  %v1544 = vadd.f32 %v1542, %v1543
  %v1545 = vsel %vm1459, %v1120, 0.0
  %v1546 = vadd.f32 %v1544, %v1545
  %v1547 = vsel %vm1459, %v1125, 0.0
  %v1548 = vadd.f32 %v1546, %v1547
  %v1549 = vsel %vm1459, %v1128, 0.0
  %v1550 = vadd.f32 %v1548, %v1549
  %v1551 = vsel %vm1459, %v1133, 0.0
  %v1552 = vadd.f32 %v1550, %v1551
  %v1553 = vsel %vm1459, %v1136, 0.0
  %v1554 = vadd.f32 %v1552, %v1553
  %v1555 = vsel %vm1459, %v1141, 0.0
  %v1556 = vadd.f32 %v1554, %v1555
  %v1557 = vsel %vm1459, %v1144, 0.0
  %v1558 = vadd.f32 %v1556, %v1557
  %v1559 = vsel %vm1459, %v1149, 0.0
  %v1560 = vadd.f32 %v1558, %v1559
  %v1561 = vsel %vm1459, %v1152, 0.0
  %v1562 = vadd.f32 %v1560, %v1561
  %v1563 = vsel %vm1459, %v1157, 0.0
  %v1564 = vadd.f32 %v1562, %v1563
  %v1565 = vsel %vm1459, %v1160, 0.0
  %v1566 = vadd.f32 %v1564, %v1565
  %v1567 = vsel %vm1459, %v1165, 0.0
  %v1568 = vadd.f32 %v1566, %v1567
  %v1569 = vsel %vm1459, %v1168, 0.0
  %v1570 = vadd.f32 %v1568, %v1569
  %v1571 = vsel %vm1459, %v1173, 0.0
  %v1572 = vadd.f32 %v1570, %v1571
  %v1573 = vsel %vm1459, %v1176, 0.0
  %v1574 = vadd.f32 %v1572, %v1573
  %v1575 = vsel %vm1459, %v1181, 0.0
  %v1576 = vadd.f32 %v1574, %v1575
  %v1577 = vsel %vm1459, %v1184, 0.0
  %v1578 = vadd.f32 %v1576, %v1577
  %v1579 = vsel %vm1459, %v1189, 0.0
  %v1580 = vadd.f32 %v1578, %v1579
  %v1581 = vsel %vm1459, %v1192, 0.0
  %v1582 = vadd.f32 %v1580, %v1581
  %v1583 = vsel %vm1459, %v1197, 0.0
  %v1584 = vadd.f32 %v1582, %v1583
  %v1585 = vsel %vm1459, %v1200, 0.0
  %v1586 = vadd.f32 %v1584, %v1585
  %v1587 = vsel %vm1459, %v1205, 0.0
  %v1588 = vadd.f32 %v1586, %v1587
  %v1589 = vsel %vm1459, %v1208, 0.0
  %v1590 = vadd.f32 %v1588, %v1589
  %v1591 = vsel %vm1459, %v1213, 0.0
  %v1592 = vadd.f32 %v1590, %v1591
  %v1593 = vsel %vm1459, %v1216, 0.0
  %v1594 = vadd.f32 %v1592, %v1593
  %v1595 = vsel %vm1459, %v1221, 0.0
  %v1596 = vadd.f32 %v1594, %v1595
  %v1597 = vsel %vm1459, %v1224, 0.0
  %v1598 = vadd.f32 %v1596, %v1597
  %v1599 = vsel %vm1459, %v1229, 0.0
  %v1600 = vadd.f32 %v1598, %v1599
  %v1601 = vsel %vm1459, %v1232, 0.0
  %v1602 = vadd.f32 %v1600, %v1601
  %v1603 = vsel %vm1459, %v1237, 0.0
  %v1604 = vadd.f32 %v1602, %v1603
  %v1605 = vsel %vm1459, %v1240, 0.0
  %v1606 = vadd.f32 %v1604, %v1605
  %v1607 = vsel %vm1459, %v1245, 0.0
  %v1608 = vadd.f32 %v1606, %v1607
  %v1609 = vsel %vm1459, %v1248, 0.0
  %v1610 = vadd.f32 %v1608, %v1609
  %v1611 = vsel %vm1459, %v1253, 0.0
  %v1612 = vadd.f32 %v1610, %v1611
  %v1613 = vsel %vm1459, %v1256, 0.0
  %v1614 = vadd.f32 %v1612, %v1613
  %v1615 = vsel %vm1459, %v1261, 0.0
  %v1616 = vadd.f32 %v1614, %v1615
  %v1617 = vsel %vm1459, %v1264, 0.0
  %v1618 = vadd.f32 %v1616, %v1617
  %v1619 = vsel %vm1459, %v1269, 0.0
  %v1620 = vadd.f32 %v1618, %v1619
  %v1621 = vsel %vm1459, %v1272, 0.0
  %v1622 = vadd.f32 %v1620, %v1621
  %v1623 = vsel %vm1459, %v1277, 0.0
  %v1624 = vadd.f32 %v1622, %v1623
  %v1625 = vsel %vm1459, %v1280, 0.0
  %v1626 = vadd.f32 %v1624, %v1625
  %v1627 = vsel %vm1459, %v1285, 0.0
  %v1628 = vadd.f32 %v1626, %v1627
  %v1629 = vsel %vm1459, %v1288, 0.0
  %v1630 = vadd.f32 %v1628, %v1629
  %v1631 = vsel %vm1459, %v1293, 0.0
  %v1632 = vadd.f32 %v1630, %v1631
  %v1633 = vsel %vm1459, %v1296, 0.0
  %v1634 = vadd.f32 %v1632, %v1633
  %v1635 = vsel %vm1459, %v1301, 0.0
  %v1636 = vadd.f32 %v1634, %v1635
  %v1637 = vsel %vm1459, %v1304, 0.0
  %v1638 = vadd.f32 %v1636, %v1637
  %v1639 = vsel %vm1459, %v1309, 0.0
  %v1640 = vadd.f32 %v1638, %v1639
  %v1641 = vsel %vm1459, %v1312, 0.0
  %v1642 = vadd.f32 %v1640, %v1641
  %v1643 = vsel %vm1459, %v1317, 0.0
  %v1644 = vadd.f32 %v1642, %v1643
  %v1645 = vsel %vm1459, %v1320, 0.0
  %v1646 = vadd.f32 %v1644, %v1645
  %v1647 = vsel %vm1459, %v1325, 0.0
  %v1648 = vadd.f32 %v1646, %v1647
  %v1649 = vsel %vm1459, %v1328, 0.0
  %v1650 = vadd.f32 %v1648, %v1649
  %v1651 = vsel %vm1459, %v1333, 0.0
  %v1652 = vadd.f32 %v1650, %v1651
  %v1653 = vsel %vm1459, %v1336, 0.0
  %v1654 = vadd.f32 %v1652, %v1653
  %v1655 = vsel %vm1459, %v1341, 0.0
  %v1656 = vadd.f32 %v1654, %v1655
  %v1657 = vsel %vm1459, %v1344, 0.0
  %v1658 = vadd.f32 %v1656, %v1657
  %v1659 = vsel %vm1459, %v1349, 0.0
  %v1660 = vadd.f32 %v1658, %v1659
  %v1661 = vsel %vm1459, %v1352, 0.0
  %v1662 = vadd.f32 %v1660, %v1661
  %v1663 = vsel %vm1459, %v1357, 0.0
  %v1664 = vadd.f32 %v1662, %v1663
  %v1665 = vsel %vm1459, %v1360, 0.0
  %v1666 = vadd.f32 %v1664, %v1665
  %v1667 = vsel %vm1459, %v1365, 0.0
  %v1668 = vadd.f32 %v1666, %v1667
  %v1669 = vsel %vm1459, %v1368, 0.0
  %v1670 = vadd.f32 %v1668, %v1669
  %v1671 = vsel %vm1459, %v1373, 0.0
  %v1672 = vadd.f32 %v1670, %v1671
  %v1673 = vsel %vm1459, %v1376, 0.0
  %v1674 = vadd.f32 %v1672, %v1673
  %v1675 = vsel %vm1459, %v1381, 0.0
  %v1676 = vadd.f32 %v1674, %v1675
  %v1677 = vsel %vm1459, %v1384, 0.0
  %v1678 = vadd.f32 %v1676, %v1677
  %v1679 = vsel %vm1459, %v1389, 0.0
  %v1680 = vadd.f32 %v1678, %v1679
  %v1681 = vsel %vm1459, %v1392, 0.0
  %v1682 = vadd.f32 %v1680, %v1681
  %v1683 = vsel %vm1459, %v1397, 0.0
  %v1684 = vadd.f32 %v1682, %v1683
  %v1685 = vsel %vm1459, %v1400, 0.0
  %v1686 = vadd.f32 %v1684, %v1685
  %v1687 = vsel %vm1459, %v1405, 0.0
  %v1688 = vadd.f32 %v1686, %v1687
  %v1689 = vsel %vm1459, %v1408, 0.0
  %v1690 = vadd.f32 %v1688, %v1689
  %v1691 = vsel %vm1459, %v1413, 0.0
  %v1692 = vadd.f32 %v1690, %v1691
  %v1693 = vsel %vm1459, %v1416, 0.0
  %v1694 = vadd.f32 %v1692, %v1693
  %v1695 = vsel %vm1459, %v1421, 0.0
  %v1696 = vadd.f32 %v1694, %v1695
  %v1697 = vsel %vm1459, %v1424, 0.0
  %v1698 = vadd.f32 %v1696, %v1697
  %v1699 = vsel %vm1459, %v1429, 0.0
  %v1700 = vadd.f32 %v1698, %v1699
  %v1701 = vsel %vm1459, %v1432, 0.0
  %v1702 = vadd.f32 %v1700, %v1701
  %v1703 = vsel %vm1459, %v1437, 0.0
  %v1704 = vadd.f32 %v1702, %v1703
  %v1705 = vsel %vm1459, %v1440, 0.0
  %v1706 = vadd.f32 %v1704, %v1705
  %v1707 = vsel %vm1459, %v1445, 0.0
  %v1708 = vadd.f32 %v1706, %v1707
  %v1709 = vsel %vm1459, %v1448, 0.0
  %v1710 = vadd.f32 %v1708, %v1709
  %v1711 = vsel %vm1459, %v1453, 0.0
  %v1712 = vadd.f32 %v1710, %v1711
  %v1713 = vsel %vm1459, %v1456, 0.0
  %v1714 = vadd.f32 %v1712, %v1713
  %v1715 = vrot.slane %v1714, 4
  %v1716 = vadd.f32 %v1714, %v1715
  %v1717 = vrot.slane %v1716, 2
  %v1718 = vadd.f32 %v1716, %v1717
  %v1719 = vrot.slane %v1718, 1
  %v1720 = vadd.f32 %v1718, %v1719
  %v1721 = vrcp.pop 1024.0
  %v1722 = vmul.f32 %v1720, %v1721
  %v1723 = vsub.f32 %v949, %v1722
  %v1724 = vsub.f32 %v952, %v1722
  %v1725 = vsub.f32 %v957, %v1722
  %v1726 = vsub.f32 %v960, %v1722
  %v1727 = vsub.f32 %v965, %v1722
  %v1728 = vsub.f32 %v968, %v1722
  %v1729 = vsub.f32 %v973, %v1722
  %v1730 = vsub.f32 %v976, %v1722
  %v1731 = vsub.f32 %v981, %v1722
  %v1732 = vsub.f32 %v984, %v1722
  %v1733 = vsub.f32 %v989, %v1722
  %v1734 = vsub.f32 %v992, %v1722
  %v1735 = vsub.f32 %v997, %v1722
  %v1736 = vsub.f32 %v1000, %v1722
  %v1737 = vsub.f32 %v1005, %v1722
  %v1738 = vsub.f32 %v1008, %v1722
  %v1739 = vsub.f32 %v1013, %v1722
  %v1740 = vsub.f32 %v1016, %v1722
  %v1741 = vsub.f32 %v1021, %v1722
  %v1742 = vsub.f32 %v1024, %v1722
  %v1743 = vsub.f32 %v1029, %v1722
  %v1744 = vsub.f32 %v1032, %v1722
  %v1745 = vsub.f32 %v1037, %v1722
  %v1746 = vsub.f32 %v1040, %v1722
  %v1747 = vsub.f32 %v1045, %v1722
  %v1748 = vsub.f32 %v1048, %v1722
  %v1749 = vsub.f32 %v1053, %v1722
  %v1750 = vsub.f32 %v1056, %v1722
  %v1751 = vsub.f32 %v1061, %v1722
  %v1752 = vsub.f32 %v1064, %v1722
  %v1753 = vsub.f32 %v1069, %v1722
  %v1754 = vsub.f32 %v1072, %v1722
  %v1755 = vsub.f32 %v1077, %v1722
  %v1756 = vsub.f32 %v1080, %v1722
  %v1757 = vsub.f32 %v1085, %v1722
  %v1758 = vsub.f32 %v1088, %v1722
  %v1759 = vsub.f32 %v1093, %v1722
  %v1760 = vsub.f32 %v1096, %v1722
  %v1761 = vsub.f32 %v1101, %v1722
  %v1762 = vsub.f32 %v1104, %v1722
  %v1763 = vsub.f32 %v1109, %v1722
  %v1764 = vsub.f32 %v1112, %v1722
  %v1765 = vsub.f32 %v1117, %v1722
  %v1766 = vsub.f32 %v1120, %v1722
  %v1767 = vsub.f32 %v1125, %v1722
  %v1768 = vsub.f32 %v1128, %v1722
  %v1769 = vsub.f32 %v1133, %v1722
  %v1770 = vsub.f32 %v1136, %v1722
  %v1771 = vsub.f32 %v1141, %v1722
  %v1772 = vsub.f32 %v1144, %v1722
  %v1773 = vsub.f32 %v1149, %v1722
  %v1774 = vsub.f32 %v1152, %v1722
  %v1775 = vsub.f32 %v1157, %v1722
  %v1776 = vsub.f32 %v1160, %v1722
  %v1777 = vsub.f32 %v1165, %v1722
  %v1778 = vsub.f32 %v1168, %v1722
  %v1779 = vsub.f32 %v1173, %v1722
  %v1780 = vsub.f32 %v1176, %v1722
  %v1781 = vsub.f32 %v1181, %v1722
  %v1782 = vsub.f32 %v1184, %v1722
  %v1783 = vsub.f32 %v1189, %v1722
  %v1784 = vsub.f32 %v1192, %v1722
  %v1785 = vsub.f32 %v1197, %v1722
  %v1786 = vsub.f32 %v1200, %v1722
  %v1787 = vsub.f32 %v1205, %v1722
  %v1788 = vsub.f32 %v1208, %v1722
  %v1789 = vsub.f32 %v1213, %v1722
  %v1790 = vsub.f32 %v1216, %v1722
  %v1791 = vsub.f32 %v1221, %v1722
  %v1792 = vsub.f32 %v1224, %v1722
  %v1793 = vsub.f32 %v1229, %v1722
  %v1794 = vsub.f32 %v1232, %v1722
  %v1795 = vsub.f32 %v1237, %v1722
  %v1796 = vsub.f32 %v1240, %v1722
  %v1797 = vsub.f32 %v1245, %v1722
  %v1798 = vsub.f32 %v1248, %v1722
  %v1799 = vsub.f32 %v1253, %v1722
  %v1800 = vsub.f32 %v1256, %v1722
  %v1801 = vsub.f32 %v1261, %v1722
  %v1802 = vsub.f32 %v1264, %v1722
  %v1803 = vsub.f32 %v1269, %v1722
  %v1804 = vsub.f32 %v1272, %v1722
  %v1805 = vsub.f32 %v1277, %v1722
  %v1806 = vsub.f32 %v1280, %v1722
  %v1807 = vsub.f32 %v1285, %v1722
  %v1808 = vsub.f32 %v1288, %v1722
  %v1809 = vsub.f32 %v1293, %v1722
  %v1810 = vsub.f32 %v1296, %v1722
  %v1811 = vsub.f32 %v1301, %v1722
  %v1812 = vsub.f32 %v1304, %v1722
  %v1813 = vsub.f32 %v1309, %v1722
  %v1814 = vsub.f32 %v1312, %v1722
  %v1815 = vsub.f32 %v1317, %v1722
  %v1816 = vsub.f32 %v1320, %v1722
  %v1817 = vsub.f32 %v1325, %v1722
  %v1818 = vsub.f32 %v1328, %v1722
  %v1819 = vsub.f32 %v1333, %v1722
  %v1820 = vsub.f32 %v1336, %v1722
  %v1821 = vsub.f32 %v1341, %v1722
  %v1822 = vsub.f32 %v1344, %v1722
  %v1823 = vsub.f32 %v1349, %v1722
  %v1824 = vsub.f32 %v1352, %v1722
  %v1825 = vsub.f32 %v1357, %v1722
  %v1826 = vsub.f32 %v1360, %v1722
  %v1827 = vsub.f32 %v1365, %v1722
  %v1828 = vsub.f32 %v1368, %v1722
  %v1829 = vsub.f32 %v1373, %v1722
  %v1830 = vsub.f32 %v1376, %v1722
  %v1831 = vsub.f32 %v1381, %v1722
  %v1832 = vsub.f32 %v1384, %v1722
  %v1833 = vsub.f32 %v1389, %v1722
  %v1834 = vsub.f32 %v1392, %v1722
  %v1835 = vsub.f32 %v1397, %v1722
  %v1836 = vsub.f32 %v1400, %v1722
  %v1837 = vsub.f32 %v1405, %v1722
  %v1838 = vsub.f32 %v1408, %v1722
  %v1839 = vsub.f32 %v1413, %v1722
  %v1840 = vsub.f32 %v1416, %v1722
  %v1841 = vsub.f32 %v1421, %v1722
  %v1842 = vsub.f32 %v1424, %v1722
  %v1843 = vsub.f32 %v1429, %v1722
  %v1844 = vsub.f32 %v1432, %v1722
  %v1845 = vsub.f32 %v1437, %v1722
  %v1846 = vsub.f32 %v1440, %v1722
  %v1847 = vsub.f32 %v1445, %v1722
  %v1848 = vsub.f32 %v1448, %v1722
  %v1849 = vsub.f32 %v1453, %v1722
  %v1850 = vsub.f32 %v1456, %v1722
  %v1851 = vmul.f32 %v1723, %v1723
  %v1852 = vmul.f32 %v1724, %v1724
  %v1853 = vmul.f32 %v1725, %v1725
  %v1854 = vmul.f32 %v1726, %v1726
  %v1855 = vmul.f32 %v1727, %v1727
  %v1856 = vmul.f32 %v1728, %v1728
  %v1857 = vmul.f32 %v1729, %v1729
  %v1858 = vmul.f32 %v1730, %v1730
  %v1859 = vmul.f32 %v1731, %v1731
  %v1860 = vmul.f32 %v1732, %v1732
  %v1861 = vmul.f32 %v1733, %v1733
  %v1862 = vmul.f32 %v1734, %v1734
  %v1863 = vmul.f32 %v1735, %v1735
  %v1864 = vmul.f32 %v1736, %v1736
  %v1865 = vmul.f32 %v1737, %v1737
  %v1866 = vmul.f32 %v1738, %v1738
  %v1867 = vmul.f32 %v1739, %v1739
  %v1868 = vmul.f32 %v1740, %v1740
  %v1869 = vmul.f32 %v1741, %v1741
  %v1870 = vmul.f32 %v1742, %v1742
  %v1871 = vmul.f32 %v1743, %v1743
  %v1872 = vmul.f32 %v1744, %v1744
  %v1873 = vmul.f32 %v1745, %v1745
  %v1874 = vmul.f32 %v1746, %v1746
  %v1875 = vmul.f32 %v1747, %v1747
  %v1876 = vmul.f32 %v1748, %v1748
  %v1877 = vmul.f32 %v1749, %v1749
  %v1878 = vmul.f32 %v1750, %v1750
  %v1879 = vmul.f32 %v1751, %v1751
  %v1880 = vmul.f32 %v1752, %v1752
  %v1881 = vmul.f32 %v1753, %v1753
  %v1882 = vmul.f32 %v1754, %v1754
  %v1883 = vmul.f32 %v1755, %v1755
  %v1884 = vmul.f32 %v1756, %v1756
  %v1885 = vmul.f32 %v1757, %v1757
  %v1886 = vmul.f32 %v1758, %v1758
  %v1887 = vmul.f32 %v1759, %v1759
  %v1888 = vmul.f32 %v1760, %v1760
  %v1889 = vmul.f32 %v1761, %v1761
  %v1890 = vmul.f32 %v1762, %v1762
  %v1891 = vmul.f32 %v1763, %v1763
  %v1892 = vmul.f32 %v1764, %v1764
  %v1893 = vmul.f32 %v1765, %v1765
  %v1894 = vmul.f32 %v1766, %v1766
  %v1895 = vmul.f32 %v1767, %v1767
  %v1896 = vmul.f32 %v1768, %v1768
  %v1897 = vmul.f32 %v1769, %v1769
  %v1898 = vmul.f32 %v1770, %v1770
  %v1899 = vmul.f32 %v1771, %v1771
  %v1900 = vmul.f32 %v1772, %v1772
  %v1901 = vmul.f32 %v1773, %v1773
  %v1902 = vmul.f32 %v1774, %v1774
  %v1903 = vmul.f32 %v1775, %v1775
  %v1904 = vmul.f32 %v1776, %v1776
  %v1905 = vmul.f32 %v1777, %v1777
  %v1906 = vmul.f32 %v1778, %v1778
  %v1907 = vmul.f32 %v1779, %v1779
  %v1908 = vmul.f32 %v1780, %v1780
  %v1909 = vmul.f32 %v1781, %v1781
  %v1910 = vmul.f32 %v1782, %v1782
  %v1911 = vmul.f32 %v1783, %v1783
  %v1912 = vmul.f32 %v1784, %v1784
  %v1913 = vmul.f32 %v1785, %v1785
  %v1914 = vmul.f32 %v1786, %v1786
  %v1915 = vmul.f32 %v1787, %v1787
  %v1916 = vmul.f32 %v1788, %v1788
  %v1917 = vmul.f32 %v1789, %v1789
  %v1918 = vmul.f32 %v1790, %v1790
  %v1919 = vmul.f32 %v1791, %v1791
  %v1920 = vmul.f32 %v1792, %v1792
  %v1921 = vmul.f32 %v1793, %v1793
  %v1922 = vmul.f32 %v1794, %v1794
  %v1923 = vmul.f32 %v1795, %v1795
  %v1924 = vmul.f32 %v1796, %v1796
  %v1925 = vmul.f32 %v1797, %v1797
  %v1926 = vmul.f32 %v1798, %v1798
  %v1927 = vmul.f32 %v1799, %v1799
  %v1928 = vmul.f32 %v1800, %v1800
  %v1929 = vmul.f32 %v1801, %v1801
  %v1930 = vmul.f32 %v1802, %v1802
  %v1931 = vmul.f32 %v1803, %v1803
  %v1932 = vmul.f32 %v1804, %v1804
  %v1933 = vmul.f32 %v1805, %v1805
  %v1934 = vmul.f32 %v1806, %v1806
  %v1935 = vmul.f32 %v1807, %v1807
  %v1936 = vmul.f32 %v1808, %v1808
  %v1937 = vmul.f32 %v1809, %v1809
  %v1938 = vmul.f32 %v1810, %v1810
  %v1939 = vmul.f32 %v1811, %v1811
  %v1940 = vmul.f32 %v1812, %v1812
  %v1941 = vmul.f32 %v1813, %v1813
  %v1942 = vmul.f32 %v1814, %v1814
  %v1943 = vmul.f32 %v1815, %v1815
  %v1944 = vmul.f32 %v1816, %v1816
  %v1945 = vmul.f32 %v1817, %v1817
  %v1946 = vmul.f32 %v1818, %v1818
  %v1947 = vmul.f32 %v1819, %v1819
  %v1948 = vmul.f32 %v1820, %v1820
  %v1949 = vmul.f32 %v1821, %v1821
  %v1950 = vmul.f32 %v1822, %v1822
  %v1951 = vmul.f32 %v1823, %v1823
  %v1952 = vmul.f32 %v1824, %v1824
  %v1953 = vmul.f32 %v1825, %v1825
  %v1954 = vmul.f32 %v1826, %v1826
  %v1955 = vmul.f32 %v1827, %v1827
  %v1956 = vmul.f32 %v1828, %v1828
  %v1957 = vmul.f32 %v1829, %v1829
  %v1958 = vmul.f32 %v1830, %v1830
  %v1959 = vmul.f32 %v1831, %v1831
  %v1960 = vmul.f32 %v1832, %v1832
  %v1961 = vmul.f32 %v1833, %v1833
  %v1962 = vmul.f32 %v1834, %v1834
  %v1963 = vmul.f32 %v1835, %v1835
  %v1964 = vmul.f32 %v1836, %v1836
  %v1965 = vmul.f32 %v1837, %v1837
  %v1966 = vmul.f32 %v1838, %v1838
  %v1967 = vmul.f32 %v1839, %v1839
  %v1968 = vmul.f32 %v1840, %v1840
  %v1969 = vmul.f32 %v1841, %v1841
  %v1970 = vmul.f32 %v1842, %v1842
  %v1971 = vmul.f32 %v1843, %v1843
  %v1972 = vmul.f32 %v1844, %v1844
  %v1973 = vmul.f32 %v1845, %v1845
  %v1974 = vmul.f32 %v1846, %v1846
  %v1975 = vmul.f32 %v1847, %v1847
  %v1976 = vmul.f32 %v1848, %v1848
  %v1977 = vmul.f32 %v1849, %v1849
  %v1978 = vmul.f32 %v1850, %v1850
  %v1979 = vsel %vm1459, %v1851, 0.0
  %v1980 = vsel %vm1459, %v1852, 0.0
  %v1981 = vadd.f32 %v1979, %v1980
  %v1982 = vsel %vm1459, %v1853, 0.0
  %v1983 = vadd.f32 %v1981, %v1982
  %v1984 = vsel %vm1459, %v1854, 0.0
  %v1985 = vadd.f32 %v1983, %v1984
  %v1986 = vsel %vm1459, %v1855, 0.0
  %v1987 = vadd.f32 %v1985, %v1986
  %v1988 = vsel %vm1459, %v1856, 0.0
  %v1989 = vadd.f32 %v1987, %v1988
  %v1990 = vsel %vm1459, %v1857, 0.0
  %v1991 = vadd.f32 %v1989, %v1990
  %v1992 = vsel %vm1459, %v1858, 0.0
  %v1993 = vadd.f32 %v1991, %v1992
  %v1994 = vsel %vm1459, %v1859, 0.0
  %v1995 = vadd.f32 %v1993, %v1994
  %v1996 = vsel %vm1459, %v1860, 0.0
  %v1997 = vadd.f32 %v1995, %v1996
  %v1998 = vsel %vm1459, %v1861, 0.0
  %v1999 = vadd.f32 %v1997, %v1998
  %v2000 = vsel %vm1459, %v1862, 0.0
  %v2001 = vadd.f32 %v1999, %v2000
  %v2002 = vsel %vm1459, %v1863, 0.0
  %v2003 = vadd.f32 %v2001, %v2002
  %v2004 = vsel %vm1459, %v1864, 0.0
  %v2005 = vadd.f32 %v2003, %v2004
  %v2006 = vsel %vm1459, %v1865, 0.0
  %v2007 = vadd.f32 %v2005, %v2006
  %v2008 = vsel %vm1459, %v1866, 0.0
  %v2009 = vadd.f32 %v2007, %v2008
  %v2010 = vsel %vm1459, %v1867, 0.0
  %v2011 = vadd.f32 %v2009, %v2010
  %v2012 = vsel %vm1459, %v1868, 0.0
  %v2013 = vadd.f32 %v2011, %v2012
  %v2014 = vsel %vm1459, %v1869, 0.0
  %v2015 = vadd.f32 %v2013, %v2014
  %v2016 = vsel %vm1459, %v1870, 0.0
  %v2017 = vadd.f32 %v2015, %v2016
  %v2018 = vsel %vm1459, %v1871, 0.0
  %v2019 = vadd.f32 %v2017, %v2018
  %v2020 = vsel %vm1459, %v1872, 0.0
  %v2021 = vadd.f32 %v2019, %v2020
  %v2022 = vsel %vm1459, %v1873, 0.0
  %v2023 = vadd.f32 %v2021, %v2022
  %v2024 = vsel %vm1459, %v1874, 0.0
  %v2025 = vadd.f32 %v2023, %v2024
  %v2026 = vsel %vm1459, %v1875, 0.0
  %v2027 = vadd.f32 %v2025, %v2026
  %v2028 = vsel %vm1459, %v1876, 0.0
  %v2029 = vadd.f32 %v2027, %v2028
  %v2030 = vsel %vm1459, %v1877, 0.0
  %v2031 = vadd.f32 %v2029, %v2030
  %v2032 = vsel %vm1459, %v1878, 0.0
  %v2033 = vadd.f32 %v2031, %v2032
  %v2034 = vsel %vm1459, %v1879, 0.0
  %v2035 = vadd.f32 %v2033, %v2034
  %v2036 = vsel %vm1459, %v1880, 0.0
  %v2037 = vadd.f32 %v2035, %v2036
  %v2038 = vsel %vm1459, %v1881, 0.0
  %v2039 = vadd.f32 %v2037, %v2038
  %v2040 = vsel %vm1459, %v1882, 0.0
  %v2041 = vadd.f32 %v2039, %v2040
  %v2042 = vsel %vm1459, %v1883, 0.0
  %v2043 = vadd.f32 %v2041, %v2042
  %v2044 = vsel %vm1459, %v1884, 0.0
  %v2045 = vadd.f32 %v2043, %v2044
  %v2046 = vsel %vm1459, %v1885, 0.0
  %v2047 = vadd.f32 %v2045, %v2046
  %v2048 = vsel %vm1459, %v1886, 0.0
  %v2049 = vadd.f32 %v2047, %v2048
  %v2050 = vsel %vm1459, %v1887, 0.0
  %v2051 = vadd.f32 %v2049, %v2050
  %v2052 = vsel %vm1459, %v1888, 0.0
  %v2053 = vadd.f32 %v2051, %v2052
  %v2054 = vsel %vm1459, %v1889, 0.0
  %v2055 = vadd.f32 %v2053, %v2054
  %v2056 = vsel %vm1459, %v1890, 0.0
  %v2057 = vadd.f32 %v2055, %v2056
  %v2058 = vsel %vm1459, %v1891, 0.0
  %v2059 = vadd.f32 %v2057, %v2058
  %v2060 = vsel %vm1459, %v1892, 0.0
  %v2061 = vadd.f32 %v2059, %v2060
  %v2062 = vsel %vm1459, %v1893, 0.0
  %v2063 = vadd.f32 %v2061, %v2062
  %v2064 = vsel %vm1459, %v1894, 0.0
  %v2065 = vadd.f32 %v2063, %v2064
  %v2066 = vsel %vm1459, %v1895, 0.0
  %v2067 = vadd.f32 %v2065, %v2066
  %v2068 = vsel %vm1459, %v1896, 0.0
  %v2069 = vadd.f32 %v2067, %v2068
  %v2070 = vsel %vm1459, %v1897, 0.0
  %v2071 = vadd.f32 %v2069, %v2070
  %v2072 = vsel %vm1459, %v1898, 0.0
  %v2073 = vadd.f32 %v2071, %v2072
  %v2074 = vsel %vm1459, %v1899, 0.0
  %v2075 = vadd.f32 %v2073, %v2074
  %v2076 = vsel %vm1459, %v1900, 0.0
  %v2077 = vadd.f32 %v2075, %v2076
  %v2078 = vsel %vm1459, %v1901, 0.0
  %v2079 = vadd.f32 %v2077, %v2078
  %v2080 = vsel %vm1459, %v1902, 0.0
  %v2081 = vadd.f32 %v2079, %v2080
  %v2082 = vsel %vm1459, %v1903, 0.0
  %v2083 = vadd.f32 %v2081, %v2082
  %v2084 = vsel %vm1459, %v1904, 0.0
  %v2085 = vadd.f32 %v2083, %v2084
  %v2086 = vsel %vm1459, %v1905, 0.0
  %v2087 = vadd.f32 %v2085, %v2086
  %v2088 = vsel %vm1459, %v1906, 0.0
  %v2089 = vadd.f32 %v2087, %v2088
  %v2090 = vsel %vm1459, %v1907, 0.0
  %v2091 = vadd.f32 %v2089, %v2090
  %v2092 = vsel %vm1459, %v1908, 0.0
  %v2093 = vadd.f32 %v2091, %v2092
  %v2094 = vsel %vm1459, %v1909, 0.0
  %v2095 = vadd.f32 %v2093, %v2094
  %v2096 = vsel %vm1459, %v1910, 0.0
  %v2097 = vadd.f32 %v2095, %v2096
  %v2098 = vsel %vm1459, %v1911, 0.0
  %v2099 = vadd.f32 %v2097, %v2098
  %v2100 = vsel %vm1459, %v1912, 0.0
  %v2101 = vadd.f32 %v2099, %v2100
  %v2102 = vsel %vm1459, %v1913, 0.0
  %v2103 = vadd.f32 %v2101, %v2102
  %v2104 = vsel %vm1459, %v1914, 0.0
  %v2105 = vadd.f32 %v2103, %v2104
  %v2106 = vsel %vm1459, %v1915, 0.0
  %v2107 = vadd.f32 %v2105, %v2106
  %v2108 = vsel %vm1459, %v1916, 0.0
  %v2109 = vadd.f32 %v2107, %v2108
  %v2110 = vsel %vm1459, %v1917, 0.0
  %v2111 = vadd.f32 %v2109, %v2110
  %v2112 = vsel %vm1459, %v1918, 0.0
  %v2113 = vadd.f32 %v2111, %v2112
  %v2114 = vsel %vm1459, %v1919, 0.0
  %v2115 = vadd.f32 %v2113, %v2114
  %v2116 = vsel %vm1459, %v1920, 0.0
  %v2117 = vadd.f32 %v2115, %v2116
  %v2118 = vsel %vm1459, %v1921, 0.0
  %v2119 = vadd.f32 %v2117, %v2118
  %v2120 = vsel %vm1459, %v1922, 0.0
  %v2121 = vadd.f32 %v2119, %v2120
  %v2122 = vsel %vm1459, %v1923, 0.0
  %v2123 = vadd.f32 %v2121, %v2122
  %v2124 = vsel %vm1459, %v1924, 0.0
  %v2125 = vadd.f32 %v2123, %v2124
  %v2126 = vsel %vm1459, %v1925, 0.0
  %v2127 = vadd.f32 %v2125, %v2126
  %v2128 = vsel %vm1459, %v1926, 0.0
  %v2129 = vadd.f32 %v2127, %v2128
  %v2130 = vsel %vm1459, %v1927, 0.0
  %v2131 = vadd.f32 %v2129, %v2130
  %v2132 = vsel %vm1459, %v1928, 0.0
  %v2133 = vadd.f32 %v2131, %v2132
  %v2134 = vsel %vm1459, %v1929, 0.0
  %v2135 = vadd.f32 %v2133, %v2134
  %v2136 = vsel %vm1459, %v1930, 0.0
  %v2137 = vadd.f32 %v2135, %v2136
  %v2138 = vsel %vm1459, %v1931, 0.0
  %v2139 = vadd.f32 %v2137, %v2138
  %v2140 = vsel %vm1459, %v1932, 0.0
  %v2141 = vadd.f32 %v2139, %v2140
  %v2142 = vsel %vm1459, %v1933, 0.0
  %v2143 = vadd.f32 %v2141, %v2142
  %v2144 = vsel %vm1459, %v1934, 0.0
  %v2145 = vadd.f32 %v2143, %v2144
  %v2146 = vsel %vm1459, %v1935, 0.0
  %v2147 = vadd.f32 %v2145, %v2146
  %v2148 = vsel %vm1459, %v1936, 0.0
  %v2149 = vadd.f32 %v2147, %v2148
  %v2150 = vsel %vm1459, %v1937, 0.0
  %v2151 = vadd.f32 %v2149, %v2150
  %v2152 = vsel %vm1459, %v1938, 0.0
  %v2153 = vadd.f32 %v2151, %v2152
  %v2154 = vsel %vm1459, %v1939, 0.0
  %v2155 = vadd.f32 %v2153, %v2154
  %v2156 = vsel %vm1459, %v1940, 0.0
  %v2157 = vadd.f32 %v2155, %v2156
  %v2158 = vsel %vm1459, %v1941, 0.0
  %v2159 = vadd.f32 %v2157, %v2158
  %v2160 = vsel %vm1459, %v1942, 0.0
  %v2161 = vadd.f32 %v2159, %v2160
  %v2162 = vsel %vm1459, %v1943, 0.0
  %v2163 = vadd.f32 %v2161, %v2162
  %v2164 = vsel %vm1459, %v1944, 0.0
  %v2165 = vadd.f32 %v2163, %v2164
  %v2166 = vsel %vm1459, %v1945, 0.0
  %v2167 = vadd.f32 %v2165, %v2166
  %v2168 = vsel %vm1459, %v1946, 0.0
  %v2169 = vadd.f32 %v2167, %v2168
  %v2170 = vsel %vm1459, %v1947, 0.0
  %v2171 = vadd.f32 %v2169, %v2170
  %v2172 = vsel %vm1459, %v1948, 0.0
  %v2173 = vadd.f32 %v2171, %v2172
  %v2174 = vsel %vm1459, %v1949, 0.0
  %v2175 = vadd.f32 %v2173, %v2174
  %v2176 = vsel %vm1459, %v1950, 0.0
  %v2177 = vadd.f32 %v2175, %v2176
  %v2178 = vsel %vm1459, %v1951, 0.0
  %v2179 = vadd.f32 %v2177, %v2178
  %v2180 = vsel %vm1459, %v1952, 0.0
  %v2181 = vadd.f32 %v2179, %v2180
  %v2182 = vsel %vm1459, %v1953, 0.0
  %v2183 = vadd.f32 %v2181, %v2182
  %v2184 = vsel %vm1459, %v1954, 0.0
  %v2185 = vadd.f32 %v2183, %v2184
  %v2186 = vsel %vm1459, %v1955, 0.0
  %v2187 = vadd.f32 %v2185, %v2186
  %v2188 = vsel %vm1459, %v1956, 0.0
  %v2189 = vadd.f32 %v2187, %v2188
  %v2190 = vsel %vm1459, %v1957, 0.0
  %v2191 = vadd.f32 %v2189, %v2190
  %v2192 = vsel %vm1459, %v1958, 0.0
  %v2193 = vadd.f32 %v2191, %v2192
  %v2194 = vsel %vm1459, %v1959, 0.0
  %v2195 = vadd.f32 %v2193, %v2194
  %v2196 = vsel %vm1459, %v1960, 0.0
  %v2197 = vadd.f32 %v2195, %v2196
  %v2198 = vsel %vm1459, %v1961, 0.0
  %v2199 = vadd.f32 %v2197, %v2198
  %v2200 = vsel %vm1459, %v1962, 0.0
  %v2201 = vadd.f32 %v2199, %v2200
  %v2202 = vsel %vm1459, %v1963, 0.0
  %v2203 = vadd.f32 %v2201, %v2202
  %v2204 = vsel %vm1459, %v1964, 0.0
  %v2205 = vadd.f32 %v2203, %v2204
  %v2206 = vsel %vm1459, %v1965, 0.0
  %v2207 = vadd.f32 %v2205, %v2206
  %v2208 = vsel %vm1459, %v1966, 0.0
  %v2209 = vadd.f32 %v2207, %v2208
  %v2210 = vsel %vm1459, %v1967, 0.0
  %v2211 = vadd.f32 %v2209, %v2210
  %v2212 = vsel %vm1459, %v1968, 0.0
  %v2213 = vadd.f32 %v2211, %v2212
  %v2214 = vsel %vm1459, %v1969, 0.0
  %v2215 = vadd.f32 %v2213, %v2214
  %v2216 = vsel %vm1459, %v1970, 0.0
  %v2217 = vadd.f32 %v2215, %v2216
  %v2218 = vsel %vm1459, %v1971, 0.0
  %v2219 = vadd.f32 %v2217, %v2218
  %v2220 = vsel %vm1459, %v1972, 0.0
  %v2221 = vadd.f32 %v2219, %v2220
  %v2222 = vsel %vm1459, %v1973, 0.0
  %v2223 = vadd.f32 %v2221, %v2222
  %v2224 = vsel %vm1459, %v1974, 0.0
  %v2225 = vadd.f32 %v2223, %v2224
  %v2226 = vsel %vm1459, %v1975, 0.0
  %v2227 = vadd.f32 %v2225, %v2226
  %v2228 = vsel %vm1459, %v1976, 0.0
  %v2229 = vadd.f32 %v2227, %v2228
  %v2230 = vsel %vm1459, %v1977, 0.0
  %v2231 = vadd.f32 %v2229, %v2230
  %v2232 = vsel %vm1459, %v1978, 0.0
  %v2233 = vadd.f32 %v2231, %v2232
  %v2234 = vrot.slane %v2233, 4
  %v2235 = vadd.f32 %v2233, %v2234
  %v2236 = vrot.slane %v2235, 2
  %v2237 = vadd.f32 %v2235, %v2236
  %v2238 = vrot.slane %v2237, 1
  %v2239 = vadd.f32 %v2237, %v2238
  %v2240 = vmul.f32 %v2239, %v1721
  %v2241 = vadd.f32 %v2240, 1e-05
  %v2242 = vrsqrt.pop %v2241
  %v2243 = vmul.f32 %v1723, %v2242
  %v2244 = vmul.f32 %v1724, %v2242
  %v2245 = vmul.f32 %v1725, %v2242
  %v2246 = vmul.f32 %v1726, %v2242
  %v2247 = vmul.f32 %v1727, %v2242
  %v2248 = vmul.f32 %v1728, %v2242
  %v2249 = vmul.f32 %v1729, %v2242
  %v2250 = vmul.f32 %v1730, %v2242
  %v2251 = vmul.f32 %v1731, %v2242
  %v2252 = vmul.f32 %v1732, %v2242
  %v2253 = vmul.f32 %v1733, %v2242
  %v2254 = vmul.f32 %v1734, %v2242
  %v2255 = vmul.f32 %v1735, %v2242
  %v2256 = vmul.f32 %v1736, %v2242
  %v2257 = vmul.f32 %v1737, %v2242
  %v2258 = vmul.f32 %v1738, %v2242
  %v2259 = vmul.f32 %v1739, %v2242
  %v2260 = vmul.f32 %v1740, %v2242
  %v2261 = vmul.f32 %v1741, %v2242
  %v2262 = vmul.f32 %v1742, %v2242
  %v2263 = vmul.f32 %v1743, %v2242
  %v2264 = vmul.f32 %v1744, %v2242
  %v2265 = vmul.f32 %v1745, %v2242
  %v2266 = vmul.f32 %v1746, %v2242
  %v2267 = vmul.f32 %v1747, %v2242
  %v2268 = vmul.f32 %v1748, %v2242
  %v2269 = vmul.f32 %v1749, %v2242
  %v2270 = vmul.f32 %v1750, %v2242
  %v2271 = vmul.f32 %v1751, %v2242
  %v2272 = vmul.f32 %v1752, %v2242
  %v2273 = vmul.f32 %v1753, %v2242
  %v2274 = vmul.f32 %v1754, %v2242
  %v2275 = vmul.f32 %v1755, %v2242
  %v2276 = vmul.f32 %v1756, %v2242
  %v2277 = vmul.f32 %v1757, %v2242
  %v2278 = vmul.f32 %v1758, %v2242
  %v2279 = vmul.f32 %v1759, %v2242
  %v2280 = vmul.f32 %v1760, %v2242
  %v2281 = vmul.f32 %v1761, %v2242
  %v2282 = vmul.f32 %v1762, %v2242
  %v2283 = vmul.f32 %v1763, %v2242
  %v2284 = vmul.f32 %v1764, %v2242
  %v2285 = vmul.f32 %v1765, %v2242
  %v2286 = vmul.f32 %v1766, %v2242
  %v2287 = vmul.f32 %v1767, %v2242
  %v2288 = vmul.f32 %v1768, %v2242
  %v2289 = vmul.f32 %v1769, %v2242
  %v2290 = vmul.f32 %v1770, %v2242
  %v2291 = vmul.f32 %v1771, %v2242
  %v2292 = vmul.f32 %v1772, %v2242
  %v2293 = vmul.f32 %v1773, %v2242
  %v2294 = vmul.f32 %v1774, %v2242
  %v2295 = vmul.f32 %v1775, %v2242
  %v2296 = vmul.f32 %v1776, %v2242
  %v2297 = vmul.f32 %v1777, %v2242
  %v2298 = vmul.f32 %v1778, %v2242
  %v2299 = vmul.f32 %v1779, %v2242
  %v2300 = vmul.f32 %v1780, %v2242
  %v2301 = vmul.f32 %v1781, %v2242
  %v2302 = vmul.f32 %v1782, %v2242
  %v2303 = vmul.f32 %v1783, %v2242
  %v2304 = vmul.f32 %v1784, %v2242
  %v2305 = vmul.f32 %v1785, %v2242
  %v2306 = vmul.f32 %v1786, %v2242
  %v2307 = vmul.f32 %v1787, %v2242
  %v2308 = vmul.f32 %v1788, %v2242
  %v2309 = vmul.f32 %v1789, %v2242
  %v2310 = vmul.f32 %v1790, %v2242
  %v2311 = vmul.f32 %v1791, %v2242
  %v2312 = vmul.f32 %v1792, %v2242
  %v2313 = vmul.f32 %v1793, %v2242
  %v2314 = vmul.f32 %v1794, %v2242
  %v2315 = vmul.f32 %v1795, %v2242
  %v2316 = vmul.f32 %v1796, %v2242
  %v2317 = vmul.f32 %v1797, %v2242
  %v2318 = vmul.f32 %v1798, %v2242
  %v2319 = vmul.f32 %v1799, %v2242
  %v2320 = vmul.f32 %v1800, %v2242
  %v2321 = vmul.f32 %v1801, %v2242
  %v2322 = vmul.f32 %v1802, %v2242
  %v2323 = vmul.f32 %v1803, %v2242
  %v2324 = vmul.f32 %v1804, %v2242
  %v2325 = vmul.f32 %v1805, %v2242
  %v2326 = vmul.f32 %v1806, %v2242
  %v2327 = vmul.f32 %v1807, %v2242
  %v2328 = vmul.f32 %v1808, %v2242
  %v2329 = vmul.f32 %v1809, %v2242
  %v2330 = vmul.f32 %v1810, %v2242
  %v2331 = vmul.f32 %v1811, %v2242
  %v2332 = vmul.f32 %v1812, %v2242
  %v2333 = vmul.f32 %v1813, %v2242
  %v2334 = vmul.f32 %v1814, %v2242
  %v2335 = vmul.f32 %v1815, %v2242
  %v2336 = vmul.f32 %v1816, %v2242
  %v2337 = vmul.f32 %v1817, %v2242
  %v2338 = vmul.f32 %v1818, %v2242
  %v2339 = vmul.f32 %v1819, %v2242
  %v2340 = vmul.f32 %v1820, %v2242
  %v2341 = vmul.f32 %v1821, %v2242
  %v2342 = vmul.f32 %v1822, %v2242
  %v2343 = vmul.f32 %v1823, %v2242
  %v2344 = vmul.f32 %v1824, %v2242
  %v2345 = vmul.f32 %v1825, %v2242
  %v2346 = vmul.f32 %v1826, %v2242
  %v2347 = vmul.f32 %v1827, %v2242
  %v2348 = vmul.f32 %v1828, %v2242
  %v2349 = vmul.f32 %v1829, %v2242
  %v2350 = vmul.f32 %v1830, %v2242
  %v2351 = vmul.f32 %v1831, %v2242
  %v2352 = vmul.f32 %v1832, %v2242
  %v2353 = vmul.f32 %v1833, %v2242
  %v2354 = vmul.f32 %v1834, %v2242
  %v2355 = vmul.f32 %v1835, %v2242
  %v2356 = vmul.f32 %v1836, %v2242
  %v2357 = vmul.f32 %v1837, %v2242
  %v2358 = vmul.f32 %v1838, %v2242
  %v2359 = vmul.f32 %v1839, %v2242
  %v2360 = vmul.f32 %v1840, %v2242
  %v2361 = vmul.f32 %v1841, %v2242
  %v2362 = vmul.f32 %v1842, %v2242
  %v2363 = vmul.f32 %v1843, %v2242
  %v2364 = vmul.f32 %v1844, %v2242
  %v2365 = vmul.f32 %v1845, %v2242
  %v2366 = vmul.f32 %v1846, %v2242
  %v2367 = vmul.f32 %v1847, %v2242
  %v2368 = vmul.f32 %v1848, %v2242
  %v2369 = vmul.f32 %v1849, %v2242
  %v2370 = vmul.f32 %v1850, %v2242
  %v2371 = vld [vmem:[%s2] sm:$0x1]
  %v2373 = vlaneseq
  %v2374 = vshrl.u32 %v2373, 7
  %v2375 = vsub.s32 0, %v2374
  %v2376 = vrot.slane %v2371, %v2375
  %v2378 = vmul.f32 %v2243, %v2376
  %v2379 = vmul.f32 %v2244, %v2376
  %v2380 = vmul.f32 %v2245, %v2376
  %v2381 = vmul.f32 %v2246, %v2376
  %v2382 = vmul.f32 %v2247, %v2376
  %v2383 = vmul.f32 %v2248, %v2376
  %v2384 = vmul.f32 %v2249, %v2376
  %v2385 = vmul.f32 %v2250, %v2376
  %v2386 = vmul.f32 %v2251, %v2376
  %v2387 = vmul.f32 %v2252, %v2376
  %v2388 = vmul.f32 %v2253, %v2376
  %v2389 = vmul.f32 %v2254, %v2376
  %v2390 = vmul.f32 %v2255, %v2376
  %v2391 = vmul.f32 %v2256, %v2376
  %v2392 = vmul.f32 %v2257, %v2376
  %v2393 = vmul.f32 %v2258, %v2376
  %v2394 = vmul.f32 %v2259, %v2376
  %v2395 = vmul.f32 %v2260, %v2376
  %v2396 = vmul.f32 %v2261, %v2376
  %v2397 = vmul.f32 %v2262, %v2376
  %v2398 = vmul.f32 %v2263, %v2376
  %v2399 = vmul.f32 %v2264, %v2376
  %v2400 = vmul.f32 %v2265, %v2376
  %v2401 = vmul.f32 %v2266, %v2376
  %v2402 = vmul.f32 %v2267, %v2376
  %v2403 = vmul.f32 %v2268, %v2376
  %v2404 = vmul.f32 %v2269, %v2376
  %v2405 = vmul.f32 %v2270, %v2376
  %v2406 = vmul.f32 %v2271, %v2376
  %v2407 = vmul.f32 %v2272, %v2376
  %v2408 = vmul.f32 %v2273, %v2376
  %v2409 = vmul.f32 %v2274, %v2376
  %v2410 = vmul.f32 %v2275, %v2376
  %v2411 = vmul.f32 %v2276, %v2376
  %v2412 = vmul.f32 %v2277, %v2376
  %v2413 = vmul.f32 %v2278, %v2376
  %v2414 = vmul.f32 %v2279, %v2376
  %v2415 = vmul.f32 %v2280, %v2376
  %v2416 = vmul.f32 %v2281, %v2376
  %v2417 = vmul.f32 %v2282, %v2376
  %v2418 = vmul.f32 %v2283, %v2376
  %v2419 = vmul.f32 %v2284, %v2376
  %v2420 = vmul.f32 %v2285, %v2376
  %v2421 = vmul.f32 %v2286, %v2376
  %v2422 = vmul.f32 %v2287, %v2376
  %v2423 = vmul.f32 %v2288, %v2376
  %v2424 = vmul.f32 %v2289, %v2376
  %v2425 = vmul.f32 %v2290, %v2376
  %v2426 = vmul.f32 %v2291, %v2376
  %v2427 = vmul.f32 %v2292, %v2376
  %v2428 = vmul.f32 %v2293, %v2376
  %v2429 = vmul.f32 %v2294, %v2376
  %v2430 = vmul.f32 %v2295, %v2376
  %v2431 = vmul.f32 %v2296, %v2376
  %v2432 = vmul.f32 %v2297, %v2376
  %v2433 = vmul.f32 %v2298, %v2376
  %v2434 = vmul.f32 %v2299, %v2376
  %v2435 = vmul.f32 %v2300, %v2376
  %v2436 = vmul.f32 %v2301, %v2376
  %v2437 = vmul.f32 %v2302, %v2376
  %v2438 = vmul.f32 %v2303, %v2376
  %v2439 = vmul.f32 %v2304, %v2376
  %v2440 = vmul.f32 %v2305, %v2376
  %v2441 = vmul.f32 %v2306, %v2376
  %v2442 = vmul.f32 %v2307, %v2376
  %v2443 = vmul.f32 %v2308, %v2376
  %v2444 = vmul.f32 %v2309, %v2376
  %v2445 = vmul.f32 %v2310, %v2376
  %v2446 = vmul.f32 %v2311, %v2376
  %v2447 = vmul.f32 %v2312, %v2376
  %v2448 = vmul.f32 %v2313, %v2376
  %v2449 = vmul.f32 %v2314, %v2376
  %v2450 = vmul.f32 %v2315, %v2376
  %v2451 = vmul.f32 %v2316, %v2376
  %v2452 = vmul.f32 %v2317, %v2376
  %v2453 = vmul.f32 %v2318, %v2376
  %v2454 = vmul.f32 %v2319, %v2376
  %v2455 = vmul.f32 %v2320, %v2376
  %v2456 = vmul.f32 %v2321, %v2376
  %v2457 = vmul.f32 %v2322, %v2376
  %v2458 = vmul.f32 %v2323, %v2376
  %v2459 = vmul.f32 %v2324, %v2376
  %v2460 = vmul.f32 %v2325, %v2376
  %v2461 = vmul.f32 %v2326, %v2376
  %v2462 = vmul.f32 %v2327, %v2376
  %v2463 = vmul.f32 %v2328, %v2376
  %v2464 = vmul.f32 %v2329, %v2376
  %v2465 = vmul.f32 %v2330, %v2376
  %v2466 = vmul.f32 %v2331, %v2376
  %v2467 = vmul.f32 %v2332, %v2376
  %v2468 = vmul.f32 %v2333, %v2376
  %v2469 = vmul.f32 %v2334, %v2376
  %v2470 = vmul.f32 %v2335, %v2376
  %v2471 = vmul.f32 %v2336, %v2376
  %v2472 = vmul.f32 %v2337, %v2376
  %v2473 = vmul.f32 %v2338, %v2376
  %v2474 = vmul.f32 %v2339, %v2376
  %v2475 = vmul.f32 %v2340, %v2376
  %v2476 = vmul.f32 %v2341, %v2376
  %v2477 = vmul.f32 %v2342, %v2376
  %v2478 = vmul.f32 %v2343, %v2376
  %v2479 = vmul.f32 %v2344, %v2376
  %v2480 = vmul.f32 %v2345, %v2376
  %v2481 = vmul.f32 %v2346, %v2376
  %v2482 = vmul.f32 %v2347, %v2376
  %v2483 = vmul.f32 %v2348, %v2376
  %v2484 = vmul.f32 %v2349, %v2376
  %v2485 = vmul.f32 %v2350, %v2376
  %v2486 = vmul.f32 %v2351, %v2376
  %v2487 = vmul.f32 %v2352, %v2376
  %v2488 = vmul.f32 %v2353, %v2376
  %v2489 = vmul.f32 %v2354, %v2376
  %v2490 = vmul.f32 %v2355, %v2376
  %v2491 = vmul.f32 %v2356, %v2376
  %v2492 = vmul.f32 %v2357, %v2376
  %v2493 = vmul.f32 %v2358, %v2376
  %v2494 = vmul.f32 %v2359, %v2376
  %v2495 = vmul.f32 %v2360, %v2376
  %v2496 = vmul.f32 %v2361, %v2376
  %v2497 = vmul.f32 %v2362, %v2376
  %v2498 = vmul.f32 %v2363, %v2376
  %v2499 = vmul.f32 %v2364, %v2376
  %v2500 = vmul.f32 %v2365, %v2376
  %v2501 = vmul.f32 %v2366, %v2376
  %v2502 = vmul.f32 %v2367, %v2376
  %v2503 = vmul.f32 %v2368, %v2376
  %v2504 = vmul.f32 %v2369, %v2376
  %v2505 = vmul.f32 %v2370, %v2376
  %v2506 = vld [vmem:[%s3] sm:$0x1]
  %v2508 = vlaneseq
  %v2509 = vshrl.u32 %v2508, 7
  %v2510 = vsub.s32 0, %v2509
  %v2511 = vrot.slane %v2506, %v2510
  %v2513 = vadd.f32 %v2378, %v2511
  %v2514 = vadd.f32 %v2379, %v2511
  %v2515 = vadd.f32 %v2380, %v2511
  %v2516 = vadd.f32 %v2381, %v2511
  %v2517 = vadd.f32 %v2382, %v2511
  %v2518 = vadd.f32 %v2383, %v2511
  %v2519 = vadd.f32 %v2384, %v2511
  %v2520 = vadd.f32 %v2385, %v2511
  %v2521 = vadd.f32 %v2386, %v2511
  %v2522 = vadd.f32 %v2387, %v2511
  %v2523 = vadd.f32 %v2388, %v2511
  %v2524 = vadd.f32 %v2389, %v2511
  %v2525 = vadd.f32 %v2390, %v2511
  %v2526 = vadd.f32 %v2391, %v2511
  %v2527 = vadd.f32 %v2392, %v2511
  %v2528 = vadd.f32 %v2393, %v2511
  %v2529 = vadd.f32 %v2394, %v2511
  %v2530 = vadd.f32 %v2395, %v2511
  %v2531 = vadd.f32 %v2396, %v2511
  %v2532 = vadd.f32 %v2397, %v2511
  %v2533 = vadd.f32 %v2398, %v2511
  %v2534 = vadd.f32 %v2399, %v2511
  %v2535 = vadd.f32 %v2400, %v2511
  %v2536 = vadd.f32 %v2401, %v2511
  %v2537 = vadd.f32 %v2402, %v2511
  %v2538 = vadd.f32 %v2403, %v2511
  %v2539 = vadd.f32 %v2404, %v2511
  %v2540 = vadd.f32 %v2405, %v2511
  %v2541 = vadd.f32 %v2406, %v2511
  %v2542 = vadd.f32 %v2407, %v2511
  %v2543 = vadd.f32 %v2408, %v2511
  %v2544 = vadd.f32 %v2409, %v2511
  %v2545 = vadd.f32 %v2410, %v2511
  %v2546 = vadd.f32 %v2411, %v2511
  %v2547 = vadd.f32 %v2412, %v2511
  %v2548 = vadd.f32 %v2413, %v2511
  %v2549 = vadd.f32 %v2414, %v2511
  %v2550 = vadd.f32 %v2415, %v2511
  %v2551 = vadd.f32 %v2416, %v2511
  %v2552 = vadd.f32 %v2417, %v2511
  %v2553 = vadd.f32 %v2418, %v2511
  %v2554 = vadd.f32 %v2419, %v2511
  %v2555 = vadd.f32 %v2420, %v2511
  %v2556 = vadd.f32 %v2421, %v2511
  %v2557 = vadd.f32 %v2422, %v2511
  %v2558 = vadd.f32 %v2423, %v2511
  %v2559 = vadd.f32 %v2424, %v2511
  %v2560 = vadd.f32 %v2425, %v2511
  %v2561 = vadd.f32 %v2426, %v2511
  %v2562 = vadd.f32 %v2427, %v2511
  %v2563 = vadd.f32 %v2428, %v2511
  %v2564 = vadd.f32 %v2429, %v2511
  %v2565 = vadd.f32 %v2430, %v2511
  %v2566 = vadd.f32 %v2431, %v2511
  %v2567 = vadd.f32 %v2432, %v2511
  %v2568 = vadd.f32 %v2433, %v2511
  %v2569 = vadd.f32 %v2434, %v2511
  %v2570 = vadd.f32 %v2435, %v2511
  %v2571 = vadd.f32 %v2436, %v2511
  %v2572 = vadd.f32 %v2437, %v2511
  %v2573 = vadd.f32 %v2438, %v2511
  %v2574 = vadd.f32 %v2439, %v2511
  %v2575 = vadd.f32 %v2440, %v2511
  %v2576 = vadd.f32 %v2441, %v2511
  %v2577 = vadd.f32 %v2442, %v2511
  %v2578 = vadd.f32 %v2443, %v2511
  %v2579 = vadd.f32 %v2444, %v2511
  %v2580 = vadd.f32 %v2445, %v2511
  %v2581 = vadd.f32 %v2446, %v2511
  %v2582 = vadd.f32 %v2447, %v2511
  %v2583 = vadd.f32 %v2448, %v2511
  %v2584 = vadd.f32 %v2449, %v2511
  %v2585 = vadd.f32 %v2450, %v2511
  %v2586 = vadd.f32 %v2451, %v2511
  %v2587 = vadd.f32 %v2452, %v2511
  %v2588 = vadd.f32 %v2453, %v2511
  %v2589 = vadd.f32 %v2454, %v2511
  %v2590 = vadd.f32 %v2455, %v2511
  %v2591 = vadd.f32 %v2456, %v2511
  %v2592 = vadd.f32 %v2457, %v2511
  %v2593 = vadd.f32 %v2458, %v2511
  %v2594 = vadd.f32 %v2459, %v2511
  %v2595 = vadd.f32 %v2460, %v2511
  %v2596 = vadd.f32 %v2461, %v2511
  %v2597 = vadd.f32 %v2462, %v2511
  %v2598 = vadd.f32 %v2463, %v2511
  %v2599 = vadd.f32 %v2464, %v2511
  %v2600 = vadd.f32 %v2465, %v2511
  %v2601 = vadd.f32 %v2466, %v2511
  %v2602 = vadd.f32 %v2467, %v2511
  %v2603 = vadd.f32 %v2468, %v2511
  %v2604 = vadd.f32 %v2469, %v2511
  %v2605 = vadd.f32 %v2470, %v2511
  %v2606 = vadd.f32 %v2471, %v2511
  %v2607 = vadd.f32 %v2472, %v2511
  %v2608 = vadd.f32 %v2473, %v2511
  %v2609 = vadd.f32 %v2474, %v2511
  %v2610 = vadd.f32 %v2475, %v2511
  %v2611 = vadd.f32 %v2476, %v2511
  %v2612 = vadd.f32 %v2477, %v2511
  %v2613 = vadd.f32 %v2478, %v2511
  %v2614 = vadd.f32 %v2479, %v2511
  %v2615 = vadd.f32 %v2480, %v2511
  %v2616 = vadd.f32 %v2481, %v2511
  %v2617 = vadd.f32 %v2482, %v2511
  %v2618 = vadd.f32 %v2483, %v2511
  %v2619 = vadd.f32 %v2484, %v2511
  %v2620 = vadd.f32 %v2485, %v2511
  %v2621 = vadd.f32 %v2486, %v2511
  %v2622 = vadd.f32 %v2487, %v2511
  %v2623 = vadd.f32 %v2488, %v2511
  %v2624 = vadd.f32 %v2489, %v2511
  %v2625 = vadd.f32 %v2490, %v2511
  %v2626 = vadd.f32 %v2491, %v2511
  %v2627 = vadd.f32 %v2492, %v2511
  %v2628 = vadd.f32 %v2493, %v2511
  %v2629 = vadd.f32 %v2494, %v2511
  %v2630 = vadd.f32 %v2495, %v2511
  %v2631 = vadd.f32 %v2496, %v2511
  %v2632 = vadd.f32 %v2497, %v2511
  %v2633 = vadd.f32 %v2498, %v2511
  %v2634 = vadd.f32 %v2499, %v2511
  %v2635 = vadd.f32 %v2500, %v2511
  %v2636 = vadd.f32 %v2501, %v2511
  %v2637 = vadd.f32 %v2502, %v2511
  %v2638 = vadd.f32 %v2503, %v2511
  %v2639 = vadd.f32 %v2504, %v2511
  %v2640 = vadd.f32 %v2505, %v2511
  %vm2641 = vcmp.ge.f32.partialorder %v2513, 0.0
  %vm2642 = vcmp.ge.f32.partialorder %v2514, 0.0
  %vm2643 = vcmp.ge.f32.partialorder %v2515, 0.0
  %vm2644 = vcmp.ge.f32.partialorder %v2516, 0.0
  %vm2645 = vcmp.ge.f32.partialorder %v2517, 0.0
  %vm2646 = vcmp.ge.f32.partialorder %v2518, 0.0
  %vm2647 = vcmp.ge.f32.partialorder %v2519, 0.0
  %vm2648 = vcmp.ge.f32.partialorder %v2520, 0.0
  %vm2649 = vcmp.ge.f32.partialorder %v2521, 0.0
  %vm2650 = vcmp.ge.f32.partialorder %v2522, 0.0
  %vm2651 = vcmp.ge.f32.partialorder %v2523, 0.0
  %vm2652 = vcmp.ge.f32.partialorder %v2524, 0.0
  %vm2653 = vcmp.ge.f32.partialorder %v2525, 0.0
  %vm2654 = vcmp.ge.f32.partialorder %v2526, 0.0
  %vm2655 = vcmp.ge.f32.partialorder %v2527, 0.0
  %vm2656 = vcmp.ge.f32.partialorder %v2528, 0.0
  %vm2657 = vcmp.ge.f32.partialorder %v2529, 0.0
  %vm2658 = vcmp.ge.f32.partialorder %v2530, 0.0
  %vm2659 = vcmp.ge.f32.partialorder %v2531, 0.0
  %vm2660 = vcmp.ge.f32.partialorder %v2532, 0.0
  %vm2661 = vcmp.ge.f32.partialorder %v2533, 0.0
  %vm2662 = vcmp.ge.f32.partialorder %v2534, 0.0
  %vm2663 = vcmp.ge.f32.partialorder %v2535, 0.0
  %vm2664 = vcmp.ge.f32.partialorder %v2536, 0.0
  %vm2665 = vcmp.ge.f32.partialorder %v2537, 0.0
  %vm2666 = vcmp.ge.f32.partialorder %v2538, 0.0
  %vm2667 = vcmp.ge.f32.partialorder %v2539, 0.0
  %vm2668 = vcmp.ge.f32.partialorder %v2540, 0.0
  %vm2669 = vcmp.ge.f32.partialorder %v2541, 0.0
  %vm2670 = vcmp.ge.f32.partialorder %v2542, 0.0
  %vm2671 = vcmp.ge.f32.partialorder %v2543, 0.0
  %vm2672 = vcmp.ge.f32.partialorder %v2544, 0.0
  %vm2673 = vcmp.ge.f32.partialorder %v2545, 0.0
  %vm2674 = vcmp.ge.f32.partialorder %v2546, 0.0
  %vm2675 = vcmp.ge.f32.partialorder %v2547, 0.0
  %vm2676 = vcmp.ge.f32.partialorder %v2548, 0.0
  %vm2677 = vcmp.ge.f32.partialorder %v2549, 0.0
  %vm2678 = vcmp.ge.f32.partialorder %v2550, 0.0
  %vm2679 = vcmp.ge.f32.partialorder %v2551, 0.0
  %vm2680 = vcmp.ge.f32.partialorder %v2552, 0.0
  %vm2681 = vcmp.ge.f32.partialorder %v2553, 0.0
  %vm2682 = vcmp.ge.f32.partialorder %v2554, 0.0
  %vm2683 = vcmp.ge.f32.partialorder %v2555, 0.0
  %vm2684 = vcmp.ge.f32.partialorder %v2556, 0.0
  %vm2685 = vcmp.ge.f32.partialorder %v2557, 0.0
  %vm2686 = vcmp.ge.f32.partialorder %v2558, 0.0
  %vm2687 = vcmp.ge.f32.partialorder %v2559, 0.0
  %vm2688 = vcmp.ge.f32.partialorder %v2560, 0.0
  %vm2689 = vcmp.ge.f32.partialorder %v2561, 0.0
  %vm2690 = vcmp.ge.f32.partialorder %v2562, 0.0
  %vm2691 = vcmp.ge.f32.partialorder %v2563, 0.0
  %vm2692 = vcmp.ge.f32.partialorder %v2564, 0.0
  %vm2693 = vcmp.ge.f32.partialorder %v2565, 0.0
  %vm2694 = vcmp.ge.f32.partialorder %v2566, 0.0
  %vm2695 = vcmp.ge.f32.partialorder %v2567, 0.0
  %vm2696 = vcmp.ge.f32.partialorder %v2568, 0.0
  %vm2697 = vcmp.ge.f32.partialorder %v2569, 0.0
  %vm2698 = vcmp.ge.f32.partialorder %v2570, 0.0
  %vm2699 = vcmp.ge.f32.partialorder %v2571, 0.0
  %vm2700 = vcmp.ge.f32.partialorder %v2572, 0.0
  %vm2701 = vcmp.ge.f32.partialorder %v2573, 0.0
  %vm2702 = vcmp.ge.f32.partialorder %v2574, 0.0
  %vm2703 = vcmp.ge.f32.partialorder %v2575, 0.0
  %vm2704 = vcmp.ge.f32.partialorder %v2576, 0.0
  %vm2705 = vcmp.ge.f32.partialorder %v2577, 0.0
  %vm2706 = vcmp.ge.f32.partialorder %v2578, 0.0
  %vm2707 = vcmp.ge.f32.partialorder %v2579, 0.0
  %vm2708 = vcmp.ge.f32.partialorder %v2580, 0.0
  %vm2709 = vcmp.ge.f32.partialorder %v2581, 0.0
  %vm2710 = vcmp.ge.f32.partialorder %v2582, 0.0
  %vm2711 = vcmp.ge.f32.partialorder %v2583, 0.0
  %vm2712 = vcmp.ge.f32.partialorder %v2584, 0.0
  %vm2713 = vcmp.ge.f32.partialorder %v2585, 0.0
  %vm2714 = vcmp.ge.f32.partialorder %v2586, 0.0
  %vm2715 = vcmp.ge.f32.partialorder %v2587, 0.0
  %vm2716 = vcmp.ge.f32.partialorder %v2588, 0.0
  %vm2717 = vcmp.ge.f32.partialorder %v2589, 0.0
  %vm2718 = vcmp.ge.f32.partialorder %v2590, 0.0
  %vm2719 = vcmp.ge.f32.partialorder %v2591, 0.0
  %vm2720 = vcmp.ge.f32.partialorder %v2592, 0.0
  %vm2721 = vcmp.ge.f32.partialorder %v2593, 0.0
  %vm2722 = vcmp.ge.f32.partialorder %v2594, 0.0
  %vm2723 = vcmp.ge.f32.partialorder %v2595, 0.0
  %vm2724 = vcmp.ge.f32.partialorder %v2596, 0.0
  %vm2725 = vcmp.ge.f32.partialorder %v2597, 0.0
  %vm2726 = vcmp.ge.f32.partialorder %v2598, 0.0
  %vm2727 = vcmp.ge.f32.partialorder %v2599, 0.0
  %vm2728 = vcmp.ge.f32.partialorder %v2600, 0.0
  %vm2729 = vcmp.ge.f32.partialorder %v2601, 0.0
  %vm2730 = vcmp.ge.f32.partialorder %v2602, 0.0
  %vm2731 = vcmp.ge.f32.partialorder %v2603, 0.0
  %vm2732 = vcmp.ge.f32.partialorder %v2604, 0.0
  %vm2733 = vcmp.ge.f32.partialorder %v2605, 0.0
  %vm2734 = vcmp.ge.f32.partialorder %v2606, 0.0
  %vm2735 = vcmp.ge.f32.partialorder %v2607, 0.0
  %vm2736 = vcmp.ge.f32.partialorder %v2608, 0.0
  %vm2737 = vcmp.ge.f32.partialorder %v2609, 0.0
  %vm2738 = vcmp.ge.f32.partialorder %v2610, 0.0
  %vm2739 = vcmp.ge.f32.partialorder %v2611, 0.0
  %vm2740 = vcmp.ge.f32.partialorder %v2612, 0.0
  %vm2741 = vcmp.ge.f32.partialorder %v2613, 0.0
  %vm2742 = vcmp.ge.f32.partialorder %v2614, 0.0
  %vm2743 = vcmp.ge.f32.partialorder %v2615, 0.0
  %vm2744 = vcmp.ge.f32.partialorder %v2616, 0.0
  %vm2745 = vcmp.ge.f32.partialorder %v2617, 0.0
  %vm2746 = vcmp.ge.f32.partialorder %v2618, 0.0
  %vm2747 = vcmp.ge.f32.partialorder %v2619, 0.0
  %vm2748 = vcmp.ge.f32.partialorder %v2620, 0.0
  %vm2749 = vcmp.ge.f32.partialorder %v2621, 0.0
  %vm2750 = vcmp.ge.f32.partialorder %v2622, 0.0
  %vm2751 = vcmp.ge.f32.partialorder %v2623, 0.0
  %vm2752 = vcmp.ge.f32.partialorder %v2624, 0.0
  %vm2753 = vcmp.ge.f32.partialorder %v2625, 0.0
  %vm2754 = vcmp.ge.f32.partialorder %v2626, 0.0
  %vm2755 = vcmp.ge.f32.partialorder %v2627, 0.0
  %vm2756 = vcmp.ge.f32.partialorder %v2628, 0.0
  %vm2757 = vcmp.ge.f32.partialorder %v2629, 0.0
  %vm2758 = vcmp.ge.f32.partialorder %v2630, 0.0
  %vm2759 = vcmp.ge.f32.partialorder %v2631, 0.0
  %vm2760 = vcmp.ge.f32.partialorder %v2632, 0.0
  %vm2761 = vcmp.ge.f32.partialorder %v2633, 0.0
  %vm2762 = vcmp.ge.f32.partialorder %v2634, 0.0
  %vm2763 = vcmp.ge.f32.partialorder %v2635, 0.0
  %vm2764 = vcmp.ge.f32.partialorder %v2636, 0.0
  %vm2765 = vcmp.ge.f32.partialorder %v2637, 0.0
  %vm2766 = vcmp.ge.f32.partialorder %v2638, 0.0
  %vm2767 = vcmp.ge.f32.partialorder %v2639, 0.0
  %vm2768 = vcmp.ge.f32.partialorder %v2640, 0.0
  %v2769 = vmul.f32 %v2513, 0.2
  %v2770 = vmul.f32 %v2514, 0.2
  %v2771 = vmul.f32 %v2515, 0.2
  %v2772 = vmul.f32 %v2516, 0.2
  %v2773 = vmul.f32 %v2517, 0.2
  %v2774 = vmul.f32 %v2518, 0.2
  %v2775 = vmul.f32 %v2519, 0.2
  %v2776 = vmul.f32 %v2520, 0.2
  %v2777 = vmul.f32 %v2521, 0.2
  %v2778 = vmul.f32 %v2522, 0.2
  %v2779 = vmul.f32 %v2523, 0.2
  %v2780 = vmul.f32 %v2524, 0.2
  %v2781 = vmul.f32 %v2525, 0.2
  %v2782 = vmul.f32 %v2526, 0.2
  %v2783 = vmul.f32 %v2527, 0.2
  %v2784 = vmul.f32 %v2528, 0.2
  %v2785 = vmul.f32 %v2529, 0.2
  %v2786 = vmul.f32 %v2530, 0.2
  %v2787 = vmul.f32 %v2531, 0.2
  %v2788 = vmul.f32 %v2532, 0.2
  %v2789 = vmul.f32 %v2533, 0.2
  %v2790 = vmul.f32 %v2534, 0.2
  %v2791 = vmul.f32 %v2535, 0.2
  %v2792 = vmul.f32 %v2536, 0.2
  %v2793 = vmul.f32 %v2537, 0.2
  %v2794 = vmul.f32 %v2538, 0.2
  %v2795 = vmul.f32 %v2539, 0.2
  %v2796 = vmul.f32 %v2540, 0.2
  %v2797 = vmul.f32 %v2541, 0.2
  %v2798 = vmul.f32 %v2542, 0.2
  %v2799 = vmul.f32 %v2543, 0.2
  %v2800 = vmul.f32 %v2544, 0.2
  %v2801 = vmul.f32 %v2545, 0.2
  %v2802 = vmul.f32 %v2546, 0.2
  %v2803 = vmul.f32 %v2547, 0.2
  %v2804 = vmul.f32 %v2548, 0.2
  %v2805 = vmul.f32 %v2549, 0.2
  %v2806 = vmul.f32 %v2550, 0.2
  %v2807 = vmul.f32 %v2551, 0.2
  %v2808 = vmul.f32 %v2552, 0.2
  %v2809 = vmul.f32 %v2553, 0.2
  %v2810 = vmul.f32 %v2554, 0.2
  %v2811 = vmul.f32 %v2555, 0.2
  %v2812 = vmul.f32 %v2556, 0.2
  %v2813 = vmul.f32 %v2557, 0.2
  %v2814 = vmul.f32 %v2558, 0.2
  %v2815 = vmul.f32 %v2559, 0.2
  %v2816 = vmul.f32 %v2560, 0.2
  %v2817 = vmul.f32 %v2561, 0.2
  %v2818 = vmul.f32 %v2562, 0.2
  %v2819 = vmul.f32 %v2563, 0.2
  %v2820 = vmul.f32 %v2564, 0.2
  %v2821 = vmul.f32 %v2565, 0.2
  %v2822 = vmul.f32 %v2566, 0.2
  %v2823 = vmul.f32 %v2567, 0.2
  %v2824 = vmul.f32 %v2568, 0.2
  %v2825 = vmul.f32 %v2569, 0.2
  %v2826 = vmul.f32 %v2570, 0.2
  %v2827 = vmul.f32 %v2571, 0.2
  %v2828 = vmul.f32 %v2572, 0.2
  %v2829 = vmul.f32 %v2573, 0.2
  %v2830 = vmul.f32 %v2574, 0.2
  %v2831 = vmul.f32 %v2575, 0.2
  %v2832 = vmul.f32 %v2576, 0.2
  %v2833 = vmul.f32 %v2577, 0.2
  %v2834 = vmul.f32 %v2578, 0.2
  %v2835 = vmul.f32 %v2579, 0.2
  %v2836 = vmul.f32 %v2580, 0.2
  %v2837 = vmul.f32 %v2581, 0.2
  %v2838 = vmul.f32 %v2582, 0.2
  %v2839 = vmul.f32 %v2583, 0.2
  %v2840 = vmul.f32 %v2584, 0.2
  %v2841 = vmul.f32 %v2585, 0.2
  %v2842 = vmul.f32 %v2586, 0.2
  %v2843 = vmul.f32 %v2587, 0.2
  %v2844 = vmul.f32 %v2588, 0.2
  %v2845 = vmul.f32 %v2589, 0.2
  %v2846 = vmul.f32 %v2590, 0.2
  %v2847 = vmul.f32 %v2591, 0.2
  %v2848 = vmul.f32 %v2592, 0.2
  %v2849 = vmul.f32 %v2593, 0.2
  %v2850 = vmul.f32 %v2594, 0.2
  %v2851 = vmul.f32 %v2595, 0.2
  %v2852 = vmul.f32 %v2596, 0.2
  %v2853 = vmul.f32 %v2597, 0.2
  %v2854 = vmul.f32 %v2598, 0.2
  %v2855 = vmul.f32 %v2599, 0.2
  %v2856 = vmul.f32 %v2600, 0.2
  %v2857 = vmul.f32 %v2601, 0.2
  %v2858 = vmul.f32 %v2602, 0.2
  %v2859 = vmul.f32 %v2603, 0.2
  %v2860 = vmul.f32 %v2604, 0.2
  %v2861 = vmul.f32 %v2605, 0.2
  %v2862 = vmul.f32 %v2606, 0.2
  %v2863 = vmul.f32 %v2607, 0.2
  %v2864 = vmul.f32 %v2608, 0.2
  %v2865 = vmul.f32 %v2609, 0.2
  %v2866 = vmul.f32 %v2610, 0.2
  %v2867 = vmul.f32 %v2611, 0.2
  %v2868 = vmul.f32 %v2612, 0.2
  %v2869 = vmul.f32 %v2613, 0.2
  %v2870 = vmul.f32 %v2614, 0.2
  %v2871 = vmul.f32 %v2615, 0.2
  %v2872 = vmul.f32 %v2616, 0.2
  %v2873 = vmul.f32 %v2617, 0.2
  %v2874 = vmul.f32 %v2618, 0.2
  %v2875 = vmul.f32 %v2619, 0.2
  %v2876 = vmul.f32 %v2620, 0.2
  %v2877 = vmul.f32 %v2621, 0.2
  %v2878 = vmul.f32 %v2622, 0.2
  %v2879 = vmul.f32 %v2623, 0.2
  %v2880 = vmul.f32 %v2624, 0.2
  %v2881 = vmul.f32 %v2625, 0.2
  %v2882 = vmul.f32 %v2626, 0.2
  %v2883 = vmul.f32 %v2627, 0.2
  %v2884 = vmul.f32 %v2628, 0.2
  %v2885 = vmul.f32 %v2629, 0.2
  %v2886 = vmul.f32 %v2630, 0.2
  %v2887 = vmul.f32 %v2631, 0.2
  %v2888 = vmul.f32 %v2632, 0.2
  %v2889 = vmul.f32 %v2633, 0.2
  %v2890 = vmul.f32 %v2634, 0.2
  %v2891 = vmul.f32 %v2635, 0.2
  %v2892 = vmul.f32 %v2636, 0.2
  %v2893 = vmul.f32 %v2637, 0.2
  %v2894 = vmul.f32 %v2638, 0.2
  %v2895 = vmul.f32 %v2639, 0.2
  %v2896 = vmul.f32 %v2640, 0.2
  %v2897 = vsel %vm2641, %v2513, %v2769
  %v2898 = vsel %vm2642, %v2514, %v2770
  %v2899 = vsel %vm2643, %v2515, %v2771
  %v2900 = vsel %vm2644, %v2516, %v2772
  %v2901 = vsel %vm2645, %v2517, %v2773
  %v2902 = vsel %vm2646, %v2518, %v2774
  %v2903 = vsel %vm2647, %v2519, %v2775
  %v2904 = vsel %vm2648, %v2520, %v2776
  %v2905 = vsel %vm2649, %v2521, %v2777
  %v2906 = vsel %vm2650, %v2522, %v2778
  %v2907 = vsel %vm2651, %v2523, %v2779
  %v2908 = vsel %vm2652, %v2524, %v2780
  %v2909 = vsel %vm2653, %v2525, %v2781
  %v2910 = vsel %vm2654, %v2526, %v2782
  %v2911 = vsel %vm2655, %v2527, %v2783
  %v2912 = vsel %vm2656, %v2528, %v2784
  %v2913 = vsel %vm2657, %v2529, %v2785
  %v2914 = vsel %vm2658, %v2530, %v2786
  %v2915 = vsel %vm2659, %v2531, %v2787
  %v2916 = vsel %vm2660, %v2532, %v2788
  %v2917 = vsel %vm2661, %v2533, %v2789
  %v2918 = vsel %vm2662, %v2534, %v2790
  %v2919 = vsel %vm2663, %v2535, %v2791
  %v2920 = vsel %vm2664, %v2536, %v2792
  %v2921 = vsel %vm2665, %v2537, %v2793
  %v2922 = vsel %vm2666, %v2538, %v2794
  %v2923 = vsel %vm2667, %v2539, %v2795
  %v2924 = vsel %vm2668, %v2540, %v2796
  %v2925 = vsel %vm2669, %v2541, %v2797
  %v2926 = vsel %vm2670, %v2542, %v2798
  %v2927 = vsel %vm2671, %v2543, %v2799
  %v2928 = vsel %vm2672, %v2544, %v2800
  %v2929 = vsel %vm2673, %v2545, %v2801
  %v2930 = vsel %vm2674, %v2546, %v2802
  %v2931 = vsel %vm2675, %v2547, %v2803
  %v2932 = vsel %vm2676, %v2548, %v2804
  %v2933 = vsel %vm2677, %v2549, %v2805
  %v2934 = vsel %vm2678, %v2550, %v2806
  %v2935 = vsel %vm2679, %v2551, %v2807
  %v2936 = vsel %vm2680, %v2552, %v2808
  %v2937 = vsel %vm2681, %v2553, %v2809
  %v2938 = vsel %vm2682, %v2554, %v2810
  %v2939 = vsel %vm2683, %v2555, %v2811
  %v2940 = vsel %vm2684, %v2556, %v2812
  %v2941 = vsel %vm2685, %v2557, %v2813
  %v2942 = vsel %vm2686, %v2558, %v2814
  %v2943 = vsel %vm2687, %v2559, %v2815
  %v2944 = vsel %vm2688, %v2560, %v2816
  %v2945 = vsel %vm2689, %v2561, %v2817
  %v2946 = vsel %vm2690, %v2562, %v2818
  %v2947 = vsel %vm2691, %v2563, %v2819
  %v2948 = vsel %vm2692, %v2564, %v2820
  %v2949 = vsel %vm2693, %v2565, %v2821
  %v2950 = vsel %vm2694, %v2566, %v2822
  %v2951 = vsel %vm2695, %v2567, %v2823
  %v2952 = vsel %vm2696, %v2568, %v2824
  %v2953 = vsel %vm2697, %v2569, %v2825
  %v2954 = vsel %vm2698, %v2570, %v2826
  %v2955 = vsel %vm2699, %v2571, %v2827
  %v2956 = vsel %vm2700, %v2572, %v2828
  %v2957 = vsel %vm2701, %v2573, %v2829
  %v2958 = vsel %vm2702, %v2574, %v2830
  %v2959 = vsel %vm2703, %v2575, %v2831
  %v2960 = vsel %vm2704, %v2576, %v2832
  %v2961 = vsel %vm2705, %v2577, %v2833
  %v2962 = vsel %vm2706, %v2578, %v2834
  %v2963 = vsel %vm2707, %v2579, %v2835
  %v2964 = vsel %vm2708, %v2580, %v2836
  %v2965 = vsel %vm2709, %v2581, %v2837
  %v2966 = vsel %vm2710, %v2582, %v2838
  %v2967 = vsel %vm2711, %v2583, %v2839
  %v2968 = vsel %vm2712, %v2584, %v2840
  %v2969 = vsel %vm2713, %v2585, %v2841
  %v2970 = vsel %vm2714, %v2586, %v2842
  %v2971 = vsel %vm2715, %v2587, %v2843
  %v2972 = vsel %vm2716, %v2588, %v2844
  %v2973 = vsel %vm2717, %v2589, %v2845
  %v2974 = vsel %vm2718, %v2590, %v2846
  %v2975 = vsel %vm2719, %v2591, %v2847
  %v2976 = vsel %vm2720, %v2592, %v2848
  %v2977 = vsel %vm2721, %v2593, %v2849
  %v2978 = vsel %vm2722, %v2594, %v2850
  %v2979 = vsel %vm2723, %v2595, %v2851
  %v2980 = vsel %vm2724, %v2596, %v2852
  %v2981 = vsel %vm2725, %v2597, %v2853
  %v2982 = vsel %vm2726, %v2598, %v2854
  %v2983 = vsel %vm2727, %v2599, %v2855
  %v2984 = vsel %vm2728, %v2600, %v2856
  %v2985 = vsel %vm2729, %v2601, %v2857
  %v2986 = vsel %vm2730, %v2602, %v2858
  %v2987 = vsel %vm2731, %v2603, %v2859
  %v2988 = vsel %vm2732, %v2604, %v2860
  %v2989 = vsel %vm2733, %v2605, %v2861
  %v2990 = vsel %vm2734, %v2606, %v2862
  %v2991 = vsel %vm2735, %v2607, %v2863
  %v2992 = vsel %vm2736, %v2608, %v2864
  %v2993 = vsel %vm2737, %v2609, %v2865
  %v2994 = vsel %vm2738, %v2610, %v2866
  %v2995 = vsel %vm2739, %v2611, %v2867
  %v2996 = vsel %vm2740, %v2612, %v2868
  %v2997 = vsel %vm2741, %v2613, %v2869
  %v2998 = vsel %vm2742, %v2614, %v2870
  %v2999 = vsel %vm2743, %v2615, %v2871
  %v3000 = vsel %vm2744, %v2616, %v2872
  %v3001 = vsel %vm2745, %v2617, %v2873
  %v3002 = vsel %vm2746, %v2618, %v2874
  %v3003 = vsel %vm2747, %v2619, %v2875
  %v3004 = vsel %vm2748, %v2620, %v2876
  %v3005 = vsel %vm2749, %v2621, %v2877
  %v3006 = vsel %vm2750, %v2622, %v2878
  %v3007 = vsel %vm2751, %v2623, %v2879
  %v3008 = vsel %vm2752, %v2624, %v2880
  %v3009 = vsel %vm2753, %v2625, %v2881
  %v3010 = vsel %vm2754, %v2626, %v2882
  %v3011 = vsel %vm2755, %v2627, %v2883
  %v3012 = vsel %vm2756, %v2628, %v2884
  %v3013 = vsel %vm2757, %v2629, %v2885
  %v3014 = vsel %vm2758, %v2630, %v2886
  %v3015 = vsel %vm2759, %v2631, %v2887
  %v3016 = vsel %vm2760, %v2632, %v2888
  %v3017 = vsel %vm2761, %v2633, %v2889
  %v3018 = vsel %vm2762, %v2634, %v2890
  %v3019 = vsel %vm2763, %v2635, %v2891
  %v3020 = vsel %vm2764, %v2636, %v2892
  %v3021 = vsel %vm2765, %v2637, %v2893
  %v3022 = vsel %vm2766, %v2638, %v2894
  %v3023 = vsel %vm2767, %v2639, %v2895
  %v3024 = vsel %vm2768, %v2640, %v2896
  %v3025 = vpack.c.bf16 %v2898, %v2897
  %v3026 = vpack.c.bf16 %v2900, %v2899
  %v3027 = vpack.c.bf16 %v2902, %v2901
  %v3028 = vpack.c.bf16 %v2904, %v2903
  %v3029 = vpack.c.bf16 %v2906, %v2905
  %v3030 = vpack.c.bf16 %v2908, %v2907
  %v3031 = vpack.c.bf16 %v2910, %v2909
  %v3032 = vpack.c.bf16 %v2912, %v2911
  %v3033 = vpack.c.bf16 %v2914, %v2913
  %v3034 = vpack.c.bf16 %v2916, %v2915
  %v3035 = vpack.c.bf16 %v2918, %v2917
  %v3036 = vpack.c.bf16 %v2920, %v2919
  %v3037 = vpack.c.bf16 %v2922, %v2921
  %v3038 = vpack.c.bf16 %v2924, %v2923
  %v3039 = vpack.c.bf16 %v2926, %v2925
  %v3040 = vpack.c.bf16 %v2928, %v2927
  %v3041 = vpack.c.bf16 %v2930, %v2929
  %v3042 = vpack.c.bf16 %v2932, %v2931
  %v3043 = vpack.c.bf16 %v2934, %v2933
  %v3044 = vpack.c.bf16 %v2936, %v2935
  %v3045 = vpack.c.bf16 %v2938, %v2937
  %v3046 = vpack.c.bf16 %v2940, %v2939
  %v3047 = vpack.c.bf16 %v2942, %v2941
  %v3048 = vpack.c.bf16 %v2944, %v2943
  %v3049 = vpack.c.bf16 %v2946, %v2945
  %v3050 = vpack.c.bf16 %v2948, %v2947
  %v3051 = vpack.c.bf16 %v2950, %v2949
  %v3052 = vpack.c.bf16 %v2952, %v2951
  %v3053 = vpack.c.bf16 %v2954, %v2953
  %v3054 = vpack.c.bf16 %v2956, %v2955
  %v3055 = vpack.c.bf16 %v2958, %v2957
  %v3056 = vpack.c.bf16 %v2960, %v2959
  %v3057 = vpack.c.bf16 %v2962, %v2961
  %v3058 = vpack.c.bf16 %v2964, %v2963
  %v3059 = vpack.c.bf16 %v2966, %v2965
  %v3060 = vpack.c.bf16 %v2968, %v2967
  %v3061 = vpack.c.bf16 %v2970, %v2969
  %v3062 = vpack.c.bf16 %v2972, %v2971
  %v3063 = vpack.c.bf16 %v2974, %v2973
  %v3064 = vpack.c.bf16 %v2976, %v2975
  %v3065 = vpack.c.bf16 %v2978, %v2977
  %v3066 = vpack.c.bf16 %v2980, %v2979
  %v3067 = vpack.c.bf16 %v2982, %v2981
  %v3068 = vpack.c.bf16 %v2984, %v2983
  %v3069 = vpack.c.bf16 %v2986, %v2985
  %v3070 = vpack.c.bf16 %v2988, %v2987
  %v3071 = vpack.c.bf16 %v2990, %v2989
  %v3072 = vpack.c.bf16 %v2992, %v2991
  %v3073 = vpack.c.bf16 %v2994, %v2993
  %v3074 = vpack.c.bf16 %v2996, %v2995
  %v3075 = vpack.c.bf16 %v2998, %v2997
  %v3076 = vpack.c.bf16 %v3000, %v2999
  %v3077 = vpack.c.bf16 %v3002, %v3001
  %v3078 = vpack.c.bf16 %v3004, %v3003
  %v3079 = vpack.c.bf16 %v3006, %v3005
  %v3080 = vpack.c.bf16 %v3008, %v3007
  %v3081 = vpack.c.bf16 %v3010, %v3009
  %v3082 = vpack.c.bf16 %v3012, %v3011
  %v3083 = vpack.c.bf16 %v3014, %v3013
  %v3084 = vpack.c.bf16 %v3016, %v3015
  %v3085 = vpack.c.bf16 %v3018, %v3017
  %v3086 = vpack.c.bf16 %v3020, %v3019
  %v3087 = vpack.c.bf16 %v3022, %v3021
  %v3088 = vpack.c.bf16 %v3024, %v3023
  %v3153 = vunpack.c.l.b16 %v3025
  %v3154 = vunpack.c.h.b16 %v3025
  %v3155 = vunpack.c.l.b16 %v3026
  %v3156 = vunpack.c.h.b16 %v3026
  %v3157 = vunpack.c.l.b16 %v3027
  %v3158 = vunpack.c.h.b16 %v3027
  %v3159 = vunpack.c.l.b16 %v3028
  %v3160 = vunpack.c.h.b16 %v3028
  %v3161 = vunpack.c.l.b16 %v3029
  %v3162 = vunpack.c.h.b16 %v3029
  %v3163 = vunpack.c.l.b16 %v3030
  %v3164 = vunpack.c.h.b16 %v3030
  %v3165 = vunpack.c.l.b16 %v3031
  %v3166 = vunpack.c.h.b16 %v3031
  %v3167 = vunpack.c.l.b16 %v3032
  %v3168 = vunpack.c.h.b16 %v3032
  %v3169 = vunpack.c.l.b16 %v3033
  %v3170 = vunpack.c.h.b16 %v3033
  %v3171 = vunpack.c.l.b16 %v3034
  %v3172 = vunpack.c.h.b16 %v3034
  %v3173 = vunpack.c.l.b16 %v3035
  %v3174 = vunpack.c.h.b16 %v3035
  %v3175 = vunpack.c.l.b16 %v3036
  %v3176 = vunpack.c.h.b16 %v3036
  %v3177 = vunpack.c.l.b16 %v3037
  %v3178 = vunpack.c.h.b16 %v3037
  %v3179 = vunpack.c.l.b16 %v3038
  %v3180 = vunpack.c.h.b16 %v3038
  %v3181 = vunpack.c.l.b16 %v3039
  %v3182 = vunpack.c.h.b16 %v3039
  %v3183 = vunpack.c.l.b16 %v3040
  %v3184 = vunpack.c.h.b16 %v3040
  %v3185 = vunpack.c.l.b16 %v3041
  %v3186 = vunpack.c.h.b16 %v3041
  %v3187 = vunpack.c.l.b16 %v3042
  %v3188 = vunpack.c.h.b16 %v3042
  %v3189 = vunpack.c.l.b16 %v3043
  %v3190 = vunpack.c.h.b16 %v3043
  %v3191 = vunpack.c.l.b16 %v3044
  %v3192 = vunpack.c.h.b16 %v3044
  %v3193 = vunpack.c.l.b16 %v3045
  %v3194 = vunpack.c.h.b16 %v3045
  %v3195 = vunpack.c.l.b16 %v3046
  %v3196 = vunpack.c.h.b16 %v3046
  %v3197 = vunpack.c.l.b16 %v3047
  %v3198 = vunpack.c.h.b16 %v3047
  %v3199 = vunpack.c.l.b16 %v3048
  %v3200 = vunpack.c.h.b16 %v3048
  %v3201 = vunpack.c.l.b16 %v3049
  %v3202 = vunpack.c.h.b16 %v3049
  %v3203 = vunpack.c.l.b16 %v3050
  %v3204 = vunpack.c.h.b16 %v3050
  %v3205 = vunpack.c.l.b16 %v3051
  %v3206 = vunpack.c.h.b16 %v3051
  %v3207 = vunpack.c.l.b16 %v3052
  %v3208 = vunpack.c.h.b16 %v3052
  %v3209 = vunpack.c.l.b16 %v3053
  %v3210 = vunpack.c.h.b16 %v3053
  %v3211 = vunpack.c.l.b16 %v3054
  %v3212 = vunpack.c.h.b16 %v3054
  %v3213 = vunpack.c.l.b16 %v3055
  %v3214 = vunpack.c.h.b16 %v3055
  %v3215 = vunpack.c.l.b16 %v3056
  %v3216 = vunpack.c.h.b16 %v3056
  %v3217 = vunpack.c.l.b16 %v3057
  %v3218 = vunpack.c.h.b16 %v3057
  %v3219 = vunpack.c.l.b16 %v3058
  %v3220 = vunpack.c.h.b16 %v3058
  %v3221 = vunpack.c.l.b16 %v3059
  %v3222 = vunpack.c.h.b16 %v3059
  %v3223 = vunpack.c.l.b16 %v3060
  %v3224 = vunpack.c.h.b16 %v3060
  %v3225 = vunpack.c.l.b16 %v3061
  %v3226 = vunpack.c.h.b16 %v3061
  %v3227 = vunpack.c.l.b16 %v3062
  %v3228 = vunpack.c.h.b16 %v3062
  %v3229 = vunpack.c.l.b16 %v3063
  %v3230 = vunpack.c.h.b16 %v3063
  %v3231 = vunpack.c.l.b16 %v3064
  %v3232 = vunpack.c.h.b16 %v3064
  %v3233 = vunpack.c.l.b16 %v3065
  %v3234 = vunpack.c.h.b16 %v3065
  %v3235 = vunpack.c.l.b16 %v3066
  %v3236 = vunpack.c.h.b16 %v3066
  %v3237 = vunpack.c.l.b16 %v3067
  %v3238 = vunpack.c.h.b16 %v3067
  %v3239 = vunpack.c.l.b16 %v3068
  %v3240 = vunpack.c.h.b16 %v3068
  %v3241 = vunpack.c.l.b16 %v3069
  %v3242 = vunpack.c.h.b16 %v3069
  %v3243 = vunpack.c.l.b16 %v3070
  %v3244 = vunpack.c.h.b16 %v3070
  %v3245 = vunpack.c.l.b16 %v3071
  %v3246 = vunpack.c.h.b16 %v3071
  %v3247 = vunpack.c.l.b16 %v3072
  %v3248 = vunpack.c.h.b16 %v3072
  %v3249 = vunpack.c.l.b16 %v3073
  %v3250 = vunpack.c.h.b16 %v3073
  %v3251 = vunpack.c.l.b16 %v3074
  %v3252 = vunpack.c.h.b16 %v3074
  %v3253 = vunpack.c.l.b16 %v3075
  %v3254 = vunpack.c.h.b16 %v3075
  %v3255 = vunpack.c.l.b16 %v3076
  %v3256 = vunpack.c.h.b16 %v3076
  %v3257 = vunpack.c.l.b16 %v3077
  %v3258 = vunpack.c.h.b16 %v3077
  %v3259 = vunpack.c.l.b16 %v3078
  %v3260 = vunpack.c.h.b16 %v3078
  %v3261 = vunpack.c.l.b16 %v3079
  %v3262 = vunpack.c.h.b16 %v3079
  %v3263 = vunpack.c.l.b16 %v3080
  %v3264 = vunpack.c.h.b16 %v3080
  %v3265 = vunpack.c.l.b16 %v3081
  %v3266 = vunpack.c.h.b16 %v3081
  %v3267 = vunpack.c.l.b16 %v3082
  %v3268 = vunpack.c.h.b16 %v3082
  %v3269 = vunpack.c.l.b16 %v3083
  %v3270 = vunpack.c.h.b16 %v3083
  %v3271 = vunpack.c.l.b16 %v3084
  %v3272 = vunpack.c.h.b16 %v3084
  %v3273 = vunpack.c.l.b16 %v3085
  %v3274 = vunpack.c.h.b16 %v3085
  %v3275 = vunpack.c.l.b16 %v3086
  %v3276 = vunpack.c.h.b16 %v3086
  %v3277 = vunpack.c.l.b16 %v3087
  %v3278 = vunpack.c.h.b16 %v3087
  %v3279 = vunpack.c.l.b16 %v3088
  %v3280 = vunpack.c.h.b16 %v3088
  %v3281 = vpack.c.b16 %v3153, %v3153
  %v3282 = vpack.c.b16 %v3154, %v3154
  %v3283 = vpack.c.b16 %v3155, %v3155
  %v3284 = vpack.c.b16 %v3156, %v3156
  %v3285 = vpack.c.b16 %v3157, %v3157
  %v3286 = vpack.c.b16 %v3158, %v3158
  %v3287 = vpack.c.b16 %v3159, %v3159
  %v3288 = vpack.c.b16 %v3160, %v3160
  %v3289 = vpack.c.b16 %v3161, %v3161
  %v3290 = vpack.c.b16 %v3162, %v3162
  %v3291 = vpack.c.b16 %v3163, %v3163
  %v3292 = vpack.c.b16 %v3164, %v3164
  %v3293 = vpack.c.b16 %v3165, %v3165
  %v3294 = vpack.c.b16 %v3166, %v3166
  %v3295 = vpack.c.b16 %v3167, %v3167
  %v3296 = vpack.c.b16 %v3168, %v3168
  %v3297 = vpack.c.b16 %v3169, %v3169
  %v3298 = vpack.c.b16 %v3170, %v3170
  %v3299 = vpack.c.b16 %v3171, %v3171
  %v3300 = vpack.c.b16 %v3172, %v3172
  %v3301 = vpack.c.b16 %v3173, %v3173
  %v3302 = vpack.c.b16 %v3174, %v3174
  %v3303 = vpack.c.b16 %v3175, %v3175
  %v3304 = vpack.c.b16 %v3176, %v3176
  %v3305 = vpack.c.b16 %v3177, %v3177
  %v3306 = vpack.c.b16 %v3178, %v3178
  %v3307 = vpack.c.b16 %v3179, %v3179
  %v3308 = vpack.c.b16 %v3180, %v3180
  %v3309 = vpack.c.b16 %v3181, %v3181
  %v3310 = vpack.c.b16 %v3182, %v3182
  %v3311 = vpack.c.b16 %v3183, %v3183
  %v3312 = vpack.c.b16 %v3184, %v3184
  %v3313 = vpack.c.b16 %v3185, %v3185
  %v3314 = vpack.c.b16 %v3186, %v3186
  %v3315 = vpack.c.b16 %v3187, %v3187
  %v3316 = vpack.c.b16 %v3188, %v3188
  %v3317 = vpack.c.b16 %v3189, %v3189
  %v3318 = vpack.c.b16 %v3190, %v3190
  %v3319 = vpack.c.b16 %v3191, %v3191
  %v3320 = vpack.c.b16 %v3192, %v3192
  %v3321 = vpack.c.b16 %v3193, %v3193
  %v3322 = vpack.c.b16 %v3194, %v3194
  %v3323 = vpack.c.b16 %v3195, %v3195
  %v3324 = vpack.c.b16 %v3196, %v3196
  %v3325 = vpack.c.b16 %v3197, %v3197
  %v3326 = vpack.c.b16 %v3198, %v3198
  %v3327 = vpack.c.b16 %v3199, %v3199
  %v3328 = vpack.c.b16 %v3200, %v3200
  %v3329 = vpack.c.b16 %v3201, %v3201
  %v3330 = vpack.c.b16 %v3202, %v3202
  %v3331 = vpack.c.b16 %v3203, %v3203
  %v3332 = vpack.c.b16 %v3204, %v3204
  %v3333 = vpack.c.b16 %v3205, %v3205
  %v3334 = vpack.c.b16 %v3206, %v3206
  %v3335 = vpack.c.b16 %v3207, %v3207
  %v3336 = vpack.c.b16 %v3208, %v3208
  %v3337 = vpack.c.b16 %v3209, %v3209
  %v3338 = vpack.c.b16 %v3210, %v3210
  %v3339 = vpack.c.b16 %v3211, %v3211
  %v3340 = vpack.c.b16 %v3212, %v3212
  %v3341 = vpack.c.b16 %v3213, %v3213
  %v3342 = vpack.c.b16 %v3214, %v3214
  %v3343 = vpack.c.b16 %v3215, %v3215
  %v3344 = vpack.c.b16 %v3216, %v3216
  %v3345 = vpack.c.b16 %v3217, %v3217
  %v3346 = vpack.c.b16 %v3218, %v3218
  %v3347 = vpack.c.b16 %v3219, %v3219
  %v3348 = vpack.c.b16 %v3220, %v3220
  %v3349 = vpack.c.b16 %v3221, %v3221
  %v3350 = vpack.c.b16 %v3222, %v3222
  %v3351 = vpack.c.b16 %v3223, %v3223
  %v3352 = vpack.c.b16 %v3224, %v3224
  %v3353 = vpack.c.b16 %v3225, %v3225
  %v3354 = vpack.c.b16 %v3226, %v3226
  %v3355 = vpack.c.b16 %v3227, %v3227
  %v3356 = vpack.c.b16 %v3228, %v3228
  %v3357 = vpack.c.b16 %v3229, %v3229
  %v3358 = vpack.c.b16 %v3230, %v3230
  %v3359 = vpack.c.b16 %v3231, %v3231
  %v3360 = vpack.c.b16 %v3232, %v3232
  %v3361 = vpack.c.b16 %v3233, %v3233
  %v3362 = vpack.c.b16 %v3234, %v3234
  %v3363 = vpack.c.b16 %v3235, %v3235
  %v3364 = vpack.c.b16 %v3236, %v3236
  %v3365 = vpack.c.b16 %v3237, %v3237
  %v3366 = vpack.c.b16 %v3238, %v3238
  %v3367 = vpack.c.b16 %v3239, %v3239
  %v3368 = vpack.c.b16 %v3240, %v3240
  %v3369 = vpack.c.b16 %v3241, %v3241
  %v3370 = vpack.c.b16 %v3242, %v3242
  %v3371 = vpack.c.b16 %v3243, %v3243
  %v3372 = vpack.c.b16 %v3244, %v3244
  %v3373 = vpack.c.b16 %v3245, %v3245
  %v3374 = vpack.c.b16 %v3246, %v3246
  %v3375 = vpack.c.b16 %v3247, %v3247
  %v3376 = vpack.c.b16 %v3248, %v3248
  %v3377 = vpack.c.b16 %v3249, %v3249
  %v3378 = vpack.c.b16 %v3250, %v3250
  %v3379 = vpack.c.b16 %v3251, %v3251
  %v3380 = vpack.c.b16 %v3252, %v3252
  %v3381 = vpack.c.b16 %v3253, %v3253
  %v3382 = vpack.c.b16 %v3254, %v3254
  %v3383 = vpack.c.b16 %v3255, %v3255
  %v3384 = vpack.c.b16 %v3256, %v3256
  %v3385 = vpack.c.b16 %v3257, %v3257
  %v3386 = vpack.c.b16 %v3258, %v3258
  %v3387 = vpack.c.b16 %v3259, %v3259
  %v3388 = vpack.c.b16 %v3260, %v3260
  %v3389 = vpack.c.b16 %v3261, %v3261
  %v3390 = vpack.c.b16 %v3262, %v3262
  %v3391 = vpack.c.b16 %v3263, %v3263
  %v3392 = vpack.c.b16 %v3264, %v3264
  %v3393 = vpack.c.b16 %v3265, %v3265
  %v3394 = vpack.c.b16 %v3266, %v3266
  %v3395 = vpack.c.b16 %v3267, %v3267
  %v3396 = vpack.c.b16 %v3268, %v3268
  %v3397 = vpack.c.b16 %v3269, %v3269
  %v3398 = vpack.c.b16 %v3270, %v3270
  %v3399 = vpack.c.b16 %v3271, %v3271
  %v3400 = vpack.c.b16 %v3272, %v3272
  %v3401 = vpack.c.b16 %v3273, %v3273
  %v3402 = vpack.c.b16 %v3274, %v3274
  %v3403 = vpack.c.b16 %v3275, %v3275
  %v3404 = vpack.c.b16 %v3276, %v3276
  %v3405 = vpack.c.b16 %v3277, %v3277
  %v3406 = vpack.c.b16 %v3278, %v3278
  %v3407 = vpack.c.b16 %v3279, %v3279
  %v3408 = vpack.c.b16 %v3280, %v3280
  %vm3537 = vcmask 60416
  %3538 = vst.msk [vmem:[%s4] sm:$0xf] %vm3537, %v3281
  %3539 = vst.msk [vmem:[%s4 + $0x4] sm:$0xf] %vm3537, %v3282
  %3540 = vst.msk [vmem:[%s4 + $0x8] sm:$0xf] %vm3537, %v3283
  %3541 = vst.msk [vmem:[%s4 + $0xc] sm:$0xf] %vm3537, %v3284
  %3542 = vst.msk [vmem:[%s4 + $0x10] sm:$0xf] %vm3537, %v3285
  %3543 = vst.msk [vmem:[%s4 + $0x14] sm:$0xf] %vm3537, %v3286
  %3544 = vst.msk [vmem:[%s4 + $0x18] sm:$0xf] %vm3537, %v3287
  %3545 = vst.msk [vmem:[%s4 + $0x1c] sm:$0xf] %vm3537, %v3288
  %3546 = vst.msk [vmem:[%s4 + $0x20] sm:$0xf] %vm3537, %v3289
  %3547 = vst.msk [vmem:[%s4 + $0x24] sm:$0xf] %vm3537, %v3290
  %3548 = vst.msk [vmem:[%s4 + $0x28] sm:$0xf] %vm3537, %v3291
  %3549 = vst.msk [vmem:[%s4 + $0x2c] sm:$0xf] %vm3537, %v3292
  %3550 = vst.msk [vmem:[%s4 + $0x30] sm:$0xf] %vm3537, %v3293
  %3551 = vst.msk [vmem:[%s4 + $0x34] sm:$0xf] %vm3537, %v3294
  %3552 = vst.msk [vmem:[%s4 + $0x38] sm:$0xf] %vm3537, %v3295
  %3553 = vst.msk [vmem:[%s4 + $0x3c] sm:$0xf] %vm3537, %v3296
  %3554 = vst.msk [vmem:[%s4 + $0x40] sm:$0xf] %vm3537, %v3297
  %3555 = vst.msk [vmem:[%s4 + $0x44] sm:$0xf] %vm3537, %v3298
  %3556 = vst.msk [vmem:[%s4 + $0x48] sm:$0xf] %vm3537, %v3299
  %3557 = vst.msk [vmem:[%s4 + $0x4c] sm:$0xf] %vm3537, %v3300
  %3558 = vst.msk [vmem:[%s4 + $0x50] sm:$0xf] %vm3537, %v3301
  %3559 = vst.msk [vmem:[%s4 + $0x54] sm:$0xf] %vm3537, %v3302
  %3560 = vst.msk [vmem:[%s4 + $0x58] sm:$0xf] %vm3537, %v3303
  %3561 = vst.msk [vmem:[%s4 + $0x5c] sm:$0xf] %vm3537, %v3304
  %3562 = vst.msk [vmem:[%s4 + $0x60] sm:$0xf] %vm3537, %v3305
  %3563 = vst.msk [vmem:[%s4 + $0x64] sm:$0xf] %vm3537, %v3306
  %3564 = vst.msk [vmem:[%s4 + $0x68] sm:$0xf] %vm3537, %v3307
  %3565 = vst.msk [vmem:[%s4 + $0x6c] sm:$0xf] %vm3537, %v3308
  %3566 = vst.msk [vmem:[%s4 + $0x70] sm:$0xf] %vm3537, %v3309
  %3567 = vst.msk [vmem:[%s4 + $0x74] sm:$0xf] %vm3537, %v3310
  %3568 = vst.msk [vmem:[%s4 + $0x78] sm:$0xf] %vm3537, %v3311
  %3569 = vst.msk [vmem:[%s4 + $0x7c] sm:$0xf] %vm3537, %v3312
  %3570 = vst.msk [vmem:[%s4 + $0x80] sm:$0xf] %vm3537, %v3313
  %3571 = vst.msk [vmem:[%s4 + $0x84] sm:$0xf] %vm3537, %v3314
  %3572 = vst.msk [vmem:[%s4 + $0x88] sm:$0xf] %vm3537, %v3315
  %3573 = vst.msk [vmem:[%s4 + $0x8c] sm:$0xf] %vm3537, %v3316
  %3574 = vst.msk [vmem:[%s4 + $0x90] sm:$0xf] %vm3537, %v3317
  %3575 = vst.msk [vmem:[%s4 + $0x94] sm:$0xf] %vm3537, %v3318
  %3576 = vst.msk [vmem:[%s4 + $0x98] sm:$0xf] %vm3537, %v3319
  %3577 = vst.msk [vmem:[%s4 + $0x9c] sm:$0xf] %vm3537, %v3320
  %3578 = vst.msk [vmem:[%s4 + $0xa0] sm:$0xf] %vm3537, %v3321
  %3579 = vst.msk [vmem:[%s4 + $0xa4] sm:$0xf] %vm3537, %v3322
  %3580 = vst.msk [vmem:[%s4 + $0xa8] sm:$0xf] %vm3537, %v3323
  %3581 = vst.msk [vmem:[%s4 + $0xac] sm:$0xf] %vm3537, %v3324
  %3582 = vst.msk [vmem:[%s4 + $0xb0] sm:$0xf] %vm3537, %v3325
  %3583 = vst.msk [vmem:[%s4 + $0xb4] sm:$0xf] %vm3537, %v3326
  %3584 = vst.msk [vmem:[%s4 + $0xb8] sm:$0xf] %vm3537, %v3327
  %3585 = vst.msk [vmem:[%s4 + $0xbc] sm:$0xf] %vm3537, %v3328
  %3586 = vst.msk [vmem:[%s4 + $0xc0] sm:$0xf] %vm3537, %v3329
  %3587 = vst.msk [vmem:[%s4 + $0xc4] sm:$0xf] %vm3537, %v3330
  %3588 = vst.msk [vmem:[%s4 + $0xc8] sm:$0xf] %vm3537, %v3331
  %3589 = vst.msk [vmem:[%s4 + $0xcc] sm:$0xf] %vm3537, %v3332
  %3590 = vst.msk [vmem:[%s4 + $0xd0] sm:$0xf] %vm3537, %v3333
  %3591 = vst.msk [vmem:[%s4 + $0xd4] sm:$0xf] %vm3537, %v3334
  %3592 = vst.msk [vmem:[%s4 + $0xd8] sm:$0xf] %vm3537, %v3335
  %3593 = vst.msk [vmem:[%s4 + $0xdc] sm:$0xf] %vm3537, %v3336
  %3594 = vst.msk [vmem:[%s4 + $0xe0] sm:$0xf] %vm3537, %v3337
  %3595 = vst.msk [vmem:[%s4 + $0xe4] sm:$0xf] %vm3537, %v3338
  %3596 = vst.msk [vmem:[%s4 + $0xe8] sm:$0xf] %vm3537, %v3339
  %3597 = vst.msk [vmem:[%s4 + $0xec] sm:$0xf] %vm3537, %v3340
  %3598 = vst.msk [vmem:[%s4 + $0xf0] sm:$0xf] %vm3537, %v3341
  %3599 = vst.msk [vmem:[%s4 + $0xf4] sm:$0xf] %vm3537, %v3342
  %3600 = vst.msk [vmem:[%s4 + $0xf8] sm:$0xf] %vm3537, %v3343
  %3601 = vst.msk [vmem:[%s4 + $0xfc] sm:$0xf] %vm3537, %v3344
  %3602 = vst.msk [vmem:[%s4 + $0x100] sm:$0xf] %vm3537, %v3345
  %3603 = vst.msk [vmem:[%s4 + $0x104] sm:$0xf] %vm3537, %v3346
  %3604 = vst.msk [vmem:[%s4 + $0x108] sm:$0xf] %vm3537, %v3347
  %3605 = vst.msk [vmem:[%s4 + $0x10c] sm:$0xf] %vm3537, %v3348
  %3606 = vst.msk [vmem:[%s4 + $0x110] sm:$0xf] %vm3537, %v3349
  %3607 = vst.msk [vmem:[%s4 + $0x114] sm:$0xf] %vm3537, %v3350
  %3608 = vst.msk [vmem:[%s4 + $0x118] sm:$0xf] %vm3537, %v3351
  %3609 = vst.msk [vmem:[%s4 + $0x11c] sm:$0xf] %vm3537, %v3352
  %3610 = vst.msk [vmem:[%s4 + $0x120] sm:$0xf] %vm3537, %v3353
  %3611 = vst.msk [vmem:[%s4 + $0x124] sm:$0xf] %vm3537, %v3354
  %3612 = vst.msk [vmem:[%s4 + $0x128] sm:$0xf] %vm3537, %v3355
  %3613 = vst.msk [vmem:[%s4 + $0x12c] sm:$0xf] %vm3537, %v3356
  %3614 = vst.msk [vmem:[%s4 + $0x130] sm:$0xf] %vm3537, %v3357
  %3615 = vst.msk [vmem:[%s4 + $0x134] sm:$0xf] %vm3537, %v3358
  %3616 = vst.msk [vmem:[%s4 + $0x138] sm:$0xf] %vm3537, %v3359
  %3617 = vst.msk [vmem:[%s4 + $0x13c] sm:$0xf] %vm3537, %v3360
  %3618 = vst.msk [vmem:[%s4 + $0x140] sm:$0xf] %vm3537, %v3361
  %3619 = vst.msk [vmem:[%s4 + $0x144] sm:$0xf] %vm3537, %v3362
  %3620 = vst.msk [vmem:[%s4 + $0x148] sm:$0xf] %vm3537, %v3363
  %3621 = vst.msk [vmem:[%s4 + $0x14c] sm:$0xf] %vm3537, %v3364
  %3622 = vst.msk [vmem:[%s4 + $0x150] sm:$0xf] %vm3537, %v3365
  %3623 = vst.msk [vmem:[%s4 + $0x154] sm:$0xf] %vm3537, %v3366
  %3624 = vst.msk [vmem:[%s4 + $0x158] sm:$0xf] %vm3537, %v3367
  %3625 = vst.msk [vmem:[%s4 + $0x15c] sm:$0xf] %vm3537, %v3368
  %3626 = vst.msk [vmem:[%s4 + $0x160] sm:$0xf] %vm3537, %v3369
  %3627 = vst.msk [vmem:[%s4 + $0x164] sm:$0xf] %vm3537, %v3370
  %3628 = vst.msk [vmem:[%s4 + $0x168] sm:$0xf] %vm3537, %v3371
  %3629 = vst.msk [vmem:[%s4 + $0x16c] sm:$0xf] %vm3537, %v3372
  %3630 = vst.msk [vmem:[%s4 + $0x170] sm:$0xf] %vm3537, %v3373
  %3631 = vst.msk [vmem:[%s4 + $0x174] sm:$0xf] %vm3537, %v3374
  %3632 = vst.msk [vmem:[%s4 + $0x178] sm:$0xf] %vm3537, %v3375
  %3633 = vst.msk [vmem:[%s4 + $0x17c] sm:$0xf] %vm3537, %v3376
  %3634 = vst.msk [vmem:[%s4 + $0x180] sm:$0xf] %vm3537, %v3377
  %3635 = vst.msk [vmem:[%s4 + $0x184] sm:$0xf] %vm3537, %v3378
  %3636 = vst.msk [vmem:[%s4 + $0x188] sm:$0xf] %vm3537, %v3379
  %3637 = vst.msk [vmem:[%s4 + $0x18c] sm:$0xf] %vm3537, %v3380
  %3638 = vst.msk [vmem:[%s4 + $0x190] sm:$0xf] %vm3537, %v3381
  %3639 = vst.msk [vmem:[%s4 + $0x194] sm:$0xf] %vm3537, %v3382
  %3640 = vst.msk [vmem:[%s4 + $0x198] sm:$0xf] %vm3537, %v3383
  %3641 = vst.msk [vmem:[%s4 + $0x19c] sm:$0xf] %vm3537, %v3384
  %3642 = vst.msk [vmem:[%s4 + $0x1a0] sm:$0xf] %vm3537, %v3385
  %3643 = vst.msk [vmem:[%s4 + $0x1a4] sm:$0xf] %vm3537, %v3386
  %3644 = vst.msk [vmem:[%s4 + $0x1a8] sm:$0xf] %vm3537, %v3387
  %3645 = vst.msk [vmem:[%s4 + $0x1ac] sm:$0xf] %vm3537, %v3388
  %3646 = vst.msk [vmem:[%s4 + $0x1b0] sm:$0xf] %vm3537, %v3389
  %3647 = vst.msk [vmem:[%s4 + $0x1b4] sm:$0xf] %vm3537, %v3390
  %3648 = vst.msk [vmem:[%s4 + $0x1b8] sm:$0xf] %vm3537, %v3391
  %3649 = vst.msk [vmem:[%s4 + $0x1bc] sm:$0xf] %vm3537, %v3392
  %3650 = vst.msk [vmem:[%s4 + $0x1c0] sm:$0xf] %vm3537, %v3393
  %3651 = vst.msk [vmem:[%s4 + $0x1c4] sm:$0xf] %vm3537, %v3394
  %3652 = vst.msk [vmem:[%s4 + $0x1c8] sm:$0xf] %vm3537, %v3395
  %3653 = vst.msk [vmem:[%s4 + $0x1cc] sm:$0xf] %vm3537, %v3396
  %3654 = vst.msk [vmem:[%s4 + $0x1d0] sm:$0xf] %vm3537, %v3397
  %3655 = vst.msk [vmem:[%s4 + $0x1d4] sm:$0xf] %vm3537, %v3398
  %3656 = vst.msk [vmem:[%s4 + $0x1d8] sm:$0xf] %vm3537, %v3399
  %3657 = vst.msk [vmem:[%s4 + $0x1dc] sm:$0xf] %vm3537, %v3400
  %3658 = vst.msk [vmem:[%s4 + $0x1e0] sm:$0xf] %vm3537, %v3401
  %3659 = vst.msk [vmem:[%s4 + $0x1e4] sm:$0xf] %vm3537, %v3402
  %3660 = vst.msk [vmem:[%s4 + $0x1e8] sm:$0xf] %vm3537, %v3403
  %3661 = vst.msk [vmem:[%s4 + $0x1ec] sm:$0xf] %vm3537, %v3404
  %3662 = vst.msk [vmem:[%s4 + $0x1f0] sm:$0xf] %vm3537, %v3405
  %3663 = vst.msk [vmem:[%s4 + $0x1f4] sm:$0xf] %vm3537, %v3406
  %3664 = vst.msk [vmem:[%s4 + $0x1f8] sm:$0xf] %vm3537, %v3407
  %3665 = vst.msk [vmem:[%s4 + $0x1fc] sm:$0xf] %vm3537, %v3408
  // Predicated region
  $region18: #{discriminator_forward.4} parent=0 // pred_check
    _
  $region19: #{discriminator_forward.4} parent=0 // pred_check_branch
    %3667 = sbr.rel (0) target = $region21
  $region20: #{discriminator_forward.4} parent=0 // pred_region
    _
  $region21: #{discriminator_forward.4} parent=0 // pred_fallthru
    _
  // Predicated region
  $region22: #{discriminator_forward.4} parent=0 // pred_check
    _
  $region23: #{discriminator_forward.4} parent=0 // pred_check_branch
    %3669 = sbr.rel (0) target = $region25
  $region24: #{discriminator_forward.4} parent=0 // pred_region
    _
  $region25: #{discriminator_forward.4} parent=0 // pred_fallthru
    _

// kernel: discriminator_forward.5
$region0: #{discriminator_forward.5}
  #allocation0 [shape = 'u32[]', space=smem, size = 0x4, offset = 0x4, fixed_abs, tag = 'smem constant byte address 0x4 - core index']
  #allocation1 [shape = 'u32[144,128]{1,0:T(1,128)}', space=vmem, size = 0x12000, scoped, tag = 'internal scratch']
  %s0 = inlined_call_operand.vmem [shape: bf16[128,512], index: 0, kind: input, shape index: {}]
  %s1 = inlined_call_operand.vmem [shape: bf16[512,16], index: 1, kind: input, shape index: {}]
  %s2 = inlined_call_operand.vmem [shape: f32[1,16], index: 2, kind: input, shape index: {}]
  %s3 = inlined_call_operand.vmem [shape: f32[1,16], index: 3, kind: input, shape index: {}]
  %s4 = inlined_call_operand.vmem [shape: f32[128,16], index: 4, kind: input, shape index: {}]
  %s5 = inlined_call_operand.vmem [shape: f32[128,2], index: 5, kind: input, shape index: {}]
  %s6 = inlined_call_operand.hbm [shape: f32[1,2], index: 6, kind: output, shape index: {}]
  %s7 = sld [smem:[#allocation0]]
  $region34: #{discriminator_forward.5} parent=0
    _
  %s9 = ssub.s32 1, %s7
  %s10 = scalar_select 0, %s9, %s7
  $region1: #{discriminator_forward.5} parent=0
    #allocation2 [shape = 'u8[512]{0}', space=vmem, size = 0x400, scoped, tag = 'output window, operand 0, single buffered']
    #allocation3 [shape = 's32[1]{0}', space=sflag, size = 0x4, scoped, tag = 'scoped memory for discriminator_forward.5']
    %11 = vsyncpa [#allocation3], 0
    // Predicated region
    $region2: #{discriminator_forward.5} parent=1 // pred_check
      _
    $region3: #{discriminator_forward.5} parent=1 // pred_check_branch
      %13 = sbr.rel (0) target = $region5
    $region4: #{discriminator_forward.5} parent=1 // pred_region
      _
    $region5: #{discriminator_forward.5} parent=1 // pred_fallthru
      _
    // Predicated region
    $region6: #{discriminator_forward.5} parent=1 // pred_check
      _
    $region7: #{discriminator_forward.5} parent=1 // pred_check_branch
      %15 = sbr.rel (0) target = $region9
    $region8: #{discriminator_forward.5} parent=1 // pred_region
      _
    $region9: #{discriminator_forward.5} parent=1 // pred_fallthru
      _
    // Predicated region
    $region10: #{discriminator_forward.5} parent=1 // pred_check
      _
    $region11: #{discriminator_forward.5} parent=1 // pred_check_branch
      %17 = sbr.rel (0) target = $region13
    $region12: #{discriminator_forward.5} parent=1 // pred_region
      _
    $region13: #{discriminator_forward.5} parent=1 // pred_fallthru
      _
    // Predicated region
    $region14: #{discriminator_forward.5} parent=1 // pred_check
      _
    $region15: #{discriminator_forward.5} parent=1 // pred_check_branch
      %19 = sbr.rel (0) target = $region17
    $region16: #{discriminator_forward.5} parent=1 // pred_region
      _
    $region17: #{discriminator_forward.5} parent=1 // pred_fallthru
      _
    // Predicated region
    $region18: #{discriminator_forward.5} parent=1 // pred_check
      _
    $region19: #{discriminator_forward.5} parent=1 // pred_check_branch
      %21 = sbr.rel (0) target = $region21
    $region20: #{discriminator_forward.5} parent=1 // pred_region
      _
    $region21: #{discriminator_forward.5} parent=1 // pred_fallthru
      _
    // Predicated region
    $region22: #{discriminator_forward.5} parent=1 // pred_check
      _
    $region23: #{discriminator_forward.5} parent=1 // pred_check_branch
      %23 = sbr.rel (0) target = $region25
    $region24: #{discriminator_forward.5} parent=1 // pred_region
      _
    $region25: #{discriminator_forward.5} parent=1 // pred_fallthru
      _
    %v25 = vld [vmem:[%s0] sm:$0xff]
    %v26 = vld [vmem:[%s0 + $0x8] sm:$0xff]
    %v27 = vld [vmem:[%s0 + $0x10] sm:$0xff]
    %v28 = vld [vmem:[%s0 + $0x18] sm:$0xff]
    %v29 = vld [vmem:[%s0 + $0x20] sm:$0xff]
    %v30 = vld [vmem:[%s0 + $0x28] sm:$0xff]
    %v31 = vld [vmem:[%s0 + $0x30] sm:$0xff]
    %v32 = vld [vmem:[%s0 + $0x38] sm:$0xff]
    %v33 = vld [vmem:[%s0 + $0x40] sm:$0xff]
    %v34 = vld [vmem:[%s0 + $0x48] sm:$0xff]
    %v35 = vld [vmem:[%s0 + $0x50] sm:$0xff]
    %v36 = vld [vmem:[%s0 + $0x58] sm:$0xff]
    %v37 = vld [vmem:[%s0 + $0x60] sm:$0xff]
    %v38 = vld [vmem:[%s0 + $0x68] sm:$0xff]
    %v39 = vld [vmem:[%s0 + $0x70] sm:$0xff]
    %v40 = vld [vmem:[%s0 + $0x78] sm:$0xff]
    %v41 = vld [vmem:[%s0 + $0x80] sm:$0xff]
    %v42 = vld [vmem:[%s0 + $0x88] sm:$0xff]
    %v43 = vld [vmem:[%s0 + $0x90] sm:$0xff]
    %v44 = vld [vmem:[%s0 + $0x98] sm:$0xff]
    %v45 = vld [vmem:[%s0 + $0xa0] sm:$0xff]
    %v46 = vld [vmem:[%s0 + $0xa8] sm:$0xff]
    %v47 = vld [vmem:[%s0 + $0xb0] sm:$0xff]
    %v48 = vld [vmem:[%s0 + $0xb8] sm:$0xff]
    %v49 = vld [vmem:[%s0 + $0xc0] sm:$0xff]
    %v50 = vld [vmem:[%s0 + $0xc8] sm:$0xff]
    %v51 = vld [vmem:[%s0 + $0xd0] sm:$0xff]
    %v52 = vld [vmem:[%s0 + $0xd8] sm:$0xff]
    %v53 = vld [vmem:[%s0 + $0xe0] sm:$0xff]
    %v54 = vld [vmem:[%s0 + $0xe8] sm:$0xff]
    %v55 = vld [vmem:[%s0 + $0xf0] sm:$0xff]
    %v56 = vld [vmem:[%s0 + $0xf8] sm:$0xff]
    %v57 = vld [vmem:[%s1] sm:$0xf]
    %v58 = vld [vmem:[%s1 + $0x4] sm:$0xf]
    %v59 = vld [vmem:[%s1 + $0x8] sm:$0xf]
    %v60 = vld [vmem:[%s1 + $0xc] sm:$0xf]
    %v61 = vld [vmem:[%s1 + $0x10] sm:$0xf]
    %v62 = vld [vmem:[%s1 + $0x14] sm:$0xf]
    %v63 = vld [vmem:[%s1 + $0x18] sm:$0xf]
    %v64 = vld [vmem:[%s1 + $0x1c] sm:$0xf]
    %v65 = vld [vmem:[%s1 + $0x20] sm:$0xf]
    %v66 = vld [vmem:[%s1 + $0x24] sm:$0xf]
    %v67 = vld [vmem:[%s1 + $0x28] sm:$0xf]
    %v68 = vld [vmem:[%s1 + $0x2c] sm:$0xf]
    %v69 = vld [vmem:[%s1 + $0x30] sm:$0xf]
    %v70 = vld [vmem:[%s1 + $0x34] sm:$0xf]
    %v71 = vld [vmem:[%s1 + $0x38] sm:$0xf]
    %v72 = vld [vmem:[%s1 + $0x3c] sm:$0xf]
    %v73 = vld [vmem:[%s1 + $0x40] sm:$0xf]
    %v74 = vld [vmem:[%s1 + $0x44] sm:$0xf]
    %v75 = vld [vmem:[%s1 + $0x48] sm:$0xf]
    %v76 = vld [vmem:[%s1 + $0x4c] sm:$0xf]
    %v77 = vld [vmem:[%s1 + $0x50] sm:$0xf]
    %v78 = vld [vmem:[%s1 + $0x54] sm:$0xf]
    %v79 = vld [vmem:[%s1 + $0x58] sm:$0xf]
    %v80 = vld [vmem:[%s1 + $0x5c] sm:$0xf]
    %v81 = vld [vmem:[%s1 + $0x60] sm:$0xf]
    %v82 = vld [vmem:[%s1 + $0x64] sm:$0xf]
    %v83 = vld [vmem:[%s1 + $0x68] sm:$0xf]
    %v84 = vld [vmem:[%s1 + $0x6c] sm:$0xf]
    %v85 = vld [vmem:[%s1 + $0x70] sm:$0xf]
    %v86 = vld [vmem:[%s1 + $0x74] sm:$0xf]
    %v87 = vld [vmem:[%s1 + $0x78] sm:$0xf]
    %v88 = vld [vmem:[%s1 + $0x7c] sm:$0xf]
    %v89 = vld [vmem:[%s1 + $0x80] sm:$0xf]
    %v90 = vld [vmem:[%s1 + $0x84] sm:$0xf]
    %v91 = vld [vmem:[%s1 + $0x88] sm:$0xf]
    %v92 = vld [vmem:[%s1 + $0x8c] sm:$0xf]
    %v93 = vld [vmem:[%s1 + $0x90] sm:$0xf]
    %v94 = vld [vmem:[%s1 + $0x94] sm:$0xf]
    %v95 = vld [vmem:[%s1 + $0x98] sm:$0xf]
    %v96 = vld [vmem:[%s1 + $0x9c] sm:$0xf]
    %v97 = vld [vmem:[%s1 + $0xa0] sm:$0xf]
    %v98 = vld [vmem:[%s1 + $0xa4] sm:$0xf]
    %v99 = vld [vmem:[%s1 + $0xa8] sm:$0xf]
    %v100 = vld [vmem:[%s1 + $0xac] sm:$0xf]
    %v101 = vld [vmem:[%s1 + $0xb0] sm:$0xf]
    %v102 = vld [vmem:[%s1 + $0xb4] sm:$0xf]
    %v103 = vld [vmem:[%s1 + $0xb8] sm:$0xf]
    %v104 = vld [vmem:[%s1 + $0xbc] sm:$0xf]
    %v105 = vld [vmem:[%s1 + $0xc0] sm:$0xf]
    %v106 = vld [vmem:[%s1 + $0xc4] sm:$0xf]
    %v107 = vld [vmem:[%s1 + $0xc8] sm:$0xf]
    %v108 = vld [vmem:[%s1 + $0xcc] sm:$0xf]
    %v109 = vld [vmem:[%s1 + $0xd0] sm:$0xf]
    %v110 = vld [vmem:[%s1 + $0xd4] sm:$0xf]
    %v111 = vld [vmem:[%s1 + $0xd8] sm:$0xf]
    %v112 = vld [vmem:[%s1 + $0xdc] sm:$0xf]
    %v113 = vld [vmem:[%s1 + $0xe0] sm:$0xf]
    %v114 = vld [vmem:[%s1 + $0xe4] sm:$0xf]
    %v115 = vld [vmem:[%s1 + $0xe8] sm:$0xf]
    %v116 = vld [vmem:[%s1 + $0xec] sm:$0xf]
    %v117 = vld [vmem:[%s1 + $0xf0] sm:$0xf]
    %v118 = vld [vmem:[%s1 + $0xf4] sm:$0xf]
    %v119 = vld [vmem:[%s1 + $0xf8] sm:$0xf]
    %v120 = vld [vmem:[%s1 + $0xfc] sm:$0xf]
    %v153 = vunpack.c.l.b16 %v25
    %v154 = vunpack.c.h.b16 %v25
    %v155 = vunpack.c.l.b16 %v26
    %v156 = vunpack.c.h.b16 %v26
    %v157 = vunpack.c.l.b16 %v27
    %v158 = vunpack.c.h.b16 %v27
    %v159 = vunpack.c.l.b16 %v28
    %v160 = vunpack.c.h.b16 %v28
    %v161 = vunpack.c.l.b16 %v29
    %v162 = vunpack.c.h.b16 %v29
    %v163 = vunpack.c.l.b16 %v30
    %v164 = vunpack.c.h.b16 %v30
    %v165 = vunpack.c.l.b16 %v31
    %v166 = vunpack.c.h.b16 %v31
    %v167 = vunpack.c.l.b16 %v32
    %v168 = vunpack.c.h.b16 %v32
    %v169 = vunpack.c.l.b16 %v33
    %v170 = vunpack.c.h.b16 %v33
    %v171 = vunpack.c.l.b16 %v34
    %v172 = vunpack.c.h.b16 %v34
    %v173 = vunpack.c.l.b16 %v35
    %v174 = vunpack.c.h.b16 %v35
    %v175 = vunpack.c.l.b16 %v36
    %v176 = vunpack.c.h.b16 %v36
    %v177 = vunpack.c.l.b16 %v37
    %v178 = vunpack.c.h.b16 %v37
    %v179 = vunpack.c.l.b16 %v38
    %v180 = vunpack.c.h.b16 %v38
    %v181 = vunpack.c.l.b16 %v39
    %v182 = vunpack.c.h.b16 %v39
    %v183 = vunpack.c.l.b16 %v40
    %v184 = vunpack.c.h.b16 %v40
    %v185 = vunpack.c.l.b16 %v41
    %v186 = vunpack.c.h.b16 %v41
    %v187 = vunpack.c.l.b16 %v42
    %v188 = vunpack.c.h.b16 %v42
    %v189 = vunpack.c.l.b16 %v43
    %v190 = vunpack.c.h.b16 %v43
    %v191 = vunpack.c.l.b16 %v44
    %v192 = vunpack.c.h.b16 %v44
    %v193 = vunpack.c.l.b16 %v45
    %v194 = vunpack.c.h.b16 %v45
    %v195 = vunpack.c.l.b16 %v46
    %v196 = vunpack.c.h.b16 %v46
    %v197 = vunpack.c.l.b16 %v47
    %v198 = vunpack.c.h.b16 %v47
    %v199 = vunpack.c.l.b16 %v48
    %v200 = vunpack.c.h.b16 %v48
    %v201 = vunpack.c.l.b16 %v49
    %v202 = vunpack.c.h.b16 %v49
    %v203 = vunpack.c.l.b16 %v50
    %v204 = vunpack.c.h.b16 %v50
    %v205 = vunpack.c.l.b16 %v51
    %v206 = vunpack.c.h.b16 %v51
    %v207 = vunpack.c.l.b16 %v52
    %v208 = vunpack.c.h.b16 %v52
    %v209 = vunpack.c.l.b16 %v53
    %v210 = vunpack.c.h.b16 %v53
    %v211 = vunpack.c.l.b16 %v54
    %v212 = vunpack.c.h.b16 %v54
    %v213 = vunpack.c.l.b16 %v55
    %v214 = vunpack.c.h.b16 %v55
    %v215 = vunpack.c.l.b16 %v56
    %v216 = vunpack.c.h.b16 %v56
    %v217 = vpack.c.b16 %v157, %v153
    %v218 = vpack.c.b16 %v158, %v154
    %v219 = vpack.c.b16 %v159, %v155
    %v220 = vpack.c.b16 %v160, %v156
    %v221 = vpack.c.b16 %v165, %v161
    %v222 = vpack.c.b16 %v166, %v162
    %v223 = vpack.c.b16 %v167, %v163
    %v224 = vpack.c.b16 %v168, %v164
    %v225 = vpack.c.b16 %v173, %v169
    %v226 = vpack.c.b16 %v174, %v170
    %v227 = vpack.c.b16 %v175, %v171
    %v228 = vpack.c.b16 %v176, %v172
    %v229 = vpack.c.b16 %v181, %v177
    %v230 = vpack.c.b16 %v182, %v178
    %v231 = vpack.c.b16 %v183, %v179
    %v232 = vpack.c.b16 %v184, %v180
    %v233 = vpack.c.b16 %v189, %v185
    %v234 = vpack.c.b16 %v190, %v186
    %v235 = vpack.c.b16 %v191, %v187
    %v236 = vpack.c.b16 %v192, %v188
    %v237 = vpack.c.b16 %v197, %v193
    %v238 = vpack.c.b16 %v198, %v194
    %v239 = vpack.c.b16 %v199, %v195
    %v240 = vpack.c.b16 %v200, %v196
    %v241 = vpack.c.b16 %v205, %v201
    %v242 = vpack.c.b16 %v206, %v202
    %v243 = vpack.c.b16 %v207, %v203
    %v244 = vpack.c.b16 %v208, %v204
    %v245 = vpack.c.b16 %v213, %v209
    %v246 = vpack.c.b16 %v214, %v210
    %v247 = vpack.c.b16 %v215, %v211
    %v248 = vpack.c.b16 %v216, %v212
    %v345 = vunpack.c.l.b16 %v57
    %v346 = vunpack.c.l.b16 %v58
    %v347 = vunpack.c.l.b16 %v59
    %v348 = vunpack.c.l.b16 %v60
    %v349 = vunpack.c.l.b16 %v61
    %v350 = vunpack.c.l.b16 %v62
    %v351 = vunpack.c.l.b16 %v63
    %v352 = vunpack.c.l.b16 %v64
    %v353 = vunpack.c.l.b16 %v65
    %v354 = vunpack.c.l.b16 %v66
    %v355 = vunpack.c.l.b16 %v67
    %v356 = vunpack.c.l.b16 %v68
    %v357 = vunpack.c.l.b16 %v69
    %v358 = vunpack.c.l.b16 %v70
    %v359 = vunpack.c.l.b16 %v71
    %v360 = vunpack.c.l.b16 %v72
    %v361 = vunpack.c.l.b16 %v73
    %v362 = vunpack.c.l.b16 %v74
    %v363 = vunpack.c.l.b16 %v75
    %v364 = vunpack.c.l.b16 %v76
    %v365 = vunpack.c.l.b16 %v77
    %v366 = vunpack.c.l.b16 %v78
    %v367 = vunpack.c.l.b16 %v79
    %v368 = vunpack.c.l.b16 %v80
    %v369 = vunpack.c.l.b16 %v81
    %v370 = vunpack.c.l.b16 %v82
    %v371 = vunpack.c.l.b16 %v83
    %v372 = vunpack.c.l.b16 %v84
    %v373 = vunpack.c.l.b16 %v85
    %v374 = vunpack.c.l.b16 %v86
    %v375 = vunpack.c.l.b16 %v87
    %v376 = vunpack.c.l.b16 %v88
    %v377 = vunpack.c.l.b16 %v89
    %v378 = vunpack.c.l.b16 %v90
    %v379 = vunpack.c.l.b16 %v91
    %v380 = vunpack.c.l.b16 %v92
    %v381 = vunpack.c.l.b16 %v93
    %v382 = vunpack.c.l.b16 %v94
    %v383 = vunpack.c.l.b16 %v95
    %v384 = vunpack.c.l.b16 %v96
    %v385 = vunpack.c.l.b16 %v97
    %v386 = vunpack.c.l.b16 %v98
    %v387 = vunpack.c.l.b16 %v99
    %v388 = vunpack.c.l.b16 %v100
    %v389 = vunpack.c.l.b16 %v101
    %v390 = vunpack.c.l.b16 %v102
    %v391 = vunpack.c.l.b16 %v103
    %v392 = vunpack.c.l.b16 %v104
    %v393 = vunpack.c.l.b16 %v105
    %v394 = vunpack.c.l.b16 %v106
    %v395 = vunpack.c.l.b16 %v107
    %v396 = vunpack.c.l.b16 %v108
    %v397 = vunpack.c.l.b16 %v109
    %v398 = vunpack.c.l.b16 %v110
    %v399 = vunpack.c.l.b16 %v111
    %v400 = vunpack.c.l.b16 %v112
    %v401 = vunpack.c.l.b16 %v113
    %v402 = vunpack.c.l.b16 %v114
    %v403 = vunpack.c.l.b16 %v115
    %v404 = vunpack.c.l.b16 %v116
    %v405 = vunpack.c.l.b16 %v117
    %v406 = vunpack.c.l.b16 %v118
    %v407 = vunpack.c.l.b16 %v119
    %v408 = vunpack.c.l.b16 %v120
    %v409 = vpack.c.b16 %v346, %v345
    %v410 = vpack.c.b16 %v348, %v347
    %v411 = vpack.c.b16 %v350, %v349
    %v412 = vpack.c.b16 %v352, %v351
    %v413 = vpack.c.b16 %v354, %v353
    %v414 = vpack.c.b16 %v356, %v355
    %v415 = vpack.c.b16 %v358, %v357
    %v416 = vpack.c.b16 %v360, %v359
    %v417 = vpack.c.b16 %v362, %v361
    %v418 = vpack.c.b16 %v364, %v363
    %v419 = vpack.c.b16 %v366, %v365
    %v420 = vpack.c.b16 %v368, %v367
    %v421 = vpack.c.b16 %v370, %v369
    %v422 = vpack.c.b16 %v372, %v371
    %v423 = vpack.c.b16 %v374, %v373
    %v424 = vpack.c.b16 %v376, %v375
    %v425 = vpack.c.b16 %v378, %v377
    %v426 = vpack.c.b16 %v380, %v379
    %v427 = vpack.c.b16 %v382, %v381
    %v428 = vpack.c.b16 %v384, %v383
    %v429 = vpack.c.b16 %v386, %v385
    %v430 = vpack.c.b16 %v388, %v387
    %v431 = vpack.c.b16 %v390, %v389
    %v432 = vpack.c.b16 %v392, %v391
    %v433 = vpack.c.b16 %v394, %v393
    %v434 = vpack.c.b16 %v396, %v395
    %v435 = vpack.c.b16 %v398, %v397
    %v436 = vpack.c.b16 %v400, %v399
    %v437 = vpack.c.b16 %v402, %v401
    %v438 = vpack.c.b16 %v404, %v403
    %v439 = vpack.c.b16 %v406, %v405
    %v440 = vpack.c.b16 %v408, %v407
    %473 = vmatprep.subr.bf16.mxu0 0
    %474 = vmatpush1.bf16.msra.mxu0 %v409
    %475 = vmatprep.subr.bf16.mxu0 0
    %476 = vmatpush1.bf16.msra.mxu0 %v410
    %477 = vmatprep.subr.bf16.mxu0 0
    %478 = vmatpush1.bf16.msra.mxu0 %v411
    %479 = vmatprep.subr.bf16.mxu0 0
    %480 = vmatpush1.bf16.msra.mxu0 %v412
    %481 = vmatprep.subr.bf16.mxu0 0
    %482 = vmatpush1.bf16.msra.mxu0 %v413
    %483 = vmatprep.subr.bf16.mxu0 0
    %484 = vmatpush1.bf16.msra.mxu0 %v414
    %485 = vmatprep.subr.bf16.mxu0 0
    %486 = vmatpush1.bf16.msra.mxu0 %v415
    %487 = vmatprep.subr.bf16.mxu0 0
    %488 = vmatpush1.bf16.msra.mxu0 %v416
    %489 = vmatprep.subr.bf16.mxu0 0
    %490 = vmatpush1.bf16.msra.mxu0 %v417
    %491 = vmatprep.subr.bf16.mxu0 0
    %492 = vmatpush1.bf16.msra.mxu0 %v418
    %493 = vmatprep.subr.bf16.mxu0 0
    %494 = vmatpush1.bf16.msra.mxu0 %v419
    %495 = vmatprep.subr.bf16.mxu0 0
    %496 = vmatpush1.bf16.msra.mxu0 %v420
    %497 = vmatprep.subr.bf16.mxu0 0
    %498 = vmatpush1.bf16.msra.mxu0 %v421
    %499 = vmatprep.subr.bf16.mxu0 0
    %500 = vmatpush1.bf16.msra.mxu0 %v422
    %501 = vmatprep.subr.bf16.mxu0 0
    %502 = vmatpush1.bf16.msra.mxu0 %v423
    %503 = vmatprep.subr.bf16.mxu0 0
    %504 = vmatpush1.bf16.msra.mxu0 %v424
    %505 = vmatprep.mubr.bf16.mxu0 %v218
    %506 = vmatmul.mubr.bf16.gmra.mrb[0].mxu0 %v217
    %v507 = vpop.f32.mrb[0].mxu0
    %v508 = vadd.f32 0.0, %v507
    %v509 = vpop.f32.mrb[0].mxu0
    %v510 = vpop.f32.mrb[0].mxu0
    %v511 = vadd.f32 0.0, %v510
    %v512 = vpop.f32.mrb[0].mxu0
    %513 = vmatprep.mubr.bf16.mxu0 %v222
    %514 = vmatmul.mubr.bf16.gmra.mrb[0].mxu0 %v221
    %v515 = vpop.f32.mrb[0].mxu0
    %v516 = vadd.f32 0.0, %v515
    %v517 = vpop.f32.mrb[0].mxu0
    %v518 = vpop.f32.mrb[0].mxu0
    %v519 = vadd.f32 0.0, %v518
    %v520 = vpop.f32.mrb[0].mxu0
    %521 = vmatprep.mubr.bf16.mxu0 %v226
    %522 = vmatmul.mubr.bf16.gmra.mrb[0].mxu0 %v225
    %v523 = vpop.f32.mrb[0].mxu0
    %v524 = vadd.f32 0.0, %v523
    %v525 = vpop.f32.mrb[0].mxu0
    %v526 = vpop.f32.mrb[0].mxu0
    %v527 = vadd.f32 0.0, %v526
    %v528 = vpop.f32.mrb[0].mxu0
    %529 = vmatprep.mubr.bf16.mxu0 %v230
    %530 = vmatmul.mubr.bf16.gmra.mrb[0].mxu0 %v229
    %v531 = vpop.f32.mrb[0].mxu0
    %v532 = vadd.f32 0.0, %v531
    %v533 = vpop.f32.mrb[0].mxu0
    %v534 = vpop.f32.mrb[0].mxu0
    %v535 = vadd.f32 0.0, %v534
    %v536 = vpop.f32.mrb[0].mxu0
    %537 = vmatprep.mubr.bf16.mxu0 %v234
    %538 = vmatmul.mubr.bf16.gmra.mrb[0].mxu0 %v233
    %v539 = vpop.f32.mrb[0].mxu0
    %v540 = vadd.f32 0.0, %v539
    %v541 = vpop.f32.mrb[0].mxu0
    %v542 = vpop.f32.mrb[0].mxu0
    %v543 = vadd.f32 0.0, %v542
    %v544 = vpop.f32.mrb[0].mxu0
    %545 = vmatprep.mubr.bf16.mxu0 %v238
    %546 = vmatmul.mubr.bf16.gmra.mrb[0].mxu0 %v237
    %v547 = vpop.f32.mrb[0].mxu0
    %v548 = vadd.f32 0.0, %v547
    %v549 = vpop.f32.mrb[0].mxu0
    %v550 = vpop.f32.mrb[0].mxu0
    %v551 = vadd.f32 0.0, %v550
    %v552 = vpop.f32.mrb[0].mxu0
    %553 = vmatprep.mubr.bf16.mxu0 %v242
    %554 = vmatmul.mubr.bf16.gmra.mrb[0].mxu0 %v241
    %v555 = vpop.f32.mrb[0].mxu0
    %v556 = vadd.f32 0.0, %v555
    %v557 = vpop.f32.mrb[0].mxu0
    %v558 = vpop.f32.mrb[0].mxu0
    %v559 = vadd.f32 0.0, %v558
    %v560 = vpop.f32.mrb[0].mxu0
    %561 = vmatprep.mubr.bf16.mxu0 %v246
    %562 = vmatmul.mubr.bf16.gmra.mrb[0].mxu0 %v245
    %v563 = vpop.f32.mrb[0].mxu0
    %v564 = vadd.f32 0.0, %v563
    %v565 = vpop.f32.mrb[0].mxu0
    %v566 = vpop.f32.mrb[0].mxu0
    %v567 = vadd.f32 0.0, %v566
    %v568 = vpop.f32.mrb[0].mxu0
    %569 = vdwg.mxu0
    %570 = vmatprep.subr.bf16.mxu0 0
    %571 = vmatpush1.bf16.msra.mxu0 %v425
    %572 = vmatprep.subr.bf16.mxu0 0
    %573 = vmatpush1.bf16.msra.mxu0 %v426
    %574 = vmatprep.subr.bf16.mxu0 0
    %575 = vmatpush1.bf16.msra.mxu0 %v427
    %576 = vmatprep.subr.bf16.mxu0 0
    %577 = vmatpush1.bf16.msra.mxu0 %v428
    %578 = vmatprep.subr.bf16.mxu0 0
    %579 = vmatpush1.bf16.msra.mxu0 %v429
    %580 = vmatprep.subr.bf16.mxu0 0
    %581 = vmatpush1.bf16.msra.mxu0 %v430
    %582 = vmatprep.subr.bf16.mxu0 0
    %583 = vmatpush1.bf16.msra.mxu0 %v431
    %584 = vmatprep.subr.bf16.mxu0 0
    %585 = vmatpush1.bf16.msra.mxu0 %v432
    %586 = vmatprep.subr.bf16.mxu0 0
    %587 = vmatpush1.bf16.msra.mxu0 %v433
    %588 = vmatprep.subr.bf16.mxu0 0
    %589 = vmatpush1.bf16.msra.mxu0 %v434
    %590 = vmatprep.subr.bf16.mxu0 0
    %591 = vmatpush1.bf16.msra.mxu0 %v435
    %592 = vmatprep.subr.bf16.mxu0 0
    %593 = vmatpush1.bf16.msra.mxu0 %v436
    %594 = vmatprep.subr.bf16.mxu0 0
    %595 = vmatpush1.bf16.msra.mxu0 %v437
    %596 = vmatprep.subr.bf16.mxu0 0
    %597 = vmatpush1.bf16.msra.mxu0 %v438
    %598 = vmatprep.subr.bf16.mxu0 0
    %599 = vmatpush1.bf16.msra.mxu0 %v439
    %600 = vmatprep.subr.bf16.mxu0 0
    %601 = vmatpush1.bf16.msra.mxu0 %v440
    %602 = vmatprep.mubr.bf16.mxu0 %v220
    %603 = vmatmul.mubr.bf16.gmra.mrb[0].mxu0 %v219
    %v604 = vpop.f32.mrb[0].mxu0
    %v605 = vadd.f32 %v508, %v604
    %v606 = vpop.f32.mrb[0].mxu0
    %v607 = vpop.f32.mrb[0].mxu0
    %v608 = vadd.f32 %v511, %v607
    %v609 = vpop.f32.mrb[0].mxu0
    %610 = vmatprep.mubr.bf16.mxu0 %v224
    %611 = vmatmul.mubr.bf16.gmra.mrb[0].mxu0 %v223
    %v612 = vpop.f32.mrb[0].mxu0
    %v613 = vadd.f32 %v516, %v612
    %v614 = vpop.f32.mrb[0].mxu0
    %v615 = vpop.f32.mrb[0].mxu0
    %v616 = vadd.f32 %v519, %v615
    %v617 = vpop.f32.mrb[0].mxu0
    %618 = vmatprep.mubr.bf16.mxu0 %v228
    %619 = vmatmul.mubr.bf16.gmra.mrb[0].mxu0 %v227
    %v620 = vpop.f32.mrb[0].mxu0
    %v621 = vadd.f32 %v524, %v620
    %v622 = vpop.f32.mrb[0].mxu0
    %v623 = vpop.f32.mrb[0].mxu0
    %v624 = vadd.f32 %v527, %v623
    %v625 = vpop.f32.mrb[0].mxu0
    %626 = vmatprep.mubr.bf16.mxu0 %v232
    %627 = vmatmul.mubr.bf16.gmra.mrb[0].mxu0 %v231
    %v628 = vpop.f32.mrb[0].mxu0
    %v629 = vadd.f32 %v532, %v628
    %v630 = vpop.f32.mrb[0].mxu0
    %v631 = vpop.f32.mrb[0].mxu0
    %v632 = vadd.f32 %v535, %v631
    %v633 = vpop.f32.mrb[0].mxu0
    %634 = vmatprep.mubr.bf16.mxu0 %v236
    %635 = vmatmul.mubr.bf16.gmra.mrb[0].mxu0 %v235
    %v636 = vpop.f32.mrb[0].mxu0
    %v637 = vadd.f32 %v540, %v636
    %v638 = vpop.f32.mrb[0].mxu0
    %v639 = vpop.f32.mrb[0].mxu0
    %v640 = vadd.f32 %v543, %v639
    %v641 = vpop.f32.mrb[0].mxu0
    %642 = vmatprep.mubr.bf16.mxu0 %v240
    %643 = vmatmul.mubr.bf16.gmra.mrb[0].mxu0 %v239
    %v644 = vpop.f32.mrb[0].mxu0
    %v645 = vadd.f32 %v548, %v644
    %v646 = vpop.f32.mrb[0].mxu0
    %v647 = vpop.f32.mrb[0].mxu0
    %v648 = vadd.f32 %v551, %v647
    %v649 = vpop.f32.mrb[0].mxu0
    %650 = vmatprep.mubr.bf16.mxu0 %v244
    %651 = vmatmul.mubr.bf16.gmra.mrb[0].mxu0 %v243
    %v652 = vpop.f32.mrb[0].mxu0
    %v653 = vadd.f32 %v556, %v652
    %v654 = vpop.f32.mrb[0].mxu0
    %v655 = vpop.f32.mrb[0].mxu0
    %v656 = vadd.f32 %v559, %v655
    %v657 = vpop.f32.mrb[0].mxu0
    %658 = vmatprep.mubr.bf16.mxu0 %v248
    %659 = vmatmul.mubr.bf16.gmra.mrb[0].mxu0 %v247
    %v660 = vpop.f32.mrb[0].mxu0
    %v661 = vadd.f32 %v564, %v660
    %v662 = vpop.f32.mrb[0].mxu0
    %v663 = vpop.f32.mrb[0].mxu0
    %v664 = vadd.f32 %v567, %v663
    %v665 = vpop.f32.mrb[0].mxu0
    %666 = vdwg.mxu0
    %vm667 = vcmask 130048
    %v668 = vsel %vm667, %v605, 0.0
    %v669 = vsel %vm667, %v608, 0.0
    %v670 = vadd.f32 %v668, %v669
    %v671 = vsel %vm667, %v613, 0.0
    %v672 = vadd.f32 %v670, %v671
    %v673 = vsel %vm667, %v616, 0.0
    %v674 = vadd.f32 %v672, %v673
    %v675 = vsel %vm667, %v621, 0.0
    %v676 = vadd.f32 %v674, %v675
    %v677 = vsel %vm667, %v624, 0.0
    %v678 = vadd.f32 %v676, %v677
    %v679 = vsel %vm667, %v629, 0.0
    %v680 = vadd.f32 %v678, %v679
    %v681 = vsel %vm667, %v632, 0.0
    %v682 = vadd.f32 %v680, %v681
    %v683 = vsel %vm667, %v637, 0.0
    %v684 = vadd.f32 %v682, %v683
    %v685 = vsel %vm667, %v640, 0.0
    %v686 = vadd.f32 %v684, %v685
    %v687 = vsel %vm667, %v645, 0.0
    %v688 = vadd.f32 %v686, %v687
    %v689 = vsel %vm667, %v648, 0.0
    %v690 = vadd.f32 %v688, %v689
    %v691 = vsel %vm667, %v653, 0.0
    %v692 = vadd.f32 %v690, %v691
    %v693 = vsel %vm667, %v656, 0.0
    %v694 = vadd.f32 %v692, %v693
    %v695 = vsel %vm667, %v661, 0.0
    %v696 = vadd.f32 %v694, %v695
    %v697 = vsel %vm667, %v664, 0.0
    %v698 = vadd.f32 %v696, %v697
    %v699 = vrot.slane %v698, 4
    %v700 = vadd.f32 %v698, %v699
    %v701 = vrot.slane %v700, 2
    %v702 = vadd.f32 %v700, %v701
    %v703 = vrot.slane %v702, 1
    %v704 = vadd.f32 %v702, %v703
    %v705 = vrcp.pop 128.0
    %v706 = vmul.f32 %v704, %v705
    %v707 = vsub.f32 %v605, %v706
    %v708 = vsub.f32 %v608, %v706
    %v709 = vsub.f32 %v613, %v706
    %v710 = vsub.f32 %v616, %v706
    %v711 = vsub.f32 %v621, %v706
    %v712 = vsub.f32 %v624, %v706
    %v713 = vsub.f32 %v629, %v706
    %v714 = vsub.f32 %v632, %v706
    %v715 = vsub.f32 %v637, %v706
    %v716 = vsub.f32 %v640, %v706
    %v717 = vsub.f32 %v645, %v706
    %v718 = vsub.f32 %v648, %v706
    %v719 = vsub.f32 %v653, %v706
    %v720 = vsub.f32 %v656, %v706
    %v721 = vsub.f32 %v661, %v706
    %v722 = vsub.f32 %v664, %v706
    %v723 = vmul.f32 %v707, %v707
    %v724 = vmul.f32 %v708, %v708
    %v725 = vmul.f32 %v709, %v709
    %v726 = vmul.f32 %v710, %v710
    %v727 = vmul.f32 %v711, %v711
    %v728 = vmul.f32 %v712, %v712
    %v729 = vmul.f32 %v713, %v713
    %v730 = vmul.f32 %v714, %v714
    %v731 = vmul.f32 %v715, %v715
    %v732 = vmul.f32 %v716, %v716
    %v733 = vmul.f32 %v717, %v717
    %v734 = vmul.f32 %v718, %v718
    %v735 = vmul.f32 %v719, %v719
    %v736 = vmul.f32 %v720, %v720
    %v737 = vmul.f32 %v721, %v721
    %v738 = vmul.f32 %v722, %v722
    %v739 = vsel %vm667, %v723, 0.0
    %v740 = vsel %vm667, %v724, 0.0
    %v741 = vadd.f32 %v739, %v740
    %v742 = vsel %vm667, %v725, 0.0
    %v743 = vadd.f32 %v741, %v742
    %v744 = vsel %vm667, %v726, 0.0
    %v745 = vadd.f32 %v743, %v744
    %v746 = vsel %vm667, %v727, 0.0
    %v747 = vadd.f32 %v745, %v746
    %v748 = vsel %vm667, %v728, 0.0
    %v749 = vadd.f32 %v747, %v748
    %v750 = vsel %vm667, %v729, 0.0
    %v751 = vadd.f32 %v749, %v750
    %v752 = vsel %vm667, %v730, 0.0
    %v753 = vadd.f32 %v751, %v752
    %v754 = vsel %vm667, %v731, 0.0
    %v755 = vadd.f32 %v753, %v754
    %v756 = vsel %vm667, %v732, 0.0
    %v757 = vadd.f32 %v755, %v756
    %v758 = vsel %vm667, %v733, 0.0
    %v759 = vadd.f32 %v757, %v758
    %v760 = vsel %vm667, %v734, 0.0
    %v761 = vadd.f32 %v759, %v760
    %v762 = vsel %vm667, %v735, 0.0
    %v763 = vadd.f32 %v761, %v762
    %v764 = vsel %vm667, %v736, 0.0
    %v765 = vadd.f32 %v763, %v764
    %v766 = vsel %vm667, %v737, 0.0
    %v767 = vadd.f32 %v765, %v766
    %v768 = vsel %vm667, %v738, 0.0
    %v769 = vadd.f32 %v767, %v768
    %v770 = vrot.slane %v769, 4
    %v771 = vadd.f32 %v769, %v770
    %v772 = vrot.slane %v771, 2
    %v773 = vadd.f32 %v771, %v772
    %v774 = vrot.slane %v773, 1
    %v775 = vadd.f32 %v773, %v774
    %v776 = vmul.f32 %v775, %v705
    %v777 = vadd.f32 %v776, 1e-05
    %v778 = vrsqrt.pop %v777
    %v779 = vmul.f32 %v707, %v778
    %v780 = vmul.f32 %v708, %v778
    %v781 = vmul.f32 %v709, %v778
    %v782 = vmul.f32 %v710, %v778
    %v783 = vmul.f32 %v711, %v778
    %v784 = vmul.f32 %v712, %v778
    %v785 = vmul.f32 %v713, %v778
    %v786 = vmul.f32 %v714, %v778
    %v787 = vmul.f32 %v715, %v778
    %v788 = vmul.f32 %v716, %v778
    %v789 = vmul.f32 %v717, %v778
    %v790 = vmul.f32 %v718, %v778
    %v791 = vmul.f32 %v719, %v778
    %v792 = vmul.f32 %v720, %v778
    %v793 = vmul.f32 %v721, %v778
    %v794 = vmul.f32 %v722, %v778
    %v795 = vld [vmem:[%s2] sm:$0x1]
    %v797 = vlaneseq
    %v798 = vshrl.u32 %v797, 7
    %v799 = vsub.s32 0, %v798
    %v800 = vrot.slane %v795, %v799
    %v802 = vmul.f32 %v779, %v800
    %v803 = vmul.f32 %v780, %v800
    %v804 = vmul.f32 %v781, %v800
    %v805 = vmul.f32 %v782, %v800
    %v806 = vmul.f32 %v783, %v800
    %v807 = vmul.f32 %v784, %v800
    %v808 = vmul.f32 %v785, %v800
    %v809 = vmul.f32 %v786, %v800
    %v810 = vmul.f32 %v787, %v800
    %v811 = vmul.f32 %v788, %v800
    %v812 = vmul.f32 %v789, %v800
    %v813 = vmul.f32 %v790, %v800
    %v814 = vmul.f32 %v791, %v800
    %v815 = vmul.f32 %v792, %v800
    %v816 = vmul.f32 %v793, %v800
    %v817 = vmul.f32 %v794, %v800
    %v818 = vld [vmem:[%s3] sm:$0x1]
    %v820 = vlaneseq
    %v821 = vshrl.u32 %v820, 7
    %v822 = vsub.s32 0, %v821
    %v823 = vrot.slane %v818, %v822
    %v825 = vadd.f32 %v802, %v823
    %v826 = vadd.f32 %v803, %v823
    %v827 = vadd.f32 %v804, %v823
    %v828 = vadd.f32 %v805, %v823
    %v829 = vadd.f32 %v806, %v823
    %v830 = vadd.f32 %v807, %v823
    %v831 = vadd.f32 %v808, %v823
    %v832 = vadd.f32 %v809, %v823
    %v833 = vadd.f32 %v810, %v823
    %v834 = vadd.f32 %v811, %v823
    %v835 = vadd.f32 %v812, %v823
    %v836 = vadd.f32 %v813, %v823
    %v837 = vadd.f32 %v814, %v823
    %v838 = vadd.f32 %v815, %v823
    %v839 = vadd.f32 %v816, %v823
    %v840 = vadd.f32 %v817, %v823
    %vm841 = vcmp.ge.f32.partialorder %v825, 0.0
    %vm842 = vcmp.ge.f32.partialorder %v826, 0.0
    %vm843 = vcmp.ge.f32.partialorder %v827, 0.0
    %vm844 = vcmp.ge.f32.partialorder %v828, 0.0
    %vm845 = vcmp.ge.f32.partialorder %v829, 0.0
    %vm846 = vcmp.ge.f32.partialorder %v830, 0.0
    %vm847 = vcmp.ge.f32.partialorder %v831, 0.0
    %vm848 = vcmp.ge.f32.partialorder %v832, 0.0
    %vm849 = vcmp.ge.f32.partialorder %v833, 0.0
    %vm850 = vcmp.ge.f32.partialorder %v834, 0.0
    %vm851 = vcmp.ge.f32.partialorder %v835, 0.0
    %vm852 = vcmp.ge.f32.partialorder %v836, 0.0
    %vm853 = vcmp.ge.f32.partialorder %v837, 0.0
    %vm854 = vcmp.ge.f32.partialorder %v838, 0.0
    %vm855 = vcmp.ge.f32.partialorder %v839, 0.0
    %vm856 = vcmp.ge.f32.partialorder %v840, 0.0
    %v857 = vmul.f32 %v825, 0.2
    %v858 = vmul.f32 %v826, 0.2
    %v859 = vmul.f32 %v827, 0.2
    %v860 = vmul.f32 %v828, 0.2
    %v861 = vmul.f32 %v829, 0.2
    %v862 = vmul.f32 %v830, 0.2
    %v863 = vmul.f32 %v831, 0.2
    %v864 = vmul.f32 %v832, 0.2
    %v865 = vmul.f32 %v833, 0.2
    %v866 = vmul.f32 %v834, 0.2
    %v867 = vmul.f32 %v835, 0.2
    %v868 = vmul.f32 %v836, 0.2
    %v869 = vmul.f32 %v837, 0.2
    %v870 = vmul.f32 %v838, 0.2
    %v871 = vmul.f32 %v839, 0.2
    %v872 = vmul.f32 %v840, 0.2
    %v873 = vsel %vm841, %v825, %v857
    %v874 = vsel %vm842, %v826, %v858
    %v875 = vsel %vm843, %v827, %v859
    %v876 = vsel %vm844, %v828, %v860
    %v877 = vsel %vm845, %v829, %v861
    %v878 = vsel %vm846, %v830, %v862
    %v879 = vsel %vm847, %v831, %v863
    %v880 = vsel %vm848, %v832, %v864
    %v881 = vsel %vm849, %v833, %v865
    %v882 = vsel %vm850, %v834, %v866
    %v883 = vsel %vm851, %v835, %v867
    %v884 = vsel %vm852, %v836, %v868
    %v885 = vsel %vm853, %v837, %v869
    %v886 = vsel %vm854, %v838, %v870
    %v887 = vsel %vm855, %v839, %v871
    %v888 = vsel %vm856, %v840, %v872
    %v889 = vld [vmem:[%s4] sm:$0xff]
    %v890 = vld [vmem:[%s4 + $0x8] sm:$0xff]
    %v891 = vld [vmem:[%s4 + $0x10] sm:$0xff]
    %v892 = vld [vmem:[%s4 + $0x18] sm:$0xff]
    %v893 = vld [vmem:[%s4 + $0x20] sm:$0xff]
    %v894 = vld [vmem:[%s4 + $0x28] sm:$0xff]
    %v895 = vld [vmem:[%s4 + $0x30] sm:$0xff]
    %v896 = vld [vmem:[%s4 + $0x38] sm:$0xff]
    %v897 = vld [vmem:[%s4 + $0x40] sm:$0xff]
    %v898 = vld [vmem:[%s4 + $0x48] sm:$0xff]
    %v899 = vld [vmem:[%s4 + $0x50] sm:$0xff]
    %v900 = vld [vmem:[%s4 + $0x58] sm:$0xff]
    %v901 = vld [vmem:[%s4 + $0x60] sm:$0xff]
    %v902 = vld [vmem:[%s4 + $0x68] sm:$0xff]
    %v903 = vld [vmem:[%s4 + $0x70] sm:$0xff]
    %v904 = vld [vmem:[%s4 + $0x78] sm:$0xff]
    %v905 = vmul.f32 %v873, %v889
    %v906 = vmul.f32 %v874, %v890
    %v907 = vmul.f32 %v875, %v891
    %v908 = vmul.f32 %v876, %v892
    %v909 = vmul.f32 %v877, %v893
    %v910 = vmul.f32 %v878, %v894
    %v911 = vmul.f32 %v879, %v895
    %v912 = vmul.f32 %v880, %v896
    %v913 = vmul.f32 %v881, %v897
    %v914 = vmul.f32 %v882, %v898
    %v915 = vmul.f32 %v883, %v899
    %v916 = vmul.f32 %v884, %v900
    %v917 = vmul.f32 %v885, %v901
    %v918 = vmul.f32 %v886, %v902
    %v919 = vmul.f32 %v887, %v903
    %v920 = vmul.f32 %v888, %v904
    %v921 = vsel %vm667, %v905, 0.0
    %922 = vadd.xlane.f32.xlu0 %v921
    %v923 = vpop.xlane.xlu0 %922
    %v924 = vsel %vm667, %v906, 0.0
    %925 = vadd.xlane.f32.xlu0 %v924
    %v926 = vpop.xlane.xlu0 %925
    %v927 = vsel %vm667, %v907, 0.0
    %928 = vadd.xlane.f32.xlu0 %v927
    %v929 = vpop.xlane.xlu0 %928
    %v930 = vsel %vm667, %v908, 0.0
    %931 = vadd.xlane.f32.xlu0 %v930
    %v932 = vpop.xlane.xlu0 %931
    %v933 = vsel %vm667, %v909, 0.0
    %934 = vadd.xlane.f32.xlu0 %v933
    %v935 = vpop.xlane.xlu0 %934
    %v936 = vsel %vm667, %v910, 0.0
    %937 = vadd.xlane.f32.xlu0 %v936
    %v938 = vpop.xlane.xlu0 %937
    %v939 = vsel %vm667, %v911, 0.0
    %940 = vadd.xlane.f32.xlu0 %v939
    %v941 = vpop.xlane.xlu0 %940
    %v942 = vsel %vm667, %v912, 0.0
    %943 = vadd.xlane.f32.xlu0 %v942
    %v944 = vpop.xlane.xlu0 %943
    %v945 = vsel %vm667, %v913, 0.0
    %946 = vadd.xlane.f32.xlu0 %v945
    %v947 = vpop.xlane.xlu0 %946
    %v948 = vsel %vm667, %v914, 0.0
    %949 = vadd.xlane.f32.xlu0 %v948
    %v950 = vpop.xlane.xlu0 %949
    %v951 = vsel %vm667, %v915, 0.0
    %952 = vadd.xlane.f32.xlu0 %v951
    %v953 = vpop.xlane.xlu0 %952
    %v954 = vsel %vm667, %v916, 0.0
    %955 = vadd.xlane.f32.xlu0 %v954
    %v956 = vpop.xlane.xlu0 %955
    %v957 = vsel %vm667, %v917, 0.0
    %958 = vadd.xlane.f32.xlu0 %v957
    %v959 = vpop.xlane.xlu0 %958
    %v960 = vsel %vm667, %v918, 0.0
    %961 = vadd.xlane.f32.xlu0 %v960
    %v962 = vpop.xlane.xlu0 %961
    %v963 = vsel %vm667, %v919, 0.0
    %964 = vadd.xlane.f32.xlu0 %v963
    %v965 = vpop.xlane.xlu0 %964
    %v966 = vsel %vm667, %v920, 0.0
    %967 = vadd.xlane.f32.xlu0 %v966
    %v968 = vpop.xlane.xlu0 %967
    %v969 = vld [vmem:[%s5] sm:$0xff]
    %v970 = vld [vmem:[%s5 + $0x8] sm:$0xff]
    %v971 = vld [vmem:[%s5 + $0x10] sm:$0xff]
    %v972 = vld [vmem:[%s5 + $0x18] sm:$0xff]
    %v973 = vld [vmem:[%s5 + $0x20] sm:$0xff]
    %v974 = vld [vmem:[%s5 + $0x28] sm:$0xff]
    %v975 = vld [vmem:[%s5 + $0x30] sm:$0xff]
    %v976 = vld [vmem:[%s5 + $0x38] sm:$0xff]
    %v977 = vld [vmem:[%s5 + $0x40] sm:$0xff]
    %v978 = vld [vmem:[%s5 + $0x48] sm:$0xff]
    %v979 = vld [vmem:[%s5 + $0x50] sm:$0xff]
    %v980 = vld [vmem:[%s5 + $0x58] sm:$0xff]
    %v981 = vld [vmem:[%s5 + $0x60] sm:$0xff]
    %v982 = vld [vmem:[%s5 + $0x68] sm:$0xff]
    %v983 = vld [vmem:[%s5 + $0x70] sm:$0xff]
    %v984 = vld [vmem:[%s5 + $0x78] sm:$0xff]
    %v985 = vmul.f32 %v923, %v969
    %v986 = vmul.f32 %v926, %v970
    %v987 = vmul.f32 %v929, %v971
    %v988 = vmul.f32 %v932, %v972
    %v989 = vmul.f32 %v935, %v973
    %v990 = vmul.f32 %v938, %v974
    %v991 = vmul.f32 %v941, %v975
    %v992 = vmul.f32 %v944, %v976
    %v993 = vmul.f32 %v947, %v977
    %v994 = vmul.f32 %v950, %v978
    %v995 = vmul.f32 %v953, %v979
    %v996 = vmul.f32 %v956, %v980
    %v997 = vmul.f32 %v959, %v981
    %v998 = vmul.f32 %v962, %v982
    %v999 = vmul.f32 %v965, %v983
    %v1000 = vmul.f32 %v968, %v984
    %vm1001 = vcmask 15360
    %v1002 = vsel %vm1001, %v985, 0.0
    %v1003 = vsel %vm1001, %v986, 0.0
    %v1004 = vadd.f32 %v1002, %v1003
    %v1005 = vsel %vm1001, %v987, 0.0
    %v1006 = vadd.f32 %v1004, %v1005
    %v1007 = vsel %vm1001, %v988, 0.0
    %v1008 = vadd.f32 %v1006, %v1007
    %v1009 = vsel %vm1001, %v989, 0.0
    %v1010 = vadd.f32 %v1008, %v1009
    %v1011 = vsel %vm1001, %v990, 0.0
    %v1012 = vadd.f32 %v1010, %v1011
    %v1013 = vsel %vm1001, %v991, 0.0
    %v1014 = vadd.f32 %v1012, %v1013
    %v1015 = vsel %vm1001, %v992, 0.0
    %v1016 = vadd.f32 %v1014, %v1015
    %v1017 = vsel %vm1001, %v993, 0.0
    %v1018 = vadd.f32 %v1016, %v1017
    %v1019 = vsel %vm1001, %v994, 0.0
    %v1020 = vadd.f32 %v1018, %v1019
    %v1021 = vsel %vm1001, %v995, 0.0
    %v1022 = vadd.f32 %v1020, %v1021
    %v1023 = vsel %vm1001, %v996, 0.0
    %v1024 = vadd.f32 %v1022, %v1023
    %v1025 = vsel %vm1001, %v997, 0.0
    %v1026 = vadd.f32 %v1024, %v1025
    %v1027 = vsel %vm1001, %v998, 0.0
    %v1028 = vadd.f32 %v1026, %v1027
    %v1029 = vsel %vm1001, %v999, 0.0
    %v1030 = vadd.f32 %v1028, %v1029
    %v1031 = vsel %vm1001, %v1000, 0.0
    %v1032 = vadd.f32 %v1030, %v1031
    %v1033 = vrot.slane %v1032, 4
    %v1034 = vadd.f32 %v1032, %v1033
    %v1035 = vrot.slane %v1034, 2
    %v1036 = vadd.f32 %v1034, %v1035
    %v1037 = vrot.slane %v1036, 1
    %v1038 = vadd.f32 %v1036, %v1037
    %v1039 = vsub.f32 0.0, %v1038
    %v1040 = vmul.f32 %v1039, 1.442695
    %v1041 = vpow.pop %v1040
    %v1042 = vadd.f32 %v1041, 1.0
    %v1043 = vrcp.pop %v1042
    %v1044 = vmul.f32 1.0, %v1043
    %vm1045 = vcmask 8192
    %1046 = vst.msk [vmem:[#allocation2] sm:$0x1] %vm1045, %v1044
    // Predicated region
    $region26: #{discriminator_forward.5} parent=1 // pred_check
      _
    $region27: #{discriminator_forward.5} parent=1 // pred_check_branch
      %1048 = sbr.rel (0) target = $region29
    $region28: #{discriminator_forward.5} parent=1 // pred_region
      %s1050 = ssub.s32 16, 16
      %1051 = vsyncadd [#allocation3], %s1050
      %s1053 = sshll.u32 [#allocation2], 4
      %s1054 = int_to_ptr.vmem [resolvable:$true] %s1053
      %1056 = dma.vmem_to_hbm [thread:$0]  %s1054, 16, %s6, [#allocation3]
    $region29: #{discriminator_forward.5} parent=1 // pred_fallthru
      _
    // Predicated region
    $region30: #{discriminator_forward.5} parent=1 // pred_check
      _
    $region31: #{discriminator_forward.5} parent=1 // pred_check_branch
      %1058 = sbr.rel (0) target = $region33
    $region32: #{discriminator_forward.5} parent=1 // pred_region
      %1059 = dma.done [#allocation3], 16
    $region33: #{discriminator_forward.5} parent=1 // pred_fallthru
      _
    %1060 = vsyncpa [#allocation3], 1

</llo_original>
